<compile_context>
chip_gen: v6e
topology: v6e:2x2x1
jax: 0.10.0
libtpu: 0.0.40
codegen_flags: <defaults>
</compile_context>

<pallas_src>
import functools

import jax
import jax.numpy as jnp
import numpy as np
from jax import lax
from jax.experimental import pallas as pl
from jax.experimental.pallas import tpu as pltpu


_TR = 1024  # max rows per head-kernel tile (multiple of 8)


def _round_up(x, m):
    return (x + m - 1) // m * m


def _row_tiling(HW):
    """Rows per head tile.  Either the whole image (block == full dim, so the
    (8,128) rule is satisfied regardless of HW) or an exact multiple-of-8 tile."""
    if HW <= _TR:
        return HW, 1
    if HW % _TR == 0:
        return _TR, HW // _TR
    return HW, 1


def _silu(z):
    return z * jax.nn.sigmoid(z)


# ----------------------------------------------------------------------------
# Pallas kernels
# ----------------------------------------------------------------------------
def csp_head_kernel(x_ref, w1_ref, b1_ref, wm1_ref, bm1_ref, w2_ref, t2_ref,
                    a_ref, t_ref, y2_ref):
    """One read of x -> a (cv1), t (m.cv1 on a), y2 (cv2 with concat-BN folded)."""
    x = x_ref[0]
    a = _silu(jnp.dot(x, w1_ref[...], preferred_element_type=jnp.float32) + b1_ref[...])
    a_ref[0] = a.astype(a_ref.dtype)
    t = _silu(jnp.dot(a, wm1_ref[...], preferred_element_type=jnp.float32) + bm1_ref[...])
    t_ref[0] = t.astype(t_ref.dtype)
    y2 = jnp.dot(x, w2_ref[...], preferred_element_type=jnp.float32) + t2_ref[...]
    y2_ref[0] = y2.astype(y2_ref.dtype)


def csp_tail_kernel(t_ref, a_ref, y2_ref, w9_ref, b2_ref, w3_ref, t3_ref,
                    w4a_ref, w4b_ref, b4_ref, o_ref, pad_scr,
                    *, H, W, Pt, e_lambda):
    """Per-image fused tail.

    3x3 m.cv2 as 9 shifted matmuls over a flat-row zero-padded scratch
    (top halo Pt >= W+1 rows, bottom halo W+1 rows), + folded-BN bias + SiLU
    + SiMAM + residual with a, then cv3/concat-BN/LeakyReLU/cv4/SiLU.

    The halos make every height-boundary tap read zeros automatically; only the
    width-boundary taps (kw=0 / kw=2) need a per-row mask on the contribution.
    """
    HW = H * W
    Cout = w9_ref.shape[2]

    # In-kernel zero padding: zero the scratch, drop the image in as one
    # contiguous (sublane-aligned: Pt % 8 == 0) copy.
    pad_scr[...] = jnp.zeros_like(pad_scr)
    pad_scr[Pt:Pt + HW, :] = t_ref[0].astype(pad_scr.dtype)

    # Column index of every output row (for width-boundary masks).
    w_idx = jax.lax.broadcasted_iota(jnp.int32, (HW, 1), 0) % W
    left_ok = w_idx >= 1            # kw == 0 taps need w-1 >= 0
    right_ok = w_idx <= W - 2       # kw == 2 taps need w+1 <  W

    # TODO(synk): group the 3 kw taps per kh into one K=3*Cin matmul when the
    # tail is MXU-issue-bound (verify bundle first; mem-bound at these shapes).
    acc = jnp.zeros((HW, Cout), jnp.float32)
    for kh in range(3):
        for kw in range(3):
            s = (kh - 1) * W + (kw - 1)
            contrib = jnp.dot(pad_scr[Pt + s:Pt + s + HW, :],
                              w9_ref[kh * 3 + kw],
                              preferred_element_type=jnp.float32)
            if kw == 0:
                contrib = jnp.where(left_ok, contrib, 0.0)
            elif kw == 2:
                contrib = jnp.where(right_ok, contrib, 0.0)
            acc = acc + contrib
    v = _silu(acc + b2_ref[...])                         # (HW, Cout)

    # SiMAM attention over the whole resident image (per channel, exact).
    mu = jnp.sum(v, axis=0, keepdims=True) * (1.0 / HW)
    d = (v - mu) ** 2
    ssum = jnp.sum(d, axis=0, keepdims=True)             # (1, Cout)
    inv = pl.reciprocal(4.0 * (ssum * (1.0 / (HW - 1)) + e_lambda), approx=False)
    att = v * jax.nn.sigmoid(d * inv + 0.5)
    m_out = a_ref[0].astype(jnp.float32) + att           # Bottleneck shortcut

    # cv3 + concat-BN (folded) + LeakyReLU(0.1); y2 half already BN-folded.
    z1 = jnp.dot(m_out, w3_ref[...], preferred_element_type=jnp.float32) + t3_ref[...]
    z1 = jnp.maximum(z1, 0.1 * z1)
    z2 = y2_ref[0].astype(jnp.float32)
    z2 = jnp.maximum(z2, 0.1 * z2)
    out = (jnp.dot(z1, w4a_ref[...], preferred_element_type=jnp.float32)
           + jnp.dot(z2, w4b_ref[...], preferred_element_type=jnp.float32)
           + b4_ref[...])
    o_ref[0] = _silu(out).astype(o_ref.dtype)


# ----------------------------------------------------------------------------
# pallas_call wrappers
# ----------------------------------------------------------------------------
def csp_head(x3d, p):
    """x3d: (B, HW, C1) -> a, t, y2 each (B, HW, c_)."""
    B, HW, C1 = x3d.shape
    c_ = p["cv1_w"].shape[1]
    tr, nrt = _row_tiling(HW)
    dt = x3d.dtype
    full = lambda b, i: (0, 0)
    tile = lambda b, i: (b, i, 0)
    a, t, y2 = pl.pallas_call(
        csp_head_kernel,
        out_shape=tuple(jax.ShapeDtypeStruct((B, HW, c_), dt) for _ in range(3)),
        grid=(B, nrt),
        in_specs=[
            pl.BlockSpec((1, tr, C1), tile),
            pl.BlockSpec((C1, c_), full),
            pl.BlockSpec((1, c_), full),
            pl.BlockSpec((c_, c_), full),
            pl.BlockSpec((1, c_), full),
            pl.BlockSpec((C1, c_), full),
            pl.BlockSpec((1, c_), full),
        ],
        out_specs=tuple(pl.BlockSpec((1, tr, c_), tile) for _ in range(3)),
        compiler_params=pltpu.CompilerParams(
            dimension_semantics=("parallel", "parallel")),
    )(x3d, p["cv1_w"], p["cv1_b"].reshape(1, c_),
      p["m_cv1_w"], p["m_cv1_b"].reshape(1, c_),
      p["cv2_w_bn"], p["cv2_t_bn"].reshape(1, c_))
    return a, t, y2


def csp_tail(t3d, a3d, y23d, p, H, W, e_lambda=1e-4):
    """Per-image fused tail: (B, HW, c_) x3 -> final (B, HW, c2)."""
    B, HW, c_ = t3d.shape
    c2 = p["cv4_b"].shape[0]
    Pt = _round_up(W + 1, 8)        # top halo (sublane-aligned)
    Pb = W + 1                      # bottom halo
    kern = functools.partial(csp_tail_kernel, H=H, W=W, Pt=Pt, e_lambda=e_lambda)
    img = lambda b: (b, 0, 0)
    full2 = lambda b: (0, 0)
    out = pl.pallas_call(
        kern,
        out_shape=jax.ShapeDtypeStruct((B, HW, c2), t3d.dtype),
        grid=(B,),
        in_specs=[
            pl.BlockSpec((1, HW, c_), img),       # t   (conv input)
            pl.BlockSpec((1, HW, c_), img),       # a   (shortcut)
            pl.BlockSpec((1, HW, c_), img),       # y2  (other CSP branch)
            pl.BlockSpec((9, c_, c_), lambda b: (0, 0, 0)),   # 3x3 weights
            pl.BlockSpec((1, c_), full2),         # m.cv2 folded-BN bias
            pl.BlockSpec((c_, c_), full2),        # cv3 (concat-BN scale folded)
            pl.BlockSpec((1, c_), full2),         # concat-BN bias (y1 half)
            pl.BlockSpec((c_, c2), full2),        # cv4 top half
            pl.BlockSpec((c_, c2), full2),        # cv4 bottom half
            pl.BlockSpec((1, c2), full2),         # cv4 folded-BN bias
        ],
        out_specs=pl.BlockSpec((1, HW, c2), img),
        scratch_shapes=[pltpu.VMEM((Pt + HW + Pb, c_), jnp.float32)],
        compiler_params=pltpu.CompilerParams(dimension_semantics=("parallel",)),
    )(t3d, a3d, y23d, p["m_cv2_w9"], p["m_cv2_b"].reshape(1, c_),
      p["cv3_w_bn"], p["cv3_t_bn"].reshape(1, c_),
      p["cv4_w_top"], p["cv4_w_bot"], p["cv4_b"].reshape(1, c2))
    return out


# ----------------------------------------------------------------------------
# Parameter construction (deterministic, eval-mode BN folded ahead of time)
# ----------------------------------------------------------------------------
def _fold_bn(w_hwio, gamma, beta, mean, var, eps=1e-5):
    scale = gamma / jnp.sqrt(var + eps)
    return w_hwio * scale[None, None, None, :], beta - mean * scale


def _bn_params(key, c):
    k1, k2, k3, k4 = jax.random.split(key, 4)
    gamma = 1.0 + 0.1 * jax.random.normal(k1, (c,), jnp.float32)
    beta = 0.1 * jax.random.normal(k2, (c,), jnp.float32)
    mean = 0.1 * jax.random.normal(k3, (c,), jnp.float32)
    var = 1.0 + 0.1 * jax.random.uniform(k4, (c,), jnp.float32)
    return gamma, beta, mean, var


def make_conv_bn(key, cin, cout, k):
    kw_, kbn = jax.random.split(key)
    w = jax.random.normal(kw_, (k, k, cin, cout), jnp.float32) / np.sqrt(cin * k * k)
    return _fold_bn(w, *_bn_params(kbn, cout))


def init_csp_params(key, c1, c2, e=0.5, eps=1e-5):
    c_ = int(c2 * e)
    ks = jax.random.split(key, 7)
    cv1_w, cv1_b = make_conv_bn(ks[0], c1, c_, 1)                       # Conv = conv+BN+SiLU
    cv2_w = jax.random.normal(ks[1], (c1, c_), jnp.float32) / np.sqrt(c1)   # plain 1x1 conv
    cv3_w = jax.random.normal(ks[2], (c_, c_), jnp.float32) / np.sqrt(c_)   # plain 1x1 conv
    cv4_w, cv4_b = make_conv_bn(ks[3], 2 * c_, c2, 1)                   # Conv = conv+BN+SiLU
    m1_w, m1_b = make_conv_bn(ks[4], c_, c_, 1)                         # Bottleneck cv1 (e=1.0)
    m2_w, m2_b = make_conv_bn(ks[5], c_, c_, 3)                         # Bottleneck cv2 (3x3)
    gamma, beta, mean, var = _bn_params(ks[6], 2 * c_)                  # standalone BN on concat
    bn_s = gamma / jnp.sqrt(var + eps)
    bn_t = beta - mean * bn_s
    s1, t1 = bn_s[:c_], bn_t[:c_]                                       # y1 = cv3(m(cv1(x))) half
    s2, t2 = bn_s[c_:], bn_t[c_:]                                       # y2 = cv2(x) half
    cv4_2d = cv4_w.reshape(2 * c_, c2)
    return {
        # raw (used by the pure-JAX reference)
        "cv1_w": cv1_w.reshape(c1, c_), "cv1_b": cv1_b,
        "cv2_w": cv2_w, "cv3_w": cv3_w,
        "cv4_w": cv4_2d, "cv4_b": cv4_b,
        "bn_s": bn_s, "bn_t": bn_t,
        "m_cv1_w": m1_w.reshape(c_, c_), "m_cv1_b": m1_b,
        "m_cv2_w_hwio": m2_w, "m_cv2_w9": m2_w.reshape(9, c_, c_), "m_cv2_b": m2_b,
        # pre-fused for the Pallas kernels: concat-BN affine folded into cv2 / cv3
        "cv2_w_bn": cv2_w * s2[None, :], "cv2_t_bn": t2,
        "cv3_w_bn": cv3_w * s1[None, :], "cv3_t_bn": t1,
        "cv4_w_top": cv4_2d[:c_], "cv4_w_bot": cv4_2d[c_:],
    }


# ----------------------------------------------------------------------------
# BottleneckCSP forward (Pallas) — matches BottleneckCSP(c1, c2, n=1, shortcut=True)
# ----------------------------------------------------------------------------
def bottleneck_csp_forward(x_nchw, p):
    B, C1, H, W = x_nchw.shape
    c2 = p["cv4_b"].shape[0]
    HW = H * W
    # TODO(synk): if the surrounding model can stay NHWC, drop these transposes.
    x3d = jnp.transpose(x_nchw, (0, 2, 3, 1)).reshape(B, HW, C1)

    # K1: one read of x -> a, t (m.cv1 fused in), y2 (concat-BN folded in).
    a3d, t3d, y23d = csp_head(x3d, p)

    # K2: 3x3 m.cv2 + BN + SiLU + SiMAM + residual + cv3/BN/LeakyReLU + cv4 + SiLU.
    out3d = csp_tail(t3d, a3d, y23d, p, H, W)                           # (B, HW, c2)

    return jnp.transpose(out3d.reshape(B, H, W, c2), (0, 3, 1, 2))      # back to NCHW


# ----------------------------------------------------------------------------
# Pure-JAX reference (for verification)
# ----------------------------------------------------------------------------
def _conv_ref(x_nhwc, w_hwio):
    return lax.conv_general_dilated(x_nhwc, w_hwio, (1, 1), "SAME",
                                    dimension_numbers=("NHWC", "HWIO", "NHWC"))


def _conv_bn_silu_ref(x_nhwc, w_hwio, b):
    return _silu(_conv_ref(x_nhwc, w_hwio) + b)


def _simam_ref(x_nhwc, e_lambda=1e-4):
    _, H, W, _ = x_nhwc.shape
    n = W * H - 1
    d = (x_nhwc - x_nhwc.mean(axis=(1, 2), keepdims=True)) ** 2
    y = d / (4 * (d.sum(axis=(1, 2), keepdims=True) / n + e_lambda)) + 0.5
    return x_nhwc * jax.nn.sigmoid(y)


def bottleneck_csp_ref(x_nchw, p):
    x = jnp.transpose(x_nchw, (0, 2, 3, 1))
    c1 = x.shape[-1]
    c_ = p["cv1_w"].shape[1]
    c2 = p["cv4_w"].shape[1]
    a = _conv_bn_silu_ref(x, p["cv1_w"].reshape(1, 1, c1, c_), p["cv1_b"])
    t = _conv_bn_silu_ref(a, p["m_cv1_w"].reshape(1, 1, c_, c_), p["m_cv1_b"])
    u = _conv_bn_silu_ref(t, p["m_cv2_w_hwio"], p["m_cv2_b"])
    m_out = a + _simam_ref(u)                               # Bottleneck with shortcut
    y1 = _conv_ref(m_out, p["cv3_w"].reshape(1, 1, c_, c_))
    y2 = _conv_ref(x, p["cv2_w"].reshape(1, 1, c1, c_))
    z = jnp.concatenate([y1, y2], axis=-1) * p["bn_s"] + p["bn_t"]
    z = jnp.maximum(z, 0.1 * z)                             # LeakyReLU(0.1)
    out = _conv_bn_silu_ref(z, p["cv4_w"].reshape(1, 1, 2 * c_, c2), p["cv4_b"])
    return jnp.transpose(out, (0, 3, 1, 2))


# ----------------------------------------------------------------------------
if __name__ == "__main__":
    key = jax.random.PRNGKey(0)
    kx, kp = jax.random.split(key)

    B, c1, c2, H, W = 2, 4, 8, 16, 16
    x = jax.random.normal(kx, (B, c1, H, W), jnp.float32)   # NCHW, like PyTorch
    params = init_csp_params(kp, c1, c2, e=0.5)

    out = jax.block_until_ready(jax.jit(bottleneck_csp_forward)(x, params))
    ref = jax.block_until_ready(bottleneck_csp_ref(x, params))

    assert out.shape == (B, c2, H, W), out.shape
    np.testing.assert_allclose(np.asarray(out), np.asarray(ref), rtol=2e-3, atol=2e-3)
    print("KERNEL_OK")
</pallas_src>

<mosaic_0001>
module attributes {stable_mosaic.version = 11 : i64} {
  func.func @csp_head_kernel(%arg0: i32, %arg1: i32, %arg2: memref<1x256x4xf32, #tpu.memory_space<vmem>>, %arg3: memref<4x4xf32, #tpu.memory_space<vmem>>, %arg4: memref<1x4xf32, #tpu.memory_space<vmem>>, %arg5: memref<4x4xf32, #tpu.memory_space<vmem>>, %arg6: memref<1x4xf32, #tpu.memory_space<vmem>>, %arg7: memref<4x4xf32, #tpu.memory_space<vmem>>, %arg8: memref<1x4xf32, #tpu.memory_space<vmem>>, %arg9: memref<1x256x4xf32, #tpu.memory_space<vmem>>, %arg10: memref<1x256x4xf32, #tpu.memory_space<vmem>>, %arg11: memref<1x256x4xf32, #tpu.memory_space<vmem>>) attributes {dimension_semantics = [#tpu.dimension_semantics<parallel>, #tpu.dimension_semantics<parallel>], iteration_bounds = array<i64: 2, 1>, scalar_prefetch = 0 : i64, scratch_operands = 0 : i64, tpu.core_type = #tpu.core_type<tc>, window_params = [{transform_indices = @transform_0, window_bounds = array<i64: 1, 256, 4>}, {pipeline_mode = #tpu.pipeline_mode<synchronous>, transform_indices = @transform_1, window_bounds = array<i64: 4, 4>}, {pipeline_mode = #tpu.pipeline_mode<synchronous>, transform_indices = @transform_2, window_bounds = array<i64: 1, 4>}, {pipeline_mode = #tpu.pipeline_mode<synchronous>, transform_indices = @transform_3, window_bounds = array<i64: 4, 4>}, {pipeline_mode = #tpu.pipeline_mode<synchronous>, transform_indices = @transform_4, window_bounds = array<i64: 1, 4>}, {pipeline_mode = #tpu.pipeline_mode<synchronous>, transform_indices = @transform_5, window_bounds = array<i64: 4, 4>}, {pipeline_mode = #tpu.pipeline_mode<synchronous>, transform_indices = @transform_6, window_bounds = array<i64: 1, 4>}, {transform_indices = @transform_7, window_bounds = array<i64: 1, 256, 4>}, {transform_indices = @transform_8, window_bounds = array<i64: 1, 256, 4>}, {transform_indices = @transform_9, window_bounds = array<i64: 1, 256, 4>}]} {
    %c0 = arith.constant 0 : index
    %c0_0 = arith.constant 0 : index
    %c0_1 = arith.constant 0 : index
    %0 = vector.load %arg2[%c0, %c0_0, %c0_1] : memref<1x256x4xf32, #tpu.memory_space<vmem>>, vector<1x256x4xf32>
    %1 = vector.shape_cast %0 : vector<1x256x4xf32> to vector<256x4xf32>
    %c0_2 = arith.constant 0 : index
    %c0_3 = arith.constant 0 : index
    %2 = vector.load %arg3[%c0_2, %c0_3] : memref<4x4xf32, #tpu.memory_space<vmem>>, vector<4x4xf32>
    %cst = arith.constant dense<0.000000e+00> : vector<256x4xf32>
    %3 = tpu.matmul %1, %2, %cst {dimension_numbers = #tpu.dot_dimension_numbers<[1], [0], [0], [1], [0, 0, 1, 1], [], []>} : vector<256x4xf32>, vector<4x4xf32>, vector<256x4xf32> -> vector<256x4xf32>
    %c0_4 = arith.constant 0 : index
    %c0_5 = arith.constant 0 : index
    %4 = vector.load %arg4[%c0_4, %c0_5] : memref<1x4xf32, #tpu.memory_space<vmem>>, vector<1x4xf32>
    %5 = vector.broadcast %4 : vector<1x4xf32> to vector<256x4xf32>
    %6 = arith.addf %3, %5 : vector<256x4xf32>
    %7 = arith.negf %6 : vector<256x4xf32>
    %8 = math.exp %7 : vector<256x4xf32>
    %cst_6 = arith.constant 1.000000e+00 : f32
    %9 = vector.broadcast %cst_6 : f32 to vector<256x4xf32>
    %10 = arith.addf %9, %8 : vector<256x4xf32>
    %11 = arith.divf %9, %10 : vector<256x4xf32>
    %12 = arith.mulf %6, %11 : vector<256x4xf32>
    %c0_7 = arith.constant 0 : index
    %c0_8 = arith.constant 0 : index
    %c0_9 = arith.constant 0 : index
    %13 = vector.load %arg9[%c0_7, %c0_8, %c0_9] : memref<1x256x4xf32, #tpu.memory_space<vmem>>, vector<1x256x4xf32>
    %14 = vector.shape_cast %13 : vector<1x256x4xf32> to vector<256x4xf32>
    %15 = vector.shape_cast %12 : vector<256x4xf32> to vector<1x256x4xf32>
    tpu.vector_store %arg9[%c0_7, %c0_8, %c0_9], %15 {strides = array<i32>} : memref<1x256x4xf32, #tpu.memory_space<vmem>>, vector<1x256x4xf32>,
    %c0_10 = arith.constant 0 : index
    %c0_11 = arith.constant 0 : index
    %16 = vector.load %arg5[%c0_10, %c0_11] : memref<4x4xf32, #tpu.memory_space<vmem>>, vector<4x4xf32>
    %cst_12 = arith.constant dense<0.000000e+00> : vector<256x4xf32>
    %17 = tpu.matmul %12, %16, %cst_12 {dimension_numbers = #tpu.dot_dimension_numbers<[1], [0], [0], [1], [0, 0, 1, 1], [], []>} : vector<256x4xf32>, vector<4x4xf32>, vector<256x4xf32> -> vector<256x4xf32>
    %c0_13 = arith.constant 0 : index
    %c0_14 = arith.constant 0 : index
    %18 = vector.load %arg6[%c0_13, %c0_14] : memref<1x4xf32, #tpu.memory_space<vmem>>, vector<1x4xf32>
    %19 = vector.broadcast %18 : vector<1x4xf32> to vector<256x4xf32>
    %20 = arith.addf %17, %19 : vector<256x4xf32>
    %21 = arith.negf %20 : vector<256x4xf32>
    %22 = math.exp %21 : vector<256x4xf32>
    %cst_15 = arith.constant 1.000000e+00 : f32
    %23 = vector.broadcast %cst_15 : f32 to vector<256x4xf32>
    %24 = arith.addf %23, %22 : vector<256x4xf32>
    %25 = arith.divf %23, %24 : vector<256x4xf32>
    %26 = arith.mulf %20, %25 : vector<256x4xf32>
    %c0_16 = arith.constant 0 : index
    %c0_17 = arith.constant 0 : index
    %c0_18 = arith.constant 0 : index
    %27 = vector.load %arg10[%c0_16, %c0_17, %c0_18] : memref<1x256x4xf32, #tpu.memory_space<vmem>>, vector<1x256x4xf32>
    %28 = vector.shape_cast %27 : vector<1x256x4xf32> to vector<256x4xf32>
    %29 = vector.shape_cast %26 : vector<256x4xf32> to vector<1x256x4xf32>
    tpu.vector_store %arg10[%c0_16, %c0_17, %c0_18], %29 {strides = array<i32>} : memref<1x256x4xf32, #tpu.memory_space<vmem>>, vector<1x256x4xf32>,
    %c0_19 = arith.constant 0 : index
    %c0_20 = arith.constant 0 : index
    %30 = vector.load %arg7[%c0_19, %c0_20] : memref<4x4xf32, #tpu.memory_space<vmem>>, vector<4x4xf32>
    %cst_21 = arith.constant dense<0.000000e+00> : vector<256x4xf32>
    %31 = tpu.matmul %1, %30, %cst_21 {dimension_numbers = #tpu.dot_dimension_numbers<[1], [0], [0], [1], [0, 0, 1, 1], [], []>} : vector<256x4xf32>, vector<4x4xf32>, vector<256x4xf32> -> vector<256x4xf32>
    %c0_22 = arith.constant 0 : index
    %c0_23 = arith.constant 0 : index
    %32 = vector.load %arg8[%c0_22, %c0_23] : memref<1x4xf32, #tpu.memory_space<vmem>>, vector<1x4xf32>
    %33 = vector.broadcast %32 : vector<1x4xf32> to vector<256x4xf32>
    %34 = arith.addf %31, %33 : vector<256x4xf32>
    %c0_24 = arith.constant 0 : index
    %c0_25 = arith.constant 0 : index
    %c0_26 = arith.constant 0 : index
    %35 = vector.load %arg11[%c0_24, %c0_25, %c0_26] : memref<1x256x4xf32, #tpu.memory_space<vmem>>, vector<1x256x4xf32>
    %36 = vector.shape_cast %35 : vector<1x256x4xf32> to vector<256x4xf32>
    %37 = vector.shape_cast %34 : vector<256x4xf32> to vector<1x256x4xf32>
    tpu.vector_store %arg11[%c0_24, %c0_25, %c0_26], %37 {strides = array<i32>} : memref<1x256x4xf32, #tpu.memory_space<vmem>>, vector<1x256x4xf32>,
    return
  }
  func.func @transform_0(%arg0: i32, %arg1: i32) -> (i32, i32, i32) {
    %c0_i32 = arith.constant 0 : i32
    %c0_i32_0 = arith.constant 0 : i32
    return %arg0, %arg1, %c0_i32 : i32, i32, i32
  }
  func.func @transform_1(%arg0: i32, %arg1: i32) -> (i32, i32) {
    %c0_i32 = arith.constant 0 : i32
    %c0_i32_0 = arith.constant 0 : i32
    %c0_i32_1 = arith.constant 0 : i32
    return %c0_i32, %c0_i32_0 : i32, i32
  }
  func.func @transform_2(%arg0: i32, %arg1: i32) -> (i32, i32) {
    %c0_i32 = arith.constant 0 : i32
    %c0_i32_0 = arith.constant 0 : i32
    %c0_i32_1 = arith.constant 0 : i32
    return %c0_i32, %c0_i32_0 : i32, i32
  }
  func.func @transform_3(%arg0: i32, %arg1: i32) -> (i32, i32) {
    %c0_i32 = arith.constant 0 : i32
    %c0_i32_0 = arith.constant 0 : i32
    %c0_i32_1 = arith.constant 0 : i32
    return %c0_i32, %c0_i32_0 : i32, i32
  }
  func.func @transform_4(%arg0: i32, %arg1: i32) -> (i32, i32) {
    %c0_i32 = arith.constant 0 : i32
    %c0_i32_0 = arith.constant 0 : i32
    %c0_i32_1 = arith.constant 0 : i32
    return %c0_i32, %c0_i32_0 : i32, i32
  }
  func.func @transform_5(%arg0: i32, %arg1: i32) -> (i32, i32) {
    %c0_i32 = arith.constant 0 : i32
    %c0_i32_0 = arith.constant 0 : i32
    %c0_i32_1 = arith.constant 0 : i32
    return %c0_i32, %c0_i32_0 : i32, i32
  }
  func.func @transform_6(%arg0: i32, %arg1: i32) -> (i32, i32) {
    %c0_i32 = arith.constant 0 : i32
    %c0_i32_0 = arith.constant 0 : i32
    %c0_i32_1 = arith.constant 0 : i32
    return %c0_i32, %c0_i32_0 : i32, i32
  }
  func.func @transform_7(%arg0: i32, %arg1: i32) -> (i32, i32, i32) {
    %c0_i32 = arith.constant 0 : i32
    %c0_i32_0 = arith.constant 0 : i32
    return %arg0, %arg1, %c0_i32 : i32, i32, i32
  }
  func.func @transform_8(%arg0: i32, %arg1: i32) -> (i32, i32, i32) {
    %c0_i32 = arith.constant 0 : i32
    %c0_i32_0 = arith.constant 0 : i32
    return %arg0, %arg1, %c0_i32 : i32, i32, i32
  }
  func.func @transform_9(%arg0: i32, %arg1: i32) -> (i32, i32, i32) {
    %c0_i32 = arith.constant 0 : i32
    %c0_i32_0 = arith.constant 0 : i32
    return %arg0, %arg1, %c0_i32 : i32, i32, i32
  }
}

module attributes {stable_mosaic.version = 11 : i64} {
  func.func @csp_tail_kernel(%arg0: i32, %arg1: memref<1x256x4xf32, #tpu.memory_space<vmem>>, %arg2: memref<1x256x4xf32, #tpu.memory_space<vmem>>, %arg3: memref<1x256x4xf32, #tpu.memory_space<vmem>>, %arg4: memref<9x4x4xf32, #tpu.memory_space<vmem>>, %arg5: memref<1x4xf32, #tpu.memory_space<vmem>>, %arg6: memref<4x4xf32, #tpu.memory_space<vmem>>, %arg7: memref<1x4xf32, #tpu.memory_space<vmem>>, %arg8: memref<4x8xf32, #tpu.memory_space<vmem>>, %arg9: memref<4x8xf32, #tpu.memory_space<vmem>>, %arg10: memref<1x8xf32, #tpu.memory_space<vmem>>, %arg11: memref<1x256x8xf32, #tpu.memory_space<vmem>>, %arg12: memref<297x4xf32, #tpu.memory_space<vmem>>) attributes {dimension_semantics = [#tpu.dimension_semantics<parallel>], iteration_bounds = array<i64: 2>, scalar_prefetch = 0 : i64, scratch_operands = 1 : i64, tpu.core_type = #tpu.core_type<tc>, window_params = [{transform_indices = @transform_0, window_bounds = array<i64: 1, 256, 4>}, {transform_indices = @transform_1, window_bounds = array<i64: 1, 256, 4>}, {transform_indices = @transform_2, window_bounds = array<i64: 1, 256, 4>}, {pipeline_mode = #tpu.pipeline_mode<synchronous>, transform_indices = @transform_3, window_bounds = array<i64: 9, 4, 4>}, {pipeline_mode = #tpu.pipeline_mode<synchronous>, transform_indices = @transform_4, window_bounds = array<i64: 1, 4>}, {pipeline_mode = #tpu.pipeline_mode<synchronous>, transform_indices = @transform_5, window_bounds = array<i64: 4, 4>}, {pipeline_mode = #tpu.pipeline_mode<synchronous>, transform_indices = @transform_6, window_bounds = array<i64: 1, 4>}, {pipeline_mode = #tpu.pipeline_mode<synchronous>, transform_indices = @transform_7, window_bounds = array<i64: 4, 8>}, {pipeline_mode = #tpu.pipeline_mode<synchronous>, transform_indices = @transform_8, window_bounds = array<i64: 4, 8>}, {pipeline_mode = #tpu.pipeline_mode<synchronous>, transform_indices = @transform_9, window_bounds = array<i64: 1, 8>}, {transform_indices = @transform_10, window_bounds = array<i64: 1, 256, 8>}]} {
    %cst = arith.constant 0.000000e+00 : f32
    %0 = vector.broadcast %cst : f32 to vector<297x4xf32>
    %c0 = arith.constant 0 : index
    %c0_0 = arith.constant 0 : index
    %1 = vector.load %arg12[%c0, %c0_0] : memref<297x4xf32, #tpu.memory_space<vmem>>, vector<297x4xf32>
    tpu.vector_store %arg12[%c0, %c0_0], %0 {strides = array<i32>} : memref<297x4xf32, #tpu.memory_space<vmem>>, vector<297x4xf32>,
    %c0_1 = arith.constant 0 : index
    %c0_2 = arith.constant 0 : index
    %c0_3 = arith.constant 0 : index
    %2 = vector.load %arg1[%c0_1, %c0_2, %c0_3] : memref<1x256x4xf32, #tpu.memory_space<vmem>>, vector<1x256x4xf32>
    %3 = vector.shape_cast %2 : vector<1x256x4xf32> to vector<256x4xf32>
    %c24 = arith.constant 24 : index
    %c0_4 = arith.constant 0 : index
    %4 = vector.load %arg12[%c24, %c0_4] : memref<297x4xf32, #tpu.memory_space<vmem>>, vector<256x4xf32>
    tpu.vector_store %arg12[%c24, %c0_4], %3 {strides = array<i32>} : memref<297x4xf32, #tpu.memory_space<vmem>>, vector<256x4xf32>,
    %5 = tpu.iota {dimensions = array<i32: 0>} : vector<256x1xi32>
    %c16_i32 = arith.constant 16 : i32
    %c0_i32 = arith.constant 0 : i32
    %6 = arith.cmpi eq, %c16_i32, %c0_i32 : i32
    %c1_i32 = arith.constant 1 : i32
    %7 = arith.select %6, %c1_i32, %c16_i32 : i32
    %8 = vector.broadcast %7 : i32 to vector<256x1xi32>
    %9 = arith.remsi %5, %8 : vector<256x1xi32>
    %c0_i32_5 = arith.constant 0 : i32
    %10 = vector.broadcast %c0_i32_5 : i32 to vector<256x1xi32>
    %11 = arith.cmpi ne, %9, %10 : vector<256x1xi32>
    %c0_i32_6 = arith.constant 0 : i32
    %12 = vector.broadcast %c0_i32_6 : i32 to vector<256x1xi32>
    %13 = arith.cmpi slt, %9, %12 : vector<256x1xi32>
    %c0_i32_7 = arith.constant 0 : i32
    %14 = arith.cmpi slt, %7, %c0_i32_7 : i32
    %15 = vector.broadcast %14 : i1 to vector<256x1xi1>
    %16 = vector.broadcast %15 : vector<256x1xi1> to vector<256x1xi1>
    %17 = arith.xori %13, %16 : vector<256x1xi1>
    %18 = arith.andi %17, %11 : vector<256x1xi1>
    %19 = vector.broadcast %7 : i32 to vector<256x1xi32>
    %20 = arith.addi %9, %19 : vector<256x1xi32>
    %21 = arith.select %18, %20, %9 : vector<256x1xi1>, vector<256x1xi32>
    %c1_i32_8 = arith.constant 1 : i32
    %22 = vector.broadcast %c1_i32_8 : i32 to vector<256x1xi32>
    %23 = arith.cmpi sge, %21, %22 : vector<256x1xi32>
    %c14_i32 = arith.constant 14 : i32
    %24 = vector.broadcast %c14_i32 : i32 to vector<256x1xi32>
    %25 = arith.cmpi sle, %21, %24 : vector<256x1xi32>
    %cst_9 = arith.constant 0.000000e+00 : f32
    %26 = vector.broadcast %cst_9 : f32 to vector<256x4xf32>
    %c7 = arith.constant 7 : index
    %c0_10 = arith.constant 0 : index
    %27 = vector.load %arg12[%c7, %c0_10] : memref<297x4xf32, #tpu.memory_space<vmem>>, vector<256x4xf32>
    %c0_11 = arith.constant 0 : index
    %c0_12 = arith.constant 0 : index
    %c0_13 = arith.constant 0 : index
    %28 = vector.load %arg4[%c0_11, %c0_12, %c0_13] : memref<9x4x4xf32, #tpu.memory_space<vmem>>, vector<1x4x4xf32>
    %29 = vector.shape_cast %28 : vector<1x4x4xf32> to vector<4x4xf32>
    %cst_14 = arith.constant dense<0.000000e+00> : vector<256x4xf32>
    %30 = tpu.matmul %27, %29, %cst_14 {dimension_numbers = #tpu.dot_dimension_numbers<[1], [0], [0], [1], [0, 0, 1, 1], [], []>} : vector<256x4xf32>, vector<4x4xf32>, vector<256x4xf32> -> vector<256x4xf32>
    %cst_15 = arith.constant 0.000000e+00 : f32
    %31 = vector.shape_cast %23 : vector<256x1xi1> to vector<256x1xi1>
    %32 = vector.broadcast %31 : vector<256x1xi1> to vector<256x4xi1>
    %33 = vector.broadcast %cst_15 : f32 to vector<256x4xf32>
    %34 = arith.select %32, %30, %33 : vector<256x4xi1>, vector<256x4xf32>
    %35 = arith.addf %26, %34 : vector<256x4xf32>
    %c8 = arith.constant 8 : index
    %c0_16 = arith.constant 0 : index
    %36 = vector.load %arg12[%c8, %c0_16] : memref<297x4xf32, #tpu.memory_space<vmem>>, vector<256x4xf32>
    %c1 = arith.constant 1 : index
    %c0_17 = arith.constant 0 : index
    %c0_18 = arith.constant 0 : index
    %37 = vector.load %arg4[%c1, %c0_17, %c0_18] : memref<9x4x4xf32, #tpu.memory_space<vmem>>, vector<1x4x4xf32>
    %38 = vector.shape_cast %37 : vector<1x4x4xf32> to vector<4x4xf32>
    %cst_19 = arith.constant dense<0.000000e+00> : vector<256x4xf32>
    %39 = tpu.matmul %36, %38, %cst_19 {dimension_numbers = #tpu.dot_dimension_numbers<[1], [0], [0], [1], [0, 0, 1, 1], [], []>} : vector<256x4xf32>, vector<4x4xf32>, vector<256x4xf32> -> vector<256x4xf32>
    %40 = arith.addf %35, %39 : vector<256x4xf32>
    %c9 = arith.constant 9 : index
    %c0_20 = arith.constant 0 : index
    %41 = vector.load %arg12[%c9, %c0_20] : memref<297x4xf32, #tpu.memory_space<vmem>>, vector<256x4xf32>
    %c2 = arith.constant 2 : index
    %c0_21 = arith.constant 0 : index
    %c0_22 = arith.constant 0 : index
    %42 = vector.load %arg4[%c2, %c0_21, %c0_22] : memref<9x4x4xf32, #tpu.memory_space<vmem>>, vector<1x4x4xf32>
    %43 = vector.shape_cast %42 : vector<1x4x4xf32> to vector<4x4xf32>
    %cst_23 = arith.constant dense<0.000000e+00> : vector<256x4xf32>
    %44 = tpu.matmul %41, %43, %cst_23 {dimension_numbers = #tpu.dot_dimension_numbers<[1], [0], [0], [1], [0, 0, 1, 1], [], []>} : vector<256x4xf32>, vector<4x4xf32>, vector<256x4xf32> -> vector<256x4xf32>
    %cst_24 = arith.constant 0.000000e+00 : f32
    %45 = vector.shape_cast %25 : vector<256x1xi1> to vector<256x1xi1>
    %46 = vector.broadcast %45 : vector<256x1xi1> to vector<256x4xi1>
    %47 = vector.broadcast %cst_24 : f32 to vector<256x4xf32>
    %48 = arith.select %46, %44, %47 : vector<256x4xi1>, vector<256x4xf32>
    %49 = arith.addf %40, %48 : vector<256x4xf32>
    %c23 = arith.constant 23 : index
    %c0_25 = arith.constant 0 : index
    %50 = vector.load %arg12[%c23, %c0_25] : memref<297x4xf32, #tpu.memory_space<vmem>>, vector<256x4xf32>
    %c3 = arith.constant 3 : index
    %c0_26 = arith.constant 0 : index
    %c0_27 = arith.constant 0 : index
    %51 = vector.load %arg4[%c3, %c0_26, %c0_27] : memref<9x4x4xf32, #tpu.memory_space<vmem>>, vector<1x4x4xf32>
    %52 = vector.shape_cast %51 : vector<1x4x4xf32> to vector<4x4xf32>
    %cst_28 = arith.constant dense<0.000000e+00> : vector<256x4xf32>
    %53 = tpu.matmul %50, %52, %cst_28 {dimension_numbers = #tpu.dot_dimension_numbers<[1], [0], [0], [1], [0, 0, 1, 1], [], []>} : vector<256x4xf32>, vector<4x4xf32>, vector<256x4xf32> -> vector<256x4xf32>
    %cst_29 = arith.constant 0.000000e+00 : f32
    %54 = vector.shape_cast %23 : vector<256x1xi1> to vector<256x1xi1>
    %55 = vector.broadcast %54 : vector<256x1xi1> to vector<256x4xi1>
    %56 = vector.broadcast %cst_29 : f32 to vector<256x4xf32>
    %57 = arith.select %55, %53, %56 : vector<256x4xi1>, vector<256x4xf32>
    %58 = arith.addf %49, %57 : vector<256x4xf32>
    %c24_30 = arith.constant 24 : index
    %c0_31 = arith.constant 0 : index
    %59 = vector.load %arg12[%c24_30, %c0_31] : memref<297x4xf32, #tpu.memory_space<vmem>>, vector<256x4xf32>
    %c4 = arith.constant 4 : index
    %c0_32 = arith.constant 0 : index
    %c0_33 = arith.constant 0 : index
    %60 = vector.load %arg4[%c4, %c0_32, %c0_33] : memref<9x4x4xf32, #tpu.memory_space<vmem>>, vector<1x4x4xf32>
    %61 = vector.shape_cast %60 : vector<1x4x4xf32> to vector<4x4xf32>
    %cst_34 = arith.constant dense<0.000000e+00> : vector<256x4xf32>
    %62 = tpu.matmul %59, %61, %cst_34 {dimension_numbers = #tpu.dot_dimension_numbers<[1], [0], [0], [1], [0, 0, 1, 1], [], []>} : vector<256x4xf32>, vector<4x4xf32>, vector<256x4xf32> -> vector<256x4xf32>
    %63 = arith.addf %58, %62 : vector<256x4xf32>
    %c25 = arith.constant 25 : index
    %c0_35 = arith.constant 0 : index
    %64 = vector.load %arg12[%c25, %c0_35] : memref<297x4xf32, #tpu.memory_space<vmem>>, vector<256x4xf32>
    %c5 = arith.constant 5 : index
    %c0_36 = arith.constant 0 : index
    %c0_37 = arith.constant 0 : index
    %65 = vector.load %arg4[%c5, %c0_36, %c0_37] : memref<9x4x4xf32, #tpu.memory_space<vmem>>, vector<1x4x4xf32>
    %66 = vector.shape_cast %65 : vector<1x4x4xf32> to vector<4x4xf32>
    %cst_38 = arith.constant dense<0.000000e+00> : vector<256x4xf32>
    %67 = tpu.matmul %64, %66, %cst_38 {dimension_numbers = #tpu.dot_dimension_numbers<[1], [0], [0], [1], [0, 0, 1, 1], [], []>} : vector<256x4xf32>, vector<4x4xf32>, vector<256x4xf32> -> vector<256x4xf32>
    %cst_39 = arith.constant 0.000000e+00 : f32
    %68 = vector.shape_cast %25 : vector<256x1xi1> to vector<256x1xi1>
    %69 = vector.broadcast %68 : vector<256x1xi1> to vector<256x4xi1>
    %70 = vector.broadcast %cst_39 : f32 to vector<256x4xf32>
    %71 = arith.select %69, %67, %70 : vector<256x4xi1>, vector<256x4xf32>
    %72 = arith.addf %63, %71 : vector<256x4xf32>
    %c39 = arith.constant 39 : index
    %c0_40 = arith.constant 0 : index
    %73 = vector.load %arg12[%c39, %c0_40] : memref<297x4xf32, #tpu.memory_space<vmem>>, vector<256x4xf32>
    %c6 = arith.constant 6 : index
    %c0_41 = arith.constant 0 : index
    %c0_42 = arith.constant 0 : index
    %74 = vector.load %arg4[%c6, %c0_41, %c0_42] : memref<9x4x4xf32, #tpu.memory_space<vmem>>, vector<1x4x4xf32>
    %75 = vector.shape_cast %74 : vector<1x4x4xf32> to vector<4x4xf32>
    %cst_43 = arith.constant dense<0.000000e+00> : vector<256x4xf32>
    %76 = tpu.matmul %73, %75, %cst_43 {dimension_numbers = #tpu.dot_dimension_numbers<[1], [0], [0], [1], [0, 0, 1, 1], [], []>} : vector<256x4xf32>, vector<4x4xf32>, vector<256x4xf32> -> vector<256x4xf32>
    %cst_44 = arith.constant 0.000000e+00 : f32
    %77 = vector.shape_cast %23 : vector<256x1xi1> to vector<256x1xi1>
    %78 = vector.broadcast %77 : vector<256x1xi1> to vector<256x4xi1>
    %79 = vector.broadcast %cst_44 : f32 to vector<256x4xf32>
    %80 = arith.select %78, %76, %79 : vector<256x4xi1>, vector<256x4xf32>
    %81 = arith.addf %72, %80 : vector<256x4xf32>
    %c40 = arith.constant 40 : index
    %c0_45 = arith.constant 0 : index
    %82 = vector.load %arg12[%c40, %c0_45] : memref<297x4xf32, #tpu.memory_space<vmem>>, vector<256x4xf32>
    %c7_46 = arith.constant 7 : index
    %c0_47 = arith.constant 0 : index
    %c0_48 = arith.constant 0 : index
    %83 = vector.load %arg4[%c7_46, %c0_47, %c0_48] : memref<9x4x4xf32, #tpu.memory_space<vmem>>, vector<1x4x4xf32>
    %84 = vector.shape_cast %83 : vector<1x4x4xf32> to vector<4x4xf32>
    %cst_49 = arith.constant dense<0.000000e+00> : vector<256x4xf32>
    %85 = tpu.matmul %82, %84, %cst_49 {dimension_numbers = #tpu.dot_dimension_numbers<[1], [0], [0], [1], [0, 0, 1, 1], [], []>} : vector<256x4xf32>, vector<4x4xf32>, vector<256x4xf32> -> vector<256x4xf32>
    %86 = arith.addf %81, %85 : vector<256x4xf32>
    %c41 = arith.constant 41 : index
    %c0_50 = arith.constant 0 : index
    %87 = vector.load %arg12[%c41, %c0_50] : memref<297x4xf32, #tpu.memory_space<vmem>>, vector<256x4xf32>
    %c8_51 = arith.constant 8 : index
    %c0_52 = arith.constant 0 : index
    %c0_53 = arith.constant 0 : index
    %88 = vector.load %arg4[%c8_51, %c0_52, %c0_53] : memref<9x4x4xf32, #tpu.memory_space<vmem>>, vector<1x4x4xf32>
    %89 = vector.shape_cast %88 : vector<1x4x4xf32> to vector<4x4xf32>
    %cst_54 = arith.constant dense<0.000000e+00> : vector<256x4xf32>
    %90 = tpu.matmul %87, %89, %cst_54 {dimension_numbers = #tpu.dot_dimension_numbers<[1], [0], [0], [1], [0, 0, 1, 1], [], []>} : vector<256x4xf32>, vector<4x4xf32>, vector<256x4xf32> -> vector<256x4xf32>
    %cst_55 = arith.constant 0.000000e+00 : f32
    %91 = vector.shape_cast %25 : vector<256x1xi1> to vector<256x1xi1>
    %92 = vector.broadcast %91 : vector<256x1xi1> to vector<256x4xi1>
    %93 = vector.broadcast %cst_55 : f32 to vector<256x4xf32>
    %94 = arith.select %92, %90, %93 : vector<256x4xi1>, vector<256x4xf32>
    %95 = arith.addf %86, %94 : vector<256x4xf32>
    %c0_56 = arith.constant 0 : index
    %c0_57 = arith.constant 0 : index
    %96 = vector.load %arg5[%c0_56, %c0_57] : memref<1x4xf32, #tpu.memory_space<vmem>>, vector<1x4xf32>
    %97 = vector.broadcast %96 : vector<1x4xf32> to vector<256x4xf32>
    %98 = arith.addf %95, %97 : vector<256x4xf32>
    %99 = arith.negf %98 : vector<256x4xf32>
    %100 = math.exp %99 : vector<256x4xf32>
    %cst_58 = arith.constant 1.000000e+00 : f32
    %101 = vector.broadcast %cst_58 : f32 to vector<256x4xf32>
    %102 = arith.addf %101, %100 : vector<256x4xf32>
    %103 = arith.divf %101, %102 : vector<256x4xf32>
    %104 = arith.mulf %98, %103 : vector<256x4xf32>
    %cst_59 = arith.constant dense<0.000000e+00> : vector<4xf32>
    %105 = vector.multi_reduction <add>, %104, %cst_59 [0] : vector<256x4xf32> to vector<4xf32>
    %106 = vector.shape_cast %105 : vector<4xf32> to vector<1x4xf32>
    %cst_60 = arith.constant 3.906250e-03 : f32
    %107 = vector.broadcast %cst_60 : f32 to vector<1x4xf32>
    %108 = arith.mulf %106, %107 : vector<1x4xf32>
    %109 = vector.broadcast %108 : vector<1x4xf32> to vector<256x4xf32>
    %110 = arith.subf %104, %109 : vector<256x4xf32>
    %111 = arith.mulf %110, %110 : vector<256x4xf32>
    %cst_61 = arith.constant dense<0.000000e+00> : vector<4xf32>
    %112 = vector.multi_reduction <add>, %111, %cst_61 [0] : vector<256x4xf32> to vector<4xf32>
    %113 = vector.shape_cast %112 : vector<4xf32> to vector<1x4xf32>
    %cst_62 = arith.constant 0.00392156886 : f32
    %114 = vector.broadcast %cst_62 : f32 to vector<1x4xf32>
    %115 = arith.mulf %113, %114 : vector<1x4xf32>
    %cst_63 = arith.constant 9.99999974E-5 : f32
    %116 = vector.broadcast %cst_63 : f32 to vector<1x4xf32>
    %117 = arith.addf %115, %116 : vector<1x4xf32>
    %cst_64 = arith.constant 4.000000e+00 : f32
    %118 = vector.broadcast %cst_64 : f32 to vector<1x4xf32>
    %119 = arith.mulf %118, %117 : vector<1x4xf32>
    %120 = tpu.reciprocal %119 : vector<1x4xf32> -> vector<1x4xf32>
    %121 = vector.broadcast %120 : vector<1x4xf32> to vector<256x4xf32>
    %122 = arith.mulf %111, %121 : vector<256x4xf32>
    %cst_65 = arith.constant 5.000000e-01 : f32
    %123 = vector.broadcast %cst_65 : f32 to vector<256x4xf32>
    %124 = arith.addf %122, %123 : vector<256x4xf32>
    %125 = arith.negf %124 : vector<256x4xf32>
    %126 = math.exp %125 : vector<256x4xf32>
    %cst_66 = arith.constant 1.000000e+00 : f32
    %127 = vector.broadcast %cst_66 : f32 to vector<256x4xf32>
    %128 = arith.addf %127, %126 : vector<256x4xf32>
    %129 = arith.divf %127, %128 : vector<256x4xf32>
    %130 = arith.mulf %104, %129 : vector<256x4xf32>
    %c0_67 = arith.constant 0 : index
    %c0_68 = arith.constant 0 : index
    %c0_69 = arith.constant 0 : index
    %131 = vector.load %arg2[%c0_67, %c0_68, %c0_69] : memref<1x256x4xf32, #tpu.memory_space<vmem>>, vector<1x256x4xf32>
    %132 = vector.shape_cast %131 : vector<1x256x4xf32> to vector<256x4xf32>
    %133 = arith.addf %132, %130 : vector<256x4xf32>
    %c0_70 = arith.constant 0 : index
    %c0_71 = arith.constant 0 : index
    %134 = vector.load %arg6[%c0_70, %c0_71] : memref<4x4xf32, #tpu.memory_space<vmem>>, vector<4x4xf32>
    %cst_72 = arith.constant dense<0.000000e+00> : vector<256x4xf32>
    %135 = tpu.matmul %133, %134, %cst_72 {dimension_numbers = #tpu.dot_dimension_numbers<[1], [0], [0], [1], [0, 0, 1, 1], [], []>} : vector<256x4xf32>, vector<4x4xf32>, vector<256x4xf32> -> vector<256x4xf32>
    %c0_73 = arith.constant 0 : index
    %c0_74 = arith.constant 0 : index
    %136 = vector.load %arg7[%c0_73, %c0_74] : memref<1x4xf32, #tpu.memory_space<vmem>>, vector<1x4xf32>
    %137 = vector.broadcast %136 : vector<1x4xf32> to vector<256x4xf32>
    %138 = arith.addf %135, %137 : vector<256x4xf32>
    %cst_75 = arith.constant 1.000000e-01 : f32
    %139 = vector.broadcast %cst_75 : f32 to vector<256x4xf32>
    %140 = arith.mulf %139, %138 : vector<256x4xf32>
    %141 = arith.maximumf %138, %140 : vector<256x4xf32>
    %c0_76 = arith.constant 0 : index
    %c0_77 = arith.constant 0 : index
    %c0_78 = arith.constant 0 : index
    %142 = vector.load %arg3[%c0_76, %c0_77, %c0_78] : memref<1x256x4xf32, #tpu.memory_space<vmem>>, vector<1x256x4xf32>
    %143 = vector.shape_cast %142 : vector<1x256x4xf32> to vector<256x4xf32>
    %cst_79 = arith.constant 1.000000e-01 : f32
    %144 = vector.broadcast %cst_79 : f32 to vector<256x4xf32>
    %145 = arith.mulf %144, %143 : vector<256x4xf32>
    %146 = arith.maximumf %143, %145 : vector<256x4xf32>
    %c0_80 = arith.constant 0 : index
    %c0_81 = arith.constant 0 : index
    %147 = vector.load %arg8[%c0_80, %c0_81] : memref<4x8xf32, #tpu.memory_space<vmem>>, vector<4x8xf32>
    %cst_82 = arith.constant dense<0.000000e+00> : vector<256x8xf32>
    %148 = tpu.matmul %141, %147, %cst_82 {dimension_numbers = #tpu.dot_dimension_numbers<[1], [0], [0], [1], [0, 0, 1, 1], [], []>} : vector<256x4xf32>, vector<4x8xf32>, vector<256x8xf32> -> vector<256x8xf32>
    %c0_83 = arith.constant 0 : index
    %c0_84 = arith.constant 0 : index
    %149 = vector.load %arg9[%c0_83, %c0_84] : memref<4x8xf32, #tpu.memory_space<vmem>>, vector<4x8xf32>
    %cst_85 = arith.constant dense<0.000000e+00> : vector<256x8xf32>
    %150 = tpu.matmul %146, %149, %cst_85 {dimension_numbers = #tpu.dot_dimension_numbers<[1], [0], [0], [1], [0, 0, 1, 1], [], []>} : vector<256x4xf32>, vector<4x8xf32>, vector<256x8xf32> -> vector<256x8xf32>
    %151 = arith.addf %148, %150 : vector<256x8xf32>
    %c0_86 = arith.constant 0 : index
    %c0_87 = arith.constant 0 : index
    %152 = vector.load %arg10[%c0_86, %c0_87] : memref<1x8xf32, #tpu.memory_space<vmem>>, vector<1x8xf32>
    %153 = vector.broadcast %152 : vector<1x8xf32> to vector<256x8xf32>
    %154 = arith.addf %151, %153 : vector<256x8xf32>
    %155 = arith.negf %154 : vector<256x8xf32>
    %156 = math.exp %155 : vector<256x8xf32>
    %cst_88 = arith.constant 1.000000e+00 : f32
    %157 = vector.broadcast %cst_88 : f32 to vector<256x8xf32>
    %158 = arith.addf %157, %156 : vector<256x8xf32>
    %159 = arith.divf %157, %158 : vector<256x8xf32>
    %160 = arith.mulf %154, %159 : vector<256x8xf32>
    %c0_89 = arith.constant 0 : index
    %c0_90 = arith.constant 0 : index
    %c0_91 = arith.constant 0 : index
    %161 = vector.load %arg11[%c0_89, %c0_90, %c0_91] : memref<1x256x8xf32, #tpu.memory_space<vmem>>, vector<1x256x8xf32>
    %162 = vector.shape_cast %161 : vector<1x256x8xf32> to vector<256x8xf32>
    %163 = vector.shape_cast %160 : vector<256x8xf32> to vector<1x256x8xf32>
    tpu.vector_store %arg11[%c0_89, %c0_90, %c0_91], %163 {strides = array<i32>} : memref<1x256x8xf32, #tpu.memory_space<vmem>>, vector<1x256x8xf32>,
    return
  }
  func.func @transform_0(%arg0: i32) -> (i32, i32, i32) {
    %c0_i32 = arith.constant 0 : i32
    %c0_i32_0 = arith.constant 0 : i32
    %c0_i32_1 = arith.constant 0 : i32
    return %arg0, %c0_i32, %c0_i32_0 : i32, i32, i32
  }
  func.func @transform_1(%arg0: i32) -> (i32, i32, i32) {
    %c0_i32 = arith.constant 0 : i32
    %c0_i32_0 = arith.constant 0 : i32
    %c0_i32_1 = arith.constant 0 : i32
    return %arg0, %c0_i32, %c0_i32_0 : i32, i32, i32
  }
  func.func @transform_2(%arg0: i32) -> (i32, i32, i32) {
    %c0_i32 = arith.constant 0 : i32
    %c0_i32_0 = arith.constant 0 : i32
    %c0_i32_1 = arith.constant 0 : i32
    return %arg0, %c0_i32, %c0_i32_0 : i32, i32, i32
  }
  func.func @transform_3(%arg0: i32) -> (i32, i32, i32) {
    %c0_i32 = arith.constant 0 : i32
    %c0_i32_0 = arith.constant 0 : i32
    %c0_i32_1 = arith.constant 0 : i32
    %c0_i32_2 = arith.constant 0 : i32
    return %c0_i32, %c0_i32_0, %c0_i32_1 : i32, i32, i32
  }
  func.func @transform_4(%arg0: i32) -> (i32, i32) {
    %c0_i32 = arith.constant 0 : i32
    %c0_i32_0 = arith.constant 0 : i32
    %c0_i32_1 = arith.constant 0 : i32
    return %c0_i32, %c0_i32_0 : i32, i32
  }
  func.func @transform_5(%arg0: i32) -> (i32, i32) {
    %c0_i32 = arith.constant 0 : i32
    %c0_i32_0 = arith.constant 0 : i32
    %c0_i32_1 = arith.constant 0 : i32
    return %c0_i32, %c0_i32_0 : i32, i32
  }
  func.func @transform_6(%arg0: i32) -> (i32, i32) {
    %c0_i32 = arith.constant 0 : i32
    %c0_i32_0 = arith.constant 0 : i32
    %c0_i32_1 = arith.constant 0 : i32
    return %c0_i32, %c0_i32_0 : i32, i32
  }
  func.func @transform_7(%arg0: i32) -> (i32, i32) {
    %c0_i32 = arith.constant 0 : i32
    %c0_i32_0 = arith.constant 0 : i32
    %c0_i32_1 = arith.constant 0 : i32
    return %c0_i32, %c0_i32_0 : i32, i32
  }
  func.func @transform_8(%arg0: i32) -> (i32, i32) {
    %c0_i32 = arith.constant 0 : i32
    %c0_i32_0 = arith.constant 0 : i32
    %c0_i32_1 = arith.constant 0 : i32
    return %c0_i32, %c0_i32_0 : i32, i32
  }
  func.func @transform_9(%arg0: i32) -> (i32, i32) {
    %c0_i32 = arith.constant 0 : i32
    %c0_i32_0 = arith.constant 0 : i32
    %c0_i32_1 = arith.constant 0 : i32
    return %c0_i32, %c0_i32_0 : i32, i32
  }
  func.func @transform_10(%arg0: i32) -> (i32, i32, i32) {
    %c0_i32 = arith.constant 0 : i32
    %c0_i32_0 = arith.constant 0 : i32
    %c0_i32_1 = arith.constant 0 : i32
    return %arg0, %c0_i32, %c0_i32_0 : i32, i32, i32
  }
}

</mosaic_0001>

<llo_original>
// kernel: bottleneck_csp_forward.2
$region0: #{bottleneck_csp_forward.2}
  #allocation0 [shape = 'u32[]', space=smem, size = 0x4, offset = 0x4, fixed_abs, tag = 'smem constant byte address 0x4 - core index']
  #allocation1 [shape = 'u32[144,128]{1,0:T(1,128)}', space=vmem, size = 0x12000, scoped, tag = 'internal scratch']
  %s0 = inlined_call_operand.vmem [shape: f32[2,256,4], index: 0, kind: input, shape index: {}]
  %s1 = inlined_call_operand.vmem [shape: f32[4,4], index: 1, kind: input, shape index: {}]
  %s2 = inlined_call_operand.vmem [shape: f32[1,4], index: 2, kind: input, shape index: {}]
  %s3 = inlined_call_operand.vmem [shape: f32[4,4], index: 3, kind: input, shape index: {}]
  %s4 = inlined_call_operand.vmem [shape: f32[1,4], index: 4, kind: input, shape index: {}]
  %s5 = inlined_call_operand.vmem [shape: f32[4,4], index: 5, kind: input, shape index: {}]
  %s6 = inlined_call_operand.vmem [shape: f32[1,4], index: 6, kind: input, shape index: {}]
  %s7 = inlined_call_operand.vmem [shape: f32[2,256,4], index: 7, kind: output, shape index: {0}]
  %s8 = inlined_call_operand.vmem [shape: f32[2,256,4], index: 8, kind: output, shape index: {1}]
  %s9 = inlined_call_operand.vmem [shape: f32[2,256,4], index: 9, kind: output, shape index: {2}]
  %10 = xla_tuple %s7, %s8, %s9
  %s11 = sld [smem:[#allocation0]]
  $region77: #{bottleneck_csp_forward.2} parent=0
    _
  %s13 = ssub.s32 1, %s11
  %s14 = scalar_select 0, %s13, %s11
  loop: start=0, step=1, limit=4
  $region2: #{bottleneck_csp_forward.2} parent=0 // loop_pre_header
    _
  $region3: #{bottleneck_csp_forward.2} parent=0 // loop_header
    %s16 = sphi 0, %s20
    %p17 = scmp.ge.s32.totalorder %s16, 4
    %s23 = sphi 0, %s35
    %s24 = sphi 0, %s31
    %s25 = sphi 0, %s23
    %s26 = sphi 0, %s24
    %s27 = sphi 0, %s25
    %s28 = sphi 0, %s26
    %s40 = sphi 0, %s42
    %s43 = sphi 0, %s40
    %s44 = sphi 0, %s43
    %s60 = sphi 0, %s44
    %s64 = sphi 0, %s64
    %s66 = sphi 0, %s64
    %s67 = sphi 0, %s66
    %s81 = sphi 0, %s67
    %s85 = sphi 0, %s85
    %s87 = sphi 0, %s85
    %s88 = sphi 0, %s87
    %s102 = sphi 0, %s88
    %s106 = sphi 0, %s106
    %s108 = sphi 0, %s106
    %s109 = sphi 0, %s108
    %s123 = sphi 0, %s109
    %s127 = sphi 0, %s127
    %s129 = sphi 0, %s127
    %s130 = sphi 0, %s129
    %s144 = sphi 0, %s130
    %s148 = sphi 0, %s148
    %s150 = sphi 0, %s148
    %s151 = sphi 0, %s150
    %s165 = sphi 0, %s151
    %s169 = sphi 0, %s169
    %s171 = sphi 0, %s169
    %s172 = sphi 0, %s171
    %s186 = sphi 0, %s172
    %s194 = sphi 0, %s196
    %s197 = sphi 0, %s194
    %s198 = sphi 0, %s197
    %s214 = sphi 0, %s198
    %s222 = sphi 0, %s224
    %s225 = sphi 0, %s222
    %s226 = sphi 0, %s225
    %s242 = sphi 0, %s226
    %s250 = sphi 0, %s252
    %s253 = sphi 0, %s250
    %s254 = sphi 0, %s253
    %s270 = sphi 0, %s254
  $region4: #{bottleneck_csp_forward.2} parent=0 // loop_header_branch
    %19 = sbr.rel (%p17) target = $region8
  $region5: #{bottleneck_csp_forward.2} parent=0 // loop_body
    %s21 = ssub.s32 %s16, 1
    %s22 = ssub.s32 %s16, 2
    %s29 = sadd.s32 1, %s24
    %p30 = scmp.ge.s32.totalorder %s29, 1
    %s31 = scalar_select %p30, 0, %s29
    %s32 = sadd.s32 1, %s23
    %s33 = scalar_select %p30, %s32, %s23
    %p34 = scmp.ge.s32.totalorder %s33, 2
    %s35 = scalar_select %p34, 0, %s33
    %s36 = ssub.s32 %s23, %s35
    %s37 = ssub.s32 %s24, %s31
    %s38 = sor.u32 %s36, %s37
    %p39 = scmp.eq.s32.totalorder %s38, 0
    %s41 = sadd.s32 %s40, 1
    %s42 = scalar_select %p39, %s40, %s41
    %p45 = pneg %p39
    %p46 = scmp.eq.s32.totalorder %s16, 1
    %p47 = por %p45, %p46
    %p48 = scmp.ne.s32.totalorder %s40, %s43
    %p49 = scmp.eq.s32.totalorder %s16, 0
    %p50 = por %p48, %p49
    %p51 = scmp.ne.s32.totalorder %s40, %s43
    %p52 = scmp.eq.s32.totalorder %s21, 1
    %p53 = por %p51, %p52
    %p54 = scmp.ne.s32.totalorder %s43, %s44
    %p55 = scmp.eq.s32.totalorder %s21, 0
    %p56 = por %p54, %p55
    %p57 = scmp.ne.s32.totalorder %s43, %s44
    %p58 = scmp.eq.s32.totalorder %s22, 1
    %p59 = por %p57, %p58
    %p61 = scmp.ne.s32.totalorder %s44, %s60
    %p62 = scmp.eq.s32.totalorder %s22, 0
    %p63 = por %p61, %p62
    %s65 = sadd.s32 %s64, 1
    %p68 = scmp.eq.s32.totalorder %s16, 1
    %p69 = scmp.ne.s32.totalorder %s64, %s66
    %p70 = scmp.eq.s32.totalorder %s16, 0
    %p71 = por %p69, %p70
    %p72 = scmp.ne.s32.totalorder %s64, %s66
    %p73 = scmp.eq.s32.totalorder %s21, 1
    %p74 = por %p72, %p73
    %p75 = scmp.ne.s32.totalorder %s66, %s67
    %p76 = scmp.eq.s32.totalorder %s21, 0
    %p77 = por %p75, %p76
    %p78 = scmp.ne.s32.totalorder %s66, %s67
    %p79 = scmp.eq.s32.totalorder %s22, 1
    %p80 = por %p78, %p79
    %p82 = scmp.ne.s32.totalorder %s67, %s81
    %p83 = scmp.eq.s32.totalorder %s22, 0
    %p84 = por %p82, %p83
    %s86 = sadd.s32 %s85, 1
    %p89 = scmp.eq.s32.totalorder %s16, 1
    %p90 = scmp.ne.s32.totalorder %s85, %s87
    %p91 = scmp.eq.s32.totalorder %s16, 0
    %p92 = por %p90, %p91
    %p93 = scmp.ne.s32.totalorder %s85, %s87
    %p94 = scmp.eq.s32.totalorder %s21, 1
    %p95 = por %p93, %p94
    %p96 = scmp.ne.s32.totalorder %s87, %s88
    %p97 = scmp.eq.s32.totalorder %s21, 0
    %p98 = por %p96, %p97
    %p99 = scmp.ne.s32.totalorder %s87, %s88
    %p100 = scmp.eq.s32.totalorder %s22, 1
    %p101 = por %p99, %p100
    %p103 = scmp.ne.s32.totalorder %s88, %s102
    %p104 = scmp.eq.s32.totalorder %s22, 0
    %p105 = por %p103, %p104
    %s107 = sadd.s32 %s106, 1
    %p110 = scmp.eq.s32.totalorder %s16, 1
    %p111 = scmp.ne.s32.totalorder %s106, %s108
    %p112 = scmp.eq.s32.totalorder %s16, 0
    %p113 = por %p111, %p112
    %p114 = scmp.ne.s32.totalorder %s106, %s108
    %p115 = scmp.eq.s32.totalorder %s21, 1
    %p116 = por %p114, %p115
    %p117 = scmp.ne.s32.totalorder %s108, %s109
    %p118 = scmp.eq.s32.totalorder %s21, 0
    %p119 = por %p117, %p118
    %p120 = scmp.ne.s32.totalorder %s108, %s109
    %p121 = scmp.eq.s32.totalorder %s22, 1
    %p122 = por %p120, %p121
    %p124 = scmp.ne.s32.totalorder %s109, %s123
    %p125 = scmp.eq.s32.totalorder %s22, 0
    %p126 = por %p124, %p125
    %s128 = sadd.s32 %s127, 1
    %p131 = scmp.eq.s32.totalorder %s16, 1
    %p132 = scmp.ne.s32.totalorder %s127, %s129
    %p133 = scmp.eq.s32.totalorder %s16, 0
    %p134 = por %p132, %p133
    %p135 = scmp.ne.s32.totalorder %s127, %s129
    %p136 = scmp.eq.s32.totalorder %s21, 1
    %p137 = por %p135, %p136
    %p138 = scmp.ne.s32.totalorder %s129, %s130
    %p139 = scmp.eq.s32.totalorder %s21, 0
    %p140 = por %p138, %p139
    %p141 = scmp.ne.s32.totalorder %s129, %s130
    %p142 = scmp.eq.s32.totalorder %s22, 1
    %p143 = por %p141, %p142
    %p145 = scmp.ne.s32.totalorder %s130, %s144
    %p146 = scmp.eq.s32.totalorder %s22, 0
    %p147 = por %p145, %p146
    %s149 = sadd.s32 %s148, 1
    %p152 = scmp.eq.s32.totalorder %s16, 1
    %p153 = scmp.ne.s32.totalorder %s148, %s150
    %p154 = scmp.eq.s32.totalorder %s16, 0
    %p155 = por %p153, %p154
    %p156 = scmp.ne.s32.totalorder %s148, %s150
    %p157 = scmp.eq.s32.totalorder %s21, 1
    %p158 = por %p156, %p157
    %p159 = scmp.ne.s32.totalorder %s150, %s151
    %p160 = scmp.eq.s32.totalorder %s21, 0
    %p161 = por %p159, %p160
    %p162 = scmp.ne.s32.totalorder %s150, %s151
    %p163 = scmp.eq.s32.totalorder %s22, 1
    %p164 = por %p162, %p163
    %p166 = scmp.ne.s32.totalorder %s151, %s165
    %p167 = scmp.eq.s32.totalorder %s22, 0
    %p168 = por %p166, %p167
    %s170 = sadd.s32 %s169, 1
    %p173 = scmp.eq.s32.totalorder %s16, 1
    %p174 = scmp.ne.s32.totalorder %s169, %s171
    %p175 = scmp.eq.s32.totalorder %s16, 0
    %p176 = por %p174, %p175
    %p177 = scmp.ne.s32.totalorder %s169, %s171
    %p178 = scmp.eq.s32.totalorder %s21, 1
    %p179 = por %p177, %p178
    %p180 = scmp.ne.s32.totalorder %s171, %s172
    %p181 = scmp.eq.s32.totalorder %s21, 0
    %p182 = por %p180, %p181
    %p183 = scmp.ne.s32.totalorder %s171, %s172
    %p184 = scmp.eq.s32.totalorder %s22, 1
    %p185 = por %p183, %p184
    %p187 = scmp.ne.s32.totalorder %s172, %s186
    %p188 = scmp.eq.s32.totalorder %s22, 0
    %p189 = por %p187, %p188
    %s190 = ssub.s32 %s23, %s35
    %s191 = ssub.s32 %s24, %s31
    %s192 = sor.u32 %s190, %s191
    %p193 = scmp.eq.s32.totalorder %s192, 0
    %s195 = sadd.s32 %s194, 1
    %s196 = scalar_select %p193, %s194, %s195
    %p199 = pneg %p193
    %p200 = scmp.eq.s32.totalorder %s16, 1
    %p201 = por %p199, %p200
    %p202 = scmp.ne.s32.totalorder %s194, %s197
    %p203 = scmp.eq.s32.totalorder %s16, 0
    %p204 = por %p202, %p203
    %p205 = scmp.ne.s32.totalorder %s194, %s197
    %p206 = scmp.eq.s32.totalorder %s21, 1
    %p207 = por %p205, %p206
    %p208 = scmp.ne.s32.totalorder %s197, %s198
    %p209 = scmp.eq.s32.totalorder %s21, 0
    %p210 = por %p208, %p209
    %p211 = scmp.ne.s32.totalorder %s197, %s198
    %p212 = scmp.eq.s32.totalorder %s22, 1
    %p213 = por %p211, %p212
    %p215 = scmp.ne.s32.totalorder %s198, %s214
    %p216 = scmp.eq.s32.totalorder %s22, 0
    %p217 = por %p215, %p216
    %s218 = ssub.s32 %s23, %s35
    %s219 = ssub.s32 %s24, %s31
    %s220 = sor.u32 %s218, %s219
    %p221 = scmp.eq.s32.totalorder %s220, 0
    %s223 = sadd.s32 %s222, 1
    %s224 = scalar_select %p221, %s222, %s223
    %p227 = pneg %p221
    %p228 = scmp.eq.s32.totalorder %s16, 1
    %p229 = por %p227, %p228
    %p230 = scmp.ne.s32.totalorder %s222, %s225
    %p231 = scmp.eq.s32.totalorder %s16, 0
    %p232 = por %p230, %p231
    %p233 = scmp.ne.s32.totalorder %s222, %s225
    %p234 = scmp.eq.s32.totalorder %s21, 1
    %p235 = por %p233, %p234
    %p236 = scmp.ne.s32.totalorder %s225, %s226
    %p237 = scmp.eq.s32.totalorder %s21, 0
    %p238 = por %p236, %p237
    %p239 = scmp.ne.s32.totalorder %s225, %s226
    %p240 = scmp.eq.s32.totalorder %s22, 1
    %p241 = por %p239, %p240
    %p243 = scmp.ne.s32.totalorder %s226, %s242
    %p244 = scmp.eq.s32.totalorder %s22, 0
    %p245 = por %p243, %p244
    %s246 = ssub.s32 %s23, %s35
    %s247 = ssub.s32 %s24, %s31
    %s248 = sor.u32 %s246, %s247
    %p249 = scmp.eq.s32.totalorder %s248, 0
    %s251 = sadd.s32 %s250, 1
    %s252 = scalar_select %p249, %s250, %s251
    %p255 = pneg %p249
    %p256 = scmp.eq.s32.totalorder %s16, 1
    %p257 = por %p255, %p256
    %p258 = scmp.ne.s32.totalorder %s250, %s253
    %p259 = scmp.eq.s32.totalorder %s16, 0
    %p260 = por %p258, %p259
    %p261 = scmp.ne.s32.totalorder %s250, %s253
    %p262 = scmp.eq.s32.totalorder %s21, 1
    %p263 = por %p261, %p262
    %p264 = scmp.ne.s32.totalorder %s253, %s254
    %p265 = scmp.eq.s32.totalorder %s21, 0
    %p266 = por %p264, %p265
    %p267 = scmp.ne.s32.totalorder %s253, %s254
    %p268 = scmp.eq.s32.totalorder %s22, 1
    %p269 = por %p267, %p268
    %p271 = scmp.ne.s32.totalorder %s254, %s270
    %p272 = scmp.eq.s32.totalorder %s22, 0
    %p273 = por %p271, %p272
    %p274 = scmp.le.s32.totalorder 1, %s16
    %p275 = scmp.lt.s32.totalorder %s16, 3
    %p276 = pnand %p274, %p275
    %p277 = pneg %p276
    // Predicated region
    $region9: #{bottleneck_csp_forward.2} parent=5 // pred_check
      _
    $region10: #{bottleneck_csp_forward.2} parent=5 // pred_check_branch
      %279 = sbr.rel (%p276) target = $region12
    $region11: #{bottleneck_csp_forward.2} parent=5 // pred_region
      %s280 = ssub.s32 %s16, 1
      // Predicated region
      $region13: #{bottleneck_csp_forward.2} parent=11 // pred_check
        %p281 = pneg %p77
      $region14: #{bottleneck_csp_forward.2} parent=11 // pred_check_branch
        %283 = sbr.rel (%p281) target = $region16
      $region15: #{bottleneck_csp_forward.2} parent=11 // pred_region
        _
      $region16: #{bottleneck_csp_forward.2} parent=11 // pred_fallthru
        _
      // Predicated region
      $region17: #{bottleneck_csp_forward.2} parent=11 // pred_check
        %p284 = pneg %p98
      $region18: #{bottleneck_csp_forward.2} parent=11 // pred_check_branch
        %286 = sbr.rel (%p284) target = $region20
      $region19: #{bottleneck_csp_forward.2} parent=11 // pred_region
        _
      $region20: #{bottleneck_csp_forward.2} parent=11 // pred_fallthru
        _
      // Predicated region
      $region21: #{bottleneck_csp_forward.2} parent=11 // pred_check
        %p287 = pneg %p119
      $region22: #{bottleneck_csp_forward.2} parent=11 // pred_check_branch
        %289 = sbr.rel (%p287) target = $region24
      $region23: #{bottleneck_csp_forward.2} parent=11 // pred_region
        _
      $region24: #{bottleneck_csp_forward.2} parent=11 // pred_fallthru
        _
      // Predicated region
      $region25: #{bottleneck_csp_forward.2} parent=11 // pred_check
        %p290 = pneg %p140
      $region26: #{bottleneck_csp_forward.2} parent=11 // pred_check_branch
        %292 = sbr.rel (%p290) target = $region28
      $region27: #{bottleneck_csp_forward.2} parent=11 // pred_region
        _
      $region28: #{bottleneck_csp_forward.2} parent=11 // pred_fallthru
        _
      // Predicated region
      $region29: #{bottleneck_csp_forward.2} parent=11 // pred_check
        %p293 = pneg %p161
      $region30: #{bottleneck_csp_forward.2} parent=11 // pred_check_branch
        %295 = sbr.rel (%p293) target = $region32
      $region31: #{bottleneck_csp_forward.2} parent=11 // pred_region
        _
      $region32: #{bottleneck_csp_forward.2} parent=11 // pred_fallthru
        _
      // Predicated region
      $region33: #{bottleneck_csp_forward.2} parent=11 // pred_check
        %p296 = pneg %p182
      $region34: #{bottleneck_csp_forward.2} parent=11 // pred_check_branch
        %298 = sbr.rel (%p296) target = $region36
      $region35: #{bottleneck_csp_forward.2} parent=11 // pred_region
        _
      $region36: #{bottleneck_csp_forward.2} parent=11 // pred_fallthru
        _
    $region12: #{bottleneck_csp_forward.2} parent=5 // pred_fallthru
      _
    %p299 = scmp.lt.s32.totalorder %s16, 2
    // Predicated region
    $region37: #{bottleneck_csp_forward.2} parent=5 // pred_check
      %p300 = pneg %p299
    $region38: #{bottleneck_csp_forward.2} parent=5 // pred_check_branch
      %302 = sbr.rel (%p300) target = $region40
    $region39: #{bottleneck_csp_forward.2} parent=5 // pred_region
      // Predicated region
      $region41: #{bottleneck_csp_forward.2} parent=39 // pred_check
        %p303 = pneg %p50
      $region42: #{bottleneck_csp_forward.2} parent=39 // pred_check_branch
        %305 = sbr.rel (%p303) target = $region44
      $region43: #{bottleneck_csp_forward.2} parent=39 // pred_region
        %s306 = smul.u32 32, %s24
        %p307 = scmp.lt.s32.totalorder %s23, 1
        %s308 = scalar_select %p307, %s23, 1
        %p309 = scmp.lt.s32.totalorder %s306, 31
        %s310 = scalar_select %p309, %s306, 31
        %s311 = smul.addr %s308, 32
        %s312 = sadd.s32 %s310, %s311
        %s313 = smul.addr %s312, 8
        %s314 = scalar_lea.vmem %s0, %s313
        %s315 = smul.u32 32, %s24
      $region44: #{bottleneck_csp_forward.2} parent=39 // pred_fallthru
        _
    $region40: #{bottleneck_csp_forward.2} parent=5 // pred_fallthru
      _
    %p316 = scmp.le.s32.totalorder 1, %s16
    %p317 = scmp.lt.s32.totalorder %s16, 3
    %p318 = pnand %p316, %p317
    %p319 = pneg %p318
    // Predicated region
    $region45: #{bottleneck_csp_forward.2} parent=5 // pred_check
      _
    $region46: #{bottleneck_csp_forward.2} parent=5 // pred_check_branch
      %321 = sbr.rel (%p318) target = $region48
    $region47: #{bottleneck_csp_forward.2} parent=5 // pred_region
      %s322 = ssub.s32 %s16, 1
      %s323 = smul.u32 32, %s26
      %p324 = scmp.lt.s32.totalorder %s25, 1
      %s325 = scalar_select %p324, %s25, 1
      %p326 = scmp.lt.s32.totalorder %s323, 31
      %s327 = scalar_select %p326, %s323, 31
      %s328 = smul.addr %s325, 32
      %s329 = sadd.s32 %s327, %s328
      %s330 = smul.addr %s329, 8
      %s331 = scalar_lea.vmem %s0, %s330
      %p332 = pneg %p56
      %p333 = pneg %p53
      %p334 = pneg %p77
      %p335 = pneg %p74
      %p336 = pneg %p98
      %p337 = pneg %p95
      %p338 = pneg %p119
      %p339 = pneg %p116
      %p340 = pneg %p140
      %p341 = pneg %p137
      %p342 = pneg %p161
      %p343 = pneg %p158
      %p344 = pneg %p182
      %p345 = pneg %p179
      %p346 = pneg %p210
      %p347 = pneg %p207
      %s348 = smul.u32 32, %s26
      %p349 = scmp.lt.s32.totalorder %s25, 1
      %s350 = scalar_select %p349, %s25, 1
      %p351 = scmp.lt.s32.totalorder %s348, 31
      %s352 = scalar_select %p351, %s348, 31
      %s353 = smul.addr %s350, 32
      %s354 = sadd.s32 %s352, %s353
      %s355 = smul.addr %s354, 8
      %s356 = scalar_lea.vmem %s7, %s355
      %p357 = pneg %p238
      %p358 = pneg %p235
      %s359 = smul.u32 32, %s26
      %p360 = scmp.lt.s32.totalorder %s25, 1
      %s361 = scalar_select %p360, %s25, 1
      %p362 = scmp.lt.s32.totalorder %s359, 31
      %s363 = scalar_select %p362, %s359, 31
      %s364 = smul.addr %s361, 32
      %s365 = sadd.s32 %s363, %s364
      %s366 = smul.addr %s365, 8
      %s367 = scalar_lea.vmem %s8, %s366
      %p368 = pneg %p266
      %p369 = pneg %p263
      %s370 = smul.u32 32, %s26
      %p371 = scmp.lt.s32.totalorder %s25, 1
      %s372 = scalar_select %p371, %s25, 1
      %p373 = scmp.lt.s32.totalorder %s370, 31
      %s374 = scalar_select %p373, %s370, 31
      %s375 = smul.addr %s372, 32
      %s376 = sadd.s32 %s374, %s375
      %s377 = smul.addr %s376, 8
      %s378 = scalar_lea.vmem %s9, %s377
      %s379 = smul.u32 32, %s26
      %p380 = scmp.lt.s32.totalorder %s25, 1
      %s381 = scalar_select %p380, %s25, 1
      %p382 = scmp.lt.s32.totalorder %s379, 31
      %s383 = scalar_select %p382, %s379, 31
      %s384 = smul.addr %s381, 32
      %s385 = sadd.s32 %s383, %s384
      %s386 = smul.addr %s385, 8
      %s387 = scalar_lea.vmem %s0, %s386
      %s388 = smul.u32 32, %s26
      %s389 = smul.u32 32, %s26
      %p390 = scmp.lt.s32.totalorder %s25, 1
      %s391 = scalar_select %p390, %s25, 1
      %p392 = scmp.lt.s32.totalorder %s389, 31
      %s393 = scalar_select %p392, %s389, 31
      %s394 = smul.addr %s391, 32
      %s395 = sadd.s32 %s393, %s394
      %s396 = smul.addr %s395, 8
      %s397 = scalar_lea.vmem %s7, %s396
      %s398 = smul.u32 32, %s26
      %s399 = smul.u32 32, %s26
      %p400 = scmp.lt.s32.totalorder %s25, 1
      %s401 = scalar_select %p400, %s25, 1
      %p402 = scmp.lt.s32.totalorder %s399, 31
      %s403 = scalar_select %p402, %s399, 31
      %s404 = smul.addr %s401, 32
      %s405 = sadd.s32 %s403, %s404
      %s406 = smul.addr %s405, 8
      %s407 = scalar_lea.vmem %s8, %s406
      %s408 = smul.u32 32, %s26
      %s409 = smul.u32 32, %s26
      %p410 = scmp.lt.s32.totalorder %s25, 1
      %s411 = scalar_select %p410, %s25, 1
      %p412 = scmp.lt.s32.totalorder %s409, 31
      %s413 = scalar_select %p412, %s409, 31
      %s414 = smul.addr %s411, 32
      %s415 = sadd.s32 %s413, %s414
      %s416 = smul.addr %s415, 8
      %s417 = scalar_lea.vmem %s9, %s416
      %s418 = smul.u32 32, %s26
      %v419 = vld [vmem:[%s387] sm:$0xff]
      %v420 = vld [vmem:[%s387 + $0x8] sm:$0xff]
      %v421 = vld [vmem:[%s387 + $0x10] sm:$0xff]
      %v422 = vld [vmem:[%s387 + $0x18] sm:$0xff]
      %v423 = vld [vmem:[%s387 + $0x20] sm:$0xff]
      %v424 = vld [vmem:[%s387 + $0x28] sm:$0xff]
      %v425 = vld [vmem:[%s387 + $0x30] sm:$0xff]
      %v426 = vld [vmem:[%s387 + $0x38] sm:$0xff]
      %v427 = vld [vmem:[%s387 + $0x40] sm:$0xff]
      %v428 = vld [vmem:[%s387 + $0x48] sm:$0xff]
      %v429 = vld [vmem:[%s387 + $0x50] sm:$0xff]
      %v430 = vld [vmem:[%s387 + $0x58] sm:$0xff]
      %v431 = vld [vmem:[%s387 + $0x60] sm:$0xff]
      %v432 = vld [vmem:[%s387 + $0x68] sm:$0xff]
      %v433 = vld [vmem:[%s387 + $0x70] sm:$0xff]
      %v434 = vld [vmem:[%s387 + $0x78] sm:$0xff]
      %v435 = vld [vmem:[%s387 + $0x80] sm:$0xff]
      %v436 = vld [vmem:[%s387 + $0x88] sm:$0xff]
      %v437 = vld [vmem:[%s387 + $0x90] sm:$0xff]
      %v438 = vld [vmem:[%s387 + $0x98] sm:$0xff]
      %v439 = vld [vmem:[%s387 + $0xa0] sm:$0xff]
      %v440 = vld [vmem:[%s387 + $0xa8] sm:$0xff]
      %v441 = vld [vmem:[%s387 + $0xb0] sm:$0xff]
      %v442 = vld [vmem:[%s387 + $0xb8] sm:$0xff]
      %v443 = vld [vmem:[%s387 + $0xc0] sm:$0xff]
      %v444 = vld [vmem:[%s387 + $0xc8] sm:$0xff]
      %v445 = vld [vmem:[%s387 + $0xd0] sm:$0xff]
      %v446 = vld [vmem:[%s387 + $0xd8] sm:$0xff]
      %v447 = vld [vmem:[%s387 + $0xe0] sm:$0xff]
      %v448 = vld [vmem:[%s387 + $0xe8] sm:$0xff]
      %v449 = vld [vmem:[%s387 + $0xf0] sm:$0xff]
      %v450 = vld [vmem:[%s387 + $0xf8] sm:$0xff]
      %v451 = vld [vmem:[%s1] sm:$0xf]
      %v452 = vld [vmem:[%s2] sm:$0x1]
      %v454 = vlaneseq
      %v455 = vshrl.u32 %v454, 7
      %v456 = vsub.s32 0, %v455
      %v457 = vrot.slane %v452, %v456
      %vm459 = vcmask 31744
      %v461 = vsel %vm459, %v419, 0
      %v464 = vsel %vm459, %v420, 0
      %v467 = vsel %vm459, %v421, 0
      %v470 = vsel %vm459, %v422, 0
      %v473 = vsel %vm459, %v423, 0
      %v476 = vsel %vm459, %v424, 0
      %v479 = vsel %vm459, %v425, 0
      %v482 = vsel %vm459, %v426, 0
      %v485 = vsel %vm459, %v427, 0
      %v488 = vsel %vm459, %v428, 0
      %v491 = vsel %vm459, %v429, 0
      %v494 = vsel %vm459, %v430, 0
      %v497 = vsel %vm459, %v431, 0
      %v500 = vsel %vm459, %v432, 0
      %v503 = vsel %vm459, %v433, 0
      %v506 = vsel %vm459, %v434, 0
      %v509 = vsel %vm459, %v435, 0
      %v512 = vsel %vm459, %v436, 0
      %v515 = vsel %vm459, %v437, 0
      %v518 = vsel %vm459, %v438, 0
      %v521 = vsel %vm459, %v439, 0
      %v524 = vsel %vm459, %v440, 0
      %v527 = vsel %vm459, %v441, 0
      %v530 = vsel %vm459, %v442, 0
      %v533 = vsel %vm459, %v443, 0
      %v536 = vsel %vm459, %v444, 0
      %v539 = vsel %vm459, %v445, 0
      %v542 = vsel %vm459, %v446, 0
      %v545 = vsel %vm459, %v447, 0
      %v548 = vsel %vm459, %v448, 0
      %v551 = vsel %vm459, %v449, 0
      %v554 = vsel %vm459, %v450, 0
      %vm556 = vcmask 1043456
      %v558 = vsel %vm556, %v451, 0
      %560 = vmatprep.subr.mxu0 0.0
      %561 = vmatpush1.msra.mxu0 0.0
      %562 = vmatprep.subr.mxu0 0.0
      %563 = vmatpush1.msra.mxu0 0.0
      %564 = vmatprep.subr.mxu0 0.0
      %565 = vmatpush1.msra.mxu0 0.0
      %566 = vmatprep.subr.mxu0 0.0
      %567 = vmatpush1.msra.mxu0 0.0
      %568 = vmatprep.subr.mxu0 0.0
      %569 = vmatpush1.msra.mxu0 0.0
      %570 = vmatprep.subr.mxu0 0.0
      %571 = vmatpush1.msra.mxu0 0.0
      %572 = vmatprep.subr.mxu0 0.0
      %573 = vmatpush1.msra.mxu0 0.0
      %574 = vmatprep.subr.mxu0 0.0
      %575 = vmatpush1.msra.mxu0 0.0
      %576 = vmatprep.subr.mxu0 0.0
      %577 = vmatpush1.msra.mxu0 0.0
      %578 = vmatprep.subr.mxu0 0.0
      %579 = vmatpush1.msra.mxu0 0.0
      %580 = vmatprep.subr.mxu0 0.0
      %581 = vmatpush1.msra.mxu0 0.0
      %582 = vmatprep.subr.mxu0 0.0
      %583 = vmatpush1.msra.mxu0 0.0
      %584 = vmatprep.subr.mxu0 0.0
      %585 = vmatpush1.msra.mxu0 0.0
      %586 = vmatprep.subr.mxu0 0.0
      %587 = vmatpush1.msra.mxu0 0.0
      %588 = vmatprep.subr.mxu0 0.0
      %589 = vmatpush1.msra.mxu0 0.0
      %590 = vmatprep.subr.mxu0 0.0
      %591 = vmatpush1.msra.mxu0 %v558
      %592 = vmatprep.subr.mxu0 0.0
      %593 = vmatpush2.msra.mxu0 0.0
      %594 = vmatprep.subr.mxu0 0.0
      %595 = vmatpush2.msra.mxu0 0.0
      %596 = vmatprep.subr.mxu0 0.0
      %597 = vmatpush2.msra.mxu0 0.0
      %598 = vmatprep.subr.mxu0 0.0
      %599 = vmatpush2.msra.mxu0 0.0
      %600 = vmatprep.subr.mxu0 0.0
      %601 = vmatpush2.msra.mxu0 0.0
      %602 = vmatprep.subr.mxu0 0.0
      %603 = vmatpush2.msra.mxu0 0.0
      %604 = vmatprep.subr.mxu0 0.0
      %605 = vmatpush2.msra.mxu0 0.0
      %606 = vmatprep.subr.mxu0 0.0
      %607 = vmatpush2.msra.mxu0 0.0
      %608 = vmatprep.subr.mxu0 0.0
      %609 = vmatpush2.msra.mxu0 0.0
      %610 = vmatprep.subr.mxu0 0.0
      %611 = vmatpush2.msra.mxu0 0.0
      %612 = vmatprep.subr.mxu0 0.0
      %613 = vmatpush2.msra.mxu0 0.0
      %614 = vmatprep.subr.mxu0 0.0
      %615 = vmatpush2.msra.mxu0 0.0
      %616 = vmatprep.subr.mxu0 0.0
      %617 = vmatpush2.msra.mxu0 0.0
      %618 = vmatprep.subr.mxu0 0.0
      %619 = vmatpush2.msra.mxu0 0.0
      %620 = vmatprep.subr.mxu0 0.0
      %621 = vmatpush2.msra.mxu0 0.0
      %622 = vmatprep.subr.mxu0 0.0
      %623 = vmatpush2.msra.mxu0 0.0
      %624 = vmatprep.mubr.f32.mxu0 0.0
      %625 = vmatmul.mubr.f32.gmra.mxu0 %v461
      %v626 = vpop.f32.mrf.mxu0
      %v627 = vadd.f32 %v457, %v626
      %v628 = vpop.f32.mrf.mxu0
      %629 = vmatprep.mubr.f32.mxu0 0.0
      %630 = vmatmul.mubr.f32.gmra.mxu0 %v464
      %v631 = vpop.f32.mrf.mxu0
      %v632 = vadd.f32 %v457, %v631
      %v633 = vpop.f32.mrf.mxu0
      %634 = vmatprep.mubr.f32.mxu0 0.0
      %635 = vmatmul.mubr.f32.gmra.mxu0 %v467
      %v636 = vpop.f32.mrf.mxu0
      %v637 = vadd.f32 %v457, %v636
      %v638 = vpop.f32.mrf.mxu0
      %639 = vmatprep.mubr.f32.mxu0 0.0
      %640 = vmatmul.mubr.f32.gmra.mxu0 %v470
      %v641 = vpop.f32.mrf.mxu0
      %v642 = vadd.f32 %v457, %v641
      %v643 = vpop.f32.mrf.mxu0
      %644 = vmatprep.mubr.f32.mxu0 0.0
      %645 = vmatmul.mubr.f32.gmra.mxu0 %v473
      %v646 = vpop.f32.mrf.mxu0
      %v647 = vadd.f32 %v457, %v646
      %v648 = vpop.f32.mrf.mxu0
      %649 = vmatprep.mubr.f32.mxu0 0.0
      %650 = vmatmul.mubr.f32.gmra.mxu0 %v476
      %v651 = vpop.f32.mrf.mxu0
      %v652 = vadd.f32 %v457, %v651
      %v653 = vpop.f32.mrf.mxu0
      %654 = vmatprep.mubr.f32.mxu0 0.0
      %655 = vmatmul.mubr.f32.gmra.mxu0 %v479
      %v656 = vpop.f32.mrf.mxu0
      %v657 = vadd.f32 %v457, %v656
      %v658 = vpop.f32.mrf.mxu0
      %659 = vmatprep.mubr.f32.mxu0 0.0
      %660 = vmatmul.mubr.f32.gmra.mxu0 %v482
      %v661 = vpop.f32.mrf.mxu0
      %v662 = vadd.f32 %v457, %v661
      %v663 = vpop.f32.mrf.mxu0
      %664 = vmatprep.mubr.f32.mxu0 0.0
      %665 = vmatmul.mubr.f32.gmra.mxu0 %v485
      %v666 = vpop.f32.mrf.mxu0
      %v667 = vadd.f32 %v457, %v666
      %v668 = vpop.f32.mrf.mxu0
      %669 = vmatprep.mubr.f32.mxu0 0.0
      %670 = vmatmul.mubr.f32.gmra.mxu0 %v488
      %v671 = vpop.f32.mrf.mxu0
      %v672 = vadd.f32 %v457, %v671
      %v673 = vpop.f32.mrf.mxu0
      %674 = vmatprep.mubr.f32.mxu0 0.0
      %675 = vmatmul.mubr.f32.gmra.mxu0 %v491
      %v676 = vpop.f32.mrf.mxu0
      %v677 = vadd.f32 %v457, %v676
      %v678 = vpop.f32.mrf.mxu0
      %679 = vmatprep.mubr.f32.mxu0 0.0
      %680 = vmatmul.mubr.f32.gmra.mxu0 %v494
      %v681 = vpop.f32.mrf.mxu0
      %v682 = vadd.f32 %v457, %v681
      %v683 = vpop.f32.mrf.mxu0
      %684 = vmatprep.mubr.f32.mxu0 0.0
      %685 = vmatmul.mubr.f32.gmra.mxu0 %v497
      %v686 = vpop.f32.mrf.mxu0
      %v687 = vadd.f32 %v457, %v686
      %v688 = vpop.f32.mrf.mxu0
      %689 = vmatprep.mubr.f32.mxu0 0.0
      %690 = vmatmul.mubr.f32.gmra.mxu0 %v500
      %v691 = vpop.f32.mrf.mxu0
      %v692 = vadd.f32 %v457, %v691
      %v693 = vpop.f32.mrf.mxu0
      %694 = vmatprep.mubr.f32.mxu0 0.0
      %695 = vmatmul.mubr.f32.gmra.mxu0 %v503
      %v696 = vpop.f32.mrf.mxu0
      %v697 = vadd.f32 %v457, %v696
      %v698 = vpop.f32.mrf.mxu0
      %699 = vmatprep.mubr.f32.mxu0 0.0
      %700 = vmatmul.mubr.f32.gmra.mxu0 %v506
      %v701 = vpop.f32.mrf.mxu0
      %v702 = vadd.f32 %v457, %v701
      %v703 = vpop.f32.mrf.mxu0
      %704 = vmatprep.mubr.f32.mxu0 0.0
      %705 = vmatmul.mubr.f32.gmra.mxu0 %v509
      %v706 = vpop.f32.mrf.mxu0
      %v707 = vadd.f32 %v457, %v706
      %v708 = vpop.f32.mrf.mxu0
      %709 = vmatprep.mubr.f32.mxu0 0.0
      %710 = vmatmul.mubr.f32.gmra.mxu0 %v512
      %v711 = vpop.f32.mrf.mxu0
      %v712 = vadd.f32 %v457, %v711
      %v713 = vpop.f32.mrf.mxu0
      %714 = vmatprep.mubr.f32.mxu0 0.0
      %715 = vmatmul.mubr.f32.gmra.mxu0 %v515
      %v716 = vpop.f32.mrf.mxu0
      %v717 = vadd.f32 %v457, %v716
      %v718 = vpop.f32.mrf.mxu0
      %719 = vmatprep.mubr.f32.mxu0 0.0
      %720 = vmatmul.mubr.f32.gmra.mxu0 %v518
      %v721 = vpop.f32.mrf.mxu0
      %v722 = vadd.f32 %v457, %v721
      %v723 = vpop.f32.mrf.mxu0
      %724 = vmatprep.mubr.f32.mxu0 0.0
      %725 = vmatmul.mubr.f32.gmra.mxu0 %v521
      %v726 = vpop.f32.mrf.mxu0
      %v727 = vadd.f32 %v457, %v726
      %v728 = vpop.f32.mrf.mxu0
      %729 = vmatprep.mubr.f32.mxu0 0.0
      %730 = vmatmul.mubr.f32.gmra.mxu0 %v524
      %v731 = vpop.f32.mrf.mxu0
      %v732 = vadd.f32 %v457, %v731
      %v733 = vpop.f32.mrf.mxu0
      %734 = vmatprep.mubr.f32.mxu0 0.0
      %735 = vmatmul.mubr.f32.gmra.mxu0 %v527
      %v736 = vpop.f32.mrf.mxu0
      %v737 = vadd.f32 %v457, %v736
      %v738 = vpop.f32.mrf.mxu0
      %739 = vmatprep.mubr.f32.mxu0 0.0
      %740 = vmatmul.mubr.f32.gmra.mxu0 %v530
      %v741 = vpop.f32.mrf.mxu0
      %v742 = vadd.f32 %v457, %v741
      %v743 = vpop.f32.mrf.mxu0
      %744 = vmatprep.mubr.f32.mxu0 0.0
      %745 = vmatmul.mubr.f32.gmra.mxu0 %v533
      %v746 = vpop.f32.mrf.mxu0
      %v747 = vadd.f32 %v457, %v746
      %v748 = vpop.f32.mrf.mxu0
      %749 = vmatprep.mubr.f32.mxu0 0.0
      %750 = vmatmul.mubr.f32.gmra.mxu0 %v536
      %v751 = vpop.f32.mrf.mxu0
      %v752 = vadd.f32 %v457, %v751
      %v753 = vpop.f32.mrf.mxu0
      %754 = vmatprep.mubr.f32.mxu0 0.0
      %755 = vmatmul.mubr.f32.gmra.mxu0 %v539
      %v756 = vpop.f32.mrf.mxu0
      %v757 = vadd.f32 %v457, %v756
      %v758 = vpop.f32.mrf.mxu0
      %759 = vmatprep.mubr.f32.mxu0 0.0
      %760 = vmatmul.mubr.f32.gmra.mxu0 %v542
      %v761 = vpop.f32.mrf.mxu0
      %v762 = vadd.f32 %v457, %v761
      %v763 = vpop.f32.mrf.mxu0
      %764 = vmatprep.mubr.f32.mxu0 0.0
      %765 = vmatmul.mubr.f32.gmra.mxu0 %v545
      %v766 = vpop.f32.mrf.mxu0
      %v767 = vadd.f32 %v457, %v766
      %v768 = vpop.f32.mrf.mxu0
      %769 = vmatprep.mubr.f32.mxu0 0.0
      %770 = vmatmul.mubr.f32.gmra.mxu0 %v548
      %v771 = vpop.f32.mrf.mxu0
      %v772 = vadd.f32 %v457, %v771
      %v773 = vpop.f32.mrf.mxu0
      %774 = vmatprep.mubr.f32.mxu0 0.0
      %775 = vmatmul.mubr.f32.gmra.mxu0 %v551
      %v776 = vpop.f32.mrf.mxu0
      %v777 = vadd.f32 %v457, %v776
      %v778 = vpop.f32.mrf.mxu0
      %779 = vmatprep.mubr.f32.mxu0 0.0
      %780 = vmatmul.mubr.f32.gmra.mxu0 %v554
      %v781 = vpop.f32.mrf.mxu0
      %v782 = vadd.f32 %v457, %v781
      %v783 = vpop.f32.mrf.mxu0
      %784 = vdwg.mxu0
      %v785 = vxor.u32 %v627, 2147483648
      %v786 = vxor.u32 %v632, 2147483648
      %v787 = vxor.u32 %v637, 2147483648
      %v788 = vxor.u32 %v642, 2147483648
      %v789 = vxor.u32 %v647, 2147483648
      %v790 = vxor.u32 %v652, 2147483648
      %v791 = vxor.u32 %v657, 2147483648
      %v792 = vxor.u32 %v662, 2147483648
      %v793 = vxor.u32 %v667, 2147483648
      %v794 = vxor.u32 %v672, 2147483648
      %v795 = vxor.u32 %v677, 2147483648
      %v796 = vxor.u32 %v682, 2147483648
      %v797 = vxor.u32 %v687, 2147483648
      %v798 = vxor.u32 %v692, 2147483648
      %v799 = vxor.u32 %v697, 2147483648
      %v800 = vxor.u32 %v702, 2147483648
      %v801 = vxor.u32 %v707, 2147483648
      %v802 = vxor.u32 %v712, 2147483648
      %v803 = vxor.u32 %v717, 2147483648
      %v804 = vxor.u32 %v722, 2147483648
      %v805 = vxor.u32 %v727, 2147483648
      %v806 = vxor.u32 %v732, 2147483648
      %v807 = vxor.u32 %v737, 2147483648
      %v808 = vxor.u32 %v742, 2147483648
      %v809 = vxor.u32 %v747, 2147483648
      %v810 = vxor.u32 %v752, 2147483648
      %v811 = vxor.u32 %v757, 2147483648
      %v812 = vxor.u32 %v762, 2147483648
      %v813 = vxor.u32 %v767, 2147483648
      %v814 = vxor.u32 %v772, 2147483648
      %v815 = vxor.u32 %v777, 2147483648
      %v816 = vxor.u32 %v782, 2147483648
      %v817 = vmul.f32 %v785, 1.442695
      %v818 = vpow.pop %v817
      %v819 = vmul.f32 %v786, 1.442695
      %v820 = vpow.pop %v819
      %v821 = vmul.f32 %v787, 1.442695
      %v822 = vpow.pop %v821
      %v823 = vmul.f32 %v788, 1.442695
      %v824 = vpow.pop %v823
      %v825 = vmul.f32 %v789, 1.442695
      %v826 = vpow.pop %v825
      %v827 = vmul.f32 %v790, 1.442695
      %v828 = vpow.pop %v827
      %v829 = vmul.f32 %v791, 1.442695
      %v830 = vpow.pop %v829
      %v831 = vmul.f32 %v792, 1.442695
      %v832 = vpow.pop %v831
      %v833 = vmul.f32 %v793, 1.442695
      %v834 = vpow.pop %v833
      %v835 = vmul.f32 %v794, 1.442695
      %v836 = vpow.pop %v835
      %v837 = vmul.f32 %v795, 1.442695
      %v838 = vpow.pop %v837
      %v839 = vmul.f32 %v796, 1.442695
      %v840 = vpow.pop %v839
      %v841 = vmul.f32 %v797, 1.442695
      %v842 = vpow.pop %v841
      %v843 = vmul.f32 %v798, 1.442695
      %v844 = vpow.pop %v843
      %v845 = vmul.f32 %v799, 1.442695
      %v846 = vpow.pop %v845
      %v847 = vmul.f32 %v800, 1.442695
      %v848 = vpow.pop %v847
      %v849 = vmul.f32 %v801, 1.442695
      %v850 = vpow.pop %v849
      %v851 = vmul.f32 %v802, 1.442695
      %v852 = vpow.pop %v851
      %v853 = vmul.f32 %v803, 1.442695
      %v854 = vpow.pop %v853
      %v855 = vmul.f32 %v804, 1.442695
      %v856 = vpow.pop %v855
      %v857 = vmul.f32 %v805, 1.442695
      %v858 = vpow.pop %v857
      %v859 = vmul.f32 %v806, 1.442695
      %v860 = vpow.pop %v859
      %v861 = vmul.f32 %v807, 1.442695
      %v862 = vpow.pop %v861
      %v863 = vmul.f32 %v808, 1.442695
      %v864 = vpow.pop %v863
      %v865 = vmul.f32 %v809, 1.442695
      %v866 = vpow.pop %v865
      %v867 = vmul.f32 %v810, 1.442695
      %v868 = vpow.pop %v867
      %v869 = vmul.f32 %v811, 1.442695
      %v870 = vpow.pop %v869
      %v871 = vmul.f32 %v812, 1.442695
      %v872 = vpow.pop %v871
      %v873 = vmul.f32 %v813, 1.442695
      %v874 = vpow.pop %v873
      %v875 = vmul.f32 %v814, 1.442695
      %v876 = vpow.pop %v875
      %v877 = vmul.f32 %v815, 1.442695
      %v878 = vpow.pop %v877
      %v879 = vmul.f32 %v816, 1.442695
      %v880 = vpow.pop %v879
      %v881 = vadd.f32 %v818, 1.0
      %v882 = vadd.f32 %v820, 1.0
      %v883 = vadd.f32 %v822, 1.0
      %v884 = vadd.f32 %v824, 1.0
      %v885 = vadd.f32 %v826, 1.0
      %v886 = vadd.f32 %v828, 1.0
      %v887 = vadd.f32 %v830, 1.0
      %v888 = vadd.f32 %v832, 1.0
      %v889 = vadd.f32 %v834, 1.0
      %v890 = vadd.f32 %v836, 1.0
      %v891 = vadd.f32 %v838, 1.0
      %v892 = vadd.f32 %v840, 1.0
      %v893 = vadd.f32 %v842, 1.0
      %v894 = vadd.f32 %v844, 1.0
      %v895 = vadd.f32 %v846, 1.0
      %v896 = vadd.f32 %v848, 1.0
      %v897 = vadd.f32 %v850, 1.0
      %v898 = vadd.f32 %v852, 1.0
      %v899 = vadd.f32 %v854, 1.0
      %v900 = vadd.f32 %v856, 1.0
      %v901 = vadd.f32 %v858, 1.0
      %v902 = vadd.f32 %v860, 1.0
      %v903 = vadd.f32 %v862, 1.0
      %v904 = vadd.f32 %v864, 1.0
      %v905 = vadd.f32 %v866, 1.0
      %v906 = vadd.f32 %v868, 1.0
      %v907 = vadd.f32 %v870, 1.0
      %v908 = vadd.f32 %v872, 1.0
      %v909 = vadd.f32 %v874, 1.0
      %v910 = vadd.f32 %v876, 1.0
      %v911 = vadd.f32 %v878, 1.0
      %v912 = vadd.f32 %v880, 1.0
      %v913 = vrcp.pop %v881
      %v914 = vmul.f32 1.0, %v913
      %v915 = vrcp.pop %v882
      %v916 = vmul.f32 1.0, %v915
      %v917 = vrcp.pop %v883
      %v918 = vmul.f32 1.0, %v917
      %v919 = vrcp.pop %v884
      %v920 = vmul.f32 1.0, %v919
      %v921 = vrcp.pop %v885
      %v922 = vmul.f32 1.0, %v921
      %v923 = vrcp.pop %v886
      %v924 = vmul.f32 1.0, %v923
      %v925 = vrcp.pop %v887
      %v926 = vmul.f32 1.0, %v925
      %v927 = vrcp.pop %v888
      %v928 = vmul.f32 1.0, %v927
      %v929 = vrcp.pop %v889
      %v930 = vmul.f32 1.0, %v929
      %v931 = vrcp.pop %v890
      %v932 = vmul.f32 1.0, %v931
      %v933 = vrcp.pop %v891
      %v934 = vmul.f32 1.0, %v933
      %v935 = vrcp.pop %v892
      %v936 = vmul.f32 1.0, %v935
      %v937 = vrcp.pop %v893
      %v938 = vmul.f32 1.0, %v937
      %v939 = vrcp.pop %v894
      %v940 = vmul.f32 1.0, %v939
      %v941 = vrcp.pop %v895
      %v942 = vmul.f32 1.0, %v941
      %v943 = vrcp.pop %v896
      %v944 = vmul.f32 1.0, %v943
      %v945 = vrcp.pop %v897
      %v946 = vmul.f32 1.0, %v945
      %v947 = vrcp.pop %v898
      %v948 = vmul.f32 1.0, %v947
      %v949 = vrcp.pop %v899
      %v950 = vmul.f32 1.0, %v949
      %v951 = vrcp.pop %v900
      %v952 = vmul.f32 1.0, %v951
      %v953 = vrcp.pop %v901
      %v954 = vmul.f32 1.0, %v953
      %v955 = vrcp.pop %v902
      %v956 = vmul.f32 1.0, %v955
      %v957 = vrcp.pop %v903
      %v958 = vmul.f32 1.0, %v957
      %v959 = vrcp.pop %v904
      %v960 = vmul.f32 1.0, %v959
      %v961 = vrcp.pop %v905
      %v962 = vmul.f32 1.0, %v961
      %v963 = vrcp.pop %v906
      %v964 = vmul.f32 1.0, %v963
      %v965 = vrcp.pop %v907
      %v966 = vmul.f32 1.0, %v965
      %v967 = vrcp.pop %v908
      %v968 = vmul.f32 1.0, %v967
      %v969 = vrcp.pop %v909
      %v970 = vmul.f32 1.0, %v969
      %v971 = vrcp.pop %v910
      %v972 = vmul.f32 1.0, %v971
      %v973 = vrcp.pop %v911
      %v974 = vmul.f32 1.0, %v973
      %v975 = vrcp.pop %v912
      %v976 = vmul.f32 1.0, %v975
      %v977 = vmul.f32 %v627, %v914
      %v978 = vmul.f32 %v632, %v916
      %v979 = vmul.f32 %v637, %v918
      %v980 = vmul.f32 %v642, %v920
      %v981 = vmul.f32 %v647, %v922
      %v982 = vmul.f32 %v652, %v924
      %v983 = vmul.f32 %v657, %v926
      %v984 = vmul.f32 %v662, %v928
      %v985 = vmul.f32 %v667, %v930
      %v986 = vmul.f32 %v672, %v932
      %v987 = vmul.f32 %v677, %v934
      %v988 = vmul.f32 %v682, %v936
      %v989 = vmul.f32 %v687, %v938
      %v990 = vmul.f32 %v692, %v940
      %v991 = vmul.f32 %v697, %v942
      %v992 = vmul.f32 %v702, %v944
      %v993 = vmul.f32 %v707, %v946
      %v994 = vmul.f32 %v712, %v948
      %v995 = vmul.f32 %v717, %v950
      %v996 = vmul.f32 %v722, %v952
      %v997 = vmul.f32 %v727, %v954
      %v998 = vmul.f32 %v732, %v956
      %v999 = vmul.f32 %v737, %v958
      %v1000 = vmul.f32 %v742, %v960
      %v1001 = vmul.f32 %v747, %v962
      %v1002 = vmul.f32 %v752, %v964
      %v1003 = vmul.f32 %v757, %v966
      %v1004 = vmul.f32 %v762, %v968
      %v1005 = vmul.f32 %v767, %v970
      %v1006 = vmul.f32 %v772, %v972
      %v1007 = vmul.f32 %v777, %v974
      %v1008 = vmul.f32 %v782, %v976
      %1009 = vst.msk [vmem:[%s397] sm:$0xff] %vm459, %v977
      %1010 = vst.msk [vmem:[%s397 + $0x8] sm:$0xff] %vm459, %v978
      %1011 = vst.msk [vmem:[%s397 + $0x10] sm:$0xff] %vm459, %v979
      %1012 = vst.msk [vmem:[%s397 + $0x18] sm:$0xff] %vm459, %v980
      %1013 = vst.msk [vmem:[%s397 + $0x20] sm:$0xff] %vm459, %v981
      %1014 = vst.msk [vmem:[%s397 + $0x28] sm:$0xff] %vm459, %v982
      %1015 = vst.msk [vmem:[%s397 + $0x30] sm:$0xff] %vm459, %v983
      %1016 = vst.msk [vmem:[%s397 + $0x38] sm:$0xff] %vm459, %v984
      %1017 = vst.msk [vmem:[%s397 + $0x40] sm:$0xff] %vm459, %v985
      %1018 = vst.msk [vmem:[%s397 + $0x48] sm:$0xff] %vm459, %v986
      %1019 = vst.msk [vmem:[%s397 + $0x50] sm:$0xff] %vm459, %v987
      %1020 = vst.msk [vmem:[%s397 + $0x58] sm:$0xff] %vm459, %v988
      %1021 = vst.msk [vmem:[%s397 + $0x60] sm:$0xff] %vm459, %v989
      %1022 = vst.msk [vmem:[%s397 + $0x68] sm:$0xff] %vm459, %v990
      %1023 = vst.msk [vmem:[%s397 + $0x70] sm:$0xff] %vm459, %v991
      %1024 = vst.msk [vmem:[%s397 + $0x78] sm:$0xff] %vm459, %v992
      %1025 = vst.msk [vmem:[%s397 + $0x80] sm:$0xff] %vm459, %v993
      %1026 = vst.msk [vmem:[%s397 + $0x88] sm:$0xff] %vm459, %v994
      %1027 = vst.msk [vmem:[%s397 + $0x90] sm:$0xff] %vm459, %v995
      %1028 = vst.msk [vmem:[%s397 + $0x98] sm:$0xff] %vm459, %v996
      %1029 = vst.msk [vmem:[%s397 + $0xa0] sm:$0xff] %vm459, %v997
      %1030 = vst.msk [vmem:[%s397 + $0xa8] sm:$0xff] %vm459, %v998
      %1031 = vst.msk [vmem:[%s397 + $0xb0] sm:$0xff] %vm459, %v999
      %1032 = vst.msk [vmem:[%s397 + $0xb8] sm:$0xff] %vm459, %v1000
      %1033 = vst.msk [vmem:[%s397 + $0xc0] sm:$0xff] %vm459, %v1001
      %1034 = vst.msk [vmem:[%s397 + $0xc8] sm:$0xff] %vm459, %v1002
      %1035 = vst.msk [vmem:[%s397 + $0xd0] sm:$0xff] %vm459, %v1003
      %1036 = vst.msk [vmem:[%s397 + $0xd8] sm:$0xff] %vm459, %v1004
      %1037 = vst.msk [vmem:[%s397 + $0xe0] sm:$0xff] %vm459, %v1005
      %1038 = vst.msk [vmem:[%s397 + $0xe8] sm:$0xff] %vm459, %v1006
      %1039 = vst.msk [vmem:[%s397 + $0xf0] sm:$0xff] %vm459, %v1007
      %1040 = vst.msk [vmem:[%s397 + $0xf8] sm:$0xff] %vm459, %v1008
      %v1041 = vld [vmem:[%s3] sm:$0xf]
      %v1042 = vld [vmem:[%s4] sm:$0x1]
      %v1044 = vlaneseq
      %v1045 = vshrl.u32 %v1044, 7
      %v1046 = vsub.s32 0, %v1045
      %v1047 = vrot.slane %v1042, %v1046
      %v1050 = vsel %vm459, %v977, 0
      %v1053 = vsel %vm459, %v978, 0
      %v1056 = vsel %vm459, %v979, 0
      %v1059 = vsel %vm459, %v980, 0
      %v1062 = vsel %vm459, %v981, 0
      %v1065 = vsel %vm459, %v982, 0
      %v1068 = vsel %vm459, %v983, 0
      %v1071 = vsel %vm459, %v984, 0
      %v1074 = vsel %vm459, %v985, 0
      %v1077 = vsel %vm459, %v986, 0
      %v1080 = vsel %vm459, %v987, 0
      %v1083 = vsel %vm459, %v988, 0
      %v1086 = vsel %vm459, %v989, 0
      %v1089 = vsel %vm459, %v990, 0
      %v1092 = vsel %vm459, %v991, 0
      %v1095 = vsel %vm459, %v992, 0
      %v1098 = vsel %vm459, %v993, 0
      %v1101 = vsel %vm459, %v994, 0
      %v1104 = vsel %vm459, %v995, 0
      %v1107 = vsel %vm459, %v996, 0
      %v1110 = vsel %vm459, %v997, 0
      %v1113 = vsel %vm459, %v998, 0
      %v1116 = vsel %vm459, %v999, 0
      %v1119 = vsel %vm459, %v1000, 0
      %v1122 = vsel %vm459, %v1001, 0
      %v1125 = vsel %vm459, %v1002, 0
      %v1128 = vsel %vm459, %v1003, 0
      %v1131 = vsel %vm459, %v1004, 0
      %v1134 = vsel %vm459, %v1005, 0
      %v1137 = vsel %vm459, %v1006, 0
      %v1140 = vsel %vm459, %v1007, 0
      %v1143 = vsel %vm459, %v1008, 0
      %v1146 = vsel %vm556, %v1041, 0
      %1148 = vmatprep.subr.mxu0 0.0
      %1149 = vmatpush1.msra.mxu0 0.0
      %1150 = vmatprep.subr.mxu0 0.0
      %1151 = vmatpush1.msra.mxu0 0.0
      %1152 = vmatprep.subr.mxu0 0.0
      %1153 = vmatpush1.msra.mxu0 0.0
      %1154 = vmatprep.subr.mxu0 0.0
      %1155 = vmatpush1.msra.mxu0 0.0
      %1156 = vmatprep.subr.mxu0 0.0
      %1157 = vmatpush1.msra.mxu0 0.0
      %1158 = vmatprep.subr.mxu0 0.0
      %1159 = vmatpush1.msra.mxu0 0.0
      %1160 = vmatprep.subr.mxu0 0.0
      %1161 = vmatpush1.msra.mxu0 0.0
      %1162 = vmatprep.subr.mxu0 0.0
      %1163 = vmatpush1.msra.mxu0 0.0
      %1164 = vmatprep.subr.mxu0 0.0
      %1165 = vmatpush1.msra.mxu0 0.0
      %1166 = vmatprep.subr.mxu0 0.0
      %1167 = vmatpush1.msra.mxu0 0.0
      %1168 = vmatprep.subr.mxu0 0.0
      %1169 = vmatpush1.msra.mxu0 0.0
      %1170 = vmatprep.subr.mxu0 0.0
      %1171 = vmatpush1.msra.mxu0 0.0
      %1172 = vmatprep.subr.mxu0 0.0
      %1173 = vmatpush1.msra.mxu0 0.0
      %1174 = vmatprep.subr.mxu0 0.0
      %1175 = vmatpush1.msra.mxu0 0.0
      %1176 = vmatprep.subr.mxu0 0.0
      %1177 = vmatpush1.msra.mxu0 0.0
      %1178 = vmatprep.subr.mxu0 0.0
      %1179 = vmatpush1.msra.mxu0 %v1146
      %1180 = vmatprep.subr.mxu0 0.0
      %1181 = vmatpush2.msra.mxu0 0.0
      %1182 = vmatprep.subr.mxu0 0.0
      %1183 = vmatpush2.msra.mxu0 0.0
      %1184 = vmatprep.subr.mxu0 0.0
      %1185 = vmatpush2.msra.mxu0 0.0
      %1186 = vmatprep.subr.mxu0 0.0
      %1187 = vmatpush2.msra.mxu0 0.0
      %1188 = vmatprep.subr.mxu0 0.0
      %1189 = vmatpush2.msra.mxu0 0.0
      %1190 = vmatprep.subr.mxu0 0.0
      %1191 = vmatpush2.msra.mxu0 0.0
      %1192 = vmatprep.subr.mxu0 0.0
      %1193 = vmatpush2.msra.mxu0 0.0
      %1194 = vmatprep.subr.mxu0 0.0
      %1195 = vmatpush2.msra.mxu0 0.0
      %1196 = vmatprep.subr.mxu0 0.0
      %1197 = vmatpush2.msra.mxu0 0.0
      %1198 = vmatprep.subr.mxu0 0.0
      %1199 = vmatpush2.msra.mxu0 0.0
      %1200 = vmatprep.subr.mxu0 0.0
      %1201 = vmatpush2.msra.mxu0 0.0
      %1202 = vmatprep.subr.mxu0 0.0
      %1203 = vmatpush2.msra.mxu0 0.0
      %1204 = vmatprep.subr.mxu0 0.0
      %1205 = vmatpush2.msra.mxu0 0.0
      %1206 = vmatprep.subr.mxu0 0.0
      %1207 = vmatpush2.msra.mxu0 0.0
      %1208 = vmatprep.subr.mxu0 0.0
      %1209 = vmatpush2.msra.mxu0 0.0
      %1210 = vmatprep.subr.mxu0 0.0
      %1211 = vmatpush2.msra.mxu0 0.0
      %1212 = vmatprep.mubr.f32.mxu0 0.0
      %1213 = vmatmul.mubr.f32.gmra.mxu0 %v1050
      %v1214 = vpop.f32.mrf.mxu0
      %v1215 = vadd.f32 %v1047, %v1214
      %v1216 = vpop.f32.mrf.mxu0
      %1217 = vmatprep.mubr.f32.mxu0 0.0
      %1218 = vmatmul.mubr.f32.gmra.mxu0 %v1053
      %v1219 = vpop.f32.mrf.mxu0
      %v1220 = vadd.f32 %v1047, %v1219
      %v1221 = vpop.f32.mrf.mxu0
      %1222 = vmatprep.mubr.f32.mxu0 0.0
      %1223 = vmatmul.mubr.f32.gmra.mxu0 %v1056
      %v1224 = vpop.f32.mrf.mxu0
      %v1225 = vadd.f32 %v1047, %v1224
      %v1226 = vpop.f32.mrf.mxu0
      %1227 = vmatprep.mubr.f32.mxu0 0.0
      %1228 = vmatmul.mubr.f32.gmra.mxu0 %v1059
      %v1229 = vpop.f32.mrf.mxu0
      %v1230 = vadd.f32 %v1047, %v1229
      %v1231 = vpop.f32.mrf.mxu0
      %1232 = vmatprep.mubr.f32.mxu0 0.0
      %1233 = vmatmul.mubr.f32.gmra.mxu0 %v1062
      %v1234 = vpop.f32.mrf.mxu0
      %v1235 = vadd.f32 %v1047, %v1234
      %v1236 = vpop.f32.mrf.mxu0
      %1237 = vmatprep.mubr.f32.mxu0 0.0
      %1238 = vmatmul.mubr.f32.gmra.mxu0 %v1065
      %v1239 = vpop.f32.mrf.mxu0
      %v1240 = vadd.f32 %v1047, %v1239
      %v1241 = vpop.f32.mrf.mxu0
      %1242 = vmatprep.mubr.f32.mxu0 0.0
      %1243 = vmatmul.mubr.f32.gmra.mxu0 %v1068
      %v1244 = vpop.f32.mrf.mxu0
      %v1245 = vadd.f32 %v1047, %v1244
      %v1246 = vpop.f32.mrf.mxu0
      %1247 = vmatprep.mubr.f32.mxu0 0.0
      %1248 = vmatmul.mubr.f32.gmra.mxu0 %v1071
      %v1249 = vpop.f32.mrf.mxu0
      %v1250 = vadd.f32 %v1047, %v1249
      %v1251 = vpop.f32.mrf.mxu0
      %1252 = vmatprep.mubr.f32.mxu0 0.0
      %1253 = vmatmul.mubr.f32.gmra.mxu0 %v1074
      %v1254 = vpop.f32.mrf.mxu0
      %v1255 = vadd.f32 %v1047, %v1254
      %v1256 = vpop.f32.mrf.mxu0
      %1257 = vmatprep.mubr.f32.mxu0 0.0
      %1258 = vmatmul.mubr.f32.gmra.mxu0 %v1077
      %v1259 = vpop.f32.mrf.mxu0
      %v1260 = vadd.f32 %v1047, %v1259
      %v1261 = vpop.f32.mrf.mxu0
      %1262 = vmatprep.mubr.f32.mxu0 0.0
      %1263 = vmatmul.mubr.f32.gmra.mxu0 %v1080
      %v1264 = vpop.f32.mrf.mxu0
      %v1265 = vadd.f32 %v1047, %v1264
      %v1266 = vpop.f32.mrf.mxu0
      %1267 = vmatprep.mubr.f32.mxu0 0.0
      %1268 = vmatmul.mubr.f32.gmra.mxu0 %v1083
      %v1269 = vpop.f32.mrf.mxu0
      %v1270 = vadd.f32 %v1047, %v1269
      %v1271 = vpop.f32.mrf.mxu0
      %1272 = vmatprep.mubr.f32.mxu0 0.0
      %1273 = vmatmul.mubr.f32.gmra.mxu0 %v1086
      %v1274 = vpop.f32.mrf.mxu0
      %v1275 = vadd.f32 %v1047, %v1274
      %v1276 = vpop.f32.mrf.mxu0
      %1277 = vmatprep.mubr.f32.mxu0 0.0
      %1278 = vmatmul.mubr.f32.gmra.mxu0 %v1089
      %v1279 = vpop.f32.mrf.mxu0
      %v1280 = vadd.f32 %v1047, %v1279
      %v1281 = vpop.f32.mrf.mxu0
      %1282 = vmatprep.mubr.f32.mxu0 0.0
      %1283 = vmatmul.mubr.f32.gmra.mxu0 %v1092
      %v1284 = vpop.f32.mrf.mxu0
      %v1285 = vadd.f32 %v1047, %v1284
      %v1286 = vpop.f32.mrf.mxu0
      %1287 = vmatprep.mubr.f32.mxu0 0.0
      %1288 = vmatmul.mubr.f32.gmra.mxu0 %v1095
      %v1289 = vpop.f32.mrf.mxu0
      %v1290 = vadd.f32 %v1047, %v1289
      %v1291 = vpop.f32.mrf.mxu0
      %1292 = vmatprep.mubr.f32.mxu0 0.0
      %1293 = vmatmul.mubr.f32.gmra.mxu0 %v1098
      %v1294 = vpop.f32.mrf.mxu0
      %v1295 = vadd.f32 %v1047, %v1294
      %v1296 = vpop.f32.mrf.mxu0
      %1297 = vmatprep.mubr.f32.mxu0 0.0
      %1298 = vmatmul.mubr.f32.gmra.mxu0 %v1101
      %v1299 = vpop.f32.mrf.mxu0
      %v1300 = vadd.f32 %v1047, %v1299
      %v1301 = vpop.f32.mrf.mxu0
      %1302 = vmatprep.mubr.f32.mxu0 0.0
      %1303 = vmatmul.mubr.f32.gmra.mxu0 %v1104
      %v1304 = vpop.f32.mrf.mxu0
      %v1305 = vadd.f32 %v1047, %v1304
      %v1306 = vpop.f32.mrf.mxu0
      %1307 = vmatprep.mubr.f32.mxu0 0.0
      %1308 = vmatmul.mubr.f32.gmra.mxu0 %v1107
      %v1309 = vpop.f32.mrf.mxu0
      %v1310 = vadd.f32 %v1047, %v1309
      %v1311 = vpop.f32.mrf.mxu0
      %1312 = vmatprep.mubr.f32.mxu0 0.0
      %1313 = vmatmul.mubr.f32.gmra.mxu0 %v1110
      %v1314 = vpop.f32.mrf.mxu0
      %v1315 = vadd.f32 %v1047, %v1314
      %v1316 = vpop.f32.mrf.mxu0
      %1317 = vmatprep.mubr.f32.mxu0 0.0
      %1318 = vmatmul.mubr.f32.gmra.mxu0 %v1113
      %v1319 = vpop.f32.mrf.mxu0
      %v1320 = vadd.f32 %v1047, %v1319
      %v1321 = vpop.f32.mrf.mxu0
      %1322 = vmatprep.mubr.f32.mxu0 0.0
      %1323 = vmatmul.mubr.f32.gmra.mxu0 %v1116
      %v1324 = vpop.f32.mrf.mxu0
      %v1325 = vadd.f32 %v1047, %v1324
      %v1326 = vpop.f32.mrf.mxu0
      %1327 = vmatprep.mubr.f32.mxu0 0.0
      %1328 = vmatmul.mubr.f32.gmra.mxu0 %v1119
      %v1329 = vpop.f32.mrf.mxu0
      %v1330 = vadd.f32 %v1047, %v1329
      %v1331 = vpop.f32.mrf.mxu0
      %1332 = vmatprep.mubr.f32.mxu0 0.0
      %1333 = vmatmul.mubr.f32.gmra.mxu0 %v1122
      %v1334 = vpop.f32.mrf.mxu0
      %v1335 = vadd.f32 %v1047, %v1334
      %v1336 = vpop.f32.mrf.mxu0
      %1337 = vmatprep.mubr.f32.mxu0 0.0
      %1338 = vmatmul.mubr.f32.gmra.mxu0 %v1125
      %v1339 = vpop.f32.mrf.mxu0
      %v1340 = vadd.f32 %v1047, %v1339
      %v1341 = vpop.f32.mrf.mxu0
      %1342 = vmatprep.mubr.f32.mxu0 0.0
      %1343 = vmatmul.mubr.f32.gmra.mxu0 %v1128
      %v1344 = vpop.f32.mrf.mxu0
      %v1345 = vadd.f32 %v1047, %v1344
      %v1346 = vpop.f32.mrf.mxu0
      %1347 = vmatprep.mubr.f32.mxu0 0.0
      %1348 = vmatmul.mubr.f32.gmra.mxu0 %v1131
      %v1349 = vpop.f32.mrf.mxu0
      %v1350 = vadd.f32 %v1047, %v1349
      %v1351 = vpop.f32.mrf.mxu0
      %1352 = vmatprep.mubr.f32.mxu0 0.0
      %1353 = vmatmul.mubr.f32.gmra.mxu0 %v1134
      %v1354 = vpop.f32.mrf.mxu0
      %v1355 = vadd.f32 %v1047, %v1354
      %v1356 = vpop.f32.mrf.mxu0
      %1357 = vmatprep.mubr.f32.mxu0 0.0
      %1358 = vmatmul.mubr.f32.gmra.mxu0 %v1137
      %v1359 = vpop.f32.mrf.mxu0
      %v1360 = vadd.f32 %v1047, %v1359
      %v1361 = vpop.f32.mrf.mxu0
      %1362 = vmatprep.mubr.f32.mxu0 0.0
      %1363 = vmatmul.mubr.f32.gmra.mxu0 %v1140
      %v1364 = vpop.f32.mrf.mxu0
      %v1365 = vadd.f32 %v1047, %v1364
      %v1366 = vpop.f32.mrf.mxu0
      %1367 = vmatprep.mubr.f32.mxu0 0.0
      %1368 = vmatmul.mubr.f32.gmra.mxu0 %v1143
      %v1369 = vpop.f32.mrf.mxu0
      %v1370 = vadd.f32 %v1047, %v1369
      %v1371 = vpop.f32.mrf.mxu0
      %1372 = vdwg.mxu0
      %v1373 = vxor.u32 %v1215, 2147483648
      %v1374 = vxor.u32 %v1220, 2147483648
      %v1375 = vxor.u32 %v1225, 2147483648
      %v1376 = vxor.u32 %v1230, 2147483648
      %v1377 = vxor.u32 %v1235, 2147483648
      %v1378 = vxor.u32 %v1240, 2147483648
      %v1379 = vxor.u32 %v1245, 2147483648
      %v1380 = vxor.u32 %v1250, 2147483648
      %v1381 = vxor.u32 %v1255, 2147483648
      %v1382 = vxor.u32 %v1260, 2147483648
      %v1383 = vxor.u32 %v1265, 2147483648
      %v1384 = vxor.u32 %v1270, 2147483648
      %v1385 = vxor.u32 %v1275, 2147483648
      %v1386 = vxor.u32 %v1280, 2147483648
      %v1387 = vxor.u32 %v1285, 2147483648
      %v1388 = vxor.u32 %v1290, 2147483648
      %v1389 = vxor.u32 %v1295, 2147483648
      %v1390 = vxor.u32 %v1300, 2147483648
      %v1391 = vxor.u32 %v1305, 2147483648
      %v1392 = vxor.u32 %v1310, 2147483648
      %v1393 = vxor.u32 %v1315, 2147483648
      %v1394 = vxor.u32 %v1320, 2147483648
      %v1395 = vxor.u32 %v1325, 2147483648
      %v1396 = vxor.u32 %v1330, 2147483648
      %v1397 = vxor.u32 %v1335, 2147483648
      %v1398 = vxor.u32 %v1340, 2147483648
      %v1399 = vxor.u32 %v1345, 2147483648
      %v1400 = vxor.u32 %v1350, 2147483648
      %v1401 = vxor.u32 %v1355, 2147483648
      %v1402 = vxor.u32 %v1360, 2147483648
      %v1403 = vxor.u32 %v1365, 2147483648
      %v1404 = vxor.u32 %v1370, 2147483648
      %v1405 = vmul.f32 %v1373, 1.442695
      %v1406 = vpow.pop %v1405
      %v1407 = vmul.f32 %v1374, 1.442695
      %v1408 = vpow.pop %v1407
      %v1409 = vmul.f32 %v1375, 1.442695
      %v1410 = vpow.pop %v1409
      %v1411 = vmul.f32 %v1376, 1.442695
      %v1412 = vpow.pop %v1411
      %v1413 = vmul.f32 %v1377, 1.442695
      %v1414 = vpow.pop %v1413
      %v1415 = vmul.f32 %v1378, 1.442695
      %v1416 = vpow.pop %v1415
      %v1417 = vmul.f32 %v1379, 1.442695
      %v1418 = vpow.pop %v1417
      %v1419 = vmul.f32 %v1380, 1.442695
      %v1420 = vpow.pop %v1419
      %v1421 = vmul.f32 %v1381, 1.442695
      %v1422 = vpow.pop %v1421
      %v1423 = vmul.f32 %v1382, 1.442695
      %v1424 = vpow.pop %v1423
      %v1425 = vmul.f32 %v1383, 1.442695
      %v1426 = vpow.pop %v1425
      %v1427 = vmul.f32 %v1384, 1.442695
      %v1428 = vpow.pop %v1427
      %v1429 = vmul.f32 %v1385, 1.442695
      %v1430 = vpow.pop %v1429
      %v1431 = vmul.f32 %v1386, 1.442695
      %v1432 = vpow.pop %v1431
      %v1433 = vmul.f32 %v1387, 1.442695
      %v1434 = vpow.pop %v1433
      %v1435 = vmul.f32 %v1388, 1.442695
      %v1436 = vpow.pop %v1435
      %v1437 = vmul.f32 %v1389, 1.442695
      %v1438 = vpow.pop %v1437
      %v1439 = vmul.f32 %v1390, 1.442695
      %v1440 = vpow.pop %v1439
      %v1441 = vmul.f32 %v1391, 1.442695
      %v1442 = vpow.pop %v1441
      %v1443 = vmul.f32 %v1392, 1.442695
      %v1444 = vpow.pop %v1443
      %v1445 = vmul.f32 %v1393, 1.442695
      %v1446 = vpow.pop %v1445
      %v1447 = vmul.f32 %v1394, 1.442695
      %v1448 = vpow.pop %v1447
      %v1449 = vmul.f32 %v1395, 1.442695
      %v1450 = vpow.pop %v1449
      %v1451 = vmul.f32 %v1396, 1.442695
      %v1452 = vpow.pop %v1451
      %v1453 = vmul.f32 %v1397, 1.442695
      %v1454 = vpow.pop %v1453
      %v1455 = vmul.f32 %v1398, 1.442695
      %v1456 = vpow.pop %v1455
      %v1457 = vmul.f32 %v1399, 1.442695
      %v1458 = vpow.pop %v1457
      %v1459 = vmul.f32 %v1400, 1.442695
      %v1460 = vpow.pop %v1459
      %v1461 = vmul.f32 %v1401, 1.442695
      %v1462 = vpow.pop %v1461
      %v1463 = vmul.f32 %v1402, 1.442695
      %v1464 = vpow.pop %v1463
      %v1465 = vmul.f32 %v1403, 1.442695
      %v1466 = vpow.pop %v1465
      %v1467 = vmul.f32 %v1404, 1.442695
      %v1468 = vpow.pop %v1467
      %v1469 = vadd.f32 %v1406, 1.0
      %v1470 = vadd.f32 %v1408, 1.0
      %v1471 = vadd.f32 %v1410, 1.0
      %v1472 = vadd.f32 %v1412, 1.0
      %v1473 = vadd.f32 %v1414, 1.0
      %v1474 = vadd.f32 %v1416, 1.0
      %v1475 = vadd.f32 %v1418, 1.0
      %v1476 = vadd.f32 %v1420, 1.0
      %v1477 = vadd.f32 %v1422, 1.0
      %v1478 = vadd.f32 %v1424, 1.0
      %v1479 = vadd.f32 %v1426, 1.0
      %v1480 = vadd.f32 %v1428, 1.0
      %v1481 = vadd.f32 %v1430, 1.0
      %v1482 = vadd.f32 %v1432, 1.0
      %v1483 = vadd.f32 %v1434, 1.0
      %v1484 = vadd.f32 %v1436, 1.0
      %v1485 = vadd.f32 %v1438, 1.0
      %v1486 = vadd.f32 %v1440, 1.0
      %v1487 = vadd.f32 %v1442, 1.0
      %v1488 = vadd.f32 %v1444, 1.0
      %v1489 = vadd.f32 %v1446, 1.0
      %v1490 = vadd.f32 %v1448, 1.0
      %v1491 = vadd.f32 %v1450, 1.0
      %v1492 = vadd.f32 %v1452, 1.0
      %v1493 = vadd.f32 %v1454, 1.0
      %v1494 = vadd.f32 %v1456, 1.0
      %v1495 = vadd.f32 %v1458, 1.0
      %v1496 = vadd.f32 %v1460, 1.0
      %v1497 = vadd.f32 %v1462, 1.0
      %v1498 = vadd.f32 %v1464, 1.0
      %v1499 = vadd.f32 %v1466, 1.0
      %v1500 = vadd.f32 %v1468, 1.0
      %v1501 = vrcp.pop %v1469
      %v1502 = vmul.f32 1.0, %v1501
      %v1503 = vrcp.pop %v1470
      %v1504 = vmul.f32 1.0, %v1503
      %v1505 = vrcp.pop %v1471
      %v1506 = vmul.f32 1.0, %v1505
      %v1507 = vrcp.pop %v1472
      %v1508 = vmul.f32 1.0, %v1507
      %v1509 = vrcp.pop %v1473
      %v1510 = vmul.f32 1.0, %v1509
      %v1511 = vrcp.pop %v1474
      %v1512 = vmul.f32 1.0, %v1511
      %v1513 = vrcp.pop %v1475
      %v1514 = vmul.f32 1.0, %v1513
      %v1515 = vrcp.pop %v1476
      %v1516 = vmul.f32 1.0, %v1515
      %v1517 = vrcp.pop %v1477
      %v1518 = vmul.f32 1.0, %v1517
      %v1519 = vrcp.pop %v1478
      %v1520 = vmul.f32 1.0, %v1519
      %v1521 = vrcp.pop %v1479
      %v1522 = vmul.f32 1.0, %v1521
      %v1523 = vrcp.pop %v1480
      %v1524 = vmul.f32 1.0, %v1523
      %v1525 = vrcp.pop %v1481
      %v1526 = vmul.f32 1.0, %v1525
      %v1527 = vrcp.pop %v1482
      %v1528 = vmul.f32 1.0, %v1527
      %v1529 = vrcp.pop %v1483
      %v1530 = vmul.f32 1.0, %v1529
      %v1531 = vrcp.pop %v1484
      %v1532 = vmul.f32 1.0, %v1531
      %v1533 = vrcp.pop %v1485
      %v1534 = vmul.f32 1.0, %v1533
      %v1535 = vrcp.pop %v1486
      %v1536 = vmul.f32 1.0, %v1535
      %v1537 = vrcp.pop %v1487
      %v1538 = vmul.f32 1.0, %v1537
      %v1539 = vrcp.pop %v1488
      %v1540 = vmul.f32 1.0, %v1539
      %v1541 = vrcp.pop %v1489
      %v1542 = vmul.f32 1.0, %v1541
      %v1543 = vrcp.pop %v1490
      %v1544 = vmul.f32 1.0, %v1543
      %v1545 = vrcp.pop %v1491
      %v1546 = vmul.f32 1.0, %v1545
      %v1547 = vrcp.pop %v1492
      %v1548 = vmul.f32 1.0, %v1547
      %v1549 = vrcp.pop %v1493
      %v1550 = vmul.f32 1.0, %v1549
      %v1551 = vrcp.pop %v1494
      %v1552 = vmul.f32 1.0, %v1551
      %v1553 = vrcp.pop %v1495
      %v1554 = vmul.f32 1.0, %v1553
      %v1555 = vrcp.pop %v1496
      %v1556 = vmul.f32 1.0, %v1555
      %v1557 = vrcp.pop %v1497
      %v1558 = vmul.f32 1.0, %v1557
      %v1559 = vrcp.pop %v1498
      %v1560 = vmul.f32 1.0, %v1559
      %v1561 = vrcp.pop %v1499
      %v1562 = vmul.f32 1.0, %v1561
      %v1563 = vrcp.pop %v1500
      %v1564 = vmul.f32 1.0, %v1563
      %v1565 = vmul.f32 %v1215, %v1502
      %v1566 = vmul.f32 %v1220, %v1504
      %v1567 = vmul.f32 %v1225, %v1506
      %v1568 = vmul.f32 %v1230, %v1508
      %v1569 = vmul.f32 %v1235, %v1510
      %v1570 = vmul.f32 %v1240, %v1512
      %v1571 = vmul.f32 %v1245, %v1514
      %v1572 = vmul.f32 %v1250, %v1516
      %v1573 = vmul.f32 %v1255, %v1518
      %v1574 = vmul.f32 %v1260, %v1520
      %v1575 = vmul.f32 %v1265, %v1522
      %v1576 = vmul.f32 %v1270, %v1524
      %v1577 = vmul.f32 %v1275, %v1526
      %v1578 = vmul.f32 %v1280, %v1528
      %v1579 = vmul.f32 %v1285, %v1530
      %v1580 = vmul.f32 %v1290, %v1532
      %v1581 = vmul.f32 %v1295, %v1534
      %v1582 = vmul.f32 %v1300, %v1536
      %v1583 = vmul.f32 %v1305, %v1538
      %v1584 = vmul.f32 %v1310, %v1540
      %v1585 = vmul.f32 %v1315, %v1542
      %v1586 = vmul.f32 %v1320, %v1544
      %v1587 = vmul.f32 %v1325, %v1546
      %v1588 = vmul.f32 %v1330, %v1548
      %v1589 = vmul.f32 %v1335, %v1550
      %v1590 = vmul.f32 %v1340, %v1552
      %v1591 = vmul.f32 %v1345, %v1554
      %v1592 = vmul.f32 %v1350, %v1556
      %v1593 = vmul.f32 %v1355, %v1558
      %v1594 = vmul.f32 %v1360, %v1560
      %v1595 = vmul.f32 %v1365, %v1562
      %v1596 = vmul.f32 %v1370, %v1564
      %1597 = vst.msk [vmem:[%s407] sm:$0xff] %vm459, %v1565
      %1598 = vst.msk [vmem:[%s407 + $0x8] sm:$0xff] %vm459, %v1566
      %1599 = vst.msk [vmem:[%s407 + $0x10] sm:$0xff] %vm459, %v1567
      %1600 = vst.msk [vmem:[%s407 + $0x18] sm:$0xff] %vm459, %v1568
      %1601 = vst.msk [vmem:[%s407 + $0x20] sm:$0xff] %vm459, %v1569
      %1602 = vst.msk [vmem:[%s407 + $0x28] sm:$0xff] %vm459, %v1570
      %1603 = vst.msk [vmem:[%s407 + $0x30] sm:$0xff] %vm459, %v1571
      %1604 = vst.msk [vmem:[%s407 + $0x38] sm:$0xff] %vm459, %v1572
      %1605 = vst.msk [vmem:[%s407 + $0x40] sm:$0xff] %vm459, %v1573
      %1606 = vst.msk [vmem:[%s407 + $0x48] sm:$0xff] %vm459, %v1574
      %1607 = vst.msk [vmem:[%s407 + $0x50] sm:$0xff] %vm459, %v1575
      %1608 = vst.msk [vmem:[%s407 + $0x58] sm:$0xff] %vm459, %v1576
      %1609 = vst.msk [vmem:[%s407 + $0x60] sm:$0xff] %vm459, %v1577
      %1610 = vst.msk [vmem:[%s407 + $0x68] sm:$0xff] %vm459, %v1578
      %1611 = vst.msk [vmem:[%s407 + $0x70] sm:$0xff] %vm459, %v1579
      %1612 = vst.msk [vmem:[%s407 + $0x78] sm:$0xff] %vm459, %v1580
      %1613 = vst.msk [vmem:[%s407 + $0x80] sm:$0xff] %vm459, %v1581
      %1614 = vst.msk [vmem:[%s407 + $0x88] sm:$0xff] %vm459, %v1582
      %1615 = vst.msk [vmem:[%s407 + $0x90] sm:$0xff] %vm459, %v1583
      %1616 = vst.msk [vmem:[%s407 + $0x98] sm:$0xff] %vm459, %v1584
      %1617 = vst.msk [vmem:[%s407 + $0xa0] sm:$0xff] %vm459, %v1585
      %1618 = vst.msk [vmem:[%s407 + $0xa8] sm:$0xff] %vm459, %v1586
      %1619 = vst.msk [vmem:[%s407 + $0xb0] sm:$0xff] %vm459, %v1587
      %1620 = vst.msk [vmem:[%s407 + $0xb8] sm:$0xff] %vm459, %v1588
      %1621 = vst.msk [vmem:[%s407 + $0xc0] sm:$0xff] %vm459, %v1589
      %1622 = vst.msk [vmem:[%s407 + $0xc8] sm:$0xff] %vm459, %v1590
      %1623 = vst.msk [vmem:[%s407 + $0xd0] sm:$0xff] %vm459, %v1591
      %1624 = vst.msk [vmem:[%s407 + $0xd8] sm:$0xff] %vm459, %v1592
      %1625 = vst.msk [vmem:[%s407 + $0xe0] sm:$0xff] %vm459, %v1593
      %1626 = vst.msk [vmem:[%s407 + $0xe8] sm:$0xff] %vm459, %v1594
      %1627 = vst.msk [vmem:[%s407 + $0xf0] sm:$0xff] %vm459, %v1595
      %1628 = vst.msk [vmem:[%s407 + $0xf8] sm:$0xff] %vm459, %v1596
      %v1629 = vld [vmem:[%s5] sm:$0xf]
      %v1630 = vld [vmem:[%s6] sm:$0x1]
      %v1632 = vlaneseq
      %v1633 = vshrl.u32 %v1632, 7
      %v1634 = vsub.s32 0, %v1633
      %v1635 = vrot.slane %v1630, %v1634
      %v1638 = vsel %vm556, %v1629, 0
      %1640 = vmatprep.subr.mxu0 0.0
      %1641 = vmatpush1.msra.mxu0 0.0
      %1642 = vmatprep.subr.mxu0 0.0
      %1643 = vmatpush1.msra.mxu0 0.0
      %1644 = vmatprep.subr.mxu0 0.0
      %1645 = vmatpush1.msra.mxu0 0.0
      %1646 = vmatprep.subr.mxu0 0.0
      %1647 = vmatpush1.msra.mxu0 0.0
      %1648 = vmatprep.subr.mxu0 0.0
      %1649 = vmatpush1.msra.mxu0 0.0
      %1650 = vmatprep.subr.mxu0 0.0
      %1651 = vmatpush1.msra.mxu0 0.0
      %1652 = vmatprep.subr.mxu0 0.0
      %1653 = vmatpush1.msra.mxu0 0.0
      %1654 = vmatprep.subr.mxu0 0.0
      %1655 = vmatpush1.msra.mxu0 0.0
      %1656 = vmatprep.subr.mxu0 0.0
      %1657 = vmatpush1.msra.mxu0 0.0
      %1658 = vmatprep.subr.mxu0 0.0
      %1659 = vmatpush1.msra.mxu0 0.0
      %1660 = vmatprep.subr.mxu0 0.0
      %1661 = vmatpush1.msra.mxu0 0.0
      %1662 = vmatprep.subr.mxu0 0.0
      %1663 = vmatpush1.msra.mxu0 0.0
      %1664 = vmatprep.subr.mxu0 0.0
      %1665 = vmatpush1.msra.mxu0 0.0
      %1666 = vmatprep.subr.mxu0 0.0
      %1667 = vmatpush1.msra.mxu0 0.0
      %1668 = vmatprep.subr.mxu0 0.0
      %1669 = vmatpush1.msra.mxu0 0.0
      %1670 = vmatprep.subr.mxu0 0.0
      %1671 = vmatpush1.msra.mxu0 %v1638
      %1672 = vmatprep.subr.mxu0 0.0
      %1673 = vmatpush2.msra.mxu0 0.0
      %1674 = vmatprep.subr.mxu0 0.0
      %1675 = vmatpush2.msra.mxu0 0.0
      %1676 = vmatprep.subr.mxu0 0.0
      %1677 = vmatpush2.msra.mxu0 0.0
      %1678 = vmatprep.subr.mxu0 0.0
      %1679 = vmatpush2.msra.mxu0 0.0
      %1680 = vmatprep.subr.mxu0 0.0
      %1681 = vmatpush2.msra.mxu0 0.0
      %1682 = vmatprep.subr.mxu0 0.0
      %1683 = vmatpush2.msra.mxu0 0.0
      %1684 = vmatprep.subr.mxu0 0.0
      %1685 = vmatpush2.msra.mxu0 0.0
      %1686 = vmatprep.subr.mxu0 0.0
      %1687 = vmatpush2.msra.mxu0 0.0
      %1688 = vmatprep.subr.mxu0 0.0
      %1689 = vmatpush2.msra.mxu0 0.0
      %1690 = vmatprep.subr.mxu0 0.0
      %1691 = vmatpush2.msra.mxu0 0.0
      %1692 = vmatprep.subr.mxu0 0.0
      %1693 = vmatpush2.msra.mxu0 0.0
      %1694 = vmatprep.subr.mxu0 0.0
      %1695 = vmatpush2.msra.mxu0 0.0
      %1696 = vmatprep.subr.mxu0 0.0
      %1697 = vmatpush2.msra.mxu0 0.0
      %1698 = vmatprep.subr.mxu0 0.0
      %1699 = vmatpush2.msra.mxu0 0.0
      %1700 = vmatprep.subr.mxu0 0.0
      %1701 = vmatpush2.msra.mxu0 0.0
      %1702 = vmatprep.subr.mxu0 0.0
      %1703 = vmatpush2.msra.mxu0 0.0
      %1704 = vmatprep.mubr.f32.mxu0 0.0
      %1705 = vmatmul.mubr.f32.gmra.mxu0 %v461
      %v1706 = vpop.f32.mrf.mxu0
      %v1707 = vadd.f32 %v1635, %v1706
      %v1708 = vpop.f32.mrf.mxu0
      %1709 = vmatprep.mubr.f32.mxu0 0.0
      %1710 = vmatmul.mubr.f32.gmra.mxu0 %v464
      %v1711 = vpop.f32.mrf.mxu0
      %v1712 = vadd.f32 %v1635, %v1711
      %v1713 = vpop.f32.mrf.mxu0
      %1714 = vmatprep.mubr.f32.mxu0 0.0
      %1715 = vmatmul.mubr.f32.gmra.mxu0 %v467
      %v1716 = vpop.f32.mrf.mxu0
      %v1717 = vadd.f32 %v1635, %v1716
      %v1718 = vpop.f32.mrf.mxu0
      %1719 = vmatprep.mubr.f32.mxu0 0.0
      %1720 = vmatmul.mubr.f32.gmra.mxu0 %v470
      %v1721 = vpop.f32.mrf.mxu0
      %v1722 = vadd.f32 %v1635, %v1721
      %v1723 = vpop.f32.mrf.mxu0
      %1724 = vmatprep.mubr.f32.mxu0 0.0
      %1725 = vmatmul.mubr.f32.gmra.mxu0 %v473
      %v1726 = vpop.f32.mrf.mxu0
      %v1727 = vadd.f32 %v1635, %v1726
      %v1728 = vpop.f32.mrf.mxu0
      %1729 = vmatprep.mubr.f32.mxu0 0.0
      %1730 = vmatmul.mubr.f32.gmra.mxu0 %v476
      %v1731 = vpop.f32.mrf.mxu0
      %v1732 = vadd.f32 %v1635, %v1731
      %v1733 = vpop.f32.mrf.mxu0
      %1734 = vmatprep.mubr.f32.mxu0 0.0
      %1735 = vmatmul.mubr.f32.gmra.mxu0 %v479
      %v1736 = vpop.f32.mrf.mxu0
      %v1737 = vadd.f32 %v1635, %v1736
      %v1738 = vpop.f32.mrf.mxu0
      %1739 = vmatprep.mubr.f32.mxu0 0.0
      %1740 = vmatmul.mubr.f32.gmra.mxu0 %v482
      %v1741 = vpop.f32.mrf.mxu0
      %v1742 = vadd.f32 %v1635, %v1741
      %v1743 = vpop.f32.mrf.mxu0
      %1744 = vmatprep.mubr.f32.mxu0 0.0
      %1745 = vmatmul.mubr.f32.gmra.mxu0 %v485
      %v1746 = vpop.f32.mrf.mxu0
      %v1747 = vadd.f32 %v1635, %v1746
      %v1748 = vpop.f32.mrf.mxu0
      %1749 = vmatprep.mubr.f32.mxu0 0.0
      %1750 = vmatmul.mubr.f32.gmra.mxu0 %v488
      %v1751 = vpop.f32.mrf.mxu0
      %v1752 = vadd.f32 %v1635, %v1751
      %v1753 = vpop.f32.mrf.mxu0
      %1754 = vmatprep.mubr.f32.mxu0 0.0
      %1755 = vmatmul.mubr.f32.gmra.mxu0 %v491
      %v1756 = vpop.f32.mrf.mxu0
      %v1757 = vadd.f32 %v1635, %v1756
      %v1758 = vpop.f32.mrf.mxu0
      %1759 = vmatprep.mubr.f32.mxu0 0.0
      %1760 = vmatmul.mubr.f32.gmra.mxu0 %v494
      %v1761 = vpop.f32.mrf.mxu0
      %v1762 = vadd.f32 %v1635, %v1761
      %v1763 = vpop.f32.mrf.mxu0
      %1764 = vmatprep.mubr.f32.mxu0 0.0
      %1765 = vmatmul.mubr.f32.gmra.mxu0 %v497
      %v1766 = vpop.f32.mrf.mxu0
      %v1767 = vadd.f32 %v1635, %v1766
      %v1768 = vpop.f32.mrf.mxu0
      %1769 = vmatprep.mubr.f32.mxu0 0.0
      %1770 = vmatmul.mubr.f32.gmra.mxu0 %v500
      %v1771 = vpop.f32.mrf.mxu0
      %v1772 = vadd.f32 %v1635, %v1771
      %v1773 = vpop.f32.mrf.mxu0
      %1774 = vmatprep.mubr.f32.mxu0 0.0
      %1775 = vmatmul.mubr.f32.gmra.mxu0 %v503
      %v1776 = vpop.f32.mrf.mxu0
      %v1777 = vadd.f32 %v1635, %v1776
      %v1778 = vpop.f32.mrf.mxu0
      %1779 = vmatprep.mubr.f32.mxu0 0.0
      %1780 = vmatmul.mubr.f32.gmra.mxu0 %v506
      %v1781 = vpop.f32.mrf.mxu0
      %v1782 = vadd.f32 %v1635, %v1781
      %v1783 = vpop.f32.mrf.mxu0
      %1784 = vmatprep.mubr.f32.mxu0 0.0
      %1785 = vmatmul.mubr.f32.gmra.mxu0 %v509
      %v1786 = vpop.f32.mrf.mxu0
      %v1787 = vadd.f32 %v1635, %v1786
      %v1788 = vpop.f32.mrf.mxu0
      %1789 = vmatprep.mubr.f32.mxu0 0.0
      %1790 = vmatmul.mubr.f32.gmra.mxu0 %v512
      %v1791 = vpop.f32.mrf.mxu0
      %v1792 = vadd.f32 %v1635, %v1791
      %v1793 = vpop.f32.mrf.mxu0
      %1794 = vmatprep.mubr.f32.mxu0 0.0
      %1795 = vmatmul.mubr.f32.gmra.mxu0 %v515
      %v1796 = vpop.f32.mrf.mxu0
      %v1797 = vadd.f32 %v1635, %v1796
      %v1798 = vpop.f32.mrf.mxu0
      %1799 = vmatprep.mubr.f32.mxu0 0.0
      %1800 = vmatmul.mubr.f32.gmra.mxu0 %v518
      %v1801 = vpop.f32.mrf.mxu0
      %v1802 = vadd.f32 %v1635, %v1801
      %v1803 = vpop.f32.mrf.mxu0
      %1804 = vmatprep.mubr.f32.mxu0 0.0
      %1805 = vmatmul.mubr.f32.gmra.mxu0 %v521
      %v1806 = vpop.f32.mrf.mxu0
      %v1807 = vadd.f32 %v1635, %v1806
      %v1808 = vpop.f32.mrf.mxu0
      %1809 = vmatprep.mubr.f32.mxu0 0.0
      %1810 = vmatmul.mubr.f32.gmra.mxu0 %v524
      %v1811 = vpop.f32.mrf.mxu0
      %v1812 = vadd.f32 %v1635, %v1811
      %v1813 = vpop.f32.mrf.mxu0
      %1814 = vmatprep.mubr.f32.mxu0 0.0
      %1815 = vmatmul.mubr.f32.gmra.mxu0 %v527
      %v1816 = vpop.f32.mrf.mxu0
      %v1817 = vadd.f32 %v1635, %v1816
      %v1818 = vpop.f32.mrf.mxu0
      %1819 = vmatprep.mubr.f32.mxu0 0.0
      %1820 = vmatmul.mubr.f32.gmra.mxu0 %v530
      %v1821 = vpop.f32.mrf.mxu0
      %v1822 = vadd.f32 %v1635, %v1821
      %v1823 = vpop.f32.mrf.mxu0
      %1824 = vmatprep.mubr.f32.mxu0 0.0
      %1825 = vmatmul.mubr.f32.gmra.mxu0 %v533
      %v1826 = vpop.f32.mrf.mxu0
      %v1827 = vadd.f32 %v1635, %v1826
      %v1828 = vpop.f32.mrf.mxu0
      %1829 = vmatprep.mubr.f32.mxu0 0.0
      %1830 = vmatmul.mubr.f32.gmra.mxu0 %v536
      %v1831 = vpop.f32.mrf.mxu0
      %v1832 = vadd.f32 %v1635, %v1831
      %v1833 = vpop.f32.mrf.mxu0
      %1834 = vmatprep.mubr.f32.mxu0 0.0
      %1835 = vmatmul.mubr.f32.gmra.mxu0 %v539
      %v1836 = vpop.f32.mrf.mxu0
      %v1837 = vadd.f32 %v1635, %v1836
      %v1838 = vpop.f32.mrf.mxu0
      %1839 = vmatprep.mubr.f32.mxu0 0.0
      %1840 = vmatmul.mubr.f32.gmra.mxu0 %v542
      %v1841 = vpop.f32.mrf.mxu0
      %v1842 = vadd.f32 %v1635, %v1841
      %v1843 = vpop.f32.mrf.mxu0
      %1844 = vmatprep.mubr.f32.mxu0 0.0
      %1845 = vmatmul.mubr.f32.gmra.mxu0 %v545
      %v1846 = vpop.f32.mrf.mxu0
      %v1847 = vadd.f32 %v1635, %v1846
      %v1848 = vpop.f32.mrf.mxu0
      %1849 = vmatprep.mubr.f32.mxu0 0.0
      %1850 = vmatmul.mubr.f32.gmra.mxu0 %v548
      %v1851 = vpop.f32.mrf.mxu0
      %v1852 = vadd.f32 %v1635, %v1851
      %v1853 = vpop.f32.mrf.mxu0
      %1854 = vmatprep.mubr.f32.mxu0 0.0
      %1855 = vmatmul.mubr.f32.gmra.mxu0 %v551
      %v1856 = vpop.f32.mrf.mxu0
      %v1857 = vadd.f32 %v1635, %v1856
      %v1858 = vpop.f32.mrf.mxu0
      %1859 = vmatprep.mubr.f32.mxu0 0.0
      %1860 = vmatmul.mubr.f32.gmra.mxu0 %v554
      %v1861 = vpop.f32.mrf.mxu0
      %v1862 = vadd.f32 %v1635, %v1861
      %v1863 = vpop.f32.mrf.mxu0
      %1864 = vdwg.mxu0
      %1865 = vst.msk [vmem:[%s417] sm:$0xff] %vm459, %v1707
      %1866 = vst.msk [vmem:[%s417 + $0x8] sm:$0xff] %vm459, %v1712
      %1867 = vst.msk [vmem:[%s417 + $0x10] sm:$0xff] %vm459, %v1717
      %1868 = vst.msk [vmem:[%s417 + $0x18] sm:$0xff] %vm459, %v1722
      %1869 = vst.msk [vmem:[%s417 + $0x20] sm:$0xff] %vm459, %v1727
      %1870 = vst.msk [vmem:[%s417 + $0x28] sm:$0xff] %vm459, %v1732
      %1871 = vst.msk [vmem:[%s417 + $0x30] sm:$0xff] %vm459, %v1737
      %1872 = vst.msk [vmem:[%s417 + $0x38] sm:$0xff] %vm459, %v1742
      %1873 = vst.msk [vmem:[%s417 + $0x40] sm:$0xff] %vm459, %v1747
      %1874 = vst.msk [vmem:[%s417 + $0x48] sm:$0xff] %vm459, %v1752
      %1875 = vst.msk [vmem:[%s417 + $0x50] sm:$0xff] %vm459, %v1757
      %1876 = vst.msk [vmem:[%s417 + $0x58] sm:$0xff] %vm459, %v1762
      %1877 = vst.msk [vmem:[%s417 + $0x60] sm:$0xff] %vm459, %v1767
      %1878 = vst.msk [vmem:[%s417 + $0x68] sm:$0xff] %vm459, %v1772
      %1879 = vst.msk [vmem:[%s417 + $0x70] sm:$0xff] %vm459, %v1777
      %1880 = vst.msk [vmem:[%s417 + $0x78] sm:$0xff] %vm459, %v1782
      %1881 = vst.msk [vmem:[%s417 + $0x80] sm:$0xff] %vm459, %v1787
      %1882 = vst.msk [vmem:[%s417 + $0x88] sm:$0xff] %vm459, %v1792
      %1883 = vst.msk [vmem:[%s417 + $0x90] sm:$0xff] %vm459, %v1797
      %1884 = vst.msk [vmem:[%s417 + $0x98] sm:$0xff] %vm459, %v1802
      %1885 = vst.msk [vmem:[%s417 + $0xa0] sm:$0xff] %vm459, %v1807
      %1886 = vst.msk [vmem:[%s417 + $0xa8] sm:$0xff] %vm459, %v1812
      %1887 = vst.msk [vmem:[%s417 + $0xb0] sm:$0xff] %vm459, %v1817
      %1888 = vst.msk [vmem:[%s417 + $0xb8] sm:$0xff] %vm459, %v1822
      %1889 = vst.msk [vmem:[%s417 + $0xc0] sm:$0xff] %vm459, %v1827
      %1890 = vst.msk [vmem:[%s417 + $0xc8] sm:$0xff] %vm459, %v1832
      %1891 = vst.msk [vmem:[%s417 + $0xd0] sm:$0xff] %vm459, %v1837
      %1892 = vst.msk [vmem:[%s417 + $0xd8] sm:$0xff] %vm459, %v1842
      %1893 = vst.msk [vmem:[%s417 + $0xe0] sm:$0xff] %vm459, %v1847
      %1894 = vst.msk [vmem:[%s417 + $0xe8] sm:$0xff] %vm459, %v1852
      %1895 = vst.msk [vmem:[%s417 + $0xf0] sm:$0xff] %vm459, %v1857
      %1896 = vst.msk [vmem:[%s417 + $0xf8] sm:$0xff] %vm459, %v1862
      %s1897 = smul.u32 32, %s26
      %p1898 = scmp.lt.s32.totalorder %s25, 1
      %s1899 = scalar_select %p1898, %s25, 1
      %p1900 = scmp.lt.s32.totalorder %s1897, 31
      %s1901 = scalar_select %p1900, %s1897, 31
      %s1902 = smul.addr %s1899, 32
      %s1903 = sadd.s32 %s1901, %s1902
      %s1904 = smul.addr %s1903, 8
      %s1905 = scalar_lea.vmem %s7, %s1904
      %s1906 = smul.u32 32, %s26
      %p1907 = scmp.lt.s32.totalorder %s25, 1
      %s1908 = scalar_select %p1907, %s25, 1
      %p1909 = scmp.lt.s32.totalorder %s1906, 31
      %s1910 = scalar_select %p1909, %s1906, 31
      %s1911 = smul.addr %s1908, 32
      %s1912 = sadd.s32 %s1910, %s1911
      %s1913 = smul.addr %s1912, 8
      %s1914 = scalar_lea.vmem %s8, %s1913
      %s1915 = smul.u32 32, %s26
      %p1916 = scmp.lt.s32.totalorder %s25, 1
      %s1917 = scalar_select %p1916, %s25, 1
      %p1918 = scmp.lt.s32.totalorder %s1915, 31
      %s1919 = scalar_select %p1918, %s1915, 31
      %s1920 = smul.addr %s1917, 32
      %s1921 = sadd.s32 %s1919, %s1920
      %s1922 = smul.addr %s1921, 8
      %s1923 = scalar_lea.vmem %s9, %s1922
      // Predicated region
      $region49: #{bottleneck_csp_forward.2} parent=47 // pred_check
        %p1924 = pneg %p207
      $region50: #{bottleneck_csp_forward.2} parent=47 // pred_check_branch
        %1926 = sbr.rel (%p1924) target = $region52
      $region51: #{bottleneck_csp_forward.2} parent=47 // pred_region
        %s1927 = smul.u32 32, %s26
      $region52: #{bottleneck_csp_forward.2} parent=47 // pred_fallthru
        _
      // Predicated region
      $region53: #{bottleneck_csp_forward.2} parent=47 // pred_check
        %p1928 = pneg %p235
      $region54: #{bottleneck_csp_forward.2} parent=47 // pred_check_branch
        %1930 = sbr.rel (%p1928) target = $region56
      $region55: #{bottleneck_csp_forward.2} parent=47 // pred_region
        %s1931 = smul.u32 32, %s26
      $region56: #{bottleneck_csp_forward.2} parent=47 // pred_fallthru
        _
      // Predicated region
      $region57: #{bottleneck_csp_forward.2} parent=47 // pred_check
        %p1932 = pneg %p263
      $region58: #{bottleneck_csp_forward.2} parent=47 // pred_check_branch
        %1934 = sbr.rel (%p1932) target = $region60
      $region59: #{bottleneck_csp_forward.2} parent=47 // pred_region
        %s1935 = smul.u32 32, %s26
      $region60: #{bottleneck_csp_forward.2} parent=47 // pred_fallthru
        _
    $region48: #{bottleneck_csp_forward.2} parent=5 // pred_fallthru
      _
    %p1936 = scmp.le.s32.totalorder 2, %s16
    // Predicated region
    $region61: #{bottleneck_csp_forward.2} parent=5 // pred_check
      %p1937 = pneg %p1936
    $region62: #{bottleneck_csp_forward.2} parent=5 // pred_check_branch
      %1939 = sbr.rel (%p1937) target = $region64
    $region63: #{bottleneck_csp_forward.2} parent=5 // pred_region
      %s1940 = ssub.s32 %s16, 2
      // Predicated region
      $region65: #{bottleneck_csp_forward.2} parent=63 // pred_check
        %p1941 = pneg %p213
      $region66: #{bottleneck_csp_forward.2} parent=63 // pred_check_branch
        %1943 = sbr.rel (%p1941) target = $region68
      $region67: #{bottleneck_csp_forward.2} parent=63 // pred_region
        %s1944 = smul.u32 32, %s28
        %p1945 = scmp.lt.s32.totalorder %s27, 1
        %s1946 = scalar_select %p1945, %s27, 1
        %p1947 = scmp.lt.s32.totalorder %s1944, 31
        %s1948 = scalar_select %p1947, %s1944, 31
        %s1949 = smul.addr %s1946, 32
        %s1950 = sadd.s32 %s1948, %s1949
        %s1951 = smul.addr %s1950, 8
        %s1952 = scalar_lea.vmem %s7, %s1951
      $region68: #{bottleneck_csp_forward.2} parent=63 // pred_fallthru
        _
      // Predicated region
      $region69: #{bottleneck_csp_forward.2} parent=63 // pred_check
        %p1953 = pneg %p241
      $region70: #{bottleneck_csp_forward.2} parent=63 // pred_check_branch
        %1955 = sbr.rel (%p1953) target = $region72
      $region71: #{bottleneck_csp_forward.2} parent=63 // pred_region
        %s1956 = smul.u32 32, %s28
        %p1957 = scmp.lt.s32.totalorder %s27, 1
        %s1958 = scalar_select %p1957, %s27, 1
        %p1959 = scmp.lt.s32.totalorder %s1956, 31
        %s1960 = scalar_select %p1959, %s1956, 31
        %s1961 = smul.addr %s1958, 32
        %s1962 = sadd.s32 %s1960, %s1961
        %s1963 = smul.addr %s1962, 8
        %s1964 = scalar_lea.vmem %s8, %s1963
      $region72: #{bottleneck_csp_forward.2} parent=63 // pred_fallthru
        _
      // Predicated region
      $region73: #{bottleneck_csp_forward.2} parent=63 // pred_check
        %p1965 = pneg %p269
      $region74: #{bottleneck_csp_forward.2} parent=63 // pred_check_branch
        %1967 = sbr.rel (%p1965) target = $region76
      $region75: #{bottleneck_csp_forward.2} parent=63 // pred_region
        %s1968 = smul.u32 32, %s28
        %p1969 = scmp.lt.s32.totalorder %s27, 1
        %s1970 = scalar_select %p1969, %s27, 1
        %p1971 = scmp.lt.s32.totalorder %s1968, 31
        %s1972 = scalar_select %p1971, %s1968, 31
        %s1973 = smul.addr %s1970, 32
        %s1974 = sadd.s32 %s1972, %s1973
        %s1975 = smul.addr %s1974, 8
        %s1976 = scalar_lea.vmem %s9, %s1975
      $region76: #{bottleneck_csp_forward.2} parent=63 // pred_fallthru
        _
    $region64: #{bottleneck_csp_forward.2} parent=5 // pred_fallthru
      _
  $region6: #{bottleneck_csp_forward.2} parent=0 // loop_footer
    %s20 = sadd.s32 1, %s16
  $region7: #{bottleneck_csp_forward.2} parent=0 // loop_footer_branch
    %15 = sbr.rel target = $region3
  $region8: #{bottleneck_csp_forward.2} parent=0 // loop_exit
    _

// kernel: bottleneck_csp_forward.3
$region0: #{bottleneck_csp_forward.3}
  #allocation0 [shape = 'u32[]', space=smem, size = 0x4, offset = 0x4, fixed_abs, tag = 'smem constant byte address 0x4 - core index']
  #allocation1 [shape = 'u32[144,128]{1,0:T(1,128)}', space=vmem, size = 0x12000, scoped, tag = 'internal scratch']
  #allocation2 [shape = 'f32[297,4]{1,0:T(8,128)}', space=vmem, size = 0x26000, scoped, tag = 'scratch operand']
  %s0 = inlined_call_operand.vmem [shape: f32[2,256,4], index: 0, kind: input, shape index: {}]
  %s1 = inlined_call_operand.vmem [shape: f32[2,256,4], index: 1, kind: input, shape index: {}]
  %s2 = inlined_call_operand.vmem [shape: f32[2,256,4], index: 2, kind: input, shape index: {}]
  %s3 = inlined_call_operand.vmem [shape: f32[9,4,4], index: 3, kind: input, shape index: {}]
  %s4 = inlined_call_operand.vmem [shape: f32[1,4], index: 4, kind: input, shape index: {}]
  %s5 = inlined_call_operand.vmem [shape: f32[4,4], index: 5, kind: input, shape index: {}]
  %s6 = inlined_call_operand.vmem [shape: f32[1,4], index: 6, kind: input, shape index: {}]
  %s7 = inlined_call_operand.vmem [shape: f32[4,8], index: 7, kind: input, shape index: {}]
  %s8 = inlined_call_operand.vmem [shape: f32[4,8], index: 8, kind: input, shape index: {}]
  %s9 = inlined_call_operand.vmem [shape: f32[1,8], index: 9, kind: input, shape index: {}]
  %s10 = inlined_call_operand.vmem [shape: f32[2,256,8], index: 10, kind: output, shape index: {}]
  %s11 = sld [smem:[#allocation0]]
  $region73: #{bottleneck_csp_forward.3} parent=0
    _
  %s13 = ssub.s32 1, %s11
  %s14 = scalar_select 0, %s13, %s11
  loop: start=0, step=1, limit=4
  $region2: #{bottleneck_csp_forward.3} parent=0 // loop_pre_header
    _
  $region3: #{bottleneck_csp_forward.3} parent=0 // loop_header
    %s16 = sphi 0, %s20
    %p17 = scmp.ge.s32.totalorder %s16, 4
    %s26 = sphi 0, %s28
    %s29 = sphi 0, %s26
    %s30 = sphi 0, %s29
    %s46 = sphi 0, %s30
    %s52 = sphi 0, %s54
    %s55 = sphi 0, %s52
    %s56 = sphi 0, %s55
    %s72 = sphi 0, %s56
    %s78 = sphi 0, %s80
    %s81 = sphi 0, %s78
    %s82 = sphi 0, %s81
    %s98 = sphi 0, %s82
    %s102 = sphi 0, %s102
    %s104 = sphi 0, %s102
    %s105 = sphi 0, %s104
    %s119 = sphi 0, %s105
    %s123 = sphi 0, %s123
    %s125 = sphi 0, %s123
    %s126 = sphi 0, %s125
    %s140 = sphi 0, %s126
    %s144 = sphi 0, %s144
    %s146 = sphi 0, %s144
    %s147 = sphi 0, %s146
    %s161 = sphi 0, %s147
    %s165 = sphi 0, %s165
    %s167 = sphi 0, %s165
    %s168 = sphi 0, %s167
    %s182 = sphi 0, %s168
    %s186 = sphi 0, %s186
    %s188 = sphi 0, %s186
    %s189 = sphi 0, %s188
    %s203 = sphi 0, %s189
    %s207 = sphi 0, %s207
    %s209 = sphi 0, %s207
    %s210 = sphi 0, %s209
    %s224 = sphi 0, %s210
    %s228 = sphi 0, %s228
    %s230 = sphi 0, %s228
    %s231 = sphi 0, %s230
    %s245 = sphi 0, %s231
    %s251 = sphi 0, %s253
    %s254 = sphi 0, %s251
    %s255 = sphi 0, %s254
    %s271 = sphi 0, %s255
  $region4: #{bottleneck_csp_forward.3} parent=0 // loop_header_branch
    %19 = sbr.rel (%p17) target = $region8
  $region5: #{bottleneck_csp_forward.3} parent=0 // loop_body
    %s21 = ssub.s32 %s16, 1
    %s22 = ssub.s32 %s16, 2
    %s23 = sadd.s32 %s16, 1
    %s24 = ssub.s32 %s16, %s23
    %p25 = scmp.eq.s32.totalorder %s24, 0
    %s27 = sadd.s32 %s26, 1
    %s28 = scalar_select %p25, %s26, %s27
    %p31 = pneg %p25
    %p32 = scmp.eq.s32.totalorder %s16, 1
    %p33 = por %p31, %p32
    %p34 = scmp.ne.s32.totalorder %s26, %s29
    %p35 = scmp.eq.s32.totalorder %s16, 0
    %p36 = por %p34, %p35
    %p37 = scmp.ne.s32.totalorder %s26, %s29
    %p38 = scmp.eq.s32.totalorder %s21, 1
    %p39 = por %p37, %p38
    %p40 = scmp.ne.s32.totalorder %s29, %s30
    %p41 = scmp.eq.s32.totalorder %s21, 0
    %p42 = por %p40, %p41
    %p43 = scmp.ne.s32.totalorder %s29, %s30
    %p44 = scmp.eq.s32.totalorder %s22, 1
    %p45 = por %p43, %p44
    %p47 = scmp.ne.s32.totalorder %s30, %s46
    %p48 = scmp.eq.s32.totalorder %s22, 0
    %p49 = por %p47, %p48
    %s50 = ssub.s32 %s16, %s23
    %p51 = scmp.eq.s32.totalorder %s50, 0
    %s53 = sadd.s32 %s52, 1
    %s54 = scalar_select %p51, %s52, %s53
    %p57 = pneg %p51
    %p58 = scmp.eq.s32.totalorder %s16, 1
    %p59 = por %p57, %p58
    %p60 = scmp.ne.s32.totalorder %s52, %s55
    %p61 = scmp.eq.s32.totalorder %s16, 0
    %p62 = por %p60, %p61
    %p63 = scmp.ne.s32.totalorder %s52, %s55
    %p64 = scmp.eq.s32.totalorder %s21, 1
    %p65 = por %p63, %p64
    %p66 = scmp.ne.s32.totalorder %s55, %s56
    %p67 = scmp.eq.s32.totalorder %s21, 0
    %p68 = por %p66, %p67
    %p69 = scmp.ne.s32.totalorder %s55, %s56
    %p70 = scmp.eq.s32.totalorder %s22, 1
    %p71 = por %p69, %p70
    %p73 = scmp.ne.s32.totalorder %s56, %s72
    %p74 = scmp.eq.s32.totalorder %s22, 0
    %p75 = por %p73, %p74
    %s76 = ssub.s32 %s16, %s23
    %p77 = scmp.eq.s32.totalorder %s76, 0
    %s79 = sadd.s32 %s78, 1
    %s80 = scalar_select %p77, %s78, %s79
    %p83 = pneg %p77
    %p84 = scmp.eq.s32.totalorder %s16, 1
    %p85 = por %p83, %p84
    %p86 = scmp.ne.s32.totalorder %s78, %s81
    %p87 = scmp.eq.s32.totalorder %s16, 0
    %p88 = por %p86, %p87
    %p89 = scmp.ne.s32.totalorder %s78, %s81
    %p90 = scmp.eq.s32.totalorder %s21, 1
    %p91 = por %p89, %p90
    %p92 = scmp.ne.s32.totalorder %s81, %s82
    %p93 = scmp.eq.s32.totalorder %s21, 0
    %p94 = por %p92, %p93
    %p95 = scmp.ne.s32.totalorder %s81, %s82
    %p96 = scmp.eq.s32.totalorder %s22, 1
    %p97 = por %p95, %p96
    %p99 = scmp.ne.s32.totalorder %s82, %s98
    %p100 = scmp.eq.s32.totalorder %s22, 0
    %p101 = por %p99, %p100
    %s103 = sadd.s32 %s102, 1
    %p106 = scmp.eq.s32.totalorder %s16, 1
    %p107 = scmp.ne.s32.totalorder %s102, %s104
    %p108 = scmp.eq.s32.totalorder %s16, 0
    %p109 = por %p107, %p108
    %p110 = scmp.ne.s32.totalorder %s102, %s104
    %p111 = scmp.eq.s32.totalorder %s21, 1
    %p112 = por %p110, %p111
    %p113 = scmp.ne.s32.totalorder %s104, %s105
    %p114 = scmp.eq.s32.totalorder %s21, 0
    %p115 = por %p113, %p114
    %p116 = scmp.ne.s32.totalorder %s104, %s105
    %p117 = scmp.eq.s32.totalorder %s22, 1
    %p118 = por %p116, %p117
    %p120 = scmp.ne.s32.totalorder %s105, %s119
    %p121 = scmp.eq.s32.totalorder %s22, 0
    %p122 = por %p120, %p121
    %s124 = sadd.s32 %s123, 1
    %p127 = scmp.eq.s32.totalorder %s16, 1
    %p128 = scmp.ne.s32.totalorder %s123, %s125
    %p129 = scmp.eq.s32.totalorder %s16, 0
    %p130 = por %p128, %p129
    %p131 = scmp.ne.s32.totalorder %s123, %s125
    %p132 = scmp.eq.s32.totalorder %s21, 1
    %p133 = por %p131, %p132
    %p134 = scmp.ne.s32.totalorder %s125, %s126
    %p135 = scmp.eq.s32.totalorder %s21, 0
    %p136 = por %p134, %p135
    %p137 = scmp.ne.s32.totalorder %s125, %s126
    %p138 = scmp.eq.s32.totalorder %s22, 1
    %p139 = por %p137, %p138
    %p141 = scmp.ne.s32.totalorder %s126, %s140
    %p142 = scmp.eq.s32.totalorder %s22, 0
    %p143 = por %p141, %p142
    %s145 = sadd.s32 %s144, 1
    %p148 = scmp.eq.s32.totalorder %s16, 1
    %p149 = scmp.ne.s32.totalorder %s144, %s146
    %p150 = scmp.eq.s32.totalorder %s16, 0
    %p151 = por %p149, %p150
    %p152 = scmp.ne.s32.totalorder %s144, %s146
    %p153 = scmp.eq.s32.totalorder %s21, 1
    %p154 = por %p152, %p153
    %p155 = scmp.ne.s32.totalorder %s146, %s147
    %p156 = scmp.eq.s32.totalorder %s21, 0
    %p157 = por %p155, %p156
    %p158 = scmp.ne.s32.totalorder %s146, %s147
    %p159 = scmp.eq.s32.totalorder %s22, 1
    %p160 = por %p158, %p159
    %p162 = scmp.ne.s32.totalorder %s147, %s161
    %p163 = scmp.eq.s32.totalorder %s22, 0
    %p164 = por %p162, %p163
    %s166 = sadd.s32 %s165, 1
    %p169 = scmp.eq.s32.totalorder %s16, 1
    %p170 = scmp.ne.s32.totalorder %s165, %s167
    %p171 = scmp.eq.s32.totalorder %s16, 0
    %p172 = por %p170, %p171
    %p173 = scmp.ne.s32.totalorder %s165, %s167
    %p174 = scmp.eq.s32.totalorder %s21, 1
    %p175 = por %p173, %p174
    %p176 = scmp.ne.s32.totalorder %s167, %s168
    %p177 = scmp.eq.s32.totalorder %s21, 0
    %p178 = por %p176, %p177
    %p179 = scmp.ne.s32.totalorder %s167, %s168
    %p180 = scmp.eq.s32.totalorder %s22, 1
    %p181 = por %p179, %p180
    %p183 = scmp.ne.s32.totalorder %s168, %s182
    %p184 = scmp.eq.s32.totalorder %s22, 0
    %p185 = por %p183, %p184
    %s187 = sadd.s32 %s186, 1
    %p190 = scmp.eq.s32.totalorder %s16, 1
    %p191 = scmp.ne.s32.totalorder %s186, %s188
    %p192 = scmp.eq.s32.totalorder %s16, 0
    %p193 = por %p191, %p192
    %p194 = scmp.ne.s32.totalorder %s186, %s188
    %p195 = scmp.eq.s32.totalorder %s21, 1
    %p196 = por %p194, %p195
    %p197 = scmp.ne.s32.totalorder %s188, %s189
    %p198 = scmp.eq.s32.totalorder %s21, 0
    %p199 = por %p197, %p198
    %p200 = scmp.ne.s32.totalorder %s188, %s189
    %p201 = scmp.eq.s32.totalorder %s22, 1
    %p202 = por %p200, %p201
    %p204 = scmp.ne.s32.totalorder %s189, %s203
    %p205 = scmp.eq.s32.totalorder %s22, 0
    %p206 = por %p204, %p205
    %s208 = sadd.s32 %s207, 1
    %p211 = scmp.eq.s32.totalorder %s16, 1
    %p212 = scmp.ne.s32.totalorder %s207, %s209
    %p213 = scmp.eq.s32.totalorder %s16, 0
    %p214 = por %p212, %p213
    %p215 = scmp.ne.s32.totalorder %s207, %s209
    %p216 = scmp.eq.s32.totalorder %s21, 1
    %p217 = por %p215, %p216
    %p218 = scmp.ne.s32.totalorder %s209, %s210
    %p219 = scmp.eq.s32.totalorder %s21, 0
    %p220 = por %p218, %p219
    %p221 = scmp.ne.s32.totalorder %s209, %s210
    %p222 = scmp.eq.s32.totalorder %s22, 1
    %p223 = por %p221, %p222
    %p225 = scmp.ne.s32.totalorder %s210, %s224
    %p226 = scmp.eq.s32.totalorder %s22, 0
    %p227 = por %p225, %p226
    %s229 = sadd.s32 %s228, 1
    %p232 = scmp.eq.s32.totalorder %s16, 1
    %p233 = scmp.ne.s32.totalorder %s228, %s230
    %p234 = scmp.eq.s32.totalorder %s16, 0
    %p235 = por %p233, %p234
    %p236 = scmp.ne.s32.totalorder %s228, %s230
    %p237 = scmp.eq.s32.totalorder %s21, 1
    %p238 = por %p236, %p237
    %p239 = scmp.ne.s32.totalorder %s230, %s231
    %p240 = scmp.eq.s32.totalorder %s21, 0
    %p241 = por %p239, %p240
    %p242 = scmp.ne.s32.totalorder %s230, %s231
    %p243 = scmp.eq.s32.totalorder %s22, 1
    %p244 = por %p242, %p243
    %p246 = scmp.ne.s32.totalorder %s231, %s245
    %p247 = scmp.eq.s32.totalorder %s22, 0
    %p248 = por %p246, %p247
    %s249 = ssub.s32 %s16, %s23
    %p250 = scmp.eq.s32.totalorder %s249, 0
    %s252 = sadd.s32 %s251, 1
    %s253 = scalar_select %p250, %s251, %s252
    %p256 = pneg %p250
    %p257 = scmp.eq.s32.totalorder %s16, 1
    %p258 = por %p256, %p257
    %p259 = scmp.ne.s32.totalorder %s251, %s254
    %p260 = scmp.eq.s32.totalorder %s16, 0
    %p261 = por %p259, %p260
    %p262 = scmp.ne.s32.totalorder %s251, %s254
    %p263 = scmp.eq.s32.totalorder %s21, 1
    %p264 = por %p262, %p263
    %p265 = scmp.ne.s32.totalorder %s254, %s255
    %p266 = scmp.eq.s32.totalorder %s21, 0
    %p267 = por %p265, %p266
    %p268 = scmp.ne.s32.totalorder %s254, %s255
    %p269 = scmp.eq.s32.totalorder %s22, 1
    %p270 = por %p268, %p269
    %p272 = scmp.ne.s32.totalorder %s255, %s271
    %p273 = scmp.eq.s32.totalorder %s22, 0
    %p274 = por %p272, %p273
    %p275 = scmp.le.s32.totalorder 1, %s16
    %p276 = scmp.lt.s32.totalorder %s16, 3
    %p277 = pnand %p275, %p276
    %p278 = pneg %p277
    // Predicated region
    $region9: #{bottleneck_csp_forward.3} parent=5 // pred_check
      _
    $region10: #{bottleneck_csp_forward.3} parent=5 // pred_check_branch
      %280 = sbr.rel (%p277) target = $region12
    $region11: #{bottleneck_csp_forward.3} parent=5 // pred_region
      %s281 = ssub.s32 %s16, 1
      // Predicated region
      $region13: #{bottleneck_csp_forward.3} parent=11 // pred_check
        %p282 = pneg %p115
      $region14: #{bottleneck_csp_forward.3} parent=11 // pred_check_branch
        %284 = sbr.rel (%p282) target = $region16
      $region15: #{bottleneck_csp_forward.3} parent=11 // pred_region
        _
      $region16: #{bottleneck_csp_forward.3} parent=11 // pred_fallthru
        _
      // Predicated region
      $region17: #{bottleneck_csp_forward.3} parent=11 // pred_check
        %p285 = pneg %p136
      $region18: #{bottleneck_csp_forward.3} parent=11 // pred_check_branch
        %287 = sbr.rel (%p285) target = $region20
      $region19: #{bottleneck_csp_forward.3} parent=11 // pred_region
        _
      $region20: #{bottleneck_csp_forward.3} parent=11 // pred_fallthru
        _
      // Predicated region
      $region21: #{bottleneck_csp_forward.3} parent=11 // pred_check
        %p288 = pneg %p157
      $region22: #{bottleneck_csp_forward.3} parent=11 // pred_check_branch
        %290 = sbr.rel (%p288) target = $region24
      $region23: #{bottleneck_csp_forward.3} parent=11 // pred_region
        _
      $region24: #{bottleneck_csp_forward.3} parent=11 // pred_fallthru
        _
      // Predicated region
      $region25: #{bottleneck_csp_forward.3} parent=11 // pred_check
        %p291 = pneg %p178
      $region26: #{bottleneck_csp_forward.3} parent=11 // pred_check_branch
        %293 = sbr.rel (%p291) target = $region28
      $region27: #{bottleneck_csp_forward.3} parent=11 // pred_region
        _
      $region28: #{bottleneck_csp_forward.3} parent=11 // pred_fallthru
        _
      // Predicated region
      $region29: #{bottleneck_csp_forward.3} parent=11 // pred_check
        %p294 = pneg %p199
      $region30: #{bottleneck_csp_forward.3} parent=11 // pred_check_branch
        %296 = sbr.rel (%p294) target = $region32
      $region31: #{bottleneck_csp_forward.3} parent=11 // pred_region
        _
      $region32: #{bottleneck_csp_forward.3} parent=11 // pred_fallthru
        _
      // Predicated region
      $region33: #{bottleneck_csp_forward.3} parent=11 // pred_check
        %p297 = pneg %p220
      $region34: #{bottleneck_csp_forward.3} parent=11 // pred_check_branch
        %299 = sbr.rel (%p297) target = $region36
      $region35: #{bottleneck_csp_forward.3} parent=11 // pred_region
        _
      $region36: #{bottleneck_csp_forward.3} parent=11 // pred_fallthru
        _
      // Predicated region
      $region37: #{bottleneck_csp_forward.3} parent=11 // pred_check
        %p300 = pneg %p241
      $region38: #{bottleneck_csp_forward.3} parent=11 // pred_check_branch
        %302 = sbr.rel (%p300) target = $region40
      $region39: #{bottleneck_csp_forward.3} parent=11 // pred_region
        _
      $region40: #{bottleneck_csp_forward.3} parent=11 // pred_fallthru
        _
    $region12: #{bottleneck_csp_forward.3} parent=5 // pred_fallthru
      _
    %p303 = scmp.lt.s32.totalorder %s16, 2
    // Predicated region
    $region41: #{bottleneck_csp_forward.3} parent=5 // pred_check
      %p304 = pneg %p303
    $region42: #{bottleneck_csp_forward.3} parent=5 // pred_check_branch
      %306 = sbr.rel (%p304) target = $region44
    $region43: #{bottleneck_csp_forward.3} parent=5 // pred_region
      // Predicated region
      $region45: #{bottleneck_csp_forward.3} parent=43 // pred_check
        %p307 = pneg %p36
      $region46: #{bottleneck_csp_forward.3} parent=43 // pred_check_branch
        %309 = sbr.rel (%p307) target = $region48
      $region47: #{bottleneck_csp_forward.3} parent=43 // pred_region
        %p310 = scmp.lt.s32.totalorder %s16, 1
        %s311 = scalar_select %p310, %s16, 1
        %s312 = smul.addr %s311, 32
        %s313 = smul.addr %s312, 8
        %s314 = scalar_lea.vmem %s0, %s313
      $region48: #{bottleneck_csp_forward.3} parent=43 // pred_fallthru
        _
      // Predicated region
      $region49: #{bottleneck_csp_forward.3} parent=43 // pred_check
        %p315 = pneg %p62
      $region50: #{bottleneck_csp_forward.3} parent=43 // pred_check_branch
        %317 = sbr.rel (%p315) target = $region52
      $region51: #{bottleneck_csp_forward.3} parent=43 // pred_region
        %p318 = scmp.lt.s32.totalorder %s16, 1
        %s319 = scalar_select %p318, %s16, 1
        %s320 = smul.addr %s319, 32
        %s321 = smul.addr %s320, 8
        %s322 = scalar_lea.vmem %s1, %s321
      $region52: #{bottleneck_csp_forward.3} parent=43 // pred_fallthru
        _
      // Predicated region
      $region53: #{bottleneck_csp_forward.3} parent=43 // pred_check
        %p323 = pneg %p88
      $region54: #{bottleneck_csp_forward.3} parent=43 // pred_check_branch
        %325 = sbr.rel (%p323) target = $region56
      $region55: #{bottleneck_csp_forward.3} parent=43 // pred_region
        %p326 = scmp.lt.s32.totalorder %s16, 1
        %s327 = scalar_select %p326, %s16, 1
        %s328 = smul.addr %s327, 32
        %s329 = smul.addr %s328, 8
        %s330 = scalar_lea.vmem %s2, %s329
      $region56: #{bottleneck_csp_forward.3} parent=43 // pred_fallthru
        _
    $region44: #{bottleneck_csp_forward.3} parent=5 // pred_fallthru
      _
    %p331 = scmp.le.s32.totalorder 1, %s16
    %p332 = scmp.lt.s32.totalorder %s16, 3
    %p333 = pnand %p331, %p332
    %p334 = pneg %p333
    // Predicated region
    $region57: #{bottleneck_csp_forward.3} parent=5 // pred_check
      _
    $region58: #{bottleneck_csp_forward.3} parent=5 // pred_check_branch
      %336 = sbr.rel (%p333) target = $region60
    $region59: #{bottleneck_csp_forward.3} parent=5 // pred_region
      %s337 = ssub.s32 %s16, 1
      %p338 = scmp.lt.s32.totalorder %s21, 1
      %s339 = scalar_select %p338, %s21, 1
      %s340 = smul.addr %s339, 32
      %s341 = smul.addr %s340, 8
      %s342 = scalar_lea.vmem %s0, %s341
      %p343 = pneg %p42
      %p344 = pneg %p39
      %p345 = scmp.lt.s32.totalorder %s21, 1
      %s346 = scalar_select %p345, %s21, 1
      %s347 = smul.addr %s346, 32
      %s348 = smul.addr %s347, 8
      %s349 = scalar_lea.vmem %s1, %s348
      %p350 = pneg %p68
      %p351 = pneg %p65
      %p352 = scmp.lt.s32.totalorder %s21, 1
      %s353 = scalar_select %p352, %s21, 1
      %s354 = smul.addr %s353, 32
      %s355 = smul.addr %s354, 8
      %s356 = scalar_lea.vmem %s2, %s355
      %p357 = pneg %p94
      %p358 = pneg %p91
      %p359 = pneg %p115
      %p360 = pneg %p112
      %p361 = pneg %p136
      %p362 = pneg %p133
      %p363 = pneg %p157
      %p364 = pneg %p154
      %p365 = pneg %p178
      %p366 = pneg %p175
      %p367 = pneg %p199
      %p368 = pneg %p196
      %p369 = pneg %p220
      %p370 = pneg %p217
      %p371 = pneg %p241
      %p372 = pneg %p238
      %p373 = pneg %p267
      %p374 = pneg %p264
      %p375 = scmp.lt.s32.totalorder %s21, 1
      %s376 = scalar_select %p375, %s21, 1
      %s377 = smul.addr %s376, 32
      %s378 = smul.addr %s377, 8
      %s379 = scalar_lea.vmem %s10, %s378
      %p380 = scmp.lt.s32.totalorder %s21, 1
      %s381 = scalar_select %p380, %s21, 1
      %s382 = smul.addr %s381, 32
      %s383 = smul.addr %s382, 8
      %s384 = scalar_lea.vmem %s0, %s383
      %p385 = scmp.lt.s32.totalorder %s21, 1
      %s386 = scalar_select %p385, %s21, 1
      %s387 = smul.addr %s386, 32
      %s388 = smul.addr %s387, 8
      %s389 = scalar_lea.vmem %s1, %s388
      %p390 = scmp.lt.s32.totalorder %s21, 1
      %s391 = scalar_select %p390, %s21, 1
      %s392 = smul.addr %s391, 32
      %s393 = smul.addr %s392, 8
      %s394 = scalar_lea.vmem %s2, %s393
      %p395 = scmp.lt.s32.totalorder %s21, 1
      %s396 = scalar_select %p395, %s21, 1
      %s397 = smul.addr %s396, 32
      %s398 = smul.addr %s397, 8
      %s399 = scalar_lea.vmem %s10, %s398
      %vm400 = vcmask 31744
      %401 = vst.msk [vmem:[#allocation2] sm:$0xff] %vm400, 0.0
      %402 = vst.msk [vmem:[#allocation2 + $0x8] sm:$0xff] %vm400, 0.0
      %403 = vst.msk [vmem:[#allocation2 + $0x10] sm:$0xff] %vm400, 0.0
      %404 = vst.msk [vmem:[#allocation2 + $0x18] sm:$0xff] %vm400, 0.0
      %405 = vst.msk [vmem:[#allocation2 + $0x20] sm:$0xff] %vm400, 0.0
      %406 = vst.msk [vmem:[#allocation2 + $0x28] sm:$0xff] %vm400, 0.0
      %407 = vst.msk [vmem:[#allocation2 + $0x30] sm:$0xff] %vm400, 0.0
      %408 = vst.msk [vmem:[#allocation2 + $0x38] sm:$0xff] %vm400, 0.0
      %409 = vst.msk [vmem:[#allocation2 + $0x40] sm:$0xff] %vm400, 0.0
      %410 = vst.msk [vmem:[#allocation2 + $0x48] sm:$0xff] %vm400, 0.0
      %411 = vst.msk [vmem:[#allocation2 + $0x50] sm:$0xff] %vm400, 0.0
      %412 = vst.msk [vmem:[#allocation2 + $0x58] sm:$0xff] %vm400, 0.0
      %413 = vst.msk [vmem:[#allocation2 + $0x60] sm:$0xff] %vm400, 0.0
      %414 = vst.msk [vmem:[#allocation2 + $0x68] sm:$0xff] %vm400, 0.0
      %415 = vst.msk [vmem:[#allocation2 + $0x70] sm:$0xff] %vm400, 0.0
      %416 = vst.msk [vmem:[#allocation2 + $0x78] sm:$0xff] %vm400, 0.0
      %417 = vst.msk [vmem:[#allocation2 + $0x80] sm:$0xff] %vm400, 0.0
      %418 = vst.msk [vmem:[#allocation2 + $0x88] sm:$0xff] %vm400, 0.0
      %419 = vst.msk [vmem:[#allocation2 + $0x90] sm:$0xff] %vm400, 0.0
      %420 = vst.msk [vmem:[#allocation2 + $0x98] sm:$0xff] %vm400, 0.0
      %421 = vst.msk [vmem:[#allocation2 + $0xa0] sm:$0xff] %vm400, 0.0
      %422 = vst.msk [vmem:[#allocation2 + $0xa8] sm:$0xff] %vm400, 0.0
      %423 = vst.msk [vmem:[#allocation2 + $0xb0] sm:$0xff] %vm400, 0.0
      %424 = vst.msk [vmem:[#allocation2 + $0xb8] sm:$0xff] %vm400, 0.0
      %425 = vst.msk [vmem:[#allocation2 + $0xc0] sm:$0xff] %vm400, 0.0
      %426 = vst.msk [vmem:[#allocation2 + $0xc8] sm:$0xff] %vm400, 0.0
      %427 = vst.msk [vmem:[#allocation2 + $0xd0] sm:$0xff] %vm400, 0.0
      %428 = vst.msk [vmem:[#allocation2 + $0xd8] sm:$0xff] %vm400, 0.0
      %429 = vst.msk [vmem:[#allocation2 + $0xe0] sm:$0xff] %vm400, 0.0
      %430 = vst.msk [vmem:[#allocation2 + $0xe8] sm:$0xff] %vm400, 0.0
      %431 = vst.msk [vmem:[#allocation2 + $0xf0] sm:$0xff] %vm400, 0.0
      %432 = vst.msk [vmem:[#allocation2 + $0xf8] sm:$0xff] %vm400, 0.0
      %433 = vst.msk [vmem:[#allocation2 + $0x100] sm:$0xff] %vm400, 0.0
      %434 = vst.msk [vmem:[#allocation2 + $0x108] sm:$0xff] %vm400, 0.0
      %435 = vst.msk [vmem:[#allocation2 + $0x110] sm:$0xff] %vm400, 0.0
      %436 = vst.msk [vmem:[#allocation2 + $0x118] sm:$0xff] %vm400, 0.0
      %437 = vst.msk [vmem:[#allocation2 + $0x120] sm:$0xff] %vm400, 0.0
      %vm438 = vcmask 24576
      %439 = vst.msk [vmem:[#allocation2 + $0x128] sm:$0x1] %vm438, 0.0
      %v440 = vld [vmem:[%s384] sm:$0xff]
      %v441 = vld [vmem:[%s384 + $0x8] sm:$0xff]
      %v442 = vld [vmem:[%s384 + $0x10] sm:$0xff]
      %v443 = vld [vmem:[%s384 + $0x18] sm:$0xff]
      %v444 = vld [vmem:[%s384 + $0x20] sm:$0xff]
      %v445 = vld [vmem:[%s384 + $0x28] sm:$0xff]
      %v446 = vld [vmem:[%s384 + $0x30] sm:$0xff]
      %v447 = vld [vmem:[%s384 + $0x38] sm:$0xff]
      %v448 = vld [vmem:[%s384 + $0x40] sm:$0xff]
      %v449 = vld [vmem:[%s384 + $0x48] sm:$0xff]
      %v450 = vld [vmem:[%s384 + $0x50] sm:$0xff]
      %v451 = vld [vmem:[%s384 + $0x58] sm:$0xff]
      %v452 = vld [vmem:[%s384 + $0x60] sm:$0xff]
      %v453 = vld [vmem:[%s384 + $0x68] sm:$0xff]
      %v454 = vld [vmem:[%s384 + $0x70] sm:$0xff]
      %v455 = vld [vmem:[%s384 + $0x78] sm:$0xff]
      %v456 = vld [vmem:[%s384 + $0x80] sm:$0xff]
      %v457 = vld [vmem:[%s384 + $0x88] sm:$0xff]
      %v458 = vld [vmem:[%s384 + $0x90] sm:$0xff]
      %v459 = vld [vmem:[%s384 + $0x98] sm:$0xff]
      %v460 = vld [vmem:[%s384 + $0xa0] sm:$0xff]
      %v461 = vld [vmem:[%s384 + $0xa8] sm:$0xff]
      %v462 = vld [vmem:[%s384 + $0xb0] sm:$0xff]
      %v463 = vld [vmem:[%s384 + $0xb8] sm:$0xff]
      %v464 = vld [vmem:[%s384 + $0xc0] sm:$0xff]
      %v465 = vld [vmem:[%s384 + $0xc8] sm:$0xff]
      %v466 = vld [vmem:[%s384 + $0xd0] sm:$0xff]
      %v467 = vld [vmem:[%s384 + $0xd8] sm:$0xff]
      %v468 = vld [vmem:[%s384 + $0xe0] sm:$0xff]
      %v469 = vld [vmem:[%s384 + $0xe8] sm:$0xff]
      %v470 = vld [vmem:[%s384 + $0xf0] sm:$0xff]
      %v471 = vld [vmem:[%s384 + $0xf8] sm:$0xff]
      %472 = vst.msk [vmem:[#allocation2 + $0x18] sm:$0xff] %vm400, %v440
      %473 = vst.msk [vmem:[#allocation2 + $0x20] sm:$0xff] %vm400, %v441
      %474 = vst.msk [vmem:[#allocation2 + $0x28] sm:$0xff] %vm400, %v442
      %475 = vst.msk [vmem:[#allocation2 + $0x30] sm:$0xff] %vm400, %v443
      %476 = vst.msk [vmem:[#allocation2 + $0x38] sm:$0xff] %vm400, %v444
      %477 = vst.msk [vmem:[#allocation2 + $0x40] sm:$0xff] %vm400, %v445
      %478 = vst.msk [vmem:[#allocation2 + $0x48] sm:$0xff] %vm400, %v446
      %479 = vst.msk [vmem:[#allocation2 + $0x50] sm:$0xff] %vm400, %v447
      %480 = vst.msk [vmem:[#allocation2 + $0x58] sm:$0xff] %vm400, %v448
      %481 = vst.msk [vmem:[#allocation2 + $0x60] sm:$0xff] %vm400, %v449
      %482 = vst.msk [vmem:[#allocation2 + $0x68] sm:$0xff] %vm400, %v450
      %483 = vst.msk [vmem:[#allocation2 + $0x70] sm:$0xff] %vm400, %v451
      %484 = vst.msk [vmem:[#allocation2 + $0x78] sm:$0xff] %vm400, %v452
      %485 = vst.msk [vmem:[#allocation2 + $0x80] sm:$0xff] %vm400, %v453
      %486 = vst.msk [vmem:[#allocation2 + $0x88] sm:$0xff] %vm400, %v454
      %487 = vst.msk [vmem:[#allocation2 + $0x90] sm:$0xff] %vm400, %v455
      %488 = vst.msk [vmem:[#allocation2 + $0x98] sm:$0xff] %vm400, %v456
      %489 = vst.msk [vmem:[#allocation2 + $0xa0] sm:$0xff] %vm400, %v457
      %490 = vst.msk [vmem:[#allocation2 + $0xa8] sm:$0xff] %vm400, %v458
      %491 = vst.msk [vmem:[#allocation2 + $0xb0] sm:$0xff] %vm400, %v459
      %492 = vst.msk [vmem:[#allocation2 + $0xb8] sm:$0xff] %vm400, %v460
      %493 = vst.msk [vmem:[#allocation2 + $0xc0] sm:$0xff] %vm400, %v461
      %494 = vst.msk [vmem:[#allocation2 + $0xc8] sm:$0xff] %vm400, %v462
      %495 = vst.msk [vmem:[#allocation2 + $0xd0] sm:$0xff] %vm400, %v463
      %496 = vst.msk [vmem:[#allocation2 + $0xd8] sm:$0xff] %vm400, %v464
      %497 = vst.msk [vmem:[#allocation2 + $0xe0] sm:$0xff] %vm400, %v465
      %498 = vst.msk [vmem:[#allocation2 + $0xe8] sm:$0xff] %vm400, %v466
      %499 = vst.msk [vmem:[#allocation2 + $0xf0] sm:$0xff] %vm400, %v467
      %500 = vst.msk [vmem:[#allocation2 + $0xf8] sm:$0xff] %vm400, %v468
      %501 = vst.msk [vmem:[#allocation2 + $0x100] sm:$0xff] %vm400, %v469
      %502 = vst.msk [vmem:[#allocation2 + $0x108] sm:$0xff] %vm400, %v470
      %503 = vst.msk [vmem:[#allocation2 + $0x110] sm:$0xff] %vm400, %v471
      %v504 = vlaneseq
      %v505 = vshrl.u32 %v504, 7
      %v506 = vadd.s32 %v505, 8
      %v507 = vadd.s32 %v505, 16
      %v508 = vadd.s32 %v505, 24
      %v509 = vadd.s32 %v505, 32
      %v510 = vadd.s32 %v505, 40
      %v511 = vadd.s32 %v505, 48
      %v512 = vadd.s32 %v505, 56
      %v513 = vadd.s32 %v505, 64
      %v514 = vadd.s32 %v505, 72
      %v515 = vadd.s32 %v505, 80
      %v516 = vadd.s32 %v505, 88
      %v517 = vadd.s32 %v505, 96
      %v518 = vadd.s32 %v505, 104
      %v519 = vadd.s32 %v505, 112
      %v520 = vadd.s32 %v505, 120
      %v521 = vadd.s32 %v505, 128
      %v522 = vadd.s32 %v505, 136
      %v523 = vadd.s32 %v505, 144
      %v524 = vadd.s32 %v505, 152
      %v525 = vadd.s32 %v505, 160
      %v526 = vadd.s32 %v505, 168
      %v527 = vadd.s32 %v505, 176
      %v528 = vadd.s32 %v505, 184
      %v529 = vadd.s32 %v505, 192
      %v530 = vadd.s32 %v505, 200
      %v531 = vadd.s32 %v505, 208
      %v532 = vadd.s32 %v505, 216
      %v533 = vadd.s32 %v505, 224
      %v534 = vadd.s32 %v505, 232
      %v535 = vadd.s32 %v505, 240
      %v536 = vadd.s32 %v505, 248
      %vm537 = vcmp.lt.s32.totalorder %v505, 0
      %v538 = vsub.s32 0, %v505
      %v539 = vsel %vm537, %v538, %v505
      %v540 = vshrl.u32 %v539, 4
      %v541 = vand.u32 %v539, 15
      %v542 = vsub.s32 0, %v541
      %v543 = vsel %vm537, %v542, %v541
      %vm544 = vcmp.lt.s32.totalorder %v506, 0
      %v545 = vsub.s32 0, %v506
      %v546 = vsel %vm544, %v545, %v506
      %v547 = vshrl.u32 %v546, 4
      %v548 = vand.u32 %v546, 15
      %v549 = vsub.s32 0, %v548
      %v550 = vsel %vm544, %v549, %v548
      %vm551 = vcmp.lt.s32.totalorder %v507, 0
      %v552 = vsub.s32 0, %v507
      %v553 = vsel %vm551, %v552, %v507
      %v554 = vshrl.u32 %v553, 4
      %v555 = vand.u32 %v553, 15
      %v556 = vsub.s32 0, %v555
      %v557 = vsel %vm551, %v556, %v555
      %vm558 = vcmp.lt.s32.totalorder %v508, 0
      %v559 = vsub.s32 0, %v508
      %v560 = vsel %vm558, %v559, %v508
      %v561 = vshrl.u32 %v560, 4
      %v562 = vand.u32 %v560, 15
      %v563 = vsub.s32 0, %v562
      %v564 = vsel %vm558, %v563, %v562
      %vm565 = vcmp.lt.s32.totalorder %v509, 0
      %v566 = vsub.s32 0, %v509
      %v567 = vsel %vm565, %v566, %v509
      %v568 = vshrl.u32 %v567, 4
      %v569 = vand.u32 %v567, 15
      %v570 = vsub.s32 0, %v569
      %v571 = vsel %vm565, %v570, %v569
      %vm572 = vcmp.lt.s32.totalorder %v510, 0
      %v573 = vsub.s32 0, %v510
      %v574 = vsel %vm572, %v573, %v510
      %v575 = vshrl.u32 %v574, 4
      %v576 = vand.u32 %v574, 15
      %v577 = vsub.s32 0, %v576
      %v578 = vsel %vm572, %v577, %v576
      %vm579 = vcmp.lt.s32.totalorder %v511, 0
      %v580 = vsub.s32 0, %v511
      %v581 = vsel %vm579, %v580, %v511
      %v582 = vshrl.u32 %v581, 4
      %v583 = vand.u32 %v581, 15
      %v584 = vsub.s32 0, %v583
      %v585 = vsel %vm579, %v584, %v583
      %vm586 = vcmp.lt.s32.totalorder %v512, 0
      %v587 = vsub.s32 0, %v512
      %v588 = vsel %vm586, %v587, %v512
      %v589 = vshrl.u32 %v588, 4
      %v590 = vand.u32 %v588, 15
      %v591 = vsub.s32 0, %v590
      %v592 = vsel %vm586, %v591, %v590
      %vm593 = vcmp.lt.s32.totalorder %v513, 0
      %v594 = vsub.s32 0, %v513
      %v595 = vsel %vm593, %v594, %v513
      %v596 = vshrl.u32 %v595, 4
      %v597 = vand.u32 %v595, 15
      %v598 = vsub.s32 0, %v597
      %v599 = vsel %vm593, %v598, %v597
      %vm600 = vcmp.lt.s32.totalorder %v514, 0
      %v601 = vsub.s32 0, %v514
      %v602 = vsel %vm600, %v601, %v514
      %v603 = vshrl.u32 %v602, 4
      %v604 = vand.u32 %v602, 15
      %v605 = vsub.s32 0, %v604
      %v606 = vsel %vm600, %v605, %v604
      %vm607 = vcmp.lt.s32.totalorder %v515, 0
      %v608 = vsub.s32 0, %v515
      %v609 = vsel %vm607, %v608, %v515
      %v610 = vshrl.u32 %v609, 4
      %v611 = vand.u32 %v609, 15
      %v612 = vsub.s32 0, %v611
      %v613 = vsel %vm607, %v612, %v611
      %vm614 = vcmp.lt.s32.totalorder %v516, 0
      %v615 = vsub.s32 0, %v516
      %v616 = vsel %vm614, %v615, %v516
      %v617 = vshrl.u32 %v616, 4
      %v618 = vand.u32 %v616, 15
      %v619 = vsub.s32 0, %v618
      %v620 = vsel %vm614, %v619, %v618
      %vm621 = vcmp.lt.s32.totalorder %v517, 0
      %v622 = vsub.s32 0, %v517
      %v623 = vsel %vm621, %v622, %v517
      %v624 = vshrl.u32 %v623, 4
      %v625 = vand.u32 %v623, 15
      %v626 = vsub.s32 0, %v625
      %v627 = vsel %vm621, %v626, %v625
      %vm628 = vcmp.lt.s32.totalorder %v518, 0
      %v629 = vsub.s32 0, %v518
      %v630 = vsel %vm628, %v629, %v518
      %v631 = vshrl.u32 %v630, 4
      %v632 = vand.u32 %v630, 15
      %v633 = vsub.s32 0, %v632
      %v634 = vsel %vm628, %v633, %v632
      %vm635 = vcmp.lt.s32.totalorder %v519, 0
      %v636 = vsub.s32 0, %v519
      %v637 = vsel %vm635, %v636, %v519
      %v638 = vshrl.u32 %v637, 4
      %v639 = vand.u32 %v637, 15
      %v640 = vsub.s32 0, %v639
      %v641 = vsel %vm635, %v640, %v639
      %vm642 = vcmp.lt.s32.totalorder %v520, 0
      %v643 = vsub.s32 0, %v520
      %v644 = vsel %vm642, %v643, %v520
      %v645 = vshrl.u32 %v644, 4
      %v646 = vand.u32 %v644, 15
      %v647 = vsub.s32 0, %v646
      %v648 = vsel %vm642, %v647, %v646
      %vm649 = vcmp.lt.s32.totalorder %v521, 0
      %v650 = vsub.s32 0, %v521
      %v651 = vsel %vm649, %v650, %v521
      %v652 = vshrl.u32 %v651, 4
      %v653 = vand.u32 %v651, 15
      %v654 = vsub.s32 0, %v653
      %v655 = vsel %vm649, %v654, %v653
      %vm656 = vcmp.lt.s32.totalorder %v522, 0
      %v657 = vsub.s32 0, %v522
      %v658 = vsel %vm656, %v657, %v522
      %v659 = vshrl.u32 %v658, 4
      %v660 = vand.u32 %v658, 15
      %v661 = vsub.s32 0, %v660
      %v662 = vsel %vm656, %v661, %v660
      %vm663 = vcmp.lt.s32.totalorder %v523, 0
      %v664 = vsub.s32 0, %v523
      %v665 = vsel %vm663, %v664, %v523
      %v666 = vshrl.u32 %v665, 4
      %v667 = vand.u32 %v665, 15
      %v668 = vsub.s32 0, %v667
      %v669 = vsel %vm663, %v668, %v667
      %vm670 = vcmp.lt.s32.totalorder %v524, 0
      %v671 = vsub.s32 0, %v524
      %v672 = vsel %vm670, %v671, %v524
      %v673 = vshrl.u32 %v672, 4
      %v674 = vand.u32 %v672, 15
      %v675 = vsub.s32 0, %v674
      %v676 = vsel %vm670, %v675, %v674
      %vm677 = vcmp.lt.s32.totalorder %v525, 0
      %v678 = vsub.s32 0, %v525
      %v679 = vsel %vm677, %v678, %v525
      %v680 = vshrl.u32 %v679, 4
      %v681 = vand.u32 %v679, 15
      %v682 = vsub.s32 0, %v681
      %v683 = vsel %vm677, %v682, %v681
      %vm684 = vcmp.lt.s32.totalorder %v526, 0
      %v685 = vsub.s32 0, %v526
      %v686 = vsel %vm684, %v685, %v526
      %v687 = vshrl.u32 %v686, 4
      %v688 = vand.u32 %v686, 15
      %v689 = vsub.s32 0, %v688
      %v690 = vsel %vm684, %v689, %v688
      %vm691 = vcmp.lt.s32.totalorder %v527, 0
      %v692 = vsub.s32 0, %v527
      %v693 = vsel %vm691, %v692, %v527
      %v694 = vshrl.u32 %v693, 4
      %v695 = vand.u32 %v693, 15
      %v696 = vsub.s32 0, %v695
      %v697 = vsel %vm691, %v696, %v695
      %vm698 = vcmp.lt.s32.totalorder %v528, 0
      %v699 = vsub.s32 0, %v528
      %v700 = vsel %vm698, %v699, %v528
      %v701 = vshrl.u32 %v700, 4
      %v702 = vand.u32 %v700, 15
      %v703 = vsub.s32 0, %v702
      %v704 = vsel %vm698, %v703, %v702
      %vm705 = vcmp.lt.s32.totalorder %v529, 0
      %v706 = vsub.s32 0, %v529
      %v707 = vsel %vm705, %v706, %v529
      %v708 = vshrl.u32 %v707, 4
      %v709 = vand.u32 %v707, 15
      %v710 = vsub.s32 0, %v709
      %v711 = vsel %vm705, %v710, %v709
      %vm712 = vcmp.lt.s32.totalorder %v530, 0
      %v713 = vsub.s32 0, %v530
      %v714 = vsel %vm712, %v713, %v530
      %v715 = vshrl.u32 %v714, 4
      %v716 = vand.u32 %v714, 15
      %v717 = vsub.s32 0, %v716
      %v718 = vsel %vm712, %v717, %v716
      %vm719 = vcmp.lt.s32.totalorder %v531, 0
      %v720 = vsub.s32 0, %v531
      %v721 = vsel %vm719, %v720, %v531
      %v722 = vshrl.u32 %v721, 4
      %v723 = vand.u32 %v721, 15
      %v724 = vsub.s32 0, %v723
      %v725 = vsel %vm719, %v724, %v723
      %vm726 = vcmp.lt.s32.totalorder %v532, 0
      %v727 = vsub.s32 0, %v532
      %v728 = vsel %vm726, %v727, %v532
      %v729 = vshrl.u32 %v728, 4
      %v730 = vand.u32 %v728, 15
      %v731 = vsub.s32 0, %v730
      %v732 = vsel %vm726, %v731, %v730
      %vm733 = vcmp.lt.s32.totalorder %v533, 0
      %v734 = vsub.s32 0, %v533
      %v735 = vsel %vm733, %v734, %v533
      %v736 = vshrl.u32 %v735, 4
      %v737 = vand.u32 %v735, 15
      %v738 = vsub.s32 0, %v737
      %v739 = vsel %vm733, %v738, %v737
      %vm740 = vcmp.lt.s32.totalorder %v534, 0
      %v741 = vsub.s32 0, %v534
      %v742 = vsel %vm740, %v741, %v534
      %v743 = vshrl.u32 %v742, 4
      %v744 = vand.u32 %v742, 15
      %v745 = vsub.s32 0, %v744
      %v746 = vsel %vm740, %v745, %v744
      %vm747 = vcmp.lt.s32.totalorder %v535, 0
      %v748 = vsub.s32 0, %v535
      %v749 = vsel %vm747, %v748, %v535
      %v750 = vshrl.u32 %v749, 4
      %v751 = vand.u32 %v749, 15
      %v752 = vsub.s32 0, %v751
      %v753 = vsel %vm747, %v752, %v751
      %vm754 = vcmp.lt.s32.totalorder %v536, 0
      %v755 = vsub.s32 0, %v536
      %v756 = vsel %vm754, %v755, %v536
      %v757 = vshrl.u32 %v756, 4
      %v758 = vand.u32 %v756, 15
      %v759 = vsub.s32 0, %v758
      %v760 = vsel %vm754, %v759, %v758
      %vm761 = vcmp.ne.s32.totalorder %v543, 0
      %vm762 = vcmp.ne.s32.totalorder %v550, 0
      %vm763 = vcmp.ne.s32.totalorder %v557, 0
      %vm764 = vcmp.ne.s32.totalorder %v564, 0
      %vm765 = vcmp.ne.s32.totalorder %v571, 0
      %vm766 = vcmp.ne.s32.totalorder %v578, 0
      %vm767 = vcmp.ne.s32.totalorder %v585, 0
      %vm768 = vcmp.ne.s32.totalorder %v592, 0
      %vm769 = vcmp.ne.s32.totalorder %v599, 0
      %vm770 = vcmp.ne.s32.totalorder %v606, 0
      %vm771 = vcmp.ne.s32.totalorder %v613, 0
      %vm772 = vcmp.ne.s32.totalorder %v620, 0
      %vm773 = vcmp.ne.s32.totalorder %v627, 0
      %vm774 = vcmp.ne.s32.totalorder %v634, 0
      %vm775 = vcmp.ne.s32.totalorder %v641, 0
      %vm776 = vcmp.ne.s32.totalorder %v648, 0
      %vm777 = vcmp.ne.s32.totalorder %v655, 0
      %vm778 = vcmp.ne.s32.totalorder %v662, 0
      %vm779 = vcmp.ne.s32.totalorder %v669, 0
      %vm780 = vcmp.ne.s32.totalorder %v676, 0
      %vm781 = vcmp.ne.s32.totalorder %v683, 0
      %vm782 = vcmp.ne.s32.totalorder %v690, 0
      %vm783 = vcmp.ne.s32.totalorder %v697, 0
      %vm784 = vcmp.ne.s32.totalorder %v704, 0
      %vm785 = vcmp.ne.s32.totalorder %v711, 0
      %vm786 = vcmp.ne.s32.totalorder %v718, 0
      %vm787 = vcmp.ne.s32.totalorder %v725, 0
      %vm788 = vcmp.ne.s32.totalorder %v732, 0
      %vm789 = vcmp.ne.s32.totalorder %v739, 0
      %vm790 = vcmp.ne.s32.totalorder %v746, 0
      %vm791 = vcmp.ne.s32.totalorder %v753, 0
      %vm792 = vcmp.ne.s32.totalorder %v760, 0
      %vm793 = vcmp.lt.s32.totalorder %v543, 0
      %vm794 = vcmp.lt.s32.totalorder %v550, 0
      %vm795 = vcmp.lt.s32.totalorder %v557, 0
      %vm796 = vcmp.lt.s32.totalorder %v564, 0
      %vm797 = vcmp.lt.s32.totalorder %v571, 0
      %vm798 = vcmp.lt.s32.totalorder %v578, 0
      %vm799 = vcmp.lt.s32.totalorder %v585, 0
      %vm800 = vcmp.lt.s32.totalorder %v592, 0
      %vm801 = vcmp.lt.s32.totalorder %v599, 0
      %vm802 = vcmp.lt.s32.totalorder %v606, 0
      %vm803 = vcmp.lt.s32.totalorder %v613, 0
      %vm804 = vcmp.lt.s32.totalorder %v620, 0
      %vm805 = vcmp.lt.s32.totalorder %v627, 0
      %vm806 = vcmp.lt.s32.totalorder %v634, 0
      %vm807 = vcmp.lt.s32.totalorder %v641, 0
      %vm808 = vcmp.lt.s32.totalorder %v648, 0
      %vm809 = vcmp.lt.s32.totalorder %v655, 0
      %vm810 = vcmp.lt.s32.totalorder %v662, 0
      %vm811 = vcmp.lt.s32.totalorder %v669, 0
      %vm812 = vcmp.lt.s32.totalorder %v676, 0
      %vm813 = vcmp.lt.s32.totalorder %v683, 0
      %vm814 = vcmp.lt.s32.totalorder %v690, 0
      %vm815 = vcmp.lt.s32.totalorder %v697, 0
      %vm816 = vcmp.lt.s32.totalorder %v704, 0
      %vm817 = vcmp.lt.s32.totalorder %v711, 0
      %vm818 = vcmp.lt.s32.totalorder %v718, 0
      %vm819 = vcmp.lt.s32.totalorder %v725, 0
      %vm820 = vcmp.lt.s32.totalorder %v732, 0
      %vm821 = vcmp.lt.s32.totalorder %v739, 0
      %vm822 = vcmp.lt.s32.totalorder %v746, 0
      %vm823 = vcmp.lt.s32.totalorder %v753, 0
      %vm824 = vcmp.lt.s32.totalorder %v760, 0
      %vm825 = vmand %vm793, %vm761
      %vm826 = vmand %vm794, %vm762
      %vm827 = vmand %vm795, %vm763
      %vm828 = vmand %vm796, %vm764
      %vm829 = vmand %vm797, %vm765
      %vm830 = vmand %vm798, %vm766
      %vm831 = vmand %vm799, %vm767
      %vm832 = vmand %vm800, %vm768
      %vm833 = vmand %vm801, %vm769
      %vm834 = vmand %vm802, %vm770
      %vm835 = vmand %vm803, %vm771
      %vm836 = vmand %vm804, %vm772
      %vm837 = vmand %vm805, %vm773
      %vm838 = vmand %vm806, %vm774
      %vm839 = vmand %vm807, %vm775
      %vm840 = vmand %vm808, %vm776
      %vm841 = vmand %vm809, %vm777
      %vm842 = vmand %vm810, %vm778
      %vm843 = vmand %vm811, %vm779
      %vm844 = vmand %vm812, %vm780
      %vm845 = vmand %vm813, %vm781
      %vm846 = vmand %vm814, %vm782
      %vm847 = vmand %vm815, %vm783
      %vm848 = vmand %vm816, %vm784
      %vm849 = vmand %vm817, %vm785
      %vm850 = vmand %vm818, %vm786
      %vm851 = vmand %vm819, %vm787
      %vm852 = vmand %vm820, %vm788
      %vm853 = vmand %vm821, %vm789
      %vm854 = vmand %vm822, %vm790
      %vm855 = vmand %vm823, %vm791
      %vm856 = vmand %vm824, %vm792
      %v857 = vadd.s32 %v543, 16
      %v858 = vadd.s32 %v550, 16
      %v859 = vadd.s32 %v557, 16
      %v860 = vadd.s32 %v564, 16
      %v861 = vadd.s32 %v571, 16
      %v862 = vadd.s32 %v578, 16
      %v863 = vadd.s32 %v585, 16
      %v864 = vadd.s32 %v592, 16
      %v865 = vadd.s32 %v599, 16
      %v866 = vadd.s32 %v606, 16
      %v867 = vadd.s32 %v613, 16
      %v868 = vadd.s32 %v620, 16
      %v869 = vadd.s32 %v627, 16
      %v870 = vadd.s32 %v634, 16
      %v871 = vadd.s32 %v641, 16
      %v872 = vadd.s32 %v648, 16
      %v873 = vadd.s32 %v655, 16
      %v874 = vadd.s32 %v662, 16
      %v875 = vadd.s32 %v669, 16
      %v876 = vadd.s32 %v676, 16
      %v877 = vadd.s32 %v683, 16
      %v878 = vadd.s32 %v690, 16
      %v879 = vadd.s32 %v697, 16
      %v880 = vadd.s32 %v704, 16
      %v881 = vadd.s32 %v711, 16
      %v882 = vadd.s32 %v718, 16
      %v883 = vadd.s32 %v725, 16
      %v884 = vadd.s32 %v732, 16
      %v885 = vadd.s32 %v739, 16
      %v886 = vadd.s32 %v746, 16
      %v887 = vadd.s32 %v753, 16
      %v888 = vadd.s32 %v760, 16
      %v889 = vsel %vm825, %v857, %v543
      %v890 = vsel %vm826, %v858, %v550
      %v891 = vsel %vm827, %v859, %v557
      %v892 = vsel %vm828, %v860, %v564
      %v893 = vsel %vm829, %v861, %v571
      %v894 = vsel %vm830, %v862, %v578
      %v895 = vsel %vm831, %v863, %v585
      %v896 = vsel %vm832, %v864, %v592
      %v897 = vsel %vm833, %v865, %v599
      %v898 = vsel %vm834, %v866, %v606
      %v899 = vsel %vm835, %v867, %v613
      %v900 = vsel %vm836, %v868, %v620
      %v901 = vsel %vm837, %v869, %v627
      %v902 = vsel %vm838, %v870, %v634
      %v903 = vsel %vm839, %v871, %v641
      %v904 = vsel %vm840, %v872, %v648
      %v905 = vsel %vm841, %v873, %v655
      %v906 = vsel %vm842, %v874, %v662
      %v907 = vsel %vm843, %v875, %v669
      %v908 = vsel %vm844, %v876, %v676
      %v909 = vsel %vm845, %v877, %v683
      %v910 = vsel %vm846, %v878, %v690
      %v911 = vsel %vm847, %v879, %v697
      %v912 = vsel %vm848, %v880, %v704
      %v913 = vsel %vm849, %v881, %v711
      %v914 = vsel %vm850, %v882, %v718
      %v915 = vsel %vm851, %v883, %v725
      %v916 = vsel %vm852, %v884, %v732
      %v917 = vsel %vm853, %v885, %v739
      %v918 = vsel %vm854, %v886, %v746
      %v919 = vsel %vm855, %v887, %v753
      %v920 = vsel %vm856, %v888, %v760
      %vm921 = vcmp.ge.s32.totalorder %v889, 1
      %vm922 = vcmp.ge.s32.totalorder %v890, 1
      %vm923 = vcmp.ge.s32.totalorder %v891, 1
      %vm924 = vcmp.ge.s32.totalorder %v892, 1
      %vm925 = vcmp.ge.s32.totalorder %v893, 1
      %vm926 = vcmp.ge.s32.totalorder %v894, 1
      %vm927 = vcmp.ge.s32.totalorder %v895, 1
      %vm928 = vcmp.ge.s32.totalorder %v896, 1
      %vm929 = vcmp.ge.s32.totalorder %v897, 1
      %vm930 = vcmp.ge.s32.totalorder %v898, 1
      %vm931 = vcmp.ge.s32.totalorder %v899, 1
      %vm932 = vcmp.ge.s32.totalorder %v900, 1
      %vm933 = vcmp.ge.s32.totalorder %v901, 1
      %vm934 = vcmp.ge.s32.totalorder %v902, 1
      %vm935 = vcmp.ge.s32.totalorder %v903, 1
      %vm936 = vcmp.ge.s32.totalorder %v904, 1
      %vm937 = vcmp.ge.s32.totalorder %v905, 1
      %vm938 = vcmp.ge.s32.totalorder %v906, 1
      %vm939 = vcmp.ge.s32.totalorder %v907, 1
      %vm940 = vcmp.ge.s32.totalorder %v908, 1
      %vm941 = vcmp.ge.s32.totalorder %v909, 1
      %vm942 = vcmp.ge.s32.totalorder %v910, 1
      %vm943 = vcmp.ge.s32.totalorder %v911, 1
      %vm944 = vcmp.ge.s32.totalorder %v912, 1
      %vm945 = vcmp.ge.s32.totalorder %v913, 1
      %vm946 = vcmp.ge.s32.totalorder %v914, 1
      %vm947 = vcmp.ge.s32.totalorder %v915, 1
      %vm948 = vcmp.ge.s32.totalorder %v916, 1
      %vm949 = vcmp.ge.s32.totalorder %v917, 1
      %vm950 = vcmp.ge.s32.totalorder %v918, 1
      %vm951 = vcmp.ge.s32.totalorder %v919, 1
      %vm952 = vcmp.ge.s32.totalorder %v920, 1
      %vm953 = vcmp.le.s32.totalorder %v889, 14
      %vm954 = vcmp.le.s32.totalorder %v890, 14
      %vm955 = vcmp.le.s32.totalorder %v891, 14
      %vm956 = vcmp.le.s32.totalorder %v892, 14
      %vm957 = vcmp.le.s32.totalorder %v893, 14
      %vm958 = vcmp.le.s32.totalorder %v894, 14
      %vm959 = vcmp.le.s32.totalorder %v895, 14
      %vm960 = vcmp.le.s32.totalorder %v896, 14
      %vm961 = vcmp.le.s32.totalorder %v897, 14
      %vm962 = vcmp.le.s32.totalorder %v898, 14
      %vm963 = vcmp.le.s32.totalorder %v899, 14
      %vm964 = vcmp.le.s32.totalorder %v900, 14
      %vm965 = vcmp.le.s32.totalorder %v901, 14
      %vm966 = vcmp.le.s32.totalorder %v902, 14
      %vm967 = vcmp.le.s32.totalorder %v903, 14
      %vm968 = vcmp.le.s32.totalorder %v904, 14
      %vm969 = vcmp.le.s32.totalorder %v905, 14
      %vm970 = vcmp.le.s32.totalorder %v906, 14
      %vm971 = vcmp.le.s32.totalorder %v907, 14
      %vm972 = vcmp.le.s32.totalorder %v908, 14
      %vm973 = vcmp.le.s32.totalorder %v909, 14
      %vm974 = vcmp.le.s32.totalorder %v910, 14
      %vm975 = vcmp.le.s32.totalorder %v911, 14
      %vm976 = vcmp.le.s32.totalorder %v912, 14
      %vm977 = vcmp.le.s32.totalorder %v913, 14
      %vm978 = vcmp.le.s32.totalorder %v914, 14
      %vm979 = vcmp.le.s32.totalorder %v915, 14
      %vm980 = vcmp.le.s32.totalorder %v916, 14
      %vm981 = vcmp.le.s32.totalorder %v917, 14
      %vm982 = vcmp.le.s32.totalorder %v918, 14
      %vm983 = vcmp.le.s32.totalorder %v919, 14
      %vm984 = vcmp.le.s32.totalorder %v920, 14
      %v985 = vld [vmem:[#allocation2 + $0x7] sm:$0xff]
      %v986 = vld [vmem:[#allocation2 + $0xf] sm:$0xff]
      %v987 = vld [vmem:[#allocation2 + $0x17] sm:$0xff]
      %v988 = vld [vmem:[#allocation2 + $0x1f] sm:$0xff]
      %v989 = vld [vmem:[#allocation2 + $0x27] sm:$0xff]
      %v990 = vld [vmem:[#allocation2 + $0x2f] sm:$0xff]
      %v991 = vld [vmem:[#allocation2 + $0x37] sm:$0xff]
      %v992 = vld [vmem:[#allocation2 + $0x3f] sm:$0xff]
      %v993 = vld [vmem:[#allocation2 + $0x47] sm:$0xff]
      %v994 = vld [vmem:[#allocation2 + $0x4f] sm:$0xff]
      %v995 = vld [vmem:[#allocation2 + $0x57] sm:$0xff]
      %v996 = vld [vmem:[#allocation2 + $0x5f] sm:$0xff]
      %v997 = vld [vmem:[#allocation2 + $0x67] sm:$0xff]
      %v998 = vld [vmem:[#allocation2 + $0x6f] sm:$0xff]
      %v999 = vld [vmem:[#allocation2 + $0x77] sm:$0xff]
      %v1000 = vld [vmem:[#allocation2 + $0x7f] sm:$0xff]
      %v1001 = vld [vmem:[#allocation2 + $0x87] sm:$0xff]
      %v1002 = vld [vmem:[#allocation2 + $0x8f] sm:$0xff]
      %v1003 = vld [vmem:[#allocation2 + $0x97] sm:$0xff]
      %v1004 = vld [vmem:[#allocation2 + $0x9f] sm:$0xff]
      %v1005 = vld [vmem:[#allocation2 + $0xa7] sm:$0xff]
      %v1006 = vld [vmem:[#allocation2 + $0xaf] sm:$0xff]
      %v1007 = vld [vmem:[#allocation2 + $0xb7] sm:$0xff]
      %v1008 = vld [vmem:[#allocation2 + $0xbf] sm:$0xff]
      %v1009 = vld [vmem:[#allocation2 + $0xc7] sm:$0xff]
      %v1010 = vld [vmem:[#allocation2 + $0xcf] sm:$0xff]
      %v1011 = vld [vmem:[#allocation2 + $0xd7] sm:$0xff]
      %v1012 = vld [vmem:[#allocation2 + $0xdf] sm:$0xff]
      %v1013 = vld [vmem:[#allocation2 + $0xe7] sm:$0xff]
      %v1014 = vld [vmem:[#allocation2 + $0xef] sm:$0xff]
      %v1015 = vld [vmem:[#allocation2 + $0xf7] sm:$0xff]
      %v1016 = vld [vmem:[#allocation2 + $0xff] sm:$0xff]
      %v1017 = vld [vmem:[%s3] sm:$0xf]
      %v1019 = vsel %vm400, %v985, 0
      %v1022 = vsel %vm400, %v986, 0
      %v1025 = vsel %vm400, %v987, 0
      %v1028 = vsel %vm400, %v988, 0
      %v1031 = vsel %vm400, %v989, 0
      %v1034 = vsel %vm400, %v990, 0
      %v1037 = vsel %vm400, %v991, 0
      %v1040 = vsel %vm400, %v992, 0
      %v1043 = vsel %vm400, %v993, 0
      %v1046 = vsel %vm400, %v994, 0
      %v1049 = vsel %vm400, %v995, 0
      %v1052 = vsel %vm400, %v996, 0
      %v1055 = vsel %vm400, %v997, 0
      %v1058 = vsel %vm400, %v998, 0
      %v1061 = vsel %vm400, %v999, 0
      %v1064 = vsel %vm400, %v1000, 0
      %v1067 = vsel %vm400, %v1001, 0
      %v1070 = vsel %vm400, %v1002, 0
      %v1073 = vsel %vm400, %v1003, 0
      %v1076 = vsel %vm400, %v1004, 0
      %v1079 = vsel %vm400, %v1005, 0
      %v1082 = vsel %vm400, %v1006, 0
      %v1085 = vsel %vm400, %v1007, 0
      %v1088 = vsel %vm400, %v1008, 0
      %v1091 = vsel %vm400, %v1009, 0
      %v1094 = vsel %vm400, %v1010, 0
      %v1097 = vsel %vm400, %v1011, 0
      %v1100 = vsel %vm400, %v1012, 0
      %v1103 = vsel %vm400, %v1013, 0
      %v1106 = vsel %vm400, %v1014, 0
      %v1109 = vsel %vm400, %v1015, 0
      %v1112 = vsel %vm400, %v1016, 0
      %vm1114 = vcmask 1043456
      %v1116 = vsel %vm1114, %v1017, 0
      %1118 = vmatprep.subr.mxu0 0.0
      %1119 = vmatpush1.msra.mxu0 0.0
      %1120 = vmatprep.subr.mxu0 0.0
      %1121 = vmatpush1.msra.mxu0 0.0
      %1122 = vmatprep.subr.mxu0 0.0
      %1123 = vmatpush1.msra.mxu0 0.0
      %1124 = vmatprep.subr.mxu0 0.0
      %1125 = vmatpush1.msra.mxu0 0.0
      %1126 = vmatprep.subr.mxu0 0.0
      %1127 = vmatpush1.msra.mxu0 0.0
      %1128 = vmatprep.subr.mxu0 0.0
      %1129 = vmatpush1.msra.mxu0 0.0
      %1130 = vmatprep.subr.mxu0 0.0
      %1131 = vmatpush1.msra.mxu0 0.0
      %1132 = vmatprep.subr.mxu0 0.0
      %1133 = vmatpush1.msra.mxu0 0.0
      %1134 = vmatprep.subr.mxu0 0.0
      %1135 = vmatpush1.msra.mxu0 0.0
      %1136 = vmatprep.subr.mxu0 0.0
      %1137 = vmatpush1.msra.mxu0 0.0
      %1138 = vmatprep.subr.mxu0 0.0
      %1139 = vmatpush1.msra.mxu0 0.0
      %1140 = vmatprep.subr.mxu0 0.0
      %1141 = vmatpush1.msra.mxu0 0.0
      %1142 = vmatprep.subr.mxu0 0.0
      %1143 = vmatpush1.msra.mxu0 0.0
      %1144 = vmatprep.subr.mxu0 0.0
      %1145 = vmatpush1.msra.mxu0 0.0
      %1146 = vmatprep.subr.mxu0 0.0
      %1147 = vmatpush1.msra.mxu0 0.0
      %1148 = vmatprep.subr.mxu0 0.0
      %1149 = vmatpush1.msra.mxu0 %v1116
      %1150 = vmatprep.subr.mxu0 0.0
      %1151 = vmatpush2.msra.mxu0 0.0
      %1152 = vmatprep.subr.mxu0 0.0
      %1153 = vmatpush2.msra.mxu0 0.0
      %1154 = vmatprep.subr.mxu0 0.0
      %1155 = vmatpush2.msra.mxu0 0.0
      %1156 = vmatprep.subr.mxu0 0.0
      %1157 = vmatpush2.msra.mxu0 0.0
      %1158 = vmatprep.subr.mxu0 0.0
      %1159 = vmatpush2.msra.mxu0 0.0
      %1160 = vmatprep.subr.mxu0 0.0
      %1161 = vmatpush2.msra.mxu0 0.0
      %1162 = vmatprep.subr.mxu0 0.0
      %1163 = vmatpush2.msra.mxu0 0.0
      %1164 = vmatprep.subr.mxu0 0.0
      %1165 = vmatpush2.msra.mxu0 0.0
      %1166 = vmatprep.subr.mxu0 0.0
      %1167 = vmatpush2.msra.mxu0 0.0
      %1168 = vmatprep.subr.mxu0 0.0
      %1169 = vmatpush2.msra.mxu0 0.0
      %1170 = vmatprep.subr.mxu0 0.0
      %1171 = vmatpush2.msra.mxu0 0.0
      %1172 = vmatprep.subr.mxu0 0.0
      %1173 = vmatpush2.msra.mxu0 0.0
      %1174 = vmatprep.subr.mxu0 0.0
      %1175 = vmatpush2.msra.mxu0 0.0
      %1176 = vmatprep.subr.mxu0 0.0
      %1177 = vmatpush2.msra.mxu0 0.0
      %1178 = vmatprep.subr.mxu0 0.0
      %1179 = vmatpush2.msra.mxu0 0.0
      %1180 = vmatprep.subr.mxu0 0.0
      %1181 = vmatpush2.msra.mxu0 0.0
      %1182 = vmatprep.mubr.f32.mxu0 0.0
      %1183 = vmatmul.mubr.f32.gmra.mxu0 %v1019
      %v1184 = vpop.f32.mrf.mxu0
      %v1185 = vadd.f32 0.0, %v1184
      %v1186 = vpop.f32.mrf.mxu0
      %1187 = vmatprep.mubr.f32.mxu0 0.0
      %1188 = vmatmul.mubr.f32.gmra.mxu0 %v1022
      %v1189 = vpop.f32.mrf.mxu0
      %v1190 = vadd.f32 0.0, %v1189
      %v1191 = vpop.f32.mrf.mxu0
      %1192 = vmatprep.mubr.f32.mxu0 0.0
      %1193 = vmatmul.mubr.f32.gmra.mxu0 %v1025
      %v1194 = vpop.f32.mrf.mxu0
      %v1195 = vadd.f32 0.0, %v1194
      %v1196 = vpop.f32.mrf.mxu0
      %1197 = vmatprep.mubr.f32.mxu0 0.0
      %1198 = vmatmul.mubr.f32.gmra.mxu0 %v1028
      %v1199 = vpop.f32.mrf.mxu0
      %v1200 = vadd.f32 0.0, %v1199
      %v1201 = vpop.f32.mrf.mxu0
      %1202 = vmatprep.mubr.f32.mxu0 0.0
      %1203 = vmatmul.mubr.f32.gmra.mxu0 %v1031
      %v1204 = vpop.f32.mrf.mxu0
      %v1205 = vadd.f32 0.0, %v1204
      %v1206 = vpop.f32.mrf.mxu0
      %1207 = vmatprep.mubr.f32.mxu0 0.0
      %1208 = vmatmul.mubr.f32.gmra.mxu0 %v1034
      %v1209 = vpop.f32.mrf.mxu0
      %v1210 = vadd.f32 0.0, %v1209
      %v1211 = vpop.f32.mrf.mxu0
      %1212 = vmatprep.mubr.f32.mxu0 0.0
      %1213 = vmatmul.mubr.f32.gmra.mxu0 %v1037
      %v1214 = vpop.f32.mrf.mxu0
      %v1215 = vadd.f32 0.0, %v1214
      %v1216 = vpop.f32.mrf.mxu0
      %1217 = vmatprep.mubr.f32.mxu0 0.0
      %1218 = vmatmul.mubr.f32.gmra.mxu0 %v1040
      %v1219 = vpop.f32.mrf.mxu0
      %v1220 = vadd.f32 0.0, %v1219
      %v1221 = vpop.f32.mrf.mxu0
      %1222 = vmatprep.mubr.f32.mxu0 0.0
      %1223 = vmatmul.mubr.f32.gmra.mxu0 %v1043
      %v1224 = vpop.f32.mrf.mxu0
      %v1225 = vadd.f32 0.0, %v1224
      %v1226 = vpop.f32.mrf.mxu0
      %1227 = vmatprep.mubr.f32.mxu0 0.0
      %1228 = vmatmul.mubr.f32.gmra.mxu0 %v1046
      %v1229 = vpop.f32.mrf.mxu0
      %v1230 = vadd.f32 0.0, %v1229
      %v1231 = vpop.f32.mrf.mxu0
      %1232 = vmatprep.mubr.f32.mxu0 0.0
      %1233 = vmatmul.mubr.f32.gmra.mxu0 %v1049
      %v1234 = vpop.f32.mrf.mxu0
      %v1235 = vadd.f32 0.0, %v1234
      %v1236 = vpop.f32.mrf.mxu0
      %1237 = vmatprep.mubr.f32.mxu0 0.0
      %1238 = vmatmul.mubr.f32.gmra.mxu0 %v1052
      %v1239 = vpop.f32.mrf.mxu0
      %v1240 = vadd.f32 0.0, %v1239
      %v1241 = vpop.f32.mrf.mxu0
      %1242 = vmatprep.mubr.f32.mxu0 0.0
      %1243 = vmatmul.mubr.f32.gmra.mxu0 %v1055
      %v1244 = vpop.f32.mrf.mxu0
      %v1245 = vadd.f32 0.0, %v1244
      %v1246 = vpop.f32.mrf.mxu0
      %1247 = vmatprep.mubr.f32.mxu0 0.0
      %1248 = vmatmul.mubr.f32.gmra.mxu0 %v1058
      %v1249 = vpop.f32.mrf.mxu0
      %v1250 = vadd.f32 0.0, %v1249
      %v1251 = vpop.f32.mrf.mxu0
      %1252 = vmatprep.mubr.f32.mxu0 0.0
      %1253 = vmatmul.mubr.f32.gmra.mxu0 %v1061
      %v1254 = vpop.f32.mrf.mxu0
      %v1255 = vadd.f32 0.0, %v1254
      %v1256 = vpop.f32.mrf.mxu0
      %1257 = vmatprep.mubr.f32.mxu0 0.0
      %1258 = vmatmul.mubr.f32.gmra.mxu0 %v1064
      %v1259 = vpop.f32.mrf.mxu0
      %v1260 = vadd.f32 0.0, %v1259
      %v1261 = vpop.f32.mrf.mxu0
      %1262 = vmatprep.mubr.f32.mxu0 0.0
      %1263 = vmatmul.mubr.f32.gmra.mxu0 %v1067
      %v1264 = vpop.f32.mrf.mxu0
      %v1265 = vadd.f32 0.0, %v1264
      %v1266 = vpop.f32.mrf.mxu0
      %1267 = vmatprep.mubr.f32.mxu0 0.0
      %1268 = vmatmul.mubr.f32.gmra.mxu0 %v1070
      %v1269 = vpop.f32.mrf.mxu0
      %v1270 = vadd.f32 0.0, %v1269
      %v1271 = vpop.f32.mrf.mxu0
      %1272 = vmatprep.mubr.f32.mxu0 0.0
      %1273 = vmatmul.mubr.f32.gmra.mxu0 %v1073
      %v1274 = vpop.f32.mrf.mxu0
      %v1275 = vadd.f32 0.0, %v1274
      %v1276 = vpop.f32.mrf.mxu0
      %1277 = vmatprep.mubr.f32.mxu0 0.0
      %1278 = vmatmul.mubr.f32.gmra.mxu0 %v1076
      %v1279 = vpop.f32.mrf.mxu0
      %v1280 = vadd.f32 0.0, %v1279
      %v1281 = vpop.f32.mrf.mxu0
      %1282 = vmatprep.mubr.f32.mxu0 0.0
      %1283 = vmatmul.mubr.f32.gmra.mxu0 %v1079
      %v1284 = vpop.f32.mrf.mxu0
      %v1285 = vadd.f32 0.0, %v1284
      %v1286 = vpop.f32.mrf.mxu0
      %1287 = vmatprep.mubr.f32.mxu0 0.0
      %1288 = vmatmul.mubr.f32.gmra.mxu0 %v1082
      %v1289 = vpop.f32.mrf.mxu0
      %v1290 = vadd.f32 0.0, %v1289
      %v1291 = vpop.f32.mrf.mxu0
      %1292 = vmatprep.mubr.f32.mxu0 0.0
      %1293 = vmatmul.mubr.f32.gmra.mxu0 %v1085
      %v1294 = vpop.f32.mrf.mxu0
      %v1295 = vadd.f32 0.0, %v1294
      %v1296 = vpop.f32.mrf.mxu0
      %1297 = vmatprep.mubr.f32.mxu0 0.0
      %1298 = vmatmul.mubr.f32.gmra.mxu0 %v1088
      %v1299 = vpop.f32.mrf.mxu0
      %v1300 = vadd.f32 0.0, %v1299
      %v1301 = vpop.f32.mrf.mxu0
      %1302 = vmatprep.mubr.f32.mxu0 0.0
      %1303 = vmatmul.mubr.f32.gmra.mxu0 %v1091
      %v1304 = vpop.f32.mrf.mxu0
      %v1305 = vadd.f32 0.0, %v1304
      %v1306 = vpop.f32.mrf.mxu0
      %1307 = vmatprep.mubr.f32.mxu0 0.0
      %1308 = vmatmul.mubr.f32.gmra.mxu0 %v1094
      %v1309 = vpop.f32.mrf.mxu0
      %v1310 = vadd.f32 0.0, %v1309
      %v1311 = vpop.f32.mrf.mxu0
      %1312 = vmatprep.mubr.f32.mxu0 0.0
      %1313 = vmatmul.mubr.f32.gmra.mxu0 %v1097
      %v1314 = vpop.f32.mrf.mxu0
      %v1315 = vadd.f32 0.0, %v1314
      %v1316 = vpop.f32.mrf.mxu0
      %1317 = vmatprep.mubr.f32.mxu0 0.0
      %1318 = vmatmul.mubr.f32.gmra.mxu0 %v1100
      %v1319 = vpop.f32.mrf.mxu0
      %v1320 = vadd.f32 0.0, %v1319
      %v1321 = vpop.f32.mrf.mxu0
      %1322 = vmatprep.mubr.f32.mxu0 0.0
      %1323 = vmatmul.mubr.f32.gmra.mxu0 %v1103
      %v1324 = vpop.f32.mrf.mxu0
      %v1325 = vadd.f32 0.0, %v1324
      %v1326 = vpop.f32.mrf.mxu0
      %1327 = vmatprep.mubr.f32.mxu0 0.0
      %1328 = vmatmul.mubr.f32.gmra.mxu0 %v1106
      %v1329 = vpop.f32.mrf.mxu0
      %v1330 = vadd.f32 0.0, %v1329
      %v1331 = vpop.f32.mrf.mxu0
      %1332 = vmatprep.mubr.f32.mxu0 0.0
      %1333 = vmatmul.mubr.f32.gmra.mxu0 %v1109
      %v1334 = vpop.f32.mrf.mxu0
      %v1335 = vadd.f32 0.0, %v1334
      %v1336 = vpop.f32.mrf.mxu0
      %1337 = vmatprep.mubr.f32.mxu0 0.0
      %1338 = vmatmul.mubr.f32.gmra.mxu0 %v1112
      %v1339 = vpop.f32.mrf.mxu0
      %v1340 = vadd.f32 0.0, %v1339
      %v1341 = vpop.f32.mrf.mxu0
      %1342 = vdwg.mxu0
      %v1343 = vsel %vm921, 1, 0
      %v1344 = vsel %vm922, 1, 0
      %v1345 = vsel %vm923, 1, 0
      %v1346 = vsel %vm924, 1, 0
      %v1347 = vsel %vm925, 1, 0
      %v1348 = vsel %vm926, 1, 0
      %v1349 = vsel %vm927, 1, 0
      %v1350 = vsel %vm928, 1, 0
      %v1351 = vsel %vm929, 1, 0
      %v1352 = vsel %vm930, 1, 0
      %v1353 = vsel %vm931, 1, 0
      %v1354 = vsel %vm932, 1, 0
      %v1355 = vsel %vm933, 1, 0
      %v1356 = vsel %vm934, 1, 0
      %v1357 = vsel %vm935, 1, 0
      %v1358 = vsel %vm936, 1, 0
      %v1359 = vsel %vm937, 1, 0
      %v1360 = vsel %vm938, 1, 0
      %v1361 = vsel %vm939, 1, 0
      %v1362 = vsel %vm940, 1, 0
      %v1363 = vsel %vm941, 1, 0
      %v1364 = vsel %vm942, 1, 0
      %v1365 = vsel %vm943, 1, 0
      %v1366 = vsel %vm944, 1, 0
      %v1367 = vsel %vm945, 1, 0
      %v1368 = vsel %vm946, 1, 0
      %v1369 = vsel %vm947, 1, 0
      %v1370 = vsel %vm948, 1, 0
      %v1371 = vsel %vm949, 1, 0
      %v1372 = vsel %vm950, 1, 0
      %v1373 = vsel %vm951, 1, 0
      %v1374 = vsel %vm952, 1, 0
      %vm1375 = vcmp.eq.s32.totalorder %v1343, 1
      %vm1376 = vcmp.eq.s32.totalorder %v1344, 1
      %vm1377 = vcmp.eq.s32.totalorder %v1345, 1
      %vm1378 = vcmp.eq.s32.totalorder %v1346, 1
      %vm1379 = vcmp.eq.s32.totalorder %v1347, 1
      %vm1380 = vcmp.eq.s32.totalorder %v1348, 1
      %vm1381 = vcmp.eq.s32.totalorder %v1349, 1
      %vm1382 = vcmp.eq.s32.totalorder %v1350, 1
      %vm1383 = vcmp.eq.s32.totalorder %v1351, 1
      %vm1384 = vcmp.eq.s32.totalorder %v1352, 1
      %vm1385 = vcmp.eq.s32.totalorder %v1353, 1
      %vm1386 = vcmp.eq.s32.totalorder %v1354, 1
      %vm1387 = vcmp.eq.s32.totalorder %v1355, 1
      %vm1388 = vcmp.eq.s32.totalorder %v1356, 1
      %vm1389 = vcmp.eq.s32.totalorder %v1357, 1
      %vm1390 = vcmp.eq.s32.totalorder %v1358, 1
      %vm1391 = vcmp.eq.s32.totalorder %v1359, 1
      %vm1392 = vcmp.eq.s32.totalorder %v1360, 1
      %vm1393 = vcmp.eq.s32.totalorder %v1361, 1
      %vm1394 = vcmp.eq.s32.totalorder %v1362, 1
      %vm1395 = vcmp.eq.s32.totalorder %v1363, 1
      %vm1396 = vcmp.eq.s32.totalorder %v1364, 1
      %vm1397 = vcmp.eq.s32.totalorder %v1365, 1
      %vm1398 = vcmp.eq.s32.totalorder %v1366, 1
      %vm1399 = vcmp.eq.s32.totalorder %v1367, 1
      %vm1400 = vcmp.eq.s32.totalorder %v1368, 1
      %vm1401 = vcmp.eq.s32.totalorder %v1369, 1
      %vm1402 = vcmp.eq.s32.totalorder %v1370, 1
      %vm1403 = vcmp.eq.s32.totalorder %v1371, 1
      %vm1404 = vcmp.eq.s32.totalorder %v1372, 1
      %vm1405 = vcmp.eq.s32.totalorder %v1373, 1
      %vm1406 = vcmp.eq.s32.totalorder %v1374, 1
      %v1407 = vsel %vm1375, %v1185, 0.0
      %v1408 = vsel %vm1376, %v1190, 0.0
      %v1409 = vsel %vm1377, %v1195, 0.0
      %v1410 = vsel %vm1378, %v1200, 0.0
      %v1411 = vsel %vm1379, %v1205, 0.0
      %v1412 = vsel %vm1380, %v1210, 0.0
      %v1413 = vsel %vm1381, %v1215, 0.0
      %v1414 = vsel %vm1382, %v1220, 0.0
      %v1415 = vsel %vm1383, %v1225, 0.0
      %v1416 = vsel %vm1384, %v1230, 0.0
      %v1417 = vsel %vm1385, %v1235, 0.0
      %v1418 = vsel %vm1386, %v1240, 0.0
      %v1419 = vsel %vm1387, %v1245, 0.0
      %v1420 = vsel %vm1388, %v1250, 0.0
      %v1421 = vsel %vm1389, %v1255, 0.0
      %v1422 = vsel %vm1390, %v1260, 0.0
      %v1423 = vsel %vm1391, %v1265, 0.0
      %v1424 = vsel %vm1392, %v1270, 0.0
      %v1425 = vsel %vm1393, %v1275, 0.0
      %v1426 = vsel %vm1394, %v1280, 0.0
      %v1427 = vsel %vm1395, %v1285, 0.0
      %v1428 = vsel %vm1396, %v1290, 0.0
      %v1429 = vsel %vm1397, %v1295, 0.0
      %v1430 = vsel %vm1398, %v1300, 0.0
      %v1431 = vsel %vm1399, %v1305, 0.0
      %v1432 = vsel %vm1400, %v1310, 0.0
      %v1433 = vsel %vm1401, %v1315, 0.0
      %v1434 = vsel %vm1402, %v1320, 0.0
      %v1435 = vsel %vm1403, %v1325, 0.0
      %v1436 = vsel %vm1404, %v1330, 0.0
      %v1437 = vsel %vm1405, %v1335, 0.0
      %v1438 = vsel %vm1406, %v1340, 0.0
      %v1439 = vadd.f32 %v1407, 0.0
      %v1440 = vadd.f32 %v1408, 0.0
      %v1441 = vadd.f32 %v1409, 0.0
      %v1442 = vadd.f32 %v1410, 0.0
      %v1443 = vadd.f32 %v1411, 0.0
      %v1444 = vadd.f32 %v1412, 0.0
      %v1445 = vadd.f32 %v1413, 0.0
      %v1446 = vadd.f32 %v1414, 0.0
      %v1447 = vadd.f32 %v1415, 0.0
      %v1448 = vadd.f32 %v1416, 0.0
      %v1449 = vadd.f32 %v1417, 0.0
      %v1450 = vadd.f32 %v1418, 0.0
      %v1451 = vadd.f32 %v1419, 0.0
      %v1452 = vadd.f32 %v1420, 0.0
      %v1453 = vadd.f32 %v1421, 0.0
      %v1454 = vadd.f32 %v1422, 0.0
      %v1455 = vadd.f32 %v1423, 0.0
      %v1456 = vadd.f32 %v1424, 0.0
      %v1457 = vadd.f32 %v1425, 0.0
      %v1458 = vadd.f32 %v1426, 0.0
      %v1459 = vadd.f32 %v1427, 0.0
      %v1460 = vadd.f32 %v1428, 0.0
      %v1461 = vadd.f32 %v1429, 0.0
      %v1462 = vadd.f32 %v1430, 0.0
      %v1463 = vadd.f32 %v1431, 0.0
      %v1464 = vadd.f32 %v1432, 0.0
      %v1465 = vadd.f32 %v1433, 0.0
      %v1466 = vadd.f32 %v1434, 0.0
      %v1467 = vadd.f32 %v1435, 0.0
      %v1468 = vadd.f32 %v1436, 0.0
      %v1469 = vadd.f32 %v1437, 0.0
      %v1470 = vadd.f32 %v1438, 0.0
      %v1471 = vld [vmem:[#allocation2 + $0x8] sm:$0xff]
      %v1472 = vld [vmem:[#allocation2 + $0x10] sm:$0xff]
      %v1473 = vld [vmem:[#allocation2 + $0x18] sm:$0xff]
      %v1474 = vld [vmem:[#allocation2 + $0x20] sm:$0xff]
      %v1475 = vld [vmem:[#allocation2 + $0x28] sm:$0xff]
      %v1476 = vld [vmem:[#allocation2 + $0x30] sm:$0xff]
      %v1477 = vld [vmem:[#allocation2 + $0x38] sm:$0xff]
      %v1478 = vld [vmem:[#allocation2 + $0x40] sm:$0xff]
      %v1479 = vld [vmem:[#allocation2 + $0x48] sm:$0xff]
      %v1480 = vld [vmem:[#allocation2 + $0x50] sm:$0xff]
      %v1481 = vld [vmem:[#allocation2 + $0x58] sm:$0xff]
      %v1482 = vld [vmem:[#allocation2 + $0x60] sm:$0xff]
      %v1483 = vld [vmem:[#allocation2 + $0x68] sm:$0xff]
      %v1484 = vld [vmem:[#allocation2 + $0x70] sm:$0xff]
      %v1485 = vld [vmem:[#allocation2 + $0x78] sm:$0xff]
      %v1486 = vld [vmem:[#allocation2 + $0x80] sm:$0xff]
      %v1487 = vld [vmem:[#allocation2 + $0x88] sm:$0xff]
      %v1488 = vld [vmem:[#allocation2 + $0x90] sm:$0xff]
      %v1489 = vld [vmem:[#allocation2 + $0x98] sm:$0xff]
      %v1490 = vld [vmem:[#allocation2 + $0xa0] sm:$0xff]
      %v1491 = vld [vmem:[#allocation2 + $0xa8] sm:$0xff]
      %v1492 = vld [vmem:[#allocation2 + $0xb0] sm:$0xff]
      %v1493 = vld [vmem:[#allocation2 + $0xb8] sm:$0xff]
      %v1494 = vld [vmem:[#allocation2 + $0xc0] sm:$0xff]
      %v1495 = vld [vmem:[#allocation2 + $0xc8] sm:$0xff]
      %v1496 = vld [vmem:[#allocation2 + $0xd0] sm:$0xff]
      %v1497 = vld [vmem:[#allocation2 + $0xd8] sm:$0xff]
      %v1498 = vld [vmem:[#allocation2 + $0xe0] sm:$0xff]
      %v1499 = vld [vmem:[#allocation2 + $0xe8] sm:$0xff]
      %v1500 = vld [vmem:[#allocation2 + $0xf0] sm:$0xff]
      %v1501 = vld [vmem:[#allocation2 + $0xf8] sm:$0xff]
      %v1502 = vld [vmem:[#allocation2 + $0x100] sm:$0xff]
      %s1503 = scalar_lea.vmem %s3, 4
      %v1504 = vld [vmem:[%s1503] sm:$0xf]
      %v1506 = vsel %vm400, %v1471, 0
      %v1509 = vsel %vm400, %v1472, 0
      %v1512 = vsel %vm400, %v1473, 0
      %v1515 = vsel %vm400, %v1474, 0
      %v1518 = vsel %vm400, %v1475, 0
      %v1521 = vsel %vm400, %v1476, 0
      %v1524 = vsel %vm400, %v1477, 0
      %v1527 = vsel %vm400, %v1478, 0
      %v1530 = vsel %vm400, %v1479, 0
      %v1533 = vsel %vm400, %v1480, 0
      %v1536 = vsel %vm400, %v1481, 0
      %v1539 = vsel %vm400, %v1482, 0
      %v1542 = vsel %vm400, %v1483, 0
      %v1545 = vsel %vm400, %v1484, 0
      %v1548 = vsel %vm400, %v1485, 0
      %v1551 = vsel %vm400, %v1486, 0
      %v1554 = vsel %vm400, %v1487, 0
      %v1557 = vsel %vm400, %v1488, 0
      %v1560 = vsel %vm400, %v1489, 0
      %v1563 = vsel %vm400, %v1490, 0
      %v1566 = vsel %vm400, %v1491, 0
      %v1569 = vsel %vm400, %v1492, 0
      %v1572 = vsel %vm400, %v1493, 0
      %v1575 = vsel %vm400, %v1494, 0
      %v1578 = vsel %vm400, %v1495, 0
      %v1581 = vsel %vm400, %v1496, 0
      %v1584 = vsel %vm400, %v1497, 0
      %v1587 = vsel %vm400, %v1498, 0
      %v1590 = vsel %vm400, %v1499, 0
      %v1593 = vsel %vm400, %v1500, 0
      %v1596 = vsel %vm400, %v1501, 0
      %v1599 = vsel %vm400, %v1502, 0
      %v1602 = vsel %vm1114, %v1504, 0
      %1604 = vmatprep.subr.mxu0 0.0
      %1605 = vmatpush1.msra.mxu0 0.0
      %1606 = vmatprep.subr.mxu0 0.0
      %1607 = vmatpush1.msra.mxu0 0.0
      %1608 = vmatprep.subr.mxu0 0.0
      %1609 = vmatpush1.msra.mxu0 0.0
      %1610 = vmatprep.subr.mxu0 0.0
      %1611 = vmatpush1.msra.mxu0 0.0
      %1612 = vmatprep.subr.mxu0 0.0
      %1613 = vmatpush1.msra.mxu0 0.0
      %1614 = vmatprep.subr.mxu0 0.0
      %1615 = vmatpush1.msra.mxu0 0.0
      %1616 = vmatprep.subr.mxu0 0.0
      %1617 = vmatpush1.msra.mxu0 0.0
      %1618 = vmatprep.subr.mxu0 0.0
      %1619 = vmatpush1.msra.mxu0 0.0
      %1620 = vmatprep.subr.mxu0 0.0
      %1621 = vmatpush1.msra.mxu0 0.0
      %1622 = vmatprep.subr.mxu0 0.0
      %1623 = vmatpush1.msra.mxu0 0.0
      %1624 = vmatprep.subr.mxu0 0.0
      %1625 = vmatpush1.msra.mxu0 0.0
      %1626 = vmatprep.subr.mxu0 0.0
      %1627 = vmatpush1.msra.mxu0 0.0
      %1628 = vmatprep.subr.mxu0 0.0
      %1629 = vmatpush1.msra.mxu0 0.0
      %1630 = vmatprep.subr.mxu0 0.0
      %1631 = vmatpush1.msra.mxu0 0.0
      %1632 = vmatprep.subr.mxu0 0.0
      %1633 = vmatpush1.msra.mxu0 0.0
      %1634 = vmatprep.subr.mxu0 0.0
      %1635 = vmatpush1.msra.mxu0 %v1602
      %1636 = vmatprep.subr.mxu0 0.0
      %1637 = vmatpush2.msra.mxu0 0.0
      %1638 = vmatprep.subr.mxu0 0.0
      %1639 = vmatpush2.msra.mxu0 0.0
      %1640 = vmatprep.subr.mxu0 0.0
      %1641 = vmatpush2.msra.mxu0 0.0
      %1642 = vmatprep.subr.mxu0 0.0
      %1643 = vmatpush2.msra.mxu0 0.0
      %1644 = vmatprep.subr.mxu0 0.0
      %1645 = vmatpush2.msra.mxu0 0.0
      %1646 = vmatprep.subr.mxu0 0.0
      %1647 = vmatpush2.msra.mxu0 0.0
      %1648 = vmatprep.subr.mxu0 0.0
      %1649 = vmatpush2.msra.mxu0 0.0
      %1650 = vmatprep.subr.mxu0 0.0
      %1651 = vmatpush2.msra.mxu0 0.0
      %1652 = vmatprep.subr.mxu0 0.0
      %1653 = vmatpush2.msra.mxu0 0.0
      %1654 = vmatprep.subr.mxu0 0.0
      %1655 = vmatpush2.msra.mxu0 0.0
      %1656 = vmatprep.subr.mxu0 0.0
      %1657 = vmatpush2.msra.mxu0 0.0
      %1658 = vmatprep.subr.mxu0 0.0
      %1659 = vmatpush2.msra.mxu0 0.0
      %1660 = vmatprep.subr.mxu0 0.0
      %1661 = vmatpush2.msra.mxu0 0.0
      %1662 = vmatprep.subr.mxu0 0.0
      %1663 = vmatpush2.msra.mxu0 0.0
      %1664 = vmatprep.subr.mxu0 0.0
      %1665 = vmatpush2.msra.mxu0 0.0
      %1666 = vmatprep.subr.mxu0 0.0
      %1667 = vmatpush2.msra.mxu0 0.0
      %1668 = vmatprep.mubr.f32.mxu0 0.0
      %1669 = vmatmul.mubr.f32.gmra.mxu0 %v1506
      %v1670 = vpop.f32.mrf.mxu0
      %v1671 = vadd.f32 0.0, %v1670
      %v1672 = vpop.f32.mrf.mxu0
      %1673 = vmatprep.mubr.f32.mxu0 0.0
      %1674 = vmatmul.mubr.f32.gmra.mxu0 %v1509
      %v1675 = vpop.f32.mrf.mxu0
      %v1676 = vadd.f32 0.0, %v1675
      %v1677 = vpop.f32.mrf.mxu0
      %1678 = vmatprep.mubr.f32.mxu0 0.0
      %1679 = vmatmul.mubr.f32.gmra.mxu0 %v1512
      %v1680 = vpop.f32.mrf.mxu0
      %v1681 = vadd.f32 0.0, %v1680
      %v1682 = vpop.f32.mrf.mxu0
      %1683 = vmatprep.mubr.f32.mxu0 0.0
      %1684 = vmatmul.mubr.f32.gmra.mxu0 %v1515
      %v1685 = vpop.f32.mrf.mxu0
      %v1686 = vadd.f32 0.0, %v1685
      %v1687 = vpop.f32.mrf.mxu0
      %1688 = vmatprep.mubr.f32.mxu0 0.0
      %1689 = vmatmul.mubr.f32.gmra.mxu0 %v1518
      %v1690 = vpop.f32.mrf.mxu0
      %v1691 = vadd.f32 0.0, %v1690
      %v1692 = vpop.f32.mrf.mxu0
      %1693 = vmatprep.mubr.f32.mxu0 0.0
      %1694 = vmatmul.mubr.f32.gmra.mxu0 %v1521
      %v1695 = vpop.f32.mrf.mxu0
      %v1696 = vadd.f32 0.0, %v1695
      %v1697 = vpop.f32.mrf.mxu0
      %1698 = vmatprep.mubr.f32.mxu0 0.0
      %1699 = vmatmul.mubr.f32.gmra.mxu0 %v1524
      %v1700 = vpop.f32.mrf.mxu0
      %v1701 = vadd.f32 0.0, %v1700
      %v1702 = vpop.f32.mrf.mxu0
      %1703 = vmatprep.mubr.f32.mxu0 0.0
      %1704 = vmatmul.mubr.f32.gmra.mxu0 %v1527
      %v1705 = vpop.f32.mrf.mxu0
      %v1706 = vadd.f32 0.0, %v1705
      %v1707 = vpop.f32.mrf.mxu0
      %1708 = vmatprep.mubr.f32.mxu0 0.0
      %1709 = vmatmul.mubr.f32.gmra.mxu0 %v1530
      %v1710 = vpop.f32.mrf.mxu0
      %v1711 = vadd.f32 0.0, %v1710
      %v1712 = vpop.f32.mrf.mxu0
      %1713 = vmatprep.mubr.f32.mxu0 0.0
      %1714 = vmatmul.mubr.f32.gmra.mxu0 %v1533
      %v1715 = vpop.f32.mrf.mxu0
      %v1716 = vadd.f32 0.0, %v1715
      %v1717 = vpop.f32.mrf.mxu0
      %1718 = vmatprep.mubr.f32.mxu0 0.0
      %1719 = vmatmul.mubr.f32.gmra.mxu0 %v1536
      %v1720 = vpop.f32.mrf.mxu0
      %v1721 = vadd.f32 0.0, %v1720
      %v1722 = vpop.f32.mrf.mxu0
      %1723 = vmatprep.mubr.f32.mxu0 0.0
      %1724 = vmatmul.mubr.f32.gmra.mxu0 %v1539
      %v1725 = vpop.f32.mrf.mxu0
      %v1726 = vadd.f32 0.0, %v1725
      %v1727 = vpop.f32.mrf.mxu0
      %1728 = vmatprep.mubr.f32.mxu0 0.0
      %1729 = vmatmul.mubr.f32.gmra.mxu0 %v1542
      %v1730 = vpop.f32.mrf.mxu0
      %v1731 = vadd.f32 0.0, %v1730
      %v1732 = vpop.f32.mrf.mxu0
      %1733 = vmatprep.mubr.f32.mxu0 0.0
      %1734 = vmatmul.mubr.f32.gmra.mxu0 %v1545
      %v1735 = vpop.f32.mrf.mxu0
      %v1736 = vadd.f32 0.0, %v1735
      %v1737 = vpop.f32.mrf.mxu0
      %1738 = vmatprep.mubr.f32.mxu0 0.0
      %1739 = vmatmul.mubr.f32.gmra.mxu0 %v1548
      %v1740 = vpop.f32.mrf.mxu0
      %v1741 = vadd.f32 0.0, %v1740
      %v1742 = vpop.f32.mrf.mxu0
      %1743 = vmatprep.mubr.f32.mxu0 0.0
      %1744 = vmatmul.mubr.f32.gmra.mxu0 %v1551
      %v1745 = vpop.f32.mrf.mxu0
      %v1746 = vadd.f32 0.0, %v1745
      %v1747 = vpop.f32.mrf.mxu0
      %1748 = vmatprep.mubr.f32.mxu0 0.0
      %1749 = vmatmul.mubr.f32.gmra.mxu0 %v1554
      %v1750 = vpop.f32.mrf.mxu0
      %v1751 = vadd.f32 0.0, %v1750
      %v1752 = vpop.f32.mrf.mxu0
      %1753 = vmatprep.mubr.f32.mxu0 0.0
      %1754 = vmatmul.mubr.f32.gmra.mxu0 %v1557
      %v1755 = vpop.f32.mrf.mxu0
      %v1756 = vadd.f32 0.0, %v1755
      %v1757 = vpop.f32.mrf.mxu0
      %1758 = vmatprep.mubr.f32.mxu0 0.0
      %1759 = vmatmul.mubr.f32.gmra.mxu0 %v1560
      %v1760 = vpop.f32.mrf.mxu0
      %v1761 = vadd.f32 0.0, %v1760
      %v1762 = vpop.f32.mrf.mxu0
      %1763 = vmatprep.mubr.f32.mxu0 0.0
      %1764 = vmatmul.mubr.f32.gmra.mxu0 %v1563
      %v1765 = vpop.f32.mrf.mxu0
      %v1766 = vadd.f32 0.0, %v1765
      %v1767 = vpop.f32.mrf.mxu0
      %1768 = vmatprep.mubr.f32.mxu0 0.0
      %1769 = vmatmul.mubr.f32.gmra.mxu0 %v1566
      %v1770 = vpop.f32.mrf.mxu0
      %v1771 = vadd.f32 0.0, %v1770
      %v1772 = vpop.f32.mrf.mxu0
      %1773 = vmatprep.mubr.f32.mxu0 0.0
      %1774 = vmatmul.mubr.f32.gmra.mxu0 %v1569
      %v1775 = vpop.f32.mrf.mxu0
      %v1776 = vadd.f32 0.0, %v1775
      %v1777 = vpop.f32.mrf.mxu0
      %1778 = vmatprep.mubr.f32.mxu0 0.0
      %1779 = vmatmul.mubr.f32.gmra.mxu0 %v1572
      %v1780 = vpop.f32.mrf.mxu0
      %v1781 = vadd.f32 0.0, %v1780
      %v1782 = vpop.f32.mrf.mxu0
      %1783 = vmatprep.mubr.f32.mxu0 0.0
      %1784 = vmatmul.mubr.f32.gmra.mxu0 %v1575
      %v1785 = vpop.f32.mrf.mxu0
      %v1786 = vadd.f32 0.0, %v1785
      %v1787 = vpop.f32.mrf.mxu0
      %1788 = vmatprep.mubr.f32.mxu0 0.0
      %1789 = vmatmul.mubr.f32.gmra.mxu0 %v1578
      %v1790 = vpop.f32.mrf.mxu0
      %v1791 = vadd.f32 0.0, %v1790
      %v1792 = vpop.f32.mrf.mxu0
      %1793 = vmatprep.mubr.f32.mxu0 0.0
      %1794 = vmatmul.mubr.f32.gmra.mxu0 %v1581
      %v1795 = vpop.f32.mrf.mxu0
      %v1796 = vadd.f32 0.0, %v1795
      %v1797 = vpop.f32.mrf.mxu0
      %1798 = vmatprep.mubr.f32.mxu0 0.0
      %1799 = vmatmul.mubr.f32.gmra.mxu0 %v1584
      %v1800 = vpop.f32.mrf.mxu0
      %v1801 = vadd.f32 0.0, %v1800
      %v1802 = vpop.f32.mrf.mxu0
      %1803 = vmatprep.mubr.f32.mxu0 0.0
      %1804 = vmatmul.mubr.f32.gmra.mxu0 %v1587
      %v1805 = vpop.f32.mrf.mxu0
      %v1806 = vadd.f32 0.0, %v1805
      %v1807 = vpop.f32.mrf.mxu0
      %1808 = vmatprep.mubr.f32.mxu0 0.0
      %1809 = vmatmul.mubr.f32.gmra.mxu0 %v1590
      %v1810 = vpop.f32.mrf.mxu0
      %v1811 = vadd.f32 0.0, %v1810
      %v1812 = vpop.f32.mrf.mxu0
      %1813 = vmatprep.mubr.f32.mxu0 0.0
      %1814 = vmatmul.mubr.f32.gmra.mxu0 %v1593
      %v1815 = vpop.f32.mrf.mxu0
      %v1816 = vadd.f32 0.0, %v1815
      %v1817 = vpop.f32.mrf.mxu0
      %1818 = vmatprep.mubr.f32.mxu0 0.0
      %1819 = vmatmul.mubr.f32.gmra.mxu0 %v1596
      %v1820 = vpop.f32.mrf.mxu0
      %v1821 = vadd.f32 0.0, %v1820
      %v1822 = vpop.f32.mrf.mxu0
      %1823 = vmatprep.mubr.f32.mxu0 0.0
      %1824 = vmatmul.mubr.f32.gmra.mxu0 %v1599
      %v1825 = vpop.f32.mrf.mxu0
      %v1826 = vadd.f32 0.0, %v1825
      %v1827 = vpop.f32.mrf.mxu0
      %1828 = vdwg.mxu0
      %v1829 = vadd.f32 %v1439, %v1671
      %v1830 = vadd.f32 %v1440, %v1676
      %v1831 = vadd.f32 %v1441, %v1681
      %v1832 = vadd.f32 %v1442, %v1686
      %v1833 = vadd.f32 %v1443, %v1691
      %v1834 = vadd.f32 %v1444, %v1696
      %v1835 = vadd.f32 %v1445, %v1701
      %v1836 = vadd.f32 %v1446, %v1706
      %v1837 = vadd.f32 %v1447, %v1711
      %v1838 = vadd.f32 %v1448, %v1716
      %v1839 = vadd.f32 %v1449, %v1721
      %v1840 = vadd.f32 %v1450, %v1726
      %v1841 = vadd.f32 %v1451, %v1731
      %v1842 = vadd.f32 %v1452, %v1736
      %v1843 = vadd.f32 %v1453, %v1741
      %v1844 = vadd.f32 %v1454, %v1746
      %v1845 = vadd.f32 %v1455, %v1751
      %v1846 = vadd.f32 %v1456, %v1756
      %v1847 = vadd.f32 %v1457, %v1761
      %v1848 = vadd.f32 %v1458, %v1766
      %v1849 = vadd.f32 %v1459, %v1771
      %v1850 = vadd.f32 %v1460, %v1776
      %v1851 = vadd.f32 %v1461, %v1781
      %v1852 = vadd.f32 %v1462, %v1786
      %v1853 = vadd.f32 %v1463, %v1791
      %v1854 = vadd.f32 %v1464, %v1796
      %v1855 = vadd.f32 %v1465, %v1801
      %v1856 = vadd.f32 %v1466, %v1806
      %v1857 = vadd.f32 %v1467, %v1811
      %v1858 = vadd.f32 %v1468, %v1816
      %v1859 = vadd.f32 %v1469, %v1821
      %v1860 = vadd.f32 %v1470, %v1826
      %v1861 = vld [vmem:[#allocation2 + $0x9] sm:$0xff]
      %v1862 = vld [vmem:[#allocation2 + $0x11] sm:$0xff]
      %v1863 = vld [vmem:[#allocation2 + $0x19] sm:$0xff]
      %v1864 = vld [vmem:[#allocation2 + $0x21] sm:$0xff]
      %v1865 = vld [vmem:[#allocation2 + $0x29] sm:$0xff]
      %v1866 = vld [vmem:[#allocation2 + $0x31] sm:$0xff]
      %v1867 = vld [vmem:[#allocation2 + $0x39] sm:$0xff]
      %v1868 = vld [vmem:[#allocation2 + $0x41] sm:$0xff]
      %v1869 = vld [vmem:[#allocation2 + $0x49] sm:$0xff]
      %v1870 = vld [vmem:[#allocation2 + $0x51] sm:$0xff]
      %v1871 = vld [vmem:[#allocation2 + $0x59] sm:$0xff]
      %v1872 = vld [vmem:[#allocation2 + $0x61] sm:$0xff]
      %v1873 = vld [vmem:[#allocation2 + $0x69] sm:$0xff]
      %v1874 = vld [vmem:[#allocation2 + $0x71] sm:$0xff]
      %v1875 = vld [vmem:[#allocation2 + $0x79] sm:$0xff]
      %v1876 = vld [vmem:[#allocation2 + $0x81] sm:$0xff]
      %v1877 = vld [vmem:[#allocation2 + $0x89] sm:$0xff]
      %v1878 = vld [vmem:[#allocation2 + $0x91] sm:$0xff]
      %v1879 = vld [vmem:[#allocation2 + $0x99] sm:$0xff]
      %v1880 = vld [vmem:[#allocation2 + $0xa1] sm:$0xff]
      %v1881 = vld [vmem:[#allocation2 + $0xa9] sm:$0xff]
      %v1882 = vld [vmem:[#allocation2 + $0xb1] sm:$0xff]
      %v1883 = vld [vmem:[#allocation2 + $0xb9] sm:$0xff]
      %v1884 = vld [vmem:[#allocation2 + $0xc1] sm:$0xff]
      %v1885 = vld [vmem:[#allocation2 + $0xc9] sm:$0xff]
      %v1886 = vld [vmem:[#allocation2 + $0xd1] sm:$0xff]
      %v1887 = vld [vmem:[#allocation2 + $0xd9] sm:$0xff]
      %v1888 = vld [vmem:[#allocation2 + $0xe1] sm:$0xff]
      %v1889 = vld [vmem:[#allocation2 + $0xe9] sm:$0xff]
      %v1890 = vld [vmem:[#allocation2 + $0xf1] sm:$0xff]
      %v1891 = vld [vmem:[#allocation2 + $0xf9] sm:$0xff]
      %v1892 = vld [vmem:[#allocation2 + $0x101] sm:$0xff]
      %s1893 = scalar_lea.vmem %s3, 8
      %v1894 = vld [vmem:[%s1893] sm:$0xf]
      %v1896 = vsel %vm400, %v1861, 0
      %v1899 = vsel %vm400, %v1862, 0
      %v1902 = vsel %vm400, %v1863, 0
      %v1905 = vsel %vm400, %v1864, 0
      %v1908 = vsel %vm400, %v1865, 0
      %v1911 = vsel %vm400, %v1866, 0
      %v1914 = vsel %vm400, %v1867, 0
      %v1917 = vsel %vm400, %v1868, 0
      %v1920 = vsel %vm400, %v1869, 0
      %v1923 = vsel %vm400, %v1870, 0
      %v1926 = vsel %vm400, %v1871, 0
      %v1929 = vsel %vm400, %v1872, 0
      %v1932 = vsel %vm400, %v1873, 0
      %v1935 = vsel %vm400, %v1874, 0
      %v1938 = vsel %vm400, %v1875, 0
      %v1941 = vsel %vm400, %v1876, 0
      %v1944 = vsel %vm400, %v1877, 0
      %v1947 = vsel %vm400, %v1878, 0
      %v1950 = vsel %vm400, %v1879, 0
      %v1953 = vsel %vm400, %v1880, 0
      %v1956 = vsel %vm400, %v1881, 0
      %v1959 = vsel %vm400, %v1882, 0
      %v1962 = vsel %vm400, %v1883, 0
      %v1965 = vsel %vm400, %v1884, 0
      %v1968 = vsel %vm400, %v1885, 0
      %v1971 = vsel %vm400, %v1886, 0
      %v1974 = vsel %vm400, %v1887, 0
      %v1977 = vsel %vm400, %v1888, 0
      %v1980 = vsel %vm400, %v1889, 0
      %v1983 = vsel %vm400, %v1890, 0
      %v1986 = vsel %vm400, %v1891, 0
      %v1989 = vsel %vm400, %v1892, 0
      %v1992 = vsel %vm1114, %v1894, 0
      %1994 = vmatprep.subr.mxu0 0.0
      %1995 = vmatpush1.msra.mxu0 0.0
      %1996 = vmatprep.subr.mxu0 0.0
      %1997 = vmatpush1.msra.mxu0 0.0
      %1998 = vmatprep.subr.mxu0 0.0
      %1999 = vmatpush1.msra.mxu0 0.0
      %2000 = vmatprep.subr.mxu0 0.0
      %2001 = vmatpush1.msra.mxu0 0.0
      %2002 = vmatprep.subr.mxu0 0.0
      %2003 = vmatpush1.msra.mxu0 0.0
      %2004 = vmatprep.subr.mxu0 0.0
      %2005 = vmatpush1.msra.mxu0 0.0
      %2006 = vmatprep.subr.mxu0 0.0
      %2007 = vmatpush1.msra.mxu0 0.0
      %2008 = vmatprep.subr.mxu0 0.0
      %2009 = vmatpush1.msra.mxu0 0.0
      %2010 = vmatprep.subr.mxu0 0.0
      %2011 = vmatpush1.msra.mxu0 0.0
      %2012 = vmatprep.subr.mxu0 0.0
      %2013 = vmatpush1.msra.mxu0 0.0
      %2014 = vmatprep.subr.mxu0 0.0
      %2015 = vmatpush1.msra.mxu0 0.0
      %2016 = vmatprep.subr.mxu0 0.0
      %2017 = vmatpush1.msra.mxu0 0.0
      %2018 = vmatprep.subr.mxu0 0.0
      %2019 = vmatpush1.msra.mxu0 0.0
      %2020 = vmatprep.subr.mxu0 0.0
      %2021 = vmatpush1.msra.mxu0 0.0
      %2022 = vmatprep.subr.mxu0 0.0
      %2023 = vmatpush1.msra.mxu0 0.0
      %2024 = vmatprep.subr.mxu0 0.0
      %2025 = vmatpush1.msra.mxu0 %v1992
      %2026 = vmatprep.subr.mxu0 0.0
      %2027 = vmatpush2.msra.mxu0 0.0
      %2028 = vmatprep.subr.mxu0 0.0
      %2029 = vmatpush2.msra.mxu0 0.0
      %2030 = vmatprep.subr.mxu0 0.0
      %2031 = vmatpush2.msra.mxu0 0.0
      %2032 = vmatprep.subr.mxu0 0.0
      %2033 = vmatpush2.msra.mxu0 0.0
      %2034 = vmatprep.subr.mxu0 0.0
      %2035 = vmatpush2.msra.mxu0 0.0
      %2036 = vmatprep.subr.mxu0 0.0
      %2037 = vmatpush2.msra.mxu0 0.0
      %2038 = vmatprep.subr.mxu0 0.0
      %2039 = vmatpush2.msra.mxu0 0.0
      %2040 = vmatprep.subr.mxu0 0.0
      %2041 = vmatpush2.msra.mxu0 0.0
      %2042 = vmatprep.subr.mxu0 0.0
      %2043 = vmatpush2.msra.mxu0 0.0
      %2044 = vmatprep.subr.mxu0 0.0
      %2045 = vmatpush2.msra.mxu0 0.0
      %2046 = vmatprep.subr.mxu0 0.0
      %2047 = vmatpush2.msra.mxu0 0.0
      %2048 = vmatprep.subr.mxu0 0.0
      %2049 = vmatpush2.msra.mxu0 0.0
      %2050 = vmatprep.subr.mxu0 0.0
      %2051 = vmatpush2.msra.mxu0 0.0
      %2052 = vmatprep.subr.mxu0 0.0
      %2053 = vmatpush2.msra.mxu0 0.0
      %2054 = vmatprep.subr.mxu0 0.0
      %2055 = vmatpush2.msra.mxu0 0.0
      %2056 = vmatprep.subr.mxu0 0.0
      %2057 = vmatpush2.msra.mxu0 0.0
      %2058 = vmatprep.mubr.f32.mxu0 0.0
      %2059 = vmatmul.mubr.f32.gmra.mxu0 %v1896
      %v2060 = vpop.f32.mrf.mxu0
      %v2061 = vadd.f32 0.0, %v2060
      %v2062 = vpop.f32.mrf.mxu0
      %2063 = vmatprep.mubr.f32.mxu0 0.0
      %2064 = vmatmul.mubr.f32.gmra.mxu0 %v1899
      %v2065 = vpop.f32.mrf.mxu0
      %v2066 = vadd.f32 0.0, %v2065
      %v2067 = vpop.f32.mrf.mxu0
      %2068 = vmatprep.mubr.f32.mxu0 0.0
      %2069 = vmatmul.mubr.f32.gmra.mxu0 %v1902
      %v2070 = vpop.f32.mrf.mxu0
      %v2071 = vadd.f32 0.0, %v2070
      %v2072 = vpop.f32.mrf.mxu0
      %2073 = vmatprep.mubr.f32.mxu0 0.0
      %2074 = vmatmul.mubr.f32.gmra.mxu0 %v1905
      %v2075 = vpop.f32.mrf.mxu0
      %v2076 = vadd.f32 0.0, %v2075
      %v2077 = vpop.f32.mrf.mxu0
      %2078 = vmatprep.mubr.f32.mxu0 0.0
      %2079 = vmatmul.mubr.f32.gmra.mxu0 %v1908
      %v2080 = vpop.f32.mrf.mxu0
      %v2081 = vadd.f32 0.0, %v2080
      %v2082 = vpop.f32.mrf.mxu0
      %2083 = vmatprep.mubr.f32.mxu0 0.0
      %2084 = vmatmul.mubr.f32.gmra.mxu0 %v1911
      %v2085 = vpop.f32.mrf.mxu0
      %v2086 = vadd.f32 0.0, %v2085
      %v2087 = vpop.f32.mrf.mxu0
      %2088 = vmatprep.mubr.f32.mxu0 0.0
      %2089 = vmatmul.mubr.f32.gmra.mxu0 %v1914
      %v2090 = vpop.f32.mrf.mxu0
      %v2091 = vadd.f32 0.0, %v2090
      %v2092 = vpop.f32.mrf.mxu0
      %2093 = vmatprep.mubr.f32.mxu0 0.0
      %2094 = vmatmul.mubr.f32.gmra.mxu0 %v1917
      %v2095 = vpop.f32.mrf.mxu0
      %v2096 = vadd.f32 0.0, %v2095
      %v2097 = vpop.f32.mrf.mxu0
      %2098 = vmatprep.mubr.f32.mxu0 0.0
      %2099 = vmatmul.mubr.f32.gmra.mxu0 %v1920
      %v2100 = vpop.f32.mrf.mxu0
      %v2101 = vadd.f32 0.0, %v2100
      %v2102 = vpop.f32.mrf.mxu0
      %2103 = vmatprep.mubr.f32.mxu0 0.0
      %2104 = vmatmul.mubr.f32.gmra.mxu0 %v1923
      %v2105 = vpop.f32.mrf.mxu0
      %v2106 = vadd.f32 0.0, %v2105
      %v2107 = vpop.f32.mrf.mxu0
      %2108 = vmatprep.mubr.f32.mxu0 0.0
      %2109 = vmatmul.mubr.f32.gmra.mxu0 %v1926
      %v2110 = vpop.f32.mrf.mxu0
      %v2111 = vadd.f32 0.0, %v2110
      %v2112 = vpop.f32.mrf.mxu0
      %2113 = vmatprep.mubr.f32.mxu0 0.0
      %2114 = vmatmul.mubr.f32.gmra.mxu0 %v1929
      %v2115 = vpop.f32.mrf.mxu0
      %v2116 = vadd.f32 0.0, %v2115
      %v2117 = vpop.f32.mrf.mxu0
      %2118 = vmatprep.mubr.f32.mxu0 0.0
      %2119 = vmatmul.mubr.f32.gmra.mxu0 %v1932
      %v2120 = vpop.f32.mrf.mxu0
      %v2121 = vadd.f32 0.0, %v2120
      %v2122 = vpop.f32.mrf.mxu0
      %2123 = vmatprep.mubr.f32.mxu0 0.0
      %2124 = vmatmul.mubr.f32.gmra.mxu0 %v1935
      %v2125 = vpop.f32.mrf.mxu0
      %v2126 = vadd.f32 0.0, %v2125
      %v2127 = vpop.f32.mrf.mxu0
      %2128 = vmatprep.mubr.f32.mxu0 0.0
      %2129 = vmatmul.mubr.f32.gmra.mxu0 %v1938
      %v2130 = vpop.f32.mrf.mxu0
      %v2131 = vadd.f32 0.0, %v2130
      %v2132 = vpop.f32.mrf.mxu0
      %2133 = vmatprep.mubr.f32.mxu0 0.0
      %2134 = vmatmul.mubr.f32.gmra.mxu0 %v1941
      %v2135 = vpop.f32.mrf.mxu0
      %v2136 = vadd.f32 0.0, %v2135
      %v2137 = vpop.f32.mrf.mxu0
      %2138 = vmatprep.mubr.f32.mxu0 0.0
      %2139 = vmatmul.mubr.f32.gmra.mxu0 %v1944
      %v2140 = vpop.f32.mrf.mxu0
      %v2141 = vadd.f32 0.0, %v2140
      %v2142 = vpop.f32.mrf.mxu0
      %2143 = vmatprep.mubr.f32.mxu0 0.0
      %2144 = vmatmul.mubr.f32.gmra.mxu0 %v1947
      %v2145 = vpop.f32.mrf.mxu0
      %v2146 = vadd.f32 0.0, %v2145
      %v2147 = vpop.f32.mrf.mxu0
      %2148 = vmatprep.mubr.f32.mxu0 0.0
      %2149 = vmatmul.mubr.f32.gmra.mxu0 %v1950
      %v2150 = vpop.f32.mrf.mxu0
      %v2151 = vadd.f32 0.0, %v2150
      %v2152 = vpop.f32.mrf.mxu0
      %2153 = vmatprep.mubr.f32.mxu0 0.0
      %2154 = vmatmul.mubr.f32.gmra.mxu0 %v1953
      %v2155 = vpop.f32.mrf.mxu0
      %v2156 = vadd.f32 0.0, %v2155
      %v2157 = vpop.f32.mrf.mxu0
      %2158 = vmatprep.mubr.f32.mxu0 0.0
      %2159 = vmatmul.mubr.f32.gmra.mxu0 %v1956
      %v2160 = vpop.f32.mrf.mxu0
      %v2161 = vadd.f32 0.0, %v2160
      %v2162 = vpop.f32.mrf.mxu0
      %2163 = vmatprep.mubr.f32.mxu0 0.0
      %2164 = vmatmul.mubr.f32.gmra.mxu0 %v1959
      %v2165 = vpop.f32.mrf.mxu0
      %v2166 = vadd.f32 0.0, %v2165
      %v2167 = vpop.f32.mrf.mxu0
      %2168 = vmatprep.mubr.f32.mxu0 0.0
      %2169 = vmatmul.mubr.f32.gmra.mxu0 %v1962
      %v2170 = vpop.f32.mrf.mxu0
      %v2171 = vadd.f32 0.0, %v2170
      %v2172 = vpop.f32.mrf.mxu0
      %2173 = vmatprep.mubr.f32.mxu0 0.0
      %2174 = vmatmul.mubr.f32.gmra.mxu0 %v1965
      %v2175 = vpop.f32.mrf.mxu0
      %v2176 = vadd.f32 0.0, %v2175
      %v2177 = vpop.f32.mrf.mxu0
      %2178 = vmatprep.mubr.f32.mxu0 0.0
      %2179 = vmatmul.mubr.f32.gmra.mxu0 %v1968
      %v2180 = vpop.f32.mrf.mxu0
      %v2181 = vadd.f32 0.0, %v2180
      %v2182 = vpop.f32.mrf.mxu0
      %2183 = vmatprep.mubr.f32.mxu0 0.0
      %2184 = vmatmul.mubr.f32.gmra.mxu0 %v1971
      %v2185 = vpop.f32.mrf.mxu0
      %v2186 = vadd.f32 0.0, %v2185
      %v2187 = vpop.f32.mrf.mxu0
      %2188 = vmatprep.mubr.f32.mxu0 0.0
      %2189 = vmatmul.mubr.f32.gmra.mxu0 %v1974
      %v2190 = vpop.f32.mrf.mxu0
      %v2191 = vadd.f32 0.0, %v2190
      %v2192 = vpop.f32.mrf.mxu0
      %2193 = vmatprep.mubr.f32.mxu0 0.0
      %2194 = vmatmul.mubr.f32.gmra.mxu0 %v1977
      %v2195 = vpop.f32.mrf.mxu0
      %v2196 = vadd.f32 0.0, %v2195
      %v2197 = vpop.f32.mrf.mxu0
      %2198 = vmatprep.mubr.f32.mxu0 0.0
      %2199 = vmatmul.mubr.f32.gmra.mxu0 %v1980
      %v2200 = vpop.f32.mrf.mxu0
      %v2201 = vadd.f32 0.0, %v2200
      %v2202 = vpop.f32.mrf.mxu0
      %2203 = vmatprep.mubr.f32.mxu0 0.0
      %2204 = vmatmul.mubr.f32.gmra.mxu0 %v1983
      %v2205 = vpop.f32.mrf.mxu0
      %v2206 = vadd.f32 0.0, %v2205
      %v2207 = vpop.f32.mrf.mxu0
      %2208 = vmatprep.mubr.f32.mxu0 0.0
      %2209 = vmatmul.mubr.f32.gmra.mxu0 %v1986
      %v2210 = vpop.f32.mrf.mxu0
      %v2211 = vadd.f32 0.0, %v2210
      %v2212 = vpop.f32.mrf.mxu0
      %2213 = vmatprep.mubr.f32.mxu0 0.0
      %2214 = vmatmul.mubr.f32.gmra.mxu0 %v1989
      %v2215 = vpop.f32.mrf.mxu0
      %v2216 = vadd.f32 0.0, %v2215
      %v2217 = vpop.f32.mrf.mxu0
      %2218 = vdwg.mxu0
      %v2219 = vsel %vm953, 1, 0
      %v2220 = vsel %vm954, 1, 0
      %v2221 = vsel %vm955, 1, 0
      %v2222 = vsel %vm956, 1, 0
      %v2223 = vsel %vm957, 1, 0
      %v2224 = vsel %vm958, 1, 0
      %v2225 = vsel %vm959, 1, 0
      %v2226 = vsel %vm960, 1, 0
      %v2227 = vsel %vm961, 1, 0
      %v2228 = vsel %vm962, 1, 0
      %v2229 = vsel %vm963, 1, 0
      %v2230 = vsel %vm964, 1, 0
      %v2231 = vsel %vm965, 1, 0
      %v2232 = vsel %vm966, 1, 0
      %v2233 = vsel %vm967, 1, 0
      %v2234 = vsel %vm968, 1, 0
      %v2235 = vsel %vm969, 1, 0
      %v2236 = vsel %vm970, 1, 0
      %v2237 = vsel %vm971, 1, 0
      %v2238 = vsel %vm972, 1, 0
      %v2239 = vsel %vm973, 1, 0
      %v2240 = vsel %vm974, 1, 0
      %v2241 = vsel %vm975, 1, 0
      %v2242 = vsel %vm976, 1, 0
      %v2243 = vsel %vm977, 1, 0
      %v2244 = vsel %vm978, 1, 0
      %v2245 = vsel %vm979, 1, 0
      %v2246 = vsel %vm980, 1, 0
      %v2247 = vsel %vm981, 1, 0
      %v2248 = vsel %vm982, 1, 0
      %v2249 = vsel %vm983, 1, 0
      %v2250 = vsel %vm984, 1, 0
      %vm2251 = vcmp.eq.s32.totalorder %v2219, 1
      %vm2252 = vcmp.eq.s32.totalorder %v2220, 1
      %vm2253 = vcmp.eq.s32.totalorder %v2221, 1
      %vm2254 = vcmp.eq.s32.totalorder %v2222, 1
      %vm2255 = vcmp.eq.s32.totalorder %v2223, 1
      %vm2256 = vcmp.eq.s32.totalorder %v2224, 1
      %vm2257 = vcmp.eq.s32.totalorder %v2225, 1
      %vm2258 = vcmp.eq.s32.totalorder %v2226, 1
      %vm2259 = vcmp.eq.s32.totalorder %v2227, 1
      %vm2260 = vcmp.eq.s32.totalorder %v2228, 1
      %vm2261 = vcmp.eq.s32.totalorder %v2229, 1
      %vm2262 = vcmp.eq.s32.totalorder %v2230, 1
      %vm2263 = vcmp.eq.s32.totalorder %v2231, 1
      %vm2264 = vcmp.eq.s32.totalorder %v2232, 1
      %vm2265 = vcmp.eq.s32.totalorder %v2233, 1
      %vm2266 = vcmp.eq.s32.totalorder %v2234, 1
      %vm2267 = vcmp.eq.s32.totalorder %v2235, 1
      %vm2268 = vcmp.eq.s32.totalorder %v2236, 1
      %vm2269 = vcmp.eq.s32.totalorder %v2237, 1
      %vm2270 = vcmp.eq.s32.totalorder %v2238, 1
      %vm2271 = vcmp.eq.s32.totalorder %v2239, 1
      %vm2272 = vcmp.eq.s32.totalorder %v2240, 1
      %vm2273 = vcmp.eq.s32.totalorder %v2241, 1
      %vm2274 = vcmp.eq.s32.totalorder %v2242, 1
      %vm2275 = vcmp.eq.s32.totalorder %v2243, 1
      %vm2276 = vcmp.eq.s32.totalorder %v2244, 1
      %vm2277 = vcmp.eq.s32.totalorder %v2245, 1
      %vm2278 = vcmp.eq.s32.totalorder %v2246, 1
      %vm2279 = vcmp.eq.s32.totalorder %v2247, 1
      %vm2280 = vcmp.eq.s32.totalorder %v2248, 1
      %vm2281 = vcmp.eq.s32.totalorder %v2249, 1
      %vm2282 = vcmp.eq.s32.totalorder %v2250, 1
      %v2283 = vsel %vm2251, %v2061, 0.0
      %v2284 = vsel %vm2252, %v2066, 0.0
      %v2285 = vsel %vm2253, %v2071, 0.0
      %v2286 = vsel %vm2254, %v2076, 0.0
      %v2287 = vsel %vm2255, %v2081, 0.0
      %v2288 = vsel %vm2256, %v2086, 0.0
      %v2289 = vsel %vm2257, %v2091, 0.0
      %v2290 = vsel %vm2258, %v2096, 0.0
      %v2291 = vsel %vm2259, %v2101, 0.0
      %v2292 = vsel %vm2260, %v2106, 0.0
      %v2293 = vsel %vm2261, %v2111, 0.0
      %v2294 = vsel %vm2262, %v2116, 0.0
      %v2295 = vsel %vm2263, %v2121, 0.0
      %v2296 = vsel %vm2264, %v2126, 0.0
      %v2297 = vsel %vm2265, %v2131, 0.0
      %v2298 = vsel %vm2266, %v2136, 0.0
      %v2299 = vsel %vm2267, %v2141, 0.0
      %v2300 = vsel %vm2268, %v2146, 0.0
      %v2301 = vsel %vm2269, %v2151, 0.0
      %v2302 = vsel %vm2270, %v2156, 0.0
      %v2303 = vsel %vm2271, %v2161, 0.0
      %v2304 = vsel %vm2272, %v2166, 0.0
      %v2305 = vsel %vm2273, %v2171, 0.0
      %v2306 = vsel %vm2274, %v2176, 0.0
      %v2307 = vsel %vm2275, %v2181, 0.0
      %v2308 = vsel %vm2276, %v2186, 0.0
      %v2309 = vsel %vm2277, %v2191, 0.0
      %v2310 = vsel %vm2278, %v2196, 0.0
      %v2311 = vsel %vm2279, %v2201, 0.0
      %v2312 = vsel %vm2280, %v2206, 0.0
      %v2313 = vsel %vm2281, %v2211, 0.0
      %v2314 = vsel %vm2282, %v2216, 0.0
      %v2315 = vadd.f32 %v1829, %v2283
      %v2316 = vadd.f32 %v1830, %v2284
      %v2317 = vadd.f32 %v1831, %v2285
      %v2318 = vadd.f32 %v1832, %v2286
      %v2319 = vadd.f32 %v1833, %v2287
      %v2320 = vadd.f32 %v1834, %v2288
      %v2321 = vadd.f32 %v1835, %v2289
      %v2322 = vadd.f32 %v1836, %v2290
      %v2323 = vadd.f32 %v1837, %v2291
      %v2324 = vadd.f32 %v1838, %v2292
      %v2325 = vadd.f32 %v1839, %v2293
      %v2326 = vadd.f32 %v1840, %v2294
      %v2327 = vadd.f32 %v1841, %v2295
      %v2328 = vadd.f32 %v1842, %v2296
      %v2329 = vadd.f32 %v1843, %v2297
      %v2330 = vadd.f32 %v1844, %v2298
      %v2331 = vadd.f32 %v1845, %v2299
      %v2332 = vadd.f32 %v1846, %v2300
      %v2333 = vadd.f32 %v1847, %v2301
      %v2334 = vadd.f32 %v1848, %v2302
      %v2335 = vadd.f32 %v1849, %v2303
      %v2336 = vadd.f32 %v1850, %v2304
      %v2337 = vadd.f32 %v1851, %v2305
      %v2338 = vadd.f32 %v1852, %v2306
      %v2339 = vadd.f32 %v1853, %v2307
      %v2340 = vadd.f32 %v1854, %v2308
      %v2341 = vadd.f32 %v1855, %v2309
      %v2342 = vadd.f32 %v1856, %v2310
      %v2343 = vadd.f32 %v1857, %v2311
      %v2344 = vadd.f32 %v1858, %v2312
      %v2345 = vadd.f32 %v1859, %v2313
      %v2346 = vadd.f32 %v1860, %v2314
      %v2347 = vld [vmem:[#allocation2 + $0x17] sm:$0xff]
      %v2348 = vld [vmem:[#allocation2 + $0x1f] sm:$0xff]
      %v2349 = vld [vmem:[#allocation2 + $0x27] sm:$0xff]
      %v2350 = vld [vmem:[#allocation2 + $0x2f] sm:$0xff]
      %v2351 = vld [vmem:[#allocation2 + $0x37] sm:$0xff]
      %v2352 = vld [vmem:[#allocation2 + $0x3f] sm:$0xff]
      %v2353 = vld [vmem:[#allocation2 + $0x47] sm:$0xff]
      %v2354 = vld [vmem:[#allocation2 + $0x4f] sm:$0xff]
      %v2355 = vld [vmem:[#allocation2 + $0x57] sm:$0xff]
      %v2356 = vld [vmem:[#allocation2 + $0x5f] sm:$0xff]
      %v2357 = vld [vmem:[#allocation2 + $0x67] sm:$0xff]
      %v2358 = vld [vmem:[#allocation2 + $0x6f] sm:$0xff]
      %v2359 = vld [vmem:[#allocation2 + $0x77] sm:$0xff]
      %v2360 = vld [vmem:[#allocation2 + $0x7f] sm:$0xff]
      %v2361 = vld [vmem:[#allocation2 + $0x87] sm:$0xff]
      %v2362 = vld [vmem:[#allocation2 + $0x8f] sm:$0xff]
      %v2363 = vld [vmem:[#allocation2 + $0x97] sm:$0xff]
      %v2364 = vld [vmem:[#allocation2 + $0x9f] sm:$0xff]
      %v2365 = vld [vmem:[#allocation2 + $0xa7] sm:$0xff]
      %v2366 = vld [vmem:[#allocation2 + $0xaf] sm:$0xff]
      %v2367 = vld [vmem:[#allocation2 + $0xb7] sm:$0xff]
      %v2368 = vld [vmem:[#allocation2 + $0xbf] sm:$0xff]
      %v2369 = vld [vmem:[#allocation2 + $0xc7] sm:$0xff]
      %v2370 = vld [vmem:[#allocation2 + $0xcf] sm:$0xff]
      %v2371 = vld [vmem:[#allocation2 + $0xd7] sm:$0xff]
      %v2372 = vld [vmem:[#allocation2 + $0xdf] sm:$0xff]
      %v2373 = vld [vmem:[#allocation2 + $0xe7] sm:$0xff]
      %v2374 = vld [vmem:[#allocation2 + $0xef] sm:$0xff]
      %v2375 = vld [vmem:[#allocation2 + $0xf7] sm:$0xff]
      %v2376 = vld [vmem:[#allocation2 + $0xff] sm:$0xff]
      %v2377 = vld [vmem:[#allocation2 + $0x107] sm:$0xff]
      %v2378 = vld [vmem:[#allocation2 + $0x10f] sm:$0xff]
      %s2379 = scalar_lea.vmem %s3, 12
      %v2380 = vld [vmem:[%s2379] sm:$0xf]
      %v2382 = vsel %vm400, %v2347, 0
      %v2385 = vsel %vm400, %v2348, 0
      %v2388 = vsel %vm400, %v2349, 0
      %v2391 = vsel %vm400, %v2350, 0
      %v2394 = vsel %vm400, %v2351, 0
      %v2397 = vsel %vm400, %v2352, 0
      %v2400 = vsel %vm400, %v2353, 0
      %v2403 = vsel %vm400, %v2354, 0
      %v2406 = vsel %vm400, %v2355, 0
      %v2409 = vsel %vm400, %v2356, 0
      %v2412 = vsel %vm400, %v2357, 0
      %v2415 = vsel %vm400, %v2358, 0
      %v2418 = vsel %vm400, %v2359, 0
      %v2421 = vsel %vm400, %v2360, 0
      %v2424 = vsel %vm400, %v2361, 0
      %v2427 = vsel %vm400, %v2362, 0
      %v2430 = vsel %vm400, %v2363, 0
      %v2433 = vsel %vm400, %v2364, 0
      %v2436 = vsel %vm400, %v2365, 0
      %v2439 = vsel %vm400, %v2366, 0
      %v2442 = vsel %vm400, %v2367, 0
      %v2445 = vsel %vm400, %v2368, 0
      %v2448 = vsel %vm400, %v2369, 0
      %v2451 = vsel %vm400, %v2370, 0
      %v2454 = vsel %vm400, %v2371, 0
      %v2457 = vsel %vm400, %v2372, 0
      %v2460 = vsel %vm400, %v2373, 0
      %v2463 = vsel %vm400, %v2374, 0
      %v2466 = vsel %vm400, %v2375, 0
      %v2469 = vsel %vm400, %v2376, 0
      %v2472 = vsel %vm400, %v2377, 0
      %v2475 = vsel %vm400, %v2378, 0
      %v2478 = vsel %vm1114, %v2380, 0
      %2480 = vmatprep.subr.mxu0 0.0
      %2481 = vmatpush1.msra.mxu0 0.0
      %2482 = vmatprep.subr.mxu0 0.0
      %2483 = vmatpush1.msra.mxu0 0.0
      %2484 = vmatprep.subr.mxu0 0.0
      %2485 = vmatpush1.msra.mxu0 0.0
      %2486 = vmatprep.subr.mxu0 0.0
      %2487 = vmatpush1.msra.mxu0 0.0
      %2488 = vmatprep.subr.mxu0 0.0
      %2489 = vmatpush1.msra.mxu0 0.0
      %2490 = vmatprep.subr.mxu0 0.0
      %2491 = vmatpush1.msra.mxu0 0.0
      %2492 = vmatprep.subr.mxu0 0.0
      %2493 = vmatpush1.msra.mxu0 0.0
      %2494 = vmatprep.subr.mxu0 0.0
      %2495 = vmatpush1.msra.mxu0 0.0
      %2496 = vmatprep.subr.mxu0 0.0
      %2497 = vmatpush1.msra.mxu0 0.0
      %2498 = vmatprep.subr.mxu0 0.0
      %2499 = vmatpush1.msra.mxu0 0.0
      %2500 = vmatprep.subr.mxu0 0.0
      %2501 = vmatpush1.msra.mxu0 0.0
      %2502 = vmatprep.subr.mxu0 0.0
      %2503 = vmatpush1.msra.mxu0 0.0
      %2504 = vmatprep.subr.mxu0 0.0
      %2505 = vmatpush1.msra.mxu0 0.0
      %2506 = vmatprep.subr.mxu0 0.0
      %2507 = vmatpush1.msra.mxu0 0.0
      %2508 = vmatprep.subr.mxu0 0.0
      %2509 = vmatpush1.msra.mxu0 0.0
      %2510 = vmatprep.subr.mxu0 0.0
      %2511 = vmatpush1.msra.mxu0 %v2478
      %2512 = vmatprep.subr.mxu0 0.0
      %2513 = vmatpush2.msra.mxu0 0.0
      %2514 = vmatprep.subr.mxu0 0.0
      %2515 = vmatpush2.msra.mxu0 0.0
      %2516 = vmatprep.subr.mxu0 0.0
      %2517 = vmatpush2.msra.mxu0 0.0
      %2518 = vmatprep.subr.mxu0 0.0
      %2519 = vmatpush2.msra.mxu0 0.0
      %2520 = vmatprep.subr.mxu0 0.0
      %2521 = vmatpush2.msra.mxu0 0.0
      %2522 = vmatprep.subr.mxu0 0.0
      %2523 = vmatpush2.msra.mxu0 0.0
      %2524 = vmatprep.subr.mxu0 0.0
      %2525 = vmatpush2.msra.mxu0 0.0
      %2526 = vmatprep.subr.mxu0 0.0
      %2527 = vmatpush2.msra.mxu0 0.0
      %2528 = vmatprep.subr.mxu0 0.0
      %2529 = vmatpush2.msra.mxu0 0.0
      %2530 = vmatprep.subr.mxu0 0.0
      %2531 = vmatpush2.msra.mxu0 0.0
      %2532 = vmatprep.subr.mxu0 0.0
      %2533 = vmatpush2.msra.mxu0 0.0
      %2534 = vmatprep.subr.mxu0 0.0
      %2535 = vmatpush2.msra.mxu0 0.0
      %2536 = vmatprep.subr.mxu0 0.0
      %2537 = vmatpush2.msra.mxu0 0.0
      %2538 = vmatprep.subr.mxu0 0.0
      %2539 = vmatpush2.msra.mxu0 0.0
      %2540 = vmatprep.subr.mxu0 0.0
      %2541 = vmatpush2.msra.mxu0 0.0
      %2542 = vmatprep.subr.mxu0 0.0
      %2543 = vmatpush2.msra.mxu0 0.0
      %2544 = vmatprep.mubr.f32.mxu0 0.0
      %2545 = vmatmul.mubr.f32.gmra.mxu0 %v2382
      %v2546 = vpop.f32.mrf.mxu0
      %v2547 = vadd.f32 0.0, %v2546
      %v2548 = vpop.f32.mrf.mxu0
      %2549 = vmatprep.mubr.f32.mxu0 0.0
      %2550 = vmatmul.mubr.f32.gmra.mxu0 %v2385
      %v2551 = vpop.f32.mrf.mxu0
      %v2552 = vadd.f32 0.0, %v2551
      %v2553 = vpop.f32.mrf.mxu0
      %2554 = vmatprep.mubr.f32.mxu0 0.0
      %2555 = vmatmul.mubr.f32.gmra.mxu0 %v2388
      %v2556 = vpop.f32.mrf.mxu0
      %v2557 = vadd.f32 0.0, %v2556
      %v2558 = vpop.f32.mrf.mxu0
      %2559 = vmatprep.mubr.f32.mxu0 0.0
      %2560 = vmatmul.mubr.f32.gmra.mxu0 %v2391
      %v2561 = vpop.f32.mrf.mxu0
      %v2562 = vadd.f32 0.0, %v2561
      %v2563 = vpop.f32.mrf.mxu0
      %2564 = vmatprep.mubr.f32.mxu0 0.0
      %2565 = vmatmul.mubr.f32.gmra.mxu0 %v2394
      %v2566 = vpop.f32.mrf.mxu0
      %v2567 = vadd.f32 0.0, %v2566
      %v2568 = vpop.f32.mrf.mxu0
      %2569 = vmatprep.mubr.f32.mxu0 0.0
      %2570 = vmatmul.mubr.f32.gmra.mxu0 %v2397
      %v2571 = vpop.f32.mrf.mxu0
      %v2572 = vadd.f32 0.0, %v2571
      %v2573 = vpop.f32.mrf.mxu0
      %2574 = vmatprep.mubr.f32.mxu0 0.0
      %2575 = vmatmul.mubr.f32.gmra.mxu0 %v2400
      %v2576 = vpop.f32.mrf.mxu0
      %v2577 = vadd.f32 0.0, %v2576
      %v2578 = vpop.f32.mrf.mxu0
      %2579 = vmatprep.mubr.f32.mxu0 0.0
      %2580 = vmatmul.mubr.f32.gmra.mxu0 %v2403
      %v2581 = vpop.f32.mrf.mxu0
      %v2582 = vadd.f32 0.0, %v2581
      %v2583 = vpop.f32.mrf.mxu0
      %2584 = vmatprep.mubr.f32.mxu0 0.0
      %2585 = vmatmul.mubr.f32.gmra.mxu0 %v2406
      %v2586 = vpop.f32.mrf.mxu0
      %v2587 = vadd.f32 0.0, %v2586
      %v2588 = vpop.f32.mrf.mxu0
      %2589 = vmatprep.mubr.f32.mxu0 0.0
      %2590 = vmatmul.mubr.f32.gmra.mxu0 %v2409
      %v2591 = vpop.f32.mrf.mxu0
      %v2592 = vadd.f32 0.0, %v2591
      %v2593 = vpop.f32.mrf.mxu0
      %2594 = vmatprep.mubr.f32.mxu0 0.0
      %2595 = vmatmul.mubr.f32.gmra.mxu0 %v2412
      %v2596 = vpop.f32.mrf.mxu0
      %v2597 = vadd.f32 0.0, %v2596
      %v2598 = vpop.f32.mrf.mxu0
      %2599 = vmatprep.mubr.f32.mxu0 0.0
      %2600 = vmatmul.mubr.f32.gmra.mxu0 %v2415
      %v2601 = vpop.f32.mrf.mxu0
      %v2602 = vadd.f32 0.0, %v2601
      %v2603 = vpop.f32.mrf.mxu0
      %2604 = vmatprep.mubr.f32.mxu0 0.0
      %2605 = vmatmul.mubr.f32.gmra.mxu0 %v2418
      %v2606 = vpop.f32.mrf.mxu0
      %v2607 = vadd.f32 0.0, %v2606
      %v2608 = vpop.f32.mrf.mxu0
      %2609 = vmatprep.mubr.f32.mxu0 0.0
      %2610 = vmatmul.mubr.f32.gmra.mxu0 %v2421
      %v2611 = vpop.f32.mrf.mxu0
      %v2612 = vadd.f32 0.0, %v2611
      %v2613 = vpop.f32.mrf.mxu0
      %2614 = vmatprep.mubr.f32.mxu0 0.0
      %2615 = vmatmul.mubr.f32.gmra.mxu0 %v2424
      %v2616 = vpop.f32.mrf.mxu0
      %v2617 = vadd.f32 0.0, %v2616
      %v2618 = vpop.f32.mrf.mxu0
      %2619 = vmatprep.mubr.f32.mxu0 0.0
      %2620 = vmatmul.mubr.f32.gmra.mxu0 %v2427
      %v2621 = vpop.f32.mrf.mxu0
      %v2622 = vadd.f32 0.0, %v2621
      %v2623 = vpop.f32.mrf.mxu0
      %2624 = vmatprep.mubr.f32.mxu0 0.0
      %2625 = vmatmul.mubr.f32.gmra.mxu0 %v2430
      %v2626 = vpop.f32.mrf.mxu0
      %v2627 = vadd.f32 0.0, %v2626
      %v2628 = vpop.f32.mrf.mxu0
      %2629 = vmatprep.mubr.f32.mxu0 0.0
      %2630 = vmatmul.mubr.f32.gmra.mxu0 %v2433
      %v2631 = vpop.f32.mrf.mxu0
      %v2632 = vadd.f32 0.0, %v2631
      %v2633 = vpop.f32.mrf.mxu0
      %2634 = vmatprep.mubr.f32.mxu0 0.0
      %2635 = vmatmul.mubr.f32.gmra.mxu0 %v2436
      %v2636 = vpop.f32.mrf.mxu0
      %v2637 = vadd.f32 0.0, %v2636
      %v2638 = vpop.f32.mrf.mxu0
      %2639 = vmatprep.mubr.f32.mxu0 0.0
      %2640 = vmatmul.mubr.f32.gmra.mxu0 %v2439
      %v2641 = vpop.f32.mrf.mxu0
      %v2642 = vadd.f32 0.0, %v2641
      %v2643 = vpop.f32.mrf.mxu0
      %2644 = vmatprep.mubr.f32.mxu0 0.0
      %2645 = vmatmul.mubr.f32.gmra.mxu0 %v2442
      %v2646 = vpop.f32.mrf.mxu0
      %v2647 = vadd.f32 0.0, %v2646
      %v2648 = vpop.f32.mrf.mxu0
      %2649 = vmatprep.mubr.f32.mxu0 0.0
      %2650 = vmatmul.mubr.f32.gmra.mxu0 %v2445
      %v2651 = vpop.f32.mrf.mxu0
      %v2652 = vadd.f32 0.0, %v2651
      %v2653 = vpop.f32.mrf.mxu0
      %2654 = vmatprep.mubr.f32.mxu0 0.0
      %2655 = vmatmul.mubr.f32.gmra.mxu0 %v2448
      %v2656 = vpop.f32.mrf.mxu0
      %v2657 = vadd.f32 0.0, %v2656
      %v2658 = vpop.f32.mrf.mxu0
      %2659 = vmatprep.mubr.f32.mxu0 0.0
      %2660 = vmatmul.mubr.f32.gmra.mxu0 %v2451
      %v2661 = vpop.f32.mrf.mxu0
      %v2662 = vadd.f32 0.0, %v2661
      %v2663 = vpop.f32.mrf.mxu0
      %2664 = vmatprep.mubr.f32.mxu0 0.0
      %2665 = vmatmul.mubr.f32.gmra.mxu0 %v2454
      %v2666 = vpop.f32.mrf.mxu0
      %v2667 = vadd.f32 0.0, %v2666
      %v2668 = vpop.f32.mrf.mxu0
      %2669 = vmatprep.mubr.f32.mxu0 0.0
      %2670 = vmatmul.mubr.f32.gmra.mxu0 %v2457
      %v2671 = vpop.f32.mrf.mxu0
      %v2672 = vadd.f32 0.0, %v2671
      %v2673 = vpop.f32.mrf.mxu0
      %2674 = vmatprep.mubr.f32.mxu0 0.0
      %2675 = vmatmul.mubr.f32.gmra.mxu0 %v2460
      %v2676 = vpop.f32.mrf.mxu0
      %v2677 = vadd.f32 0.0, %v2676
      %v2678 = vpop.f32.mrf.mxu0
      %2679 = vmatprep.mubr.f32.mxu0 0.0
      %2680 = vmatmul.mubr.f32.gmra.mxu0 %v2463
      %v2681 = vpop.f32.mrf.mxu0
      %v2682 = vadd.f32 0.0, %v2681
      %v2683 = vpop.f32.mrf.mxu0
      %2684 = vmatprep.mubr.f32.mxu0 0.0
      %2685 = vmatmul.mubr.f32.gmra.mxu0 %v2466
      %v2686 = vpop.f32.mrf.mxu0
      %v2687 = vadd.f32 0.0, %v2686
      %v2688 = vpop.f32.mrf.mxu0
      %2689 = vmatprep.mubr.f32.mxu0 0.0
      %2690 = vmatmul.mubr.f32.gmra.mxu0 %v2469
      %v2691 = vpop.f32.mrf.mxu0
      %v2692 = vadd.f32 0.0, %v2691
      %v2693 = vpop.f32.mrf.mxu0
      %2694 = vmatprep.mubr.f32.mxu0 0.0
      %2695 = vmatmul.mubr.f32.gmra.mxu0 %v2472
      %v2696 = vpop.f32.mrf.mxu0
      %v2697 = vadd.f32 0.0, %v2696
      %v2698 = vpop.f32.mrf.mxu0
      %2699 = vmatprep.mubr.f32.mxu0 0.0
      %2700 = vmatmul.mubr.f32.gmra.mxu0 %v2475
      %v2701 = vpop.f32.mrf.mxu0
      %v2702 = vadd.f32 0.0, %v2701
      %v2703 = vpop.f32.mrf.mxu0
      %2704 = vdwg.mxu0
      %v2705 = vsel %vm1375, %v2547, 0.0
      %v2706 = vsel %vm1376, %v2552, 0.0
      %v2707 = vsel %vm1377, %v2557, 0.0
      %v2708 = vsel %vm1378, %v2562, 0.0
      %v2709 = vsel %vm1379, %v2567, 0.0
      %v2710 = vsel %vm1380, %v2572, 0.0
      %v2711 = vsel %vm1381, %v2577, 0.0
      %v2712 = vsel %vm1382, %v2582, 0.0
      %v2713 = vsel %vm1383, %v2587, 0.0
      %v2714 = vsel %vm1384, %v2592, 0.0
      %v2715 = vsel %vm1385, %v2597, 0.0
      %v2716 = vsel %vm1386, %v2602, 0.0
      %v2717 = vsel %vm1387, %v2607, 0.0
      %v2718 = vsel %vm1388, %v2612, 0.0
      %v2719 = vsel %vm1389, %v2617, 0.0
      %v2720 = vsel %vm1390, %v2622, 0.0
      %v2721 = vsel %vm1391, %v2627, 0.0
      %v2722 = vsel %vm1392, %v2632, 0.0
      %v2723 = vsel %vm1393, %v2637, 0.0
      %v2724 = vsel %vm1394, %v2642, 0.0
      %v2725 = vsel %vm1395, %v2647, 0.0
      %v2726 = vsel %vm1396, %v2652, 0.0
      %v2727 = vsel %vm1397, %v2657, 0.0
      %v2728 = vsel %vm1398, %v2662, 0.0
      %v2729 = vsel %vm1399, %v2667, 0.0
      %v2730 = vsel %vm1400, %v2672, 0.0
      %v2731 = vsel %vm1401, %v2677, 0.0
      %v2732 = vsel %vm1402, %v2682, 0.0
      %v2733 = vsel %vm1403, %v2687, 0.0
      %v2734 = vsel %vm1404, %v2692, 0.0
      %v2735 = vsel %vm1405, %v2697, 0.0
      %v2736 = vsel %vm1406, %v2702, 0.0
      %v2737 = vadd.f32 %v2315, %v2705
      %v2738 = vadd.f32 %v2316, %v2706
      %v2739 = vadd.f32 %v2317, %v2707
      %v2740 = vadd.f32 %v2318, %v2708
      %v2741 = vadd.f32 %v2319, %v2709
      %v2742 = vadd.f32 %v2320, %v2710
      %v2743 = vadd.f32 %v2321, %v2711
      %v2744 = vadd.f32 %v2322, %v2712
      %v2745 = vadd.f32 %v2323, %v2713
      %v2746 = vadd.f32 %v2324, %v2714
      %v2747 = vadd.f32 %v2325, %v2715
      %v2748 = vadd.f32 %v2326, %v2716
      %v2749 = vadd.f32 %v2327, %v2717
      %v2750 = vadd.f32 %v2328, %v2718
      %v2751 = vadd.f32 %v2329, %v2719
      %v2752 = vadd.f32 %v2330, %v2720
      %v2753 = vadd.f32 %v2331, %v2721
      %v2754 = vadd.f32 %v2332, %v2722
      %v2755 = vadd.f32 %v2333, %v2723
      %v2756 = vadd.f32 %v2334, %v2724
      %v2757 = vadd.f32 %v2335, %v2725
      %v2758 = vadd.f32 %v2336, %v2726
      %v2759 = vadd.f32 %v2337, %v2727
      %v2760 = vadd.f32 %v2338, %v2728
      %v2761 = vadd.f32 %v2339, %v2729
      %v2762 = vadd.f32 %v2340, %v2730
      %v2763 = vadd.f32 %v2341, %v2731
      %v2764 = vadd.f32 %v2342, %v2732
      %v2765 = vadd.f32 %v2343, %v2733
      %v2766 = vadd.f32 %v2344, %v2734
      %v2767 = vadd.f32 %v2345, %v2735
      %v2768 = vadd.f32 %v2346, %v2736
      %v2769 = vld [vmem:[#allocation2 + $0x18] sm:$0xff]
      %v2770 = vld [vmem:[#allocation2 + $0x20] sm:$0xff]
      %v2771 = vld [vmem:[#allocation2 + $0x28] sm:$0xff]
      %v2772 = vld [vmem:[#allocation2 + $0x30] sm:$0xff]
      %v2773 = vld [vmem:[#allocation2 + $0x38] sm:$0xff]
      %v2774 = vld [vmem:[#allocation2 + $0x40] sm:$0xff]
      %v2775 = vld [vmem:[#allocation2 + $0x48] sm:$0xff]
      %v2776 = vld [vmem:[#allocation2 + $0x50] sm:$0xff]
      %v2777 = vld [vmem:[#allocation2 + $0x58] sm:$0xff]
      %v2778 = vld [vmem:[#allocation2 + $0x60] sm:$0xff]
      %v2779 = vld [vmem:[#allocation2 + $0x68] sm:$0xff]
      %v2780 = vld [vmem:[#allocation2 + $0x70] sm:$0xff]
      %v2781 = vld [vmem:[#allocation2 + $0x78] sm:$0xff]
      %v2782 = vld [vmem:[#allocation2 + $0x80] sm:$0xff]
      %v2783 = vld [vmem:[#allocation2 + $0x88] sm:$0xff]
      %v2784 = vld [vmem:[#allocation2 + $0x90] sm:$0xff]
      %v2785 = vld [vmem:[#allocation2 + $0x98] sm:$0xff]
      %v2786 = vld [vmem:[#allocation2 + $0xa0] sm:$0xff]
      %v2787 = vld [vmem:[#allocation2 + $0xa8] sm:$0xff]
      %v2788 = vld [vmem:[#allocation2 + $0xb0] sm:$0xff]
      %v2789 = vld [vmem:[#allocation2 + $0xb8] sm:$0xff]
      %v2790 = vld [vmem:[#allocation2 + $0xc0] sm:$0xff]
      %v2791 = vld [vmem:[#allocation2 + $0xc8] sm:$0xff]
      %v2792 = vld [vmem:[#allocation2 + $0xd0] sm:$0xff]
      %v2793 = vld [vmem:[#allocation2 + $0xd8] sm:$0xff]
      %v2794 = vld [vmem:[#allocation2 + $0xe0] sm:$0xff]
      %v2795 = vld [vmem:[#allocation2 + $0xe8] sm:$0xff]
      %v2796 = vld [vmem:[#allocation2 + $0xf0] sm:$0xff]
      %v2797 = vld [vmem:[#allocation2 + $0xf8] sm:$0xff]
      %v2798 = vld [vmem:[#allocation2 + $0x100] sm:$0xff]
      %v2799 = vld [vmem:[#allocation2 + $0x108] sm:$0xff]
      %v2800 = vld [vmem:[#allocation2 + $0x110] sm:$0xff]
      %s2801 = scalar_lea.vmem %s3, 16
      %v2802 = vld [vmem:[%s2801] sm:$0xf]
      %v2804 = vsel %vm400, %v2769, 0
      %v2807 = vsel %vm400, %v2770, 0
      %v2810 = vsel %vm400, %v2771, 0
      %v2813 = vsel %vm400, %v2772, 0
      %v2816 = vsel %vm400, %v2773, 0
      %v2819 = vsel %vm400, %v2774, 0
      %v2822 = vsel %vm400, %v2775, 0
      %v2825 = vsel %vm400, %v2776, 0
      %v2828 = vsel %vm400, %v2777, 0
      %v2831 = vsel %vm400, %v2778, 0
      %v2834 = vsel %vm400, %v2779, 0
      %v2837 = vsel %vm400, %v2780, 0
      %v2840 = vsel %vm400, %v2781, 0
      %v2843 = vsel %vm400, %v2782, 0
      %v2846 = vsel %vm400, %v2783, 0
      %v2849 = vsel %vm400, %v2784, 0
      %v2852 = vsel %vm400, %v2785, 0
      %v2855 = vsel %vm400, %v2786, 0
      %v2858 = vsel %vm400, %v2787, 0
      %v2861 = vsel %vm400, %v2788, 0
      %v2864 = vsel %vm400, %v2789, 0
      %v2867 = vsel %vm400, %v2790, 0
      %v2870 = vsel %vm400, %v2791, 0
      %v2873 = vsel %vm400, %v2792, 0
      %v2876 = vsel %vm400, %v2793, 0
      %v2879 = vsel %vm400, %v2794, 0
      %v2882 = vsel %vm400, %v2795, 0
      %v2885 = vsel %vm400, %v2796, 0
      %v2888 = vsel %vm400, %v2797, 0
      %v2891 = vsel %vm400, %v2798, 0
      %v2894 = vsel %vm400, %v2799, 0
      %v2897 = vsel %vm400, %v2800, 0
      %v2900 = vsel %vm1114, %v2802, 0
      %2902 = vmatprep.subr.mxu0 0.0
      %2903 = vmatpush1.msra.mxu0 0.0
      %2904 = vmatprep.subr.mxu0 0.0
      %2905 = vmatpush1.msra.mxu0 0.0
      %2906 = vmatprep.subr.mxu0 0.0
      %2907 = vmatpush1.msra.mxu0 0.0
      %2908 = vmatprep.subr.mxu0 0.0
      %2909 = vmatpush1.msra.mxu0 0.0
      %2910 = vmatprep.subr.mxu0 0.0
      %2911 = vmatpush1.msra.mxu0 0.0
      %2912 = vmatprep.subr.mxu0 0.0
      %2913 = vmatpush1.msra.mxu0 0.0
      %2914 = vmatprep.subr.mxu0 0.0
      %2915 = vmatpush1.msra.mxu0 0.0
      %2916 = vmatprep.subr.mxu0 0.0
      %2917 = vmatpush1.msra.mxu0 0.0
      %2918 = vmatprep.subr.mxu0 0.0
      %2919 = vmatpush1.msra.mxu0 0.0
      %2920 = vmatprep.subr.mxu0 0.0
      %2921 = vmatpush1.msra.mxu0 0.0
      %2922 = vmatprep.subr.mxu0 0.0
      %2923 = vmatpush1.msra.mxu0 0.0
      %2924 = vmatprep.subr.mxu0 0.0
      %2925 = vmatpush1.msra.mxu0 0.0
      %2926 = vmatprep.subr.mxu0 0.0
      %2927 = vmatpush1.msra.mxu0 0.0
      %2928 = vmatprep.subr.mxu0 0.0
      %2929 = vmatpush1.msra.mxu0 0.0
      %2930 = vmatprep.subr.mxu0 0.0
      %2931 = vmatpush1.msra.mxu0 0.0
      %2932 = vmatprep.subr.mxu0 0.0
      %2933 = vmatpush1.msra.mxu0 %v2900
      %2934 = vmatprep.subr.mxu0 0.0
      %2935 = vmatpush2.msra.mxu0 0.0
      %2936 = vmatprep.subr.mxu0 0.0
      %2937 = vmatpush2.msra.mxu0 0.0
      %2938 = vmatprep.subr.mxu0 0.0
      %2939 = vmatpush2.msra.mxu0 0.0
      %2940 = vmatprep.subr.mxu0 0.0
      %2941 = vmatpush2.msra.mxu0 0.0
      %2942 = vmatprep.subr.mxu0 0.0
      %2943 = vmatpush2.msra.mxu0 0.0
      %2944 = vmatprep.subr.mxu0 0.0
      %2945 = vmatpush2.msra.mxu0 0.0
      %2946 = vmatprep.subr.mxu0 0.0
      %2947 = vmatpush2.msra.mxu0 0.0
      %2948 = vmatprep.subr.mxu0 0.0
      %2949 = vmatpush2.msra.mxu0 0.0
      %2950 = vmatprep.subr.mxu0 0.0
      %2951 = vmatpush2.msra.mxu0 0.0
      %2952 = vmatprep.subr.mxu0 0.0
      %2953 = vmatpush2.msra.mxu0 0.0
      %2954 = vmatprep.subr.mxu0 0.0
      %2955 = vmatpush2.msra.mxu0 0.0
      %2956 = vmatprep.subr.mxu0 0.0
      %2957 = vmatpush2.msra.mxu0 0.0
      %2958 = vmatprep.subr.mxu0 0.0
      %2959 = vmatpush2.msra.mxu0 0.0
      %2960 = vmatprep.subr.mxu0 0.0
      %2961 = vmatpush2.msra.mxu0 0.0
      %2962 = vmatprep.subr.mxu0 0.0
      %2963 = vmatpush2.msra.mxu0 0.0
      %2964 = vmatprep.subr.mxu0 0.0
      %2965 = vmatpush2.msra.mxu0 0.0
      %2966 = vmatprep.mubr.f32.mxu0 0.0
      %2967 = vmatmul.mubr.f32.gmra.mxu0 %v2804
      %v2968 = vpop.f32.mrf.mxu0
      %v2969 = vadd.f32 0.0, %v2968
      %v2970 = vpop.f32.mrf.mxu0
      %2971 = vmatprep.mubr.f32.mxu0 0.0
      %2972 = vmatmul.mubr.f32.gmra.mxu0 %v2807
      %v2973 = vpop.f32.mrf.mxu0
      %v2974 = vadd.f32 0.0, %v2973
      %v2975 = vpop.f32.mrf.mxu0
      %2976 = vmatprep.mubr.f32.mxu0 0.0
      %2977 = vmatmul.mubr.f32.gmra.mxu0 %v2810
      %v2978 = vpop.f32.mrf.mxu0
      %v2979 = vadd.f32 0.0, %v2978
      %v2980 = vpop.f32.mrf.mxu0
      %2981 = vmatprep.mubr.f32.mxu0 0.0
      %2982 = vmatmul.mubr.f32.gmra.mxu0 %v2813
      %v2983 = vpop.f32.mrf.mxu0
      %v2984 = vadd.f32 0.0, %v2983
      %v2985 = vpop.f32.mrf.mxu0
      %2986 = vmatprep.mubr.f32.mxu0 0.0
      %2987 = vmatmul.mubr.f32.gmra.mxu0 %v2816
      %v2988 = vpop.f32.mrf.mxu0
      %v2989 = vadd.f32 0.0, %v2988
      %v2990 = vpop.f32.mrf.mxu0
      %2991 = vmatprep.mubr.f32.mxu0 0.0
      %2992 = vmatmul.mubr.f32.gmra.mxu0 %v2819
      %v2993 = vpop.f32.mrf.mxu0
      %v2994 = vadd.f32 0.0, %v2993
      %v2995 = vpop.f32.mrf.mxu0
      %2996 = vmatprep.mubr.f32.mxu0 0.0
      %2997 = vmatmul.mubr.f32.gmra.mxu0 %v2822
      %v2998 = vpop.f32.mrf.mxu0
      %v2999 = vadd.f32 0.0, %v2998
      %v3000 = vpop.f32.mrf.mxu0
      %3001 = vmatprep.mubr.f32.mxu0 0.0
      %3002 = vmatmul.mubr.f32.gmra.mxu0 %v2825
      %v3003 = vpop.f32.mrf.mxu0
      %v3004 = vadd.f32 0.0, %v3003
      %v3005 = vpop.f32.mrf.mxu0
      %3006 = vmatprep.mubr.f32.mxu0 0.0
      %3007 = vmatmul.mubr.f32.gmra.mxu0 %v2828
      %v3008 = vpop.f32.mrf.mxu0
      %v3009 = vadd.f32 0.0, %v3008
      %v3010 = vpop.f32.mrf.mxu0
      %3011 = vmatprep.mubr.f32.mxu0 0.0
      %3012 = vmatmul.mubr.f32.gmra.mxu0 %v2831
      %v3013 = vpop.f32.mrf.mxu0
      %v3014 = vadd.f32 0.0, %v3013
      %v3015 = vpop.f32.mrf.mxu0
      %3016 = vmatprep.mubr.f32.mxu0 0.0
      %3017 = vmatmul.mubr.f32.gmra.mxu0 %v2834
      %v3018 = vpop.f32.mrf.mxu0
      %v3019 = vadd.f32 0.0, %v3018
      %v3020 = vpop.f32.mrf.mxu0
      %3021 = vmatprep.mubr.f32.mxu0 0.0
      %3022 = vmatmul.mubr.f32.gmra.mxu0 %v2837
      %v3023 = vpop.f32.mrf.mxu0
      %v3024 = vadd.f32 0.0, %v3023
      %v3025 = vpop.f32.mrf.mxu0
      %3026 = vmatprep.mubr.f32.mxu0 0.0
      %3027 = vmatmul.mubr.f32.gmra.mxu0 %v2840
      %v3028 = vpop.f32.mrf.mxu0
      %v3029 = vadd.f32 0.0, %v3028
      %v3030 = vpop.f32.mrf.mxu0
      %3031 = vmatprep.mubr.f32.mxu0 0.0
      %3032 = vmatmul.mubr.f32.gmra.mxu0 %v2843
      %v3033 = vpop.f32.mrf.mxu0
      %v3034 = vadd.f32 0.0, %v3033
      %v3035 = vpop.f32.mrf.mxu0
      %3036 = vmatprep.mubr.f32.mxu0 0.0
      %3037 = vmatmul.mubr.f32.gmra.mxu0 %v2846
      %v3038 = vpop.f32.mrf.mxu0
      %v3039 = vadd.f32 0.0, %v3038
      %v3040 = vpop.f32.mrf.mxu0
      %3041 = vmatprep.mubr.f32.mxu0 0.0
      %3042 = vmatmul.mubr.f32.gmra.mxu0 %v2849
      %v3043 = vpop.f32.mrf.mxu0
      %v3044 = vadd.f32 0.0, %v3043
      %v3045 = vpop.f32.mrf.mxu0
      %3046 = vmatprep.mubr.f32.mxu0 0.0
      %3047 = vmatmul.mubr.f32.gmra.mxu0 %v2852
      %v3048 = vpop.f32.mrf.mxu0
      %v3049 = vadd.f32 0.0, %v3048
      %v3050 = vpop.f32.mrf.mxu0
      %3051 = vmatprep.mubr.f32.mxu0 0.0
      %3052 = vmatmul.mubr.f32.gmra.mxu0 %v2855
      %v3053 = vpop.f32.mrf.mxu0
      %v3054 = vadd.f32 0.0, %v3053
      %v3055 = vpop.f32.mrf.mxu0
      %3056 = vmatprep.mubr.f32.mxu0 0.0
      %3057 = vmatmul.mubr.f32.gmra.mxu0 %v2858
      %v3058 = vpop.f32.mrf.mxu0
      %v3059 = vadd.f32 0.0, %v3058
      %v3060 = vpop.f32.mrf.mxu0
      %3061 = vmatprep.mubr.f32.mxu0 0.0
      %3062 = vmatmul.mubr.f32.gmra.mxu0 %v2861
      %v3063 = vpop.f32.mrf.mxu0
      %v3064 = vadd.f32 0.0, %v3063
      %v3065 = vpop.f32.mrf.mxu0
      %3066 = vmatprep.mubr.f32.mxu0 0.0
      %3067 = vmatmul.mubr.f32.gmra.mxu0 %v2864
      %v3068 = vpop.f32.mrf.mxu0
      %v3069 = vadd.f32 0.0, %v3068
      %v3070 = vpop.f32.mrf.mxu0
      %3071 = vmatprep.mubr.f32.mxu0 0.0
      %3072 = vmatmul.mubr.f32.gmra.mxu0 %v2867
      %v3073 = vpop.f32.mrf.mxu0
      %v3074 = vadd.f32 0.0, %v3073
      %v3075 = vpop.f32.mrf.mxu0
      %3076 = vmatprep.mubr.f32.mxu0 0.0
      %3077 = vmatmul.mubr.f32.gmra.mxu0 %v2870
      %v3078 = vpop.f32.mrf.mxu0
      %v3079 = vadd.f32 0.0, %v3078
      %v3080 = vpop.f32.mrf.mxu0
      %3081 = vmatprep.mubr.f32.mxu0 0.0
      %3082 = vmatmul.mubr.f32.gmra.mxu0 %v2873
      %v3083 = vpop.f32.mrf.mxu0
      %v3084 = vadd.f32 0.0, %v3083
      %v3085 = vpop.f32.mrf.mxu0
      %3086 = vmatprep.mubr.f32.mxu0 0.0
      %3087 = vmatmul.mubr.f32.gmra.mxu0 %v2876
      %v3088 = vpop.f32.mrf.mxu0
      %v3089 = vadd.f32 0.0, %v3088
      %v3090 = vpop.f32.mrf.mxu0
      %3091 = vmatprep.mubr.f32.mxu0 0.0
      %3092 = vmatmul.mubr.f32.gmra.mxu0 %v2879
      %v3093 = vpop.f32.mrf.mxu0
      %v3094 = vadd.f32 0.0, %v3093
      %v3095 = vpop.f32.mrf.mxu0
      %3096 = vmatprep.mubr.f32.mxu0 0.0
      %3097 = vmatmul.mubr.f32.gmra.mxu0 %v2882
      %v3098 = vpop.f32.mrf.mxu0
      %v3099 = vadd.f32 0.0, %v3098
      %v3100 = vpop.f32.mrf.mxu0
      %3101 = vmatprep.mubr.f32.mxu0 0.0
      %3102 = vmatmul.mubr.f32.gmra.mxu0 %v2885
      %v3103 = vpop.f32.mrf.mxu0
      %v3104 = vadd.f32 0.0, %v3103
      %v3105 = vpop.f32.mrf.mxu0
      %3106 = vmatprep.mubr.f32.mxu0 0.0
      %3107 = vmatmul.mubr.f32.gmra.mxu0 %v2888
      %v3108 = vpop.f32.mrf.mxu0
      %v3109 = vadd.f32 0.0, %v3108
      %v3110 = vpop.f32.mrf.mxu0
      %3111 = vmatprep.mubr.f32.mxu0 0.0
      %3112 = vmatmul.mubr.f32.gmra.mxu0 %v2891
      %v3113 = vpop.f32.mrf.mxu0
      %v3114 = vadd.f32 0.0, %v3113
      %v3115 = vpop.f32.mrf.mxu0
      %3116 = vmatprep.mubr.f32.mxu0 0.0
      %3117 = vmatmul.mubr.f32.gmra.mxu0 %v2894
      %v3118 = vpop.f32.mrf.mxu0
      %v3119 = vadd.f32 0.0, %v3118
      %v3120 = vpop.f32.mrf.mxu0
      %3121 = vmatprep.mubr.f32.mxu0 0.0
      %3122 = vmatmul.mubr.f32.gmra.mxu0 %v2897
      %v3123 = vpop.f32.mrf.mxu0
      %v3124 = vadd.f32 0.0, %v3123
      %v3125 = vpop.f32.mrf.mxu0
      %3126 = vdwg.mxu0
      %v3127 = vadd.f32 %v2737, %v2969
      %v3128 = vadd.f32 %v2738, %v2974
      %v3129 = vadd.f32 %v2739, %v2979
      %v3130 = vadd.f32 %v2740, %v2984
      %v3131 = vadd.f32 %v2741, %v2989
      %v3132 = vadd.f32 %v2742, %v2994
      %v3133 = vadd.f32 %v2743, %v2999
      %v3134 = vadd.f32 %v2744, %v3004
      %v3135 = vadd.f32 %v2745, %v3009
      %v3136 = vadd.f32 %v2746, %v3014
      %v3137 = vadd.f32 %v2747, %v3019
      %v3138 = vadd.f32 %v2748, %v3024
      %v3139 = vadd.f32 %v2749, %v3029
      %v3140 = vadd.f32 %v2750, %v3034
      %v3141 = vadd.f32 %v2751, %v3039
      %v3142 = vadd.f32 %v2752, %v3044
      %v3143 = vadd.f32 %v2753, %v3049
      %v3144 = vadd.f32 %v2754, %v3054
      %v3145 = vadd.f32 %v2755, %v3059
      %v3146 = vadd.f32 %v2756, %v3064
      %v3147 = vadd.f32 %v2757, %v3069
      %v3148 = vadd.f32 %v2758, %v3074
      %v3149 = vadd.f32 %v2759, %v3079
      %v3150 = vadd.f32 %v2760, %v3084
      %v3151 = vadd.f32 %v2761, %v3089
      %v3152 = vadd.f32 %v2762, %v3094
      %v3153 = vadd.f32 %v2763, %v3099
      %v3154 = vadd.f32 %v2764, %v3104
      %v3155 = vadd.f32 %v2765, %v3109
      %v3156 = vadd.f32 %v2766, %v3114
      %v3157 = vadd.f32 %v2767, %v3119
      %v3158 = vadd.f32 %v2768, %v3124
      %v3159 = vld [vmem:[#allocation2 + $0x19] sm:$0xff]
      %v3160 = vld [vmem:[#allocation2 + $0x21] sm:$0xff]
      %v3161 = vld [vmem:[#allocation2 + $0x29] sm:$0xff]
      %v3162 = vld [vmem:[#allocation2 + $0x31] sm:$0xff]
      %v3163 = vld [vmem:[#allocation2 + $0x39] sm:$0xff]
      %v3164 = vld [vmem:[#allocation2 + $0x41] sm:$0xff]
      %v3165 = vld [vmem:[#allocation2 + $0x49] sm:$0xff]
      %v3166 = vld [vmem:[#allocation2 + $0x51] sm:$0xff]
      %v3167 = vld [vmem:[#allocation2 + $0x59] sm:$0xff]
      %v3168 = vld [vmem:[#allocation2 + $0x61] sm:$0xff]
      %v3169 = vld [vmem:[#allocation2 + $0x69] sm:$0xff]
      %v3170 = vld [vmem:[#allocation2 + $0x71] sm:$0xff]
      %v3171 = vld [vmem:[#allocation2 + $0x79] sm:$0xff]
      %v3172 = vld [vmem:[#allocation2 + $0x81] sm:$0xff]
      %v3173 = vld [vmem:[#allocation2 + $0x89] sm:$0xff]
      %v3174 = vld [vmem:[#allocation2 + $0x91] sm:$0xff]
      %v3175 = vld [vmem:[#allocation2 + $0x99] sm:$0xff]
      %v3176 = vld [vmem:[#allocation2 + $0xa1] sm:$0xff]
      %v3177 = vld [vmem:[#allocation2 + $0xa9] sm:$0xff]
      %v3178 = vld [vmem:[#allocation2 + $0xb1] sm:$0xff]
      %v3179 = vld [vmem:[#allocation2 + $0xb9] sm:$0xff]
      %v3180 = vld [vmem:[#allocation2 + $0xc1] sm:$0xff]
      %v3181 = vld [vmem:[#allocation2 + $0xc9] sm:$0xff]
      %v3182 = vld [vmem:[#allocation2 + $0xd1] sm:$0xff]
      %v3183 = vld [vmem:[#allocation2 + $0xd9] sm:$0xff]
      %v3184 = vld [vmem:[#allocation2 + $0xe1] sm:$0xff]
      %v3185 = vld [vmem:[#allocation2 + $0xe9] sm:$0xff]
      %v3186 = vld [vmem:[#allocation2 + $0xf1] sm:$0xff]
      %v3187 = vld [vmem:[#allocation2 + $0xf9] sm:$0xff]
      %v3188 = vld [vmem:[#allocation2 + $0x101] sm:$0xff]
      %v3189 = vld [vmem:[#allocation2 + $0x109] sm:$0xff]
      %v3190 = vld [vmem:[#allocation2 + $0x111] sm:$0xff]
      %s3191 = scalar_lea.vmem %s3, 20
      %v3192 = vld [vmem:[%s3191] sm:$0xf]
      %v3194 = vsel %vm400, %v3159, 0
      %v3197 = vsel %vm400, %v3160, 0
      %v3200 = vsel %vm400, %v3161, 0
      %v3203 = vsel %vm400, %v3162, 0
      %v3206 = vsel %vm400, %v3163, 0
      %v3209 = vsel %vm400, %v3164, 0
      %v3212 = vsel %vm400, %v3165, 0
      %v3215 = vsel %vm400, %v3166, 0
      %v3218 = vsel %vm400, %v3167, 0
      %v3221 = vsel %vm400, %v3168, 0
      %v3224 = vsel %vm400, %v3169, 0
      %v3227 = vsel %vm400, %v3170, 0
      %v3230 = vsel %vm400, %v3171, 0
      %v3233 = vsel %vm400, %v3172, 0
      %v3236 = vsel %vm400, %v3173, 0
      %v3239 = vsel %vm400, %v3174, 0
      %v3242 = vsel %vm400, %v3175, 0
      %v3245 = vsel %vm400, %v3176, 0
      %v3248 = vsel %vm400, %v3177, 0
      %v3251 = vsel %vm400, %v3178, 0
      %v3254 = vsel %vm400, %v3179, 0
      %v3257 = vsel %vm400, %v3180, 0
      %v3260 = vsel %vm400, %v3181, 0
      %v3263 = vsel %vm400, %v3182, 0
      %v3266 = vsel %vm400, %v3183, 0
      %v3269 = vsel %vm400, %v3184, 0
      %v3272 = vsel %vm400, %v3185, 0
      %v3275 = vsel %vm400, %v3186, 0
      %v3278 = vsel %vm400, %v3187, 0
      %v3281 = vsel %vm400, %v3188, 0
      %v3284 = vsel %vm400, %v3189, 0
      %v3287 = vsel %vm400, %v3190, 0
      %v3290 = vsel %vm1114, %v3192, 0
      %3292 = vmatprep.subr.mxu0 0.0
      %3293 = vmatpush1.msra.mxu0 0.0
      %3294 = vmatprep.subr.mxu0 0.0
      %3295 = vmatpush1.msra.mxu0 0.0
      %3296 = vmatprep.subr.mxu0 0.0
      %3297 = vmatpush1.msra.mxu0 0.0
      %3298 = vmatprep.subr.mxu0 0.0
      %3299 = vmatpush1.msra.mxu0 0.0
      %3300 = vmatprep.subr.mxu0 0.0
      %3301 = vmatpush1.msra.mxu0 0.0
      %3302 = vmatprep.subr.mxu0 0.0
      %3303 = vmatpush1.msra.mxu0 0.0
      %3304 = vmatprep.subr.mxu0 0.0
      %3305 = vmatpush1.msra.mxu0 0.0
      %3306 = vmatprep.subr.mxu0 0.0
      %3307 = vmatpush1.msra.mxu0 0.0
      %3308 = vmatprep.subr.mxu0 0.0
      %3309 = vmatpush1.msra.mxu0 0.0
      %3310 = vmatprep.subr.mxu0 0.0
      %3311 = vmatpush1.msra.mxu0 0.0
      %3312 = vmatprep.subr.mxu0 0.0
      %3313 = vmatpush1.msra.mxu0 0.0
      %3314 = vmatprep.subr.mxu0 0.0
      %3315 = vmatpush1.msra.mxu0 0.0
      %3316 = vmatprep.subr.mxu0 0.0
      %3317 = vmatpush1.msra.mxu0 0.0
      %3318 = vmatprep.subr.mxu0 0.0
      %3319 = vmatpush1.msra.mxu0 0.0
      %3320 = vmatprep.subr.mxu0 0.0
      %3321 = vmatpush1.msra.mxu0 0.0
      %3322 = vmatprep.subr.mxu0 0.0
      %3323 = vmatpush1.msra.mxu0 %v3290
      %3324 = vmatprep.subr.mxu0 0.0
      %3325 = vmatpush2.msra.mxu0 0.0
      %3326 = vmatprep.subr.mxu0 0.0
      %3327 = vmatpush2.msra.mxu0 0.0
      %3328 = vmatprep.subr.mxu0 0.0
      %3329 = vmatpush2.msra.mxu0 0.0
      %3330 = vmatprep.subr.mxu0 0.0
      %3331 = vmatpush2.msra.mxu0 0.0
      %3332 = vmatprep.subr.mxu0 0.0
      %3333 = vmatpush2.msra.mxu0 0.0
      %3334 = vmatprep.subr.mxu0 0.0
      %3335 = vmatpush2.msra.mxu0 0.0
      %3336 = vmatprep.subr.mxu0 0.0
      %3337 = vmatpush2.msra.mxu0 0.0
      %3338 = vmatprep.subr.mxu0 0.0
      %3339 = vmatpush2.msra.mxu0 0.0
      %3340 = vmatprep.subr.mxu0 0.0
      %3341 = vmatpush2.msra.mxu0 0.0
      %3342 = vmatprep.subr.mxu0 0.0
      %3343 = vmatpush2.msra.mxu0 0.0
      %3344 = vmatprep.subr.mxu0 0.0
      %3345 = vmatpush2.msra.mxu0 0.0
      %3346 = vmatprep.subr.mxu0 0.0
      %3347 = vmatpush2.msra.mxu0 0.0
      %3348 = vmatprep.subr.mxu0 0.0
      %3349 = vmatpush2.msra.mxu0 0.0
      %3350 = vmatprep.subr.mxu0 0.0
      %3351 = vmatpush2.msra.mxu0 0.0
      %3352 = vmatprep.subr.mxu0 0.0
      %3353 = vmatpush2.msra.mxu0 0.0
      %3354 = vmatprep.subr.mxu0 0.0
      %3355 = vmatpush2.msra.mxu0 0.0
      %3356 = vmatprep.mubr.f32.mxu0 0.0
      %3357 = vmatmul.mubr.f32.gmra.mxu0 %v3194
      %v3358 = vpop.f32.mrf.mxu0
      %v3359 = vadd.f32 0.0, %v3358
      %v3360 = vpop.f32.mrf.mxu0
      %3361 = vmatprep.mubr.f32.mxu0 0.0
      %3362 = vmatmul.mubr.f32.gmra.mxu0 %v3197
      %v3363 = vpop.f32.mrf.mxu0
      %v3364 = vadd.f32 0.0, %v3363
      %v3365 = vpop.f32.mrf.mxu0
      %3366 = vmatprep.mubr.f32.mxu0 0.0
      %3367 = vmatmul.mubr.f32.gmra.mxu0 %v3200
      %v3368 = vpop.f32.mrf.mxu0
      %v3369 = vadd.f32 0.0, %v3368
      %v3370 = vpop.f32.mrf.mxu0
      %3371 = vmatprep.mubr.f32.mxu0 0.0
      %3372 = vmatmul.mubr.f32.gmra.mxu0 %v3203
      %v3373 = vpop.f32.mrf.mxu0
      %v3374 = vadd.f32 0.0, %v3373
      %v3375 = vpop.f32.mrf.mxu0
      %3376 = vmatprep.mubr.f32.mxu0 0.0
      %3377 = vmatmul.mubr.f32.gmra.mxu0 %v3206
      %v3378 = vpop.f32.mrf.mxu0
      %v3379 = vadd.f32 0.0, %v3378
      %v3380 = vpop.f32.mrf.mxu0
      %3381 = vmatprep.mubr.f32.mxu0 0.0
      %3382 = vmatmul.mubr.f32.gmra.mxu0 %v3209
      %v3383 = vpop.f32.mrf.mxu0
      %v3384 = vadd.f32 0.0, %v3383
      %v3385 = vpop.f32.mrf.mxu0
      %3386 = vmatprep.mubr.f32.mxu0 0.0
      %3387 = vmatmul.mubr.f32.gmra.mxu0 %v3212
      %v3388 = vpop.f32.mrf.mxu0
      %v3389 = vadd.f32 0.0, %v3388
      %v3390 = vpop.f32.mrf.mxu0
      %3391 = vmatprep.mubr.f32.mxu0 0.0
      %3392 = vmatmul.mubr.f32.gmra.mxu0 %v3215
      %v3393 = vpop.f32.mrf.mxu0
      %v3394 = vadd.f32 0.0, %v3393
      %v3395 = vpop.f32.mrf.mxu0
      %3396 = vmatprep.mubr.f32.mxu0 0.0
      %3397 = vmatmul.mubr.f32.gmra.mxu0 %v3218
      %v3398 = vpop.f32.mrf.mxu0
      %v3399 = vadd.f32 0.0, %v3398
      %v3400 = vpop.f32.mrf.mxu0
      %3401 = vmatprep.mubr.f32.mxu0 0.0
      %3402 = vmatmul.mubr.f32.gmra.mxu0 %v3221
      %v3403 = vpop.f32.mrf.mxu0
      %v3404 = vadd.f32 0.0, %v3403
      %v3405 = vpop.f32.mrf.mxu0
      %3406 = vmatprep.mubr.f32.mxu0 0.0
      %3407 = vmatmul.mubr.f32.gmra.mxu0 %v3224
      %v3408 = vpop.f32.mrf.mxu0
      %v3409 = vadd.f32 0.0, %v3408
      %v3410 = vpop.f32.mrf.mxu0
      %3411 = vmatprep.mubr.f32.mxu0 0.0
      %3412 = vmatmul.mubr.f32.gmra.mxu0 %v3227
      %v3413 = vpop.f32.mrf.mxu0
      %v3414 = vadd.f32 0.0, %v3413
      %v3415 = vpop.f32.mrf.mxu0
      %3416 = vmatprep.mubr.f32.mxu0 0.0
      %3417 = vmatmul.mubr.f32.gmra.mxu0 %v3230
      %v3418 = vpop.f32.mrf.mxu0
      %v3419 = vadd.f32 0.0, %v3418
      %v3420 = vpop.f32.mrf.mxu0
      %3421 = vmatprep.mubr.f32.mxu0 0.0
      %3422 = vmatmul.mubr.f32.gmra.mxu0 %v3233
      %v3423 = vpop.f32.mrf.mxu0
      %v3424 = vadd.f32 0.0, %v3423
      %v3425 = vpop.f32.mrf.mxu0
      %3426 = vmatprep.mubr.f32.mxu0 0.0
      %3427 = vmatmul.mubr.f32.gmra.mxu0 %v3236
      %v3428 = vpop.f32.mrf.mxu0
      %v3429 = vadd.f32 0.0, %v3428
      %v3430 = vpop.f32.mrf.mxu0
      %3431 = vmatprep.mubr.f32.mxu0 0.0
      %3432 = vmatmul.mubr.f32.gmra.mxu0 %v3239
      %v3433 = vpop.f32.mrf.mxu0
      %v3434 = vadd.f32 0.0, %v3433
      %v3435 = vpop.f32.mrf.mxu0
      %3436 = vmatprep.mubr.f32.mxu0 0.0
      %3437 = vmatmul.mubr.f32.gmra.mxu0 %v3242
      %v3438 = vpop.f32.mrf.mxu0
      %v3439 = vadd.f32 0.0, %v3438
      %v3440 = vpop.f32.mrf.mxu0
      %3441 = vmatprep.mubr.f32.mxu0 0.0
      %3442 = vmatmul.mubr.f32.gmra.mxu0 %v3245
      %v3443 = vpop.f32.mrf.mxu0
      %v3444 = vadd.f32 0.0, %v3443
      %v3445 = vpop.f32.mrf.mxu0
      %3446 = vmatprep.mubr.f32.mxu0 0.0
      %3447 = vmatmul.mubr.f32.gmra.mxu0 %v3248
      %v3448 = vpop.f32.mrf.mxu0
      %v3449 = vadd.f32 0.0, %v3448
      %v3450 = vpop.f32.mrf.mxu0
      %3451 = vmatprep.mubr.f32.mxu0 0.0
      %3452 = vmatmul.mubr.f32.gmra.mxu0 %v3251
      %v3453 = vpop.f32.mrf.mxu0
      %v3454 = vadd.f32 0.0, %v3453
      %v3455 = vpop.f32.mrf.mxu0
      %3456 = vmatprep.mubr.f32.mxu0 0.0
      %3457 = vmatmul.mubr.f32.gmra.mxu0 %v3254
      %v3458 = vpop.f32.mrf.mxu0
      %v3459 = vadd.f32 0.0, %v3458
      %v3460 = vpop.f32.mrf.mxu0
      %3461 = vmatprep.mubr.f32.mxu0 0.0
      %3462 = vmatmul.mubr.f32.gmra.mxu0 %v3257
      %v3463 = vpop.f32.mrf.mxu0
      %v3464 = vadd.f32 0.0, %v3463
      %v3465 = vpop.f32.mrf.mxu0
      %3466 = vmatprep.mubr.f32.mxu0 0.0
      %3467 = vmatmul.mubr.f32.gmra.mxu0 %v3260
      %v3468 = vpop.f32.mrf.mxu0
      %v3469 = vadd.f32 0.0, %v3468
      %v3470 = vpop.f32.mrf.mxu0
      %3471 = vmatprep.mubr.f32.mxu0 0.0
      %3472 = vmatmul.mubr.f32.gmra.mxu0 %v3263
      %v3473 = vpop.f32.mrf.mxu0
      %v3474 = vadd.f32 0.0, %v3473
      %v3475 = vpop.f32.mrf.mxu0
      %3476 = vmatprep.mubr.f32.mxu0 0.0
      %3477 = vmatmul.mubr.f32.gmra.mxu0 %v3266
      %v3478 = vpop.f32.mrf.mxu0
      %v3479 = vadd.f32 0.0, %v3478
      %v3480 = vpop.f32.mrf.mxu0
      %3481 = vmatprep.mubr.f32.mxu0 0.0
      %3482 = vmatmul.mubr.f32.gmra.mxu0 %v3269
      %v3483 = vpop.f32.mrf.mxu0
      %v3484 = vadd.f32 0.0, %v3483
      %v3485 = vpop.f32.mrf.mxu0
      %3486 = vmatprep.mubr.f32.mxu0 0.0
      %3487 = vmatmul.mubr.f32.gmra.mxu0 %v3272
      %v3488 = vpop.f32.mrf.mxu0
      %v3489 = vadd.f32 0.0, %v3488
      %v3490 = vpop.f32.mrf.mxu0
      %3491 = vmatprep.mubr.f32.mxu0 0.0
      %3492 = vmatmul.mubr.f32.gmra.mxu0 %v3275
      %v3493 = vpop.f32.mrf.mxu0
      %v3494 = vadd.f32 0.0, %v3493
      %v3495 = vpop.f32.mrf.mxu0
      %3496 = vmatprep.mubr.f32.mxu0 0.0
      %3497 = vmatmul.mubr.f32.gmra.mxu0 %v3278
      %v3498 = vpop.f32.mrf.mxu0
      %v3499 = vadd.f32 0.0, %v3498
      %v3500 = vpop.f32.mrf.mxu0
      %3501 = vmatprep.mubr.f32.mxu0 0.0
      %3502 = vmatmul.mubr.f32.gmra.mxu0 %v3281
      %v3503 = vpop.f32.mrf.mxu0
      %v3504 = vadd.f32 0.0, %v3503
      %v3505 = vpop.f32.mrf.mxu0
      %3506 = vmatprep.mubr.f32.mxu0 0.0
      %3507 = vmatmul.mubr.f32.gmra.mxu0 %v3284
      %v3508 = vpop.f32.mrf.mxu0
      %v3509 = vadd.f32 0.0, %v3508
      %v3510 = vpop.f32.mrf.mxu0
      %3511 = vmatprep.mubr.f32.mxu0 0.0
      %3512 = vmatmul.mubr.f32.gmra.mxu0 %v3287
      %v3513 = vpop.f32.mrf.mxu0
      %v3514 = vadd.f32 0.0, %v3513
      %v3515 = vpop.f32.mrf.mxu0
      %3516 = vdwg.mxu0
      %v3517 = vsel %vm2251, %v3359, 0.0
      %v3518 = vsel %vm2252, %v3364, 0.0
      %v3519 = vsel %vm2253, %v3369, 0.0
      %v3520 = vsel %vm2254, %v3374, 0.0
      %v3521 = vsel %vm2255, %v3379, 0.0
      %v3522 = vsel %vm2256, %v3384, 0.0
      %v3523 = vsel %vm2257, %v3389, 0.0
      %v3524 = vsel %vm2258, %v3394, 0.0
      %v3525 = vsel %vm2259, %v3399, 0.0
      %v3526 = vsel %vm2260, %v3404, 0.0
      %v3527 = vsel %vm2261, %v3409, 0.0
      %v3528 = vsel %vm2262, %v3414, 0.0
      %v3529 = vsel %vm2263, %v3419, 0.0
      %v3530 = vsel %vm2264, %v3424, 0.0
      %v3531 = vsel %vm2265, %v3429, 0.0
      %v3532 = vsel %vm2266, %v3434, 0.0
      %v3533 = vsel %vm2267, %v3439, 0.0
      %v3534 = vsel %vm2268, %v3444, 0.0
      %v3535 = vsel %vm2269, %v3449, 0.0
      %v3536 = vsel %vm2270, %v3454, 0.0
      %v3537 = vsel %vm2271, %v3459, 0.0
      %v3538 = vsel %vm2272, %v3464, 0.0
      %v3539 = vsel %vm2273, %v3469, 0.0
      %v3540 = vsel %vm2274, %v3474, 0.0
      %v3541 = vsel %vm2275, %v3479, 0.0
      %v3542 = vsel %vm2276, %v3484, 0.0
      %v3543 = vsel %vm2277, %v3489, 0.0
      %v3544 = vsel %vm2278, %v3494, 0.0
      %v3545 = vsel %vm2279, %v3499, 0.0
      %v3546 = vsel %vm2280, %v3504, 0.0
      %v3547 = vsel %vm2281, %v3509, 0.0
      %v3548 = vsel %vm2282, %v3514, 0.0
      %v3549 = vadd.f32 %v3127, %v3517
      %v3550 = vadd.f32 %v3128, %v3518
      %v3551 = vadd.f32 %v3129, %v3519
      %v3552 = vadd.f32 %v3130, %v3520
      %v3553 = vadd.f32 %v3131, %v3521
      %v3554 = vadd.f32 %v3132, %v3522
      %v3555 = vadd.f32 %v3133, %v3523
      %v3556 = vadd.f32 %v3134, %v3524
      %v3557 = vadd.f32 %v3135, %v3525
      %v3558 = vadd.f32 %v3136, %v3526
      %v3559 = vadd.f32 %v3137, %v3527
      %v3560 = vadd.f32 %v3138, %v3528
      %v3561 = vadd.f32 %v3139, %v3529
      %v3562 = vadd.f32 %v3140, %v3530
      %v3563 = vadd.f32 %v3141, %v3531
      %v3564 = vadd.f32 %v3142, %v3532
      %v3565 = vadd.f32 %v3143, %v3533
      %v3566 = vadd.f32 %v3144, %v3534
      %v3567 = vadd.f32 %v3145, %v3535
      %v3568 = vadd.f32 %v3146, %v3536
      %v3569 = vadd.f32 %v3147, %v3537
      %v3570 = vadd.f32 %v3148, %v3538
      %v3571 = vadd.f32 %v3149, %v3539
      %v3572 = vadd.f32 %v3150, %v3540
      %v3573 = vadd.f32 %v3151, %v3541
      %v3574 = vadd.f32 %v3152, %v3542
      %v3575 = vadd.f32 %v3153, %v3543
      %v3576 = vadd.f32 %v3154, %v3544
      %v3577 = vadd.f32 %v3155, %v3545
      %v3578 = vadd.f32 %v3156, %v3546
      %v3579 = vadd.f32 %v3157, %v3547
      %v3580 = vadd.f32 %v3158, %v3548
      %v3581 = vld [vmem:[#allocation2 + $0x27] sm:$0xff]
      %v3582 = vld [vmem:[#allocation2 + $0x2f] sm:$0xff]
      %v3583 = vld [vmem:[#allocation2 + $0x37] sm:$0xff]
      %v3584 = vld [vmem:[#allocation2 + $0x3f] sm:$0xff]
      %v3585 = vld [vmem:[#allocation2 + $0x47] sm:$0xff]
      %v3586 = vld [vmem:[#allocation2 + $0x4f] sm:$0xff]
      %v3587 = vld [vmem:[#allocation2 + $0x57] sm:$0xff]
      %v3588 = vld [vmem:[#allocation2 + $0x5f] sm:$0xff]
      %v3589 = vld [vmem:[#allocation2 + $0x67] sm:$0xff]
      %v3590 = vld [vmem:[#allocation2 + $0x6f] sm:$0xff]
      %v3591 = vld [vmem:[#allocation2 + $0x77] sm:$0xff]
      %v3592 = vld [vmem:[#allocation2 + $0x7f] sm:$0xff]
      %v3593 = vld [vmem:[#allocation2 + $0x87] sm:$0xff]
      %v3594 = vld [vmem:[#allocation2 + $0x8f] sm:$0xff]
      %v3595 = vld [vmem:[#allocation2 + $0x97] sm:$0xff]
      %v3596 = vld [vmem:[#allocation2 + $0x9f] sm:$0xff]
      %v3597 = vld [vmem:[#allocation2 + $0xa7] sm:$0xff]
      %v3598 = vld [vmem:[#allocation2 + $0xaf] sm:$0xff]
      %v3599 = vld [vmem:[#allocation2 + $0xb7] sm:$0xff]
      %v3600 = vld [vmem:[#allocation2 + $0xbf] sm:$0xff]
      %v3601 = vld [vmem:[#allocation2 + $0xc7] sm:$0xff]
      %v3602 = vld [vmem:[#allocation2 + $0xcf] sm:$0xff]
      %v3603 = vld [vmem:[#allocation2 + $0xd7] sm:$0xff]
      %v3604 = vld [vmem:[#allocation2 + $0xdf] sm:$0xff]
      %v3605 = vld [vmem:[#allocation2 + $0xe7] sm:$0xff]
      %v3606 = vld [vmem:[#allocation2 + $0xef] sm:$0xff]
      %v3607 = vld [vmem:[#allocation2 + $0xf7] sm:$0xff]
      %v3608 = vld [vmem:[#allocation2 + $0xff] sm:$0xff]
      %v3609 = vld [vmem:[#allocation2 + $0x107] sm:$0xff]
      %v3610 = vld [vmem:[#allocation2 + $0x10f] sm:$0xff]
      %v3611 = vld [vmem:[#allocation2 + $0x117] sm:$0xff]
      %v3612 = vld [vmem:[#allocation2 + $0x11f] sm:$0xff]
      %s3613 = scalar_lea.vmem %s3, 24
      %v3614 = vld [vmem:[%s3613] sm:$0xf]
      %v3616 = vsel %vm400, %v3581, 0
      %v3619 = vsel %vm400, %v3582, 0
      %v3622 = vsel %vm400, %v3583, 0
      %v3625 = vsel %vm400, %v3584, 0
      %v3628 = vsel %vm400, %v3585, 0
      %v3631 = vsel %vm400, %v3586, 0
      %v3634 = vsel %vm400, %v3587, 0
      %v3637 = vsel %vm400, %v3588, 0
      %v3640 = vsel %vm400, %v3589, 0
      %v3643 = vsel %vm400, %v3590, 0
      %v3646 = vsel %vm400, %v3591, 0
      %v3649 = vsel %vm400, %v3592, 0
      %v3652 = vsel %vm400, %v3593, 0
      %v3655 = vsel %vm400, %v3594, 0
      %v3658 = vsel %vm400, %v3595, 0
      %v3661 = vsel %vm400, %v3596, 0
      %v3664 = vsel %vm400, %v3597, 0
      %v3667 = vsel %vm400, %v3598, 0
      %v3670 = vsel %vm400, %v3599, 0
      %v3673 = vsel %vm400, %v3600, 0
      %v3676 = vsel %vm400, %v3601, 0
      %v3679 = vsel %vm400, %v3602, 0
      %v3682 = vsel %vm400, %v3603, 0
      %v3685 = vsel %vm400, %v3604, 0
      %v3688 = vsel %vm400, %v3605, 0
      %v3691 = vsel %vm400, %v3606, 0
      %v3694 = vsel %vm400, %v3607, 0
      %v3697 = vsel %vm400, %v3608, 0
      %v3700 = vsel %vm400, %v3609, 0
      %v3703 = vsel %vm400, %v3610, 0
      %v3706 = vsel %vm400, %v3611, 0
      %v3709 = vsel %vm400, %v3612, 0
      %v3712 = vsel %vm1114, %v3614, 0
      %3714 = vmatprep.subr.mxu0 0.0
      %3715 = vmatpush1.msra.mxu0 0.0
      %3716 = vmatprep.subr.mxu0 0.0
      %3717 = vmatpush1.msra.mxu0 0.0
      %3718 = vmatprep.subr.mxu0 0.0
      %3719 = vmatpush1.msra.mxu0 0.0
      %3720 = vmatprep.subr.mxu0 0.0
      %3721 = vmatpush1.msra.mxu0 0.0
      %3722 = vmatprep.subr.mxu0 0.0
      %3723 = vmatpush1.msra.mxu0 0.0
      %3724 = vmatprep.subr.mxu0 0.0
      %3725 = vmatpush1.msra.mxu0 0.0
      %3726 = vmatprep.subr.mxu0 0.0
      %3727 = vmatpush1.msra.mxu0 0.0
      %3728 = vmatprep.subr.mxu0 0.0
      %3729 = vmatpush1.msra.mxu0 0.0
      %3730 = vmatprep.subr.mxu0 0.0
      %3731 = vmatpush1.msra.mxu0 0.0
      %3732 = vmatprep.subr.mxu0 0.0
      %3733 = vmatpush1.msra.mxu0 0.0
      %3734 = vmatprep.subr.mxu0 0.0
      %3735 = vmatpush1.msra.mxu0 0.0
      %3736 = vmatprep.subr.mxu0 0.0
      %3737 = vmatpush1.msra.mxu0 0.0
      %3738 = vmatprep.subr.mxu0 0.0
      %3739 = vmatpush1.msra.mxu0 0.0
      %3740 = vmatprep.subr.mxu0 0.0
      %3741 = vmatpush1.msra.mxu0 0.0
      %3742 = vmatprep.subr.mxu0 0.0
      %3743 = vmatpush1.msra.mxu0 0.0
      %3744 = vmatprep.subr.mxu0 0.0
      %3745 = vmatpush1.msra.mxu0 %v3712
      %3746 = vmatprep.subr.mxu0 0.0
      %3747 = vmatpush2.msra.mxu0 0.0
      %3748 = vmatprep.subr.mxu0 0.0
      %3749 = vmatpush2.msra.mxu0 0.0
      %3750 = vmatprep.subr.mxu0 0.0
      %3751 = vmatpush2.msra.mxu0 0.0
      %3752 = vmatprep.subr.mxu0 0.0
      %3753 = vmatpush2.msra.mxu0 0.0
      %3754 = vmatprep.subr.mxu0 0.0
      %3755 = vmatpush2.msra.mxu0 0.0
      %3756 = vmatprep.subr.mxu0 0.0
      %3757 = vmatpush2.msra.mxu0 0.0
      %3758 = vmatprep.subr.mxu0 0.0
      %3759 = vmatpush2.msra.mxu0 0.0
      %3760 = vmatprep.subr.mxu0 0.0
      %3761 = vmatpush2.msra.mxu0 0.0
      %3762 = vmatprep.subr.mxu0 0.0
      %3763 = vmatpush2.msra.mxu0 0.0
      %3764 = vmatprep.subr.mxu0 0.0
      %3765 = vmatpush2.msra.mxu0 0.0
      %3766 = vmatprep.subr.mxu0 0.0
      %3767 = vmatpush2.msra.mxu0 0.0
      %3768 = vmatprep.subr.mxu0 0.0
      %3769 = vmatpush2.msra.mxu0 0.0
      %3770 = vmatprep.subr.mxu0 0.0
      %3771 = vmatpush2.msra.mxu0 0.0
      %3772 = vmatprep.subr.mxu0 0.0
      %3773 = vmatpush2.msra.mxu0 0.0
      %3774 = vmatprep.subr.mxu0 0.0
      %3775 = vmatpush2.msra.mxu0 0.0
      %3776 = vmatprep.subr.mxu0 0.0
      %3777 = vmatpush2.msra.mxu0 0.0
      %3778 = vmatprep.mubr.f32.mxu0 0.0
      %3779 = vmatmul.mubr.f32.gmra.mxu0 %v3616
      %v3780 = vpop.f32.mrf.mxu0
      %v3781 = vadd.f32 0.0, %v3780
      %v3782 = vpop.f32.mrf.mxu0
      %3783 = vmatprep.mubr.f32.mxu0 0.0
      %3784 = vmatmul.mubr.f32.gmra.mxu0 %v3619
      %v3785 = vpop.f32.mrf.mxu0
      %v3786 = vadd.f32 0.0, %v3785
      %v3787 = vpop.f32.mrf.mxu0
      %3788 = vmatprep.mubr.f32.mxu0 0.0
      %3789 = vmatmul.mubr.f32.gmra.mxu0 %v3622
      %v3790 = vpop.f32.mrf.mxu0
      %v3791 = vadd.f32 0.0, %v3790
      %v3792 = vpop.f32.mrf.mxu0
      %3793 = vmatprep.mubr.f32.mxu0 0.0
      %3794 = vmatmul.mubr.f32.gmra.mxu0 %v3625
      %v3795 = vpop.f32.mrf.mxu0
      %v3796 = vadd.f32 0.0, %v3795
      %v3797 = vpop.f32.mrf.mxu0
      %3798 = vmatprep.mubr.f32.mxu0 0.0
      %3799 = vmatmul.mubr.f32.gmra.mxu0 %v3628
      %v3800 = vpop.f32.mrf.mxu0
      %v3801 = vadd.f32 0.0, %v3800
      %v3802 = vpop.f32.mrf.mxu0
      %3803 = vmatprep.mubr.f32.mxu0 0.0
      %3804 = vmatmul.mubr.f32.gmra.mxu0 %v3631
      %v3805 = vpop.f32.mrf.mxu0
      %v3806 = vadd.f32 0.0, %v3805
      %v3807 = vpop.f32.mrf.mxu0
      %3808 = vmatprep.mubr.f32.mxu0 0.0
      %3809 = vmatmul.mubr.f32.gmra.mxu0 %v3634
      %v3810 = vpop.f32.mrf.mxu0
      %v3811 = vadd.f32 0.0, %v3810
      %v3812 = vpop.f32.mrf.mxu0
      %3813 = vmatprep.mubr.f32.mxu0 0.0
      %3814 = vmatmul.mubr.f32.gmra.mxu0 %v3637
      %v3815 = vpop.f32.mrf.mxu0
      %v3816 = vadd.f32 0.0, %v3815
      %v3817 = vpop.f32.mrf.mxu0
      %3818 = vmatprep.mubr.f32.mxu0 0.0
      %3819 = vmatmul.mubr.f32.gmra.mxu0 %v3640
      %v3820 = vpop.f32.mrf.mxu0
      %v3821 = vadd.f32 0.0, %v3820
      %v3822 = vpop.f32.mrf.mxu0
      %3823 = vmatprep.mubr.f32.mxu0 0.0
      %3824 = vmatmul.mubr.f32.gmra.mxu0 %v3643
      %v3825 = vpop.f32.mrf.mxu0
      %v3826 = vadd.f32 0.0, %v3825
      %v3827 = vpop.f32.mrf.mxu0
      %3828 = vmatprep.mubr.f32.mxu0 0.0
      %3829 = vmatmul.mubr.f32.gmra.mxu0 %v3646
      %v3830 = vpop.f32.mrf.mxu0
      %v3831 = vadd.f32 0.0, %v3830
      %v3832 = vpop.f32.mrf.mxu0
      %3833 = vmatprep.mubr.f32.mxu0 0.0
      %3834 = vmatmul.mubr.f32.gmra.mxu0 %v3649
      %v3835 = vpop.f32.mrf.mxu0
      %v3836 = vadd.f32 0.0, %v3835
      %v3837 = vpop.f32.mrf.mxu0
      %3838 = vmatprep.mubr.f32.mxu0 0.0
      %3839 = vmatmul.mubr.f32.gmra.mxu0 %v3652
      %v3840 = vpop.f32.mrf.mxu0
      %v3841 = vadd.f32 0.0, %v3840
      %v3842 = vpop.f32.mrf.mxu0
      %3843 = vmatprep.mubr.f32.mxu0 0.0
      %3844 = vmatmul.mubr.f32.gmra.mxu0 %v3655
      %v3845 = vpop.f32.mrf.mxu0
      %v3846 = vadd.f32 0.0, %v3845
      %v3847 = vpop.f32.mrf.mxu0
      %3848 = vmatprep.mubr.f32.mxu0 0.0
      %3849 = vmatmul.mubr.f32.gmra.mxu0 %v3658
      %v3850 = vpop.f32.mrf.mxu0
      %v3851 = vadd.f32 0.0, %v3850
      %v3852 = vpop.f32.mrf.mxu0
      %3853 = vmatprep.mubr.f32.mxu0 0.0
      %3854 = vmatmul.mubr.f32.gmra.mxu0 %v3661
      %v3855 = vpop.f32.mrf.mxu0
      %v3856 = vadd.f32 0.0, %v3855
      %v3857 = vpop.f32.mrf.mxu0
      %3858 = vmatprep.mubr.f32.mxu0 0.0
      %3859 = vmatmul.mubr.f32.gmra.mxu0 %v3664
      %v3860 = vpop.f32.mrf.mxu0
      %v3861 = vadd.f32 0.0, %v3860
      %v3862 = vpop.f32.mrf.mxu0
      %3863 = vmatprep.mubr.f32.mxu0 0.0
      %3864 = vmatmul.mubr.f32.gmra.mxu0 %v3667
      %v3865 = vpop.f32.mrf.mxu0
      %v3866 = vadd.f32 0.0, %v3865
      %v3867 = vpop.f32.mrf.mxu0
      %3868 = vmatprep.mubr.f32.mxu0 0.0
      %3869 = vmatmul.mubr.f32.gmra.mxu0 %v3670
      %v3870 = vpop.f32.mrf.mxu0
      %v3871 = vadd.f32 0.0, %v3870
      %v3872 = vpop.f32.mrf.mxu0
      %3873 = vmatprep.mubr.f32.mxu0 0.0
      %3874 = vmatmul.mubr.f32.gmra.mxu0 %v3673
      %v3875 = vpop.f32.mrf.mxu0
      %v3876 = vadd.f32 0.0, %v3875
      %v3877 = vpop.f32.mrf.mxu0
      %3878 = vmatprep.mubr.f32.mxu0 0.0
      %3879 = vmatmul.mubr.f32.gmra.mxu0 %v3676
      %v3880 = vpop.f32.mrf.mxu0
      %v3881 = vadd.f32 0.0, %v3880
      %v3882 = vpop.f32.mrf.mxu0
      %3883 = vmatprep.mubr.f32.mxu0 0.0
      %3884 = vmatmul.mubr.f32.gmra.mxu0 %v3679
      %v3885 = vpop.f32.mrf.mxu0
      %v3886 = vadd.f32 0.0, %v3885
      %v3887 = vpop.f32.mrf.mxu0
      %3888 = vmatprep.mubr.f32.mxu0 0.0
      %3889 = vmatmul.mubr.f32.gmra.mxu0 %v3682
      %v3890 = vpop.f32.mrf.mxu0
      %v3891 = vadd.f32 0.0, %v3890
      %v3892 = vpop.f32.mrf.mxu0
      %3893 = vmatprep.mubr.f32.mxu0 0.0
      %3894 = vmatmul.mubr.f32.gmra.mxu0 %v3685
      %v3895 = vpop.f32.mrf.mxu0
      %v3896 = vadd.f32 0.0, %v3895
      %v3897 = vpop.f32.mrf.mxu0
      %3898 = vmatprep.mubr.f32.mxu0 0.0
      %3899 = vmatmul.mubr.f32.gmra.mxu0 %v3688
      %v3900 = vpop.f32.mrf.mxu0
      %v3901 = vadd.f32 0.0, %v3900
      %v3902 = vpop.f32.mrf.mxu0
      %3903 = vmatprep.mubr.f32.mxu0 0.0
      %3904 = vmatmul.mubr.f32.gmra.mxu0 %v3691
      %v3905 = vpop.f32.mrf.mxu0
      %v3906 = vadd.f32 0.0, %v3905
      %v3907 = vpop.f32.mrf.mxu0
      %3908 = vmatprep.mubr.f32.mxu0 0.0
      %3909 = vmatmul.mubr.f32.gmra.mxu0 %v3694
      %v3910 = vpop.f32.mrf.mxu0
      %v3911 = vadd.f32 0.0, %v3910
      %v3912 = vpop.f32.mrf.mxu0
      %3913 = vmatprep.mubr.f32.mxu0 0.0
      %3914 = vmatmul.mubr.f32.gmra.mxu0 %v3697
      %v3915 = vpop.f32.mrf.mxu0
      %v3916 = vadd.f32 0.0, %v3915
      %v3917 = vpop.f32.mrf.mxu0
      %3918 = vmatprep.mubr.f32.mxu0 0.0
      %3919 = vmatmul.mubr.f32.gmra.mxu0 %v3700
      %v3920 = vpop.f32.mrf.mxu0
      %v3921 = vadd.f32 0.0, %v3920
      %v3922 = vpop.f32.mrf.mxu0
      %3923 = vmatprep.mubr.f32.mxu0 0.0
      %3924 = vmatmul.mubr.f32.gmra.mxu0 %v3703
      %v3925 = vpop.f32.mrf.mxu0
      %v3926 = vadd.f32 0.0, %v3925
      %v3927 = vpop.f32.mrf.mxu0
      %3928 = vmatprep.mubr.f32.mxu0 0.0
      %3929 = vmatmul.mubr.f32.gmra.mxu0 %v3706
      %v3930 = vpop.f32.mrf.mxu0
      %v3931 = vadd.f32 0.0, %v3930
      %v3932 = vpop.f32.mrf.mxu0
      %3933 = vmatprep.mubr.f32.mxu0 0.0
      %3934 = vmatmul.mubr.f32.gmra.mxu0 %v3709
      %v3935 = vpop.f32.mrf.mxu0
      %v3936 = vadd.f32 0.0, %v3935
      %v3937 = vpop.f32.mrf.mxu0
      %3938 = vdwg.mxu0
      %v3939 = vsel %vm1375, %v3781, 0.0
      %v3940 = vsel %vm1376, %v3786, 0.0
      %v3941 = vsel %vm1377, %v3791, 0.0
      %v3942 = vsel %vm1378, %v3796, 0.0
      %v3943 = vsel %vm1379, %v3801, 0.0
      %v3944 = vsel %vm1380, %v3806, 0.0
      %v3945 = vsel %vm1381, %v3811, 0.0
      %v3946 = vsel %vm1382, %v3816, 0.0
      %v3947 = vsel %vm1383, %v3821, 0.0
      %v3948 = vsel %vm1384, %v3826, 0.0
      %v3949 = vsel %vm1385, %v3831, 0.0
      %v3950 = vsel %vm1386, %v3836, 0.0
      %v3951 = vsel %vm1387, %v3841, 0.0
      %v3952 = vsel %vm1388, %v3846, 0.0
      %v3953 = vsel %vm1389, %v3851, 0.0
      %v3954 = vsel %vm1390, %v3856, 0.0
      %v3955 = vsel %vm1391, %v3861, 0.0
      %v3956 = vsel %vm1392, %v3866, 0.0
      %v3957 = vsel %vm1393, %v3871, 0.0
      %v3958 = vsel %vm1394, %v3876, 0.0
      %v3959 = vsel %vm1395, %v3881, 0.0
      %v3960 = vsel %vm1396, %v3886, 0.0
      %v3961 = vsel %vm1397, %v3891, 0.0
      %v3962 = vsel %vm1398, %v3896, 0.0
      %v3963 = vsel %vm1399, %v3901, 0.0
      %v3964 = vsel %vm1400, %v3906, 0.0
      %v3965 = vsel %vm1401, %v3911, 0.0
      %v3966 = vsel %vm1402, %v3916, 0.0
      %v3967 = vsel %vm1403, %v3921, 0.0
      %v3968 = vsel %vm1404, %v3926, 0.0
      %v3969 = vsel %vm1405, %v3931, 0.0
      %v3970 = vsel %vm1406, %v3936, 0.0
      %v3971 = vadd.f32 %v3549, %v3939
      %v3972 = vadd.f32 %v3550, %v3940
      %v3973 = vadd.f32 %v3551, %v3941
      %v3974 = vadd.f32 %v3552, %v3942
      %v3975 = vadd.f32 %v3553, %v3943
      %v3976 = vadd.f32 %v3554, %v3944
      %v3977 = vadd.f32 %v3555, %v3945
      %v3978 = vadd.f32 %v3556, %v3946
      %v3979 = vadd.f32 %v3557, %v3947
      %v3980 = vadd.f32 %v3558, %v3948
      %v3981 = vadd.f32 %v3559, %v3949
      %v3982 = vadd.f32 %v3560, %v3950
      %v3983 = vadd.f32 %v3561, %v3951
      %v3984 = vadd.f32 %v3562, %v3952
      %v3985 = vadd.f32 %v3563, %v3953
      %v3986 = vadd.f32 %v3564, %v3954
      %v3987 = vadd.f32 %v3565, %v3955
      %v3988 = vadd.f32 %v3566, %v3956
      %v3989 = vadd.f32 %v3567, %v3957
      %v3990 = vadd.f32 %v3568, %v3958
      %v3991 = vadd.f32 %v3569, %v3959
      %v3992 = vadd.f32 %v3570, %v3960
      %v3993 = vadd.f32 %v3571, %v3961
      %v3994 = vadd.f32 %v3572, %v3962
      %v3995 = vadd.f32 %v3573, %v3963
      %v3996 = vadd.f32 %v3574, %v3964
      %v3997 = vadd.f32 %v3575, %v3965
      %v3998 = vadd.f32 %v3576, %v3966
      %v3999 = vadd.f32 %v3577, %v3967
      %v4000 = vadd.f32 %v3578, %v3968
      %v4001 = vadd.f32 %v3579, %v3969
      %v4002 = vadd.f32 %v3580, %v3970
      %v4003 = vld [vmem:[#allocation2 + $0x28] sm:$0xff]
      %v4004 = vld [vmem:[#allocation2 + $0x30] sm:$0xff]
      %v4005 = vld [vmem:[#allocation2 + $0x38] sm:$0xff]
      %v4006 = vld [vmem:[#allocation2 + $0x40] sm:$0xff]
      %v4007 = vld [vmem:[#allocation2 + $0x48] sm:$0xff]
      %v4008 = vld [vmem:[#allocation2 + $0x50] sm:$0xff]
      %v4009 = vld [vmem:[#allocation2 + $0x58] sm:$0xff]
      %v4010 = vld [vmem:[#allocation2 + $0x60] sm:$0xff]
      %v4011 = vld [vmem:[#allocation2 + $0x68] sm:$0xff]
      %v4012 = vld [vmem:[#allocation2 + $0x70] sm:$0xff]
      %v4013 = vld [vmem:[#allocation2 + $0x78] sm:$0xff]
      %v4014 = vld [vmem:[#allocation2 + $0x80] sm:$0xff]
      %v4015 = vld [vmem:[#allocation2 + $0x88] sm:$0xff]
      %v4016 = vld [vmem:[#allocation2 + $0x90] sm:$0xff]
      %v4017 = vld [vmem:[#allocation2 + $0x98] sm:$0xff]
      %v4018 = vld [vmem:[#allocation2 + $0xa0] sm:$0xff]
      %v4019 = vld [vmem:[#allocation2 + $0xa8] sm:$0xff]
      %v4020 = vld [vmem:[#allocation2 + $0xb0] sm:$0xff]
      %v4021 = vld [vmem:[#allocation2 + $0xb8] sm:$0xff]
      %v4022 = vld [vmem:[#allocation2 + $0xc0] sm:$0xff]
      %v4023 = vld [vmem:[#allocation2 + $0xc8] sm:$0xff]
      %v4024 = vld [vmem:[#allocation2 + $0xd0] sm:$0xff]
      %v4025 = vld [vmem:[#allocation2 + $0xd8] sm:$0xff]
      %v4026 = vld [vmem:[#allocation2 + $0xe0] sm:$0xff]
      %v4027 = vld [vmem:[#allocation2 + $0xe8] sm:$0xff]
      %v4028 = vld [vmem:[#allocation2 + $0xf0] sm:$0xff]
      %v4029 = vld [vmem:[#allocation2 + $0xf8] sm:$0xff]
      %v4030 = vld [vmem:[#allocation2 + $0x100] sm:$0xff]
      %v4031 = vld [vmem:[#allocation2 + $0x108] sm:$0xff]
      %v4032 = vld [vmem:[#allocation2 + $0x110] sm:$0xff]
      %v4033 = vld [vmem:[#allocation2 + $0x118] sm:$0xff]
      %v4034 = vld [vmem:[#allocation2 + $0x120] sm:$0xff]
      %s4035 = scalar_lea.vmem %s3, 28
      %v4036 = vld [vmem:[%s4035] sm:$0xf]
      %v4038 = vsel %vm400, %v4003, 0
      %v4041 = vsel %vm400, %v4004, 0
      %v4044 = vsel %vm400, %v4005, 0
      %v4047 = vsel %vm400, %v4006, 0
      %v4050 = vsel %vm400, %v4007, 0
      %v4053 = vsel %vm400, %v4008, 0
      %v4056 = vsel %vm400, %v4009, 0
      %v4059 = vsel %vm400, %v4010, 0
      %v4062 = vsel %vm400, %v4011, 0
      %v4065 = vsel %vm400, %v4012, 0
      %v4068 = vsel %vm400, %v4013, 0
      %v4071 = vsel %vm400, %v4014, 0
      %v4074 = vsel %vm400, %v4015, 0
      %v4077 = vsel %vm400, %v4016, 0
      %v4080 = vsel %vm400, %v4017, 0
      %v4083 = vsel %vm400, %v4018, 0
      %v4086 = vsel %vm400, %v4019, 0
      %v4089 = vsel %vm400, %v4020, 0
      %v4092 = vsel %vm400, %v4021, 0
      %v4095 = vsel %vm400, %v4022, 0
      %v4098 = vsel %vm400, %v4023, 0
      %v4101 = vsel %vm400, %v4024, 0
      %v4104 = vsel %vm400, %v4025, 0
      %v4107 = vsel %vm400, %v4026, 0
      %v4110 = vsel %vm400, %v4027, 0
      %v4113 = vsel %vm400, %v4028, 0
      %v4116 = vsel %vm400, %v4029, 0
      %v4119 = vsel %vm400, %v4030, 0
      %v4122 = vsel %vm400, %v4031, 0
      %v4125 = vsel %vm400, %v4032, 0
      %v4128 = vsel %vm400, %v4033, 0
      %v4131 = vsel %vm400, %v4034, 0
      %v4134 = vsel %vm1114, %v4036, 0
      %4136 = vmatprep.subr.mxu0 0.0
      %4137 = vmatpush1.msra.mxu0 0.0
      %4138 = vmatprep.subr.mxu0 0.0
      %4139 = vmatpush1.msra.mxu0 0.0
      %4140 = vmatprep.subr.mxu0 0.0
      %4141 = vmatpush1.msra.mxu0 0.0
      %4142 = vmatprep.subr.mxu0 0.0
      %4143 = vmatpush1.msra.mxu0 0.0
      %4144 = vmatprep.subr.mxu0 0.0
      %4145 = vmatpush1.msra.mxu0 0.0
      %4146 = vmatprep.subr.mxu0 0.0
      %4147 = vmatpush1.msra.mxu0 0.0
      %4148 = vmatprep.subr.mxu0 0.0
      %4149 = vmatpush1.msra.mxu0 0.0
      %4150 = vmatprep.subr.mxu0 0.0
      %4151 = vmatpush1.msra.mxu0 0.0
      %4152 = vmatprep.subr.mxu0 0.0
      %4153 = vmatpush1.msra.mxu0 0.0
      %4154 = vmatprep.subr.mxu0 0.0
      %4155 = vmatpush1.msra.mxu0 0.0
      %4156 = vmatprep.subr.mxu0 0.0
      %4157 = vmatpush1.msra.mxu0 0.0
      %4158 = vmatprep.subr.mxu0 0.0
      %4159 = vmatpush1.msra.mxu0 0.0
      %4160 = vmatprep.subr.mxu0 0.0
      %4161 = vmatpush1.msra.mxu0 0.0
      %4162 = vmatprep.subr.mxu0 0.0
      %4163 = vmatpush1.msra.mxu0 0.0
      %4164 = vmatprep.subr.mxu0 0.0
      %4165 = vmatpush1.msra.mxu0 0.0
      %4166 = vmatprep.subr.mxu0 0.0
      %4167 = vmatpush1.msra.mxu0 %v4134
      %4168 = vmatprep.subr.mxu0 0.0
      %4169 = vmatpush2.msra.mxu0 0.0
      %4170 = vmatprep.subr.mxu0 0.0
      %4171 = vmatpush2.msra.mxu0 0.0
      %4172 = vmatprep.subr.mxu0 0.0
      %4173 = vmatpush2.msra.mxu0 0.0
      %4174 = vmatprep.subr.mxu0 0.0
      %4175 = vmatpush2.msra.mxu0 0.0
      %4176 = vmatprep.subr.mxu0 0.0
      %4177 = vmatpush2.msra.mxu0 0.0
      %4178 = vmatprep.subr.mxu0 0.0
      %4179 = vmatpush2.msra.mxu0 0.0
      %4180 = vmatprep.subr.mxu0 0.0
      %4181 = vmatpush2.msra.mxu0 0.0
      %4182 = vmatprep.subr.mxu0 0.0
      %4183 = vmatpush2.msra.mxu0 0.0
      %4184 = vmatprep.subr.mxu0 0.0
      %4185 = vmatpush2.msra.mxu0 0.0
      %4186 = vmatprep.subr.mxu0 0.0
      %4187 = vmatpush2.msra.mxu0 0.0
      %4188 = vmatprep.subr.mxu0 0.0
      %4189 = vmatpush2.msra.mxu0 0.0
      %4190 = vmatprep.subr.mxu0 0.0
      %4191 = vmatpush2.msra.mxu0 0.0
      %4192 = vmatprep.subr.mxu0 0.0
      %4193 = vmatpush2.msra.mxu0 0.0
      %4194 = vmatprep.subr.mxu0 0.0
      %4195 = vmatpush2.msra.mxu0 0.0
      %4196 = vmatprep.subr.mxu0 0.0
      %4197 = vmatpush2.msra.mxu0 0.0
      %4198 = vmatprep.subr.mxu0 0.0
      %4199 = vmatpush2.msra.mxu0 0.0
      %4200 = vmatprep.mubr.f32.mxu0 0.0
      %4201 = vmatmul.mubr.f32.gmra.mxu0 %v4038
      %v4202 = vpop.f32.mrf.mxu0
      %v4203 = vadd.f32 0.0, %v4202
      %v4204 = vpop.f32.mrf.mxu0
      %4205 = vmatprep.mubr.f32.mxu0 0.0
      %4206 = vmatmul.mubr.f32.gmra.mxu0 %v4041
      %v4207 = vpop.f32.mrf.mxu0
      %v4208 = vadd.f32 0.0, %v4207
      %v4209 = vpop.f32.mrf.mxu0
      %4210 = vmatprep.mubr.f32.mxu0 0.0
      %4211 = vmatmul.mubr.f32.gmra.mxu0 %v4044
      %v4212 = vpop.f32.mrf.mxu0
      %v4213 = vadd.f32 0.0, %v4212
      %v4214 = vpop.f32.mrf.mxu0
      %4215 = vmatprep.mubr.f32.mxu0 0.0
      %4216 = vmatmul.mubr.f32.gmra.mxu0 %v4047
      %v4217 = vpop.f32.mrf.mxu0
      %v4218 = vadd.f32 0.0, %v4217
      %v4219 = vpop.f32.mrf.mxu0
      %4220 = vmatprep.mubr.f32.mxu0 0.0
      %4221 = vmatmul.mubr.f32.gmra.mxu0 %v4050
      %v4222 = vpop.f32.mrf.mxu0
      %v4223 = vadd.f32 0.0, %v4222
      %v4224 = vpop.f32.mrf.mxu0
      %4225 = vmatprep.mubr.f32.mxu0 0.0
      %4226 = vmatmul.mubr.f32.gmra.mxu0 %v4053
      %v4227 = vpop.f32.mrf.mxu0
      %v4228 = vadd.f32 0.0, %v4227
      %v4229 = vpop.f32.mrf.mxu0
      %4230 = vmatprep.mubr.f32.mxu0 0.0
      %4231 = vmatmul.mubr.f32.gmra.mxu0 %v4056
      %v4232 = vpop.f32.mrf.mxu0
      %v4233 = vadd.f32 0.0, %v4232
      %v4234 = vpop.f32.mrf.mxu0
      %4235 = vmatprep.mubr.f32.mxu0 0.0
      %4236 = vmatmul.mubr.f32.gmra.mxu0 %v4059
      %v4237 = vpop.f32.mrf.mxu0
      %v4238 = vadd.f32 0.0, %v4237
      %v4239 = vpop.f32.mrf.mxu0
      %4240 = vmatprep.mubr.f32.mxu0 0.0
      %4241 = vmatmul.mubr.f32.gmra.mxu0 %v4062
      %v4242 = vpop.f32.mrf.mxu0
      %v4243 = vadd.f32 0.0, %v4242
      %v4244 = vpop.f32.mrf.mxu0
      %4245 = vmatprep.mubr.f32.mxu0 0.0
      %4246 = vmatmul.mubr.f32.gmra.mxu0 %v4065
      %v4247 = vpop.f32.mrf.mxu0
      %v4248 = vadd.f32 0.0, %v4247
      %v4249 = vpop.f32.mrf.mxu0
      %4250 = vmatprep.mubr.f32.mxu0 0.0
      %4251 = vmatmul.mubr.f32.gmra.mxu0 %v4068
      %v4252 = vpop.f32.mrf.mxu0
      %v4253 = vadd.f32 0.0, %v4252
      %v4254 = vpop.f32.mrf.mxu0
      %4255 = vmatprep.mubr.f32.mxu0 0.0
      %4256 = vmatmul.mubr.f32.gmra.mxu0 %v4071
      %v4257 = vpop.f32.mrf.mxu0
      %v4258 = vadd.f32 0.0, %v4257
      %v4259 = vpop.f32.mrf.mxu0
      %4260 = vmatprep.mubr.f32.mxu0 0.0
      %4261 = vmatmul.mubr.f32.gmra.mxu0 %v4074
      %v4262 = vpop.f32.mrf.mxu0
      %v4263 = vadd.f32 0.0, %v4262
      %v4264 = vpop.f32.mrf.mxu0
      %4265 = vmatprep.mubr.f32.mxu0 0.0
      %4266 = vmatmul.mubr.f32.gmra.mxu0 %v4077
      %v4267 = vpop.f32.mrf.mxu0
      %v4268 = vadd.f32 0.0, %v4267
      %v4269 = vpop.f32.mrf.mxu0
      %4270 = vmatprep.mubr.f32.mxu0 0.0
      %4271 = vmatmul.mubr.f32.gmra.mxu0 %v4080
      %v4272 = vpop.f32.mrf.mxu0
      %v4273 = vadd.f32 0.0, %v4272
      %v4274 = vpop.f32.mrf.mxu0
      %4275 = vmatprep.mubr.f32.mxu0 0.0
      %4276 = vmatmul.mubr.f32.gmra.mxu0 %v4083
      %v4277 = vpop.f32.mrf.mxu0
      %v4278 = vadd.f32 0.0, %v4277
      %v4279 = vpop.f32.mrf.mxu0
      %4280 = vmatprep.mubr.f32.mxu0 0.0
      %4281 = vmatmul.mubr.f32.gmra.mxu0 %v4086
      %v4282 = vpop.f32.mrf.mxu0
      %v4283 = vadd.f32 0.0, %v4282
      %v4284 = vpop.f32.mrf.mxu0
      %4285 = vmatprep.mubr.f32.mxu0 0.0
      %4286 = vmatmul.mubr.f32.gmra.mxu0 %v4089
      %v4287 = vpop.f32.mrf.mxu0
      %v4288 = vadd.f32 0.0, %v4287
      %v4289 = vpop.f32.mrf.mxu0
      %4290 = vmatprep.mubr.f32.mxu0 0.0
      %4291 = vmatmul.mubr.f32.gmra.mxu0 %v4092
      %v4292 = vpop.f32.mrf.mxu0
      %v4293 = vadd.f32 0.0, %v4292
      %v4294 = vpop.f32.mrf.mxu0
      %4295 = vmatprep.mubr.f32.mxu0 0.0
      %4296 = vmatmul.mubr.f32.gmra.mxu0 %v4095
      %v4297 = vpop.f32.mrf.mxu0
      %v4298 = vadd.f32 0.0, %v4297
      %v4299 = vpop.f32.mrf.mxu0
      %4300 = vmatprep.mubr.f32.mxu0 0.0
      %4301 = vmatmul.mubr.f32.gmra.mxu0 %v4098
      %v4302 = vpop.f32.mrf.mxu0
      %v4303 = vadd.f32 0.0, %v4302
      %v4304 = vpop.f32.mrf.mxu0
      %4305 = vmatprep.mubr.f32.mxu0 0.0
      %4306 = vmatmul.mubr.f32.gmra.mxu0 %v4101
      %v4307 = vpop.f32.mrf.mxu0
      %v4308 = vadd.f32 0.0, %v4307
      %v4309 = vpop.f32.mrf.mxu0
      %4310 = vmatprep.mubr.f32.mxu0 0.0
      %4311 = vmatmul.mubr.f32.gmra.mxu0 %v4104
      %v4312 = vpop.f32.mrf.mxu0
      %v4313 = vadd.f32 0.0, %v4312
      %v4314 = vpop.f32.mrf.mxu0
      %4315 = vmatprep.mubr.f32.mxu0 0.0
      %4316 = vmatmul.mubr.f32.gmra.mxu0 %v4107
      %v4317 = vpop.f32.mrf.mxu0
      %v4318 = vadd.f32 0.0, %v4317
      %v4319 = vpop.f32.mrf.mxu0
      %4320 = vmatprep.mubr.f32.mxu0 0.0
      %4321 = vmatmul.mubr.f32.gmra.mxu0 %v4110
      %v4322 = vpop.f32.mrf.mxu0
      %v4323 = vadd.f32 0.0, %v4322
      %v4324 = vpop.f32.mrf.mxu0
      %4325 = vmatprep.mubr.f32.mxu0 0.0
      %4326 = vmatmul.mubr.f32.gmra.mxu0 %v4113
      %v4327 = vpop.f32.mrf.mxu0
      %v4328 = vadd.f32 0.0, %v4327
      %v4329 = vpop.f32.mrf.mxu0
      %4330 = vmatprep.mubr.f32.mxu0 0.0
      %4331 = vmatmul.mubr.f32.gmra.mxu0 %v4116
      %v4332 = vpop.f32.mrf.mxu0
      %v4333 = vadd.f32 0.0, %v4332
      %v4334 = vpop.f32.mrf.mxu0
      %4335 = vmatprep.mubr.f32.mxu0 0.0
      %4336 = vmatmul.mubr.f32.gmra.mxu0 %v4119
      %v4337 = vpop.f32.mrf.mxu0
      %v4338 = vadd.f32 0.0, %v4337
      %v4339 = vpop.f32.mrf.mxu0
      %4340 = vmatprep.mubr.f32.mxu0 0.0
      %4341 = vmatmul.mubr.f32.gmra.mxu0 %v4122
      %v4342 = vpop.f32.mrf.mxu0
      %v4343 = vadd.f32 0.0, %v4342
      %v4344 = vpop.f32.mrf.mxu0
      %4345 = vmatprep.mubr.f32.mxu0 0.0
      %4346 = vmatmul.mubr.f32.gmra.mxu0 %v4125
      %v4347 = vpop.f32.mrf.mxu0
      %v4348 = vadd.f32 0.0, %v4347
      %v4349 = vpop.f32.mrf.mxu0
      %4350 = vmatprep.mubr.f32.mxu0 0.0
      %4351 = vmatmul.mubr.f32.gmra.mxu0 %v4128
      %v4352 = vpop.f32.mrf.mxu0
      %v4353 = vadd.f32 0.0, %v4352
      %v4354 = vpop.f32.mrf.mxu0
      %4355 = vmatprep.mubr.f32.mxu0 0.0
      %4356 = vmatmul.mubr.f32.gmra.mxu0 %v4131
      %v4357 = vpop.f32.mrf.mxu0
      %v4358 = vadd.f32 0.0, %v4357
      %v4359 = vpop.f32.mrf.mxu0
      %4360 = vdwg.mxu0
      %v4361 = vadd.f32 %v3971, %v4203
      %v4362 = vadd.f32 %v3972, %v4208
      %v4363 = vadd.f32 %v3973, %v4213
      %v4364 = vadd.f32 %v3974, %v4218
      %v4365 = vadd.f32 %v3975, %v4223
      %v4366 = vadd.f32 %v3976, %v4228
      %v4367 = vadd.f32 %v3977, %v4233
      %v4368 = vadd.f32 %v3978, %v4238
      %v4369 = vadd.f32 %v3979, %v4243
      %v4370 = vadd.f32 %v3980, %v4248
      %v4371 = vadd.f32 %v3981, %v4253
      %v4372 = vadd.f32 %v3982, %v4258
      %v4373 = vadd.f32 %v3983, %v4263
      %v4374 = vadd.f32 %v3984, %v4268
      %v4375 = vadd.f32 %v3985, %v4273
      %v4376 = vadd.f32 %v3986, %v4278
      %v4377 = vadd.f32 %v3987, %v4283
      %v4378 = vadd.f32 %v3988, %v4288
      %v4379 = vadd.f32 %v3989, %v4293
      %v4380 = vadd.f32 %v3990, %v4298
      %v4381 = vadd.f32 %v3991, %v4303
      %v4382 = vadd.f32 %v3992, %v4308
      %v4383 = vadd.f32 %v3993, %v4313
      %v4384 = vadd.f32 %v3994, %v4318
      %v4385 = vadd.f32 %v3995, %v4323
      %v4386 = vadd.f32 %v3996, %v4328
      %v4387 = vadd.f32 %v3997, %v4333
      %v4388 = vadd.f32 %v3998, %v4338
      %v4389 = vadd.f32 %v3999, %v4343
      %v4390 = vadd.f32 %v4000, %v4348
      %v4391 = vadd.f32 %v4001, %v4353
      %v4392 = vadd.f32 %v4002, %v4358
      %v4393 = vld [vmem:[#allocation2 + $0x29] sm:$0xff]
      %v4394 = vld [vmem:[#allocation2 + $0x31] sm:$0xff]
      %v4395 = vld [vmem:[#allocation2 + $0x39] sm:$0xff]
      %v4396 = vld [vmem:[#allocation2 + $0x41] sm:$0xff]
      %v4397 = vld [vmem:[#allocation2 + $0x49] sm:$0xff]
      %v4398 = vld [vmem:[#allocation2 + $0x51] sm:$0xff]
      %v4399 = vld [vmem:[#allocation2 + $0x59] sm:$0xff]
      %v4400 = vld [vmem:[#allocation2 + $0x61] sm:$0xff]
      %v4401 = vld [vmem:[#allocation2 + $0x69] sm:$0xff]
      %v4402 = vld [vmem:[#allocation2 + $0x71] sm:$0xff]
      %v4403 = vld [vmem:[#allocation2 + $0x79] sm:$0xff]
      %v4404 = vld [vmem:[#allocation2 + $0x81] sm:$0xff]
      %v4405 = vld [vmem:[#allocation2 + $0x89] sm:$0xff]
      %v4406 = vld [vmem:[#allocation2 + $0x91] sm:$0xff]
      %v4407 = vld [vmem:[#allocation2 + $0x99] sm:$0xff]
      %v4408 = vld [vmem:[#allocation2 + $0xa1] sm:$0xff]
      %v4409 = vld [vmem:[#allocation2 + $0xa9] sm:$0xff]
      %v4410 = vld [vmem:[#allocation2 + $0xb1] sm:$0xff]
      %v4411 = vld [vmem:[#allocation2 + $0xb9] sm:$0xff]
      %v4412 = vld [vmem:[#allocation2 + $0xc1] sm:$0xff]
      %v4413 = vld [vmem:[#allocation2 + $0xc9] sm:$0xff]
      %v4414 = vld [vmem:[#allocation2 + $0xd1] sm:$0xff]
      %v4415 = vld [vmem:[#allocation2 + $0xd9] sm:$0xff]
      %v4416 = vld [vmem:[#allocation2 + $0xe1] sm:$0xff]
      %v4417 = vld [vmem:[#allocation2 + $0xe9] sm:$0xff]
      %v4418 = vld [vmem:[#allocation2 + $0xf1] sm:$0xff]
      %v4419 = vld [vmem:[#allocation2 + $0xf9] sm:$0xff]
      %v4420 = vld [vmem:[#allocation2 + $0x101] sm:$0xff]
      %v4421 = vld [vmem:[#allocation2 + $0x109] sm:$0xff]
      %v4422 = vld [vmem:[#allocation2 + $0x111] sm:$0xff]
      %v4423 = vld [vmem:[#allocation2 + $0x119] sm:$0xff]
      %v4424 = vld [vmem:[#allocation2 + $0x121] sm:$0xff]
      %s4425 = scalar_lea.vmem %s3, 32
      %v4426 = vld [vmem:[%s4425] sm:$0xf]
      %v4428 = vsel %vm400, %v4393, 0
      %v4431 = vsel %vm400, %v4394, 0
      %v4434 = vsel %vm400, %v4395, 0
      %v4437 = vsel %vm400, %v4396, 0
      %v4440 = vsel %vm400, %v4397, 0
      %v4443 = vsel %vm400, %v4398, 0
      %v4446 = vsel %vm400, %v4399, 0
      %v4449 = vsel %vm400, %v4400, 0
      %v4452 = vsel %vm400, %v4401, 0
      %v4455 = vsel %vm400, %v4402, 0
      %v4458 = vsel %vm400, %v4403, 0
      %v4461 = vsel %vm400, %v4404, 0
      %v4464 = vsel %vm400, %v4405, 0
      %v4467 = vsel %vm400, %v4406, 0
      %v4470 = vsel %vm400, %v4407, 0
      %v4473 = vsel %vm400, %v4408, 0
      %v4476 = vsel %vm400, %v4409, 0
      %v4479 = vsel %vm400, %v4410, 0
      %v4482 = vsel %vm400, %v4411, 0
      %v4485 = vsel %vm400, %v4412, 0
      %v4488 = vsel %vm400, %v4413, 0
      %v4491 = vsel %vm400, %v4414, 0
      %v4494 = vsel %vm400, %v4415, 0
      %v4497 = vsel %vm400, %v4416, 0
      %v4500 = vsel %vm400, %v4417, 0
      %v4503 = vsel %vm400, %v4418, 0
      %v4506 = vsel %vm400, %v4419, 0
      %v4509 = vsel %vm400, %v4420, 0
      %v4512 = vsel %vm400, %v4421, 0
      %v4515 = vsel %vm400, %v4422, 0
      %v4518 = vsel %vm400, %v4423, 0
      %v4521 = vsel %vm400, %v4424, 0
      %v4524 = vsel %vm1114, %v4426, 0
      %4526 = vmatprep.subr.mxu0 0.0
      %4527 = vmatpush1.msra.mxu0 0.0
      %4528 = vmatprep.subr.mxu0 0.0
      %4529 = vmatpush1.msra.mxu0 0.0
      %4530 = vmatprep.subr.mxu0 0.0
      %4531 = vmatpush1.msra.mxu0 0.0
      %4532 = vmatprep.subr.mxu0 0.0
      %4533 = vmatpush1.msra.mxu0 0.0
      %4534 = vmatprep.subr.mxu0 0.0
      %4535 = vmatpush1.msra.mxu0 0.0
      %4536 = vmatprep.subr.mxu0 0.0
      %4537 = vmatpush1.msra.mxu0 0.0
      %4538 = vmatprep.subr.mxu0 0.0
      %4539 = vmatpush1.msra.mxu0 0.0
      %4540 = vmatprep.subr.mxu0 0.0
      %4541 = vmatpush1.msra.mxu0 0.0
      %4542 = vmatprep.subr.mxu0 0.0
      %4543 = vmatpush1.msra.mxu0 0.0
      %4544 = vmatprep.subr.mxu0 0.0
      %4545 = vmatpush1.msra.mxu0 0.0
      %4546 = vmatprep.subr.mxu0 0.0
      %4547 = vmatpush1.msra.mxu0 0.0
      %4548 = vmatprep.subr.mxu0 0.0
      %4549 = vmatpush1.msra.mxu0 0.0
      %4550 = vmatprep.subr.mxu0 0.0
      %4551 = vmatpush1.msra.mxu0 0.0
      %4552 = vmatprep.subr.mxu0 0.0
      %4553 = vmatpush1.msra.mxu0 0.0
      %4554 = vmatprep.subr.mxu0 0.0
      %4555 = vmatpush1.msra.mxu0 0.0
      %4556 = vmatprep.subr.mxu0 0.0
      %4557 = vmatpush1.msra.mxu0 %v4524
      %4558 = vmatprep.subr.mxu0 0.0
      %4559 = vmatpush2.msra.mxu0 0.0
      %4560 = vmatprep.subr.mxu0 0.0
      %4561 = vmatpush2.msra.mxu0 0.0
      %4562 = vmatprep.subr.mxu0 0.0
      %4563 = vmatpush2.msra.mxu0 0.0
      %4564 = vmatprep.subr.mxu0 0.0
      %4565 = vmatpush2.msra.mxu0 0.0
      %4566 = vmatprep.subr.mxu0 0.0
      %4567 = vmatpush2.msra.mxu0 0.0
      %4568 = vmatprep.subr.mxu0 0.0
      %4569 = vmatpush2.msra.mxu0 0.0
      %4570 = vmatprep.subr.mxu0 0.0
      %4571 = vmatpush2.msra.mxu0 0.0
      %4572 = vmatprep.subr.mxu0 0.0
      %4573 = vmatpush2.msra.mxu0 0.0
      %4574 = vmatprep.subr.mxu0 0.0
      %4575 = vmatpush2.msra.mxu0 0.0
      %4576 = vmatprep.subr.mxu0 0.0
      %4577 = vmatpush2.msra.mxu0 0.0
      %4578 = vmatprep.subr.mxu0 0.0
      %4579 = vmatpush2.msra.mxu0 0.0
      %4580 = vmatprep.subr.mxu0 0.0
      %4581 = vmatpush2.msra.mxu0 0.0
      %4582 = vmatprep.subr.mxu0 0.0
      %4583 = vmatpush2.msra.mxu0 0.0
      %4584 = vmatprep.subr.mxu0 0.0
      %4585 = vmatpush2.msra.mxu0 0.0
      %4586 = vmatprep.subr.mxu0 0.0
      %4587 = vmatpush2.msra.mxu0 0.0
      %4588 = vmatprep.subr.mxu0 0.0
      %4589 = vmatpush2.msra.mxu0 0.0
      %4590 = vmatprep.mubr.f32.mxu0 0.0
      %4591 = vmatmul.mubr.f32.gmra.mxu0 %v4428
      %v4592 = vpop.f32.mrf.mxu0
      %v4593 = vadd.f32 0.0, %v4592
      %v4594 = vpop.f32.mrf.mxu0
      %4595 = vmatprep.mubr.f32.mxu0 0.0
      %4596 = vmatmul.mubr.f32.gmra.mxu0 %v4431
      %v4597 = vpop.f32.mrf.mxu0
      %v4598 = vadd.f32 0.0, %v4597
      %v4599 = vpop.f32.mrf.mxu0
      %4600 = vmatprep.mubr.f32.mxu0 0.0
      %4601 = vmatmul.mubr.f32.gmra.mxu0 %v4434
      %v4602 = vpop.f32.mrf.mxu0
      %v4603 = vadd.f32 0.0, %v4602
      %v4604 = vpop.f32.mrf.mxu0
      %4605 = vmatprep.mubr.f32.mxu0 0.0
      %4606 = vmatmul.mubr.f32.gmra.mxu0 %v4437
      %v4607 = vpop.f32.mrf.mxu0
      %v4608 = vadd.f32 0.0, %v4607
      %v4609 = vpop.f32.mrf.mxu0
      %4610 = vmatprep.mubr.f32.mxu0 0.0
      %4611 = vmatmul.mubr.f32.gmra.mxu0 %v4440
      %v4612 = vpop.f32.mrf.mxu0
      %v4613 = vadd.f32 0.0, %v4612
      %v4614 = vpop.f32.mrf.mxu0
      %4615 = vmatprep.mubr.f32.mxu0 0.0
      %4616 = vmatmul.mubr.f32.gmra.mxu0 %v4443
      %v4617 = vpop.f32.mrf.mxu0
      %v4618 = vadd.f32 0.0, %v4617
      %v4619 = vpop.f32.mrf.mxu0
      %4620 = vmatprep.mubr.f32.mxu0 0.0
      %4621 = vmatmul.mubr.f32.gmra.mxu0 %v4446
      %v4622 = vpop.f32.mrf.mxu0
      %v4623 = vadd.f32 0.0, %v4622
      %v4624 = vpop.f32.mrf.mxu0
      %4625 = vmatprep.mubr.f32.mxu0 0.0
      %4626 = vmatmul.mubr.f32.gmra.mxu0 %v4449
      %v4627 = vpop.f32.mrf.mxu0
      %v4628 = vadd.f32 0.0, %v4627
      %v4629 = vpop.f32.mrf.mxu0
      %4630 = vmatprep.mubr.f32.mxu0 0.0
      %4631 = vmatmul.mubr.f32.gmra.mxu0 %v4452
      %v4632 = vpop.f32.mrf.mxu0
      %v4633 = vadd.f32 0.0, %v4632
      %v4634 = vpop.f32.mrf.mxu0
      %4635 = vmatprep.mubr.f32.mxu0 0.0
      %4636 = vmatmul.mubr.f32.gmra.mxu0 %v4455
      %v4637 = vpop.f32.mrf.mxu0
      %v4638 = vadd.f32 0.0, %v4637
      %v4639 = vpop.f32.mrf.mxu0
      %4640 = vmatprep.mubr.f32.mxu0 0.0
      %4641 = vmatmul.mubr.f32.gmra.mxu0 %v4458
      %v4642 = vpop.f32.mrf.mxu0
      %v4643 = vadd.f32 0.0, %v4642
      %v4644 = vpop.f32.mrf.mxu0
      %4645 = vmatprep.mubr.f32.mxu0 0.0
      %4646 = vmatmul.mubr.f32.gmra.mxu0 %v4461
      %v4647 = vpop.f32.mrf.mxu0
      %v4648 = vadd.f32 0.0, %v4647
      %v4649 = vpop.f32.mrf.mxu0
      %4650 = vmatprep.mubr.f32.mxu0 0.0
      %4651 = vmatmul.mubr.f32.gmra.mxu0 %v4464
      %v4652 = vpop.f32.mrf.mxu0
      %v4653 = vadd.f32 0.0, %v4652
      %v4654 = vpop.f32.mrf.mxu0
      %4655 = vmatprep.mubr.f32.mxu0 0.0
      %4656 = vmatmul.mubr.f32.gmra.mxu0 %v4467
      %v4657 = vpop.f32.mrf.mxu0
      %v4658 = vadd.f32 0.0, %v4657
      %v4659 = vpop.f32.mrf.mxu0
      %4660 = vmatprep.mubr.f32.mxu0 0.0
      %4661 = vmatmul.mubr.f32.gmra.mxu0 %v4470
      %v4662 = vpop.f32.mrf.mxu0
      %v4663 = vadd.f32 0.0, %v4662
      %v4664 = vpop.f32.mrf.mxu0
      %4665 = vmatprep.mubr.f32.mxu0 0.0
      %4666 = vmatmul.mubr.f32.gmra.mxu0 %v4473
      %v4667 = vpop.f32.mrf.mxu0
      %v4668 = vadd.f32 0.0, %v4667
      %v4669 = vpop.f32.mrf.mxu0
      %4670 = vmatprep.mubr.f32.mxu0 0.0
      %4671 = vmatmul.mubr.f32.gmra.mxu0 %v4476
      %v4672 = vpop.f32.mrf.mxu0
      %v4673 = vadd.f32 0.0, %v4672
      %v4674 = vpop.f32.mrf.mxu0
      %4675 = vmatprep.mubr.f32.mxu0 0.0
      %4676 = vmatmul.mubr.f32.gmra.mxu0 %v4479
      %v4677 = vpop.f32.mrf.mxu0
      %v4678 = vadd.f32 0.0, %v4677
      %v4679 = vpop.f32.mrf.mxu0
      %4680 = vmatprep.mubr.f32.mxu0 0.0
      %4681 = vmatmul.mubr.f32.gmra.mxu0 %v4482
      %v4682 = vpop.f32.mrf.mxu0
      %v4683 = vadd.f32 0.0, %v4682
      %v4684 = vpop.f32.mrf.mxu0
      %4685 = vmatprep.mubr.f32.mxu0 0.0
      %4686 = vmatmul.mubr.f32.gmra.mxu0 %v4485
      %v4687 = vpop.f32.mrf.mxu0
      %v4688 = vadd.f32 0.0, %v4687
      %v4689 = vpop.f32.mrf.mxu0
      %4690 = vmatprep.mubr.f32.mxu0 0.0
      %4691 = vmatmul.mubr.f32.gmra.mxu0 %v4488
      %v4692 = vpop.f32.mrf.mxu0
      %v4693 = vadd.f32 0.0, %v4692
      %v4694 = vpop.f32.mrf.mxu0
      %4695 = vmatprep.mubr.f32.mxu0 0.0
      %4696 = vmatmul.mubr.f32.gmra.mxu0 %v4491
      %v4697 = vpop.f32.mrf.mxu0
      %v4698 = vadd.f32 0.0, %v4697
      %v4699 = vpop.f32.mrf.mxu0
      %4700 = vmatprep.mubr.f32.mxu0 0.0
      %4701 = vmatmul.mubr.f32.gmra.mxu0 %v4494
      %v4702 = vpop.f32.mrf.mxu0
      %v4703 = vadd.f32 0.0, %v4702
      %v4704 = vpop.f32.mrf.mxu0
      %4705 = vmatprep.mubr.f32.mxu0 0.0
      %4706 = vmatmul.mubr.f32.gmra.mxu0 %v4497
      %v4707 = vpop.f32.mrf.mxu0
      %v4708 = vadd.f32 0.0, %v4707
      %v4709 = vpop.f32.mrf.mxu0
      %4710 = vmatprep.mubr.f32.mxu0 0.0
      %4711 = vmatmul.mubr.f32.gmra.mxu0 %v4500
      %v4712 = vpop.f32.mrf.mxu0
      %v4713 = vadd.f32 0.0, %v4712
      %v4714 = vpop.f32.mrf.mxu0
      %4715 = vmatprep.mubr.f32.mxu0 0.0
      %4716 = vmatmul.mubr.f32.gmra.mxu0 %v4503
      %v4717 = vpop.f32.mrf.mxu0
      %v4718 = vadd.f32 0.0, %v4717
      %v4719 = vpop.f32.mrf.mxu0
      %4720 = vmatprep.mubr.f32.mxu0 0.0
      %4721 = vmatmul.mubr.f32.gmra.mxu0 %v4506
      %v4722 = vpop.f32.mrf.mxu0
      %v4723 = vadd.f32 0.0, %v4722
      %v4724 = vpop.f32.mrf.mxu0
      %4725 = vmatprep.mubr.f32.mxu0 0.0
      %4726 = vmatmul.mubr.f32.gmra.mxu0 %v4509
      %v4727 = vpop.f32.mrf.mxu0
      %v4728 = vadd.f32 0.0, %v4727
      %v4729 = vpop.f32.mrf.mxu0
      %4730 = vmatprep.mubr.f32.mxu0 0.0
      %4731 = vmatmul.mubr.f32.gmra.mxu0 %v4512
      %v4732 = vpop.f32.mrf.mxu0
      %v4733 = vadd.f32 0.0, %v4732
      %v4734 = vpop.f32.mrf.mxu0
      %4735 = vmatprep.mubr.f32.mxu0 0.0
      %4736 = vmatmul.mubr.f32.gmra.mxu0 %v4515
      %v4737 = vpop.f32.mrf.mxu0
      %v4738 = vadd.f32 0.0, %v4737
      %v4739 = vpop.f32.mrf.mxu0
      %4740 = vmatprep.mubr.f32.mxu0 0.0
      %4741 = vmatmul.mubr.f32.gmra.mxu0 %v4518
      %v4742 = vpop.f32.mrf.mxu0
      %v4743 = vadd.f32 0.0, %v4742
      %v4744 = vpop.f32.mrf.mxu0
      %4745 = vmatprep.mubr.f32.mxu0 0.0
      %4746 = vmatmul.mubr.f32.gmra.mxu0 %v4521
      %v4747 = vpop.f32.mrf.mxu0
      %v4748 = vadd.f32 0.0, %v4747
      %v4749 = vpop.f32.mrf.mxu0
      %4750 = vdwg.mxu0
      %v4751 = vsel %vm2251, %v4593, 0.0
      %v4752 = vsel %vm2252, %v4598, 0.0
      %v4753 = vsel %vm2253, %v4603, 0.0
      %v4754 = vsel %vm2254, %v4608, 0.0
      %v4755 = vsel %vm2255, %v4613, 0.0
      %v4756 = vsel %vm2256, %v4618, 0.0
      %v4757 = vsel %vm2257, %v4623, 0.0
      %v4758 = vsel %vm2258, %v4628, 0.0
      %v4759 = vsel %vm2259, %v4633, 0.0
      %v4760 = vsel %vm2260, %v4638, 0.0
      %v4761 = vsel %vm2261, %v4643, 0.0
      %v4762 = vsel %vm2262, %v4648, 0.0
      %v4763 = vsel %vm2263, %v4653, 0.0
      %v4764 = vsel %vm2264, %v4658, 0.0
      %v4765 = vsel %vm2265, %v4663, 0.0
      %v4766 = vsel %vm2266, %v4668, 0.0
      %v4767 = vsel %vm2267, %v4673, 0.0
      %v4768 = vsel %vm2268, %v4678, 0.0
      %v4769 = vsel %vm2269, %v4683, 0.0
      %v4770 = vsel %vm2270, %v4688, 0.0
      %v4771 = vsel %vm2271, %v4693, 0.0
      %v4772 = vsel %vm2272, %v4698, 0.0
      %v4773 = vsel %vm2273, %v4703, 0.0
      %v4774 = vsel %vm2274, %v4708, 0.0
      %v4775 = vsel %vm2275, %v4713, 0.0
      %v4776 = vsel %vm2276, %v4718, 0.0
      %v4777 = vsel %vm2277, %v4723, 0.0
      %v4778 = vsel %vm2278, %v4728, 0.0
      %v4779 = vsel %vm2279, %v4733, 0.0
      %v4780 = vsel %vm2280, %v4738, 0.0
      %v4781 = vsel %vm2281, %v4743, 0.0
      %v4782 = vsel %vm2282, %v4748, 0.0
      %v4783 = vadd.f32 %v4361, %v4751
      %v4784 = vadd.f32 %v4362, %v4752
      %v4785 = vadd.f32 %v4363, %v4753
      %v4786 = vadd.f32 %v4364, %v4754
      %v4787 = vadd.f32 %v4365, %v4755
      %v4788 = vadd.f32 %v4366, %v4756
      %v4789 = vadd.f32 %v4367, %v4757
      %v4790 = vadd.f32 %v4368, %v4758
      %v4791 = vadd.f32 %v4369, %v4759
      %v4792 = vadd.f32 %v4370, %v4760
      %v4793 = vadd.f32 %v4371, %v4761
      %v4794 = vadd.f32 %v4372, %v4762
      %v4795 = vadd.f32 %v4373, %v4763
      %v4796 = vadd.f32 %v4374, %v4764
      %v4797 = vadd.f32 %v4375, %v4765
      %v4798 = vadd.f32 %v4376, %v4766
      %v4799 = vadd.f32 %v4377, %v4767
      %v4800 = vadd.f32 %v4378, %v4768
      %v4801 = vadd.f32 %v4379, %v4769
      %v4802 = vadd.f32 %v4380, %v4770
      %v4803 = vadd.f32 %v4381, %v4771
      %v4804 = vadd.f32 %v4382, %v4772
      %v4805 = vadd.f32 %v4383, %v4773
      %v4806 = vadd.f32 %v4384, %v4774
      %v4807 = vadd.f32 %v4385, %v4775
      %v4808 = vadd.f32 %v4386, %v4776
      %v4809 = vadd.f32 %v4387, %v4777
      %v4810 = vadd.f32 %v4388, %v4778
      %v4811 = vadd.f32 %v4389, %v4779
      %v4812 = vadd.f32 %v4390, %v4780
      %v4813 = vadd.f32 %v4391, %v4781
      %v4814 = vadd.f32 %v4392, %v4782
      %v4815 = vld [vmem:[%s4] sm:$0x1]
      %v4817 = vlaneseq
      %v4818 = vshrl.u32 %v4817, 7
      %v4819 = vsub.s32 0, %v4818
      %v4820 = vrot.slane %v4815, %v4819
      %v4822 = vadd.f32 %v4783, %v4820
      %v4823 = vadd.f32 %v4784, %v4820
      %v4824 = vadd.f32 %v4785, %v4820
      %v4825 = vadd.f32 %v4786, %v4820
      %v4826 = vadd.f32 %v4787, %v4820
      %v4827 = vadd.f32 %v4788, %v4820
      %v4828 = vadd.f32 %v4789, %v4820
      %v4829 = vadd.f32 %v4790, %v4820
      %v4830 = vadd.f32 %v4791, %v4820
      %v4831 = vadd.f32 %v4792, %v4820
      %v4832 = vadd.f32 %v4793, %v4820
      %v4833 = vadd.f32 %v4794, %v4820
      %v4834 = vadd.f32 %v4795, %v4820
      %v4835 = vadd.f32 %v4796, %v4820
      %v4836 = vadd.f32 %v4797, %v4820
      %v4837 = vadd.f32 %v4798, %v4820
      %v4838 = vadd.f32 %v4799, %v4820
      %v4839 = vadd.f32 %v4800, %v4820
      %v4840 = vadd.f32 %v4801, %v4820
      %v4841 = vadd.f32 %v4802, %v4820
      %v4842 = vadd.f32 %v4803, %v4820
      %v4843 = vadd.f32 %v4804, %v4820
      %v4844 = vadd.f32 %v4805, %v4820
      %v4845 = vadd.f32 %v4806, %v4820
      %v4846 = vadd.f32 %v4807, %v4820
      %v4847 = vadd.f32 %v4808, %v4820
      %v4848 = vadd.f32 %v4809, %v4820
      %v4849 = vadd.f32 %v4810, %v4820
      %v4850 = vadd.f32 %v4811, %v4820
      %v4851 = vadd.f32 %v4812, %v4820
      %v4852 = vadd.f32 %v4813, %v4820
      %v4853 = vadd.f32 %v4814, %v4820
      %v4854 = vxor.u32 %v4822, 2147483648
      %v4855 = vxor.u32 %v4823, 2147483648
      %v4856 = vxor.u32 %v4824, 2147483648
      %v4857 = vxor.u32 %v4825, 2147483648
      %v4858 = vxor.u32 %v4826, 2147483648
      %v4859 = vxor.u32 %v4827, 2147483648
      %v4860 = vxor.u32 %v4828, 2147483648
      %v4861 = vxor.u32 %v4829, 2147483648
      %v4862 = vxor.u32 %v4830, 2147483648
      %v4863 = vxor.u32 %v4831, 2147483648
      %v4864 = vxor.u32 %v4832, 2147483648
      %v4865 = vxor.u32 %v4833, 2147483648
      %v4866 = vxor.u32 %v4834, 2147483648
      %v4867 = vxor.u32 %v4835, 2147483648
      %v4868 = vxor.u32 %v4836, 2147483648
      %v4869 = vxor.u32 %v4837, 2147483648
      %v4870 = vxor.u32 %v4838, 2147483648
      %v4871 = vxor.u32 %v4839, 2147483648
      %v4872 = vxor.u32 %v4840, 2147483648
      %v4873 = vxor.u32 %v4841, 2147483648
      %v4874 = vxor.u32 %v4842, 2147483648
      %v4875 = vxor.u32 %v4843, 2147483648
      %v4876 = vxor.u32 %v4844, 2147483648
      %v4877 = vxor.u32 %v4845, 2147483648
      %v4878 = vxor.u32 %v4846, 2147483648
      %v4879 = vxor.u32 %v4847, 2147483648
      %v4880 = vxor.u32 %v4848, 2147483648
      %v4881 = vxor.u32 %v4849, 2147483648
      %v4882 = vxor.u32 %v4850, 2147483648
      %v4883 = vxor.u32 %v4851, 2147483648
      %v4884 = vxor.u32 %v4852, 2147483648
      %v4885 = vxor.u32 %v4853, 2147483648
      %v4886 = vmul.f32 %v4854, 1.442695
      %v4887 = vpow.pop %v4886
      %v4888 = vmul.f32 %v4855, 1.442695
      %v4889 = vpow.pop %v4888
      %v4890 = vmul.f32 %v4856, 1.442695
      %v4891 = vpow.pop %v4890
      %v4892 = vmul.f32 %v4857, 1.442695
      %v4893 = vpow.pop %v4892
      %v4894 = vmul.f32 %v4858, 1.442695
      %v4895 = vpow.pop %v4894
      %v4896 = vmul.f32 %v4859, 1.442695
      %v4897 = vpow.pop %v4896
      %v4898 = vmul.f32 %v4860, 1.442695
      %v4899 = vpow.pop %v4898
      %v4900 = vmul.f32 %v4861, 1.442695
      %v4901 = vpow.pop %v4900
      %v4902 = vmul.f32 %v4862, 1.442695
      %v4903 = vpow.pop %v4902
      %v4904 = vmul.f32 %v4863, 1.442695
      %v4905 = vpow.pop %v4904
      %v4906 = vmul.f32 %v4864, 1.442695
      %v4907 = vpow.pop %v4906
      %v4908 = vmul.f32 %v4865, 1.442695
      %v4909 = vpow.pop %v4908
      %v4910 = vmul.f32 %v4866, 1.442695
      %v4911 = vpow.pop %v4910
      %v4912 = vmul.f32 %v4867, 1.442695
      %v4913 = vpow.pop %v4912
      %v4914 = vmul.f32 %v4868, 1.442695
      %v4915 = vpow.pop %v4914
      %v4916 = vmul.f32 %v4869, 1.442695
      %v4917 = vpow.pop %v4916
      %v4918 = vmul.f32 %v4870, 1.442695
      %v4919 = vpow.pop %v4918
      %v4920 = vmul.f32 %v4871, 1.442695
      %v4921 = vpow.pop %v4920
      %v4922 = vmul.f32 %v4872, 1.442695
      %v4923 = vpow.pop %v4922
      %v4924 = vmul.f32 %v4873, 1.442695
      %v4925 = vpow.pop %v4924
      %v4926 = vmul.f32 %v4874, 1.442695
      %v4927 = vpow.pop %v4926
      %v4928 = vmul.f32 %v4875, 1.442695
      %v4929 = vpow.pop %v4928
      %v4930 = vmul.f32 %v4876, 1.442695
      %v4931 = vpow.pop %v4930
      %v4932 = vmul.f32 %v4877, 1.442695
      %v4933 = vpow.pop %v4932
      %v4934 = vmul.f32 %v4878, 1.442695
      %v4935 = vpow.pop %v4934
      %v4936 = vmul.f32 %v4879, 1.442695
      %v4937 = vpow.pop %v4936
      %v4938 = vmul.f32 %v4880, 1.442695
      %v4939 = vpow.pop %v4938
      %v4940 = vmul.f32 %v4881, 1.442695
      %v4941 = vpow.pop %v4940
      %v4942 = vmul.f32 %v4882, 1.442695
      %v4943 = vpow.pop %v4942
      %v4944 = vmul.f32 %v4883, 1.442695
      %v4945 = vpow.pop %v4944
      %v4946 = vmul.f32 %v4884, 1.442695
      %v4947 = vpow.pop %v4946
      %v4948 = vmul.f32 %v4885, 1.442695
      %v4949 = vpow.pop %v4948
      %v4950 = vadd.f32 %v4887, 1.0
      %v4951 = vadd.f32 %v4889, 1.0
      %v4952 = vadd.f32 %v4891, 1.0
      %v4953 = vadd.f32 %v4893, 1.0
      %v4954 = vadd.f32 %v4895, 1.0
      %v4955 = vadd.f32 %v4897, 1.0
      %v4956 = vadd.f32 %v4899, 1.0
      %v4957 = vadd.f32 %v4901, 1.0
      %v4958 = vadd.f32 %v4903, 1.0
      %v4959 = vadd.f32 %v4905, 1.0
      %v4960 = vadd.f32 %v4907, 1.0
      %v4961 = vadd.f32 %v4909, 1.0
      %v4962 = vadd.f32 %v4911, 1.0
      %v4963 = vadd.f32 %v4913, 1.0
      %v4964 = vadd.f32 %v4915, 1.0
      %v4965 = vadd.f32 %v4917, 1.0
      %v4966 = vadd.f32 %v4919, 1.0
      %v4967 = vadd.f32 %v4921, 1.0
      %v4968 = vadd.f32 %v4923, 1.0
      %v4969 = vadd.f32 %v4925, 1.0
      %v4970 = vadd.f32 %v4927, 1.0
      %v4971 = vadd.f32 %v4929, 1.0
      %v4972 = vadd.f32 %v4931, 1.0
      %v4973 = vadd.f32 %v4933, 1.0
      %v4974 = vadd.f32 %v4935, 1.0
      %v4975 = vadd.f32 %v4937, 1.0
      %v4976 = vadd.f32 %v4939, 1.0
      %v4977 = vadd.f32 %v4941, 1.0
      %v4978 = vadd.f32 %v4943, 1.0
      %v4979 = vadd.f32 %v4945, 1.0
      %v4980 = vadd.f32 %v4947, 1.0
      %v4981 = vadd.f32 %v4949, 1.0
      %v4982 = vrcp.pop %v4950
      %v4983 = vmul.f32 1.0, %v4982
      %v4984 = vrcp.pop %v4951
      %v4985 = vmul.f32 1.0, %v4984
      %v4986 = vrcp.pop %v4952
      %v4987 = vmul.f32 1.0, %v4986
      %v4988 = vrcp.pop %v4953
      %v4989 = vmul.f32 1.0, %v4988
      %v4990 = vrcp.pop %v4954
      %v4991 = vmul.f32 1.0, %v4990
      %v4992 = vrcp.pop %v4955
      %v4993 = vmul.f32 1.0, %v4992
      %v4994 = vrcp.pop %v4956
      %v4995 = vmul.f32 1.0, %v4994
      %v4996 = vrcp.pop %v4957
      %v4997 = vmul.f32 1.0, %v4996
      %v4998 = vrcp.pop %v4958
      %v4999 = vmul.f32 1.0, %v4998
      %v5000 = vrcp.pop %v4959
      %v5001 = vmul.f32 1.0, %v5000
      %v5002 = vrcp.pop %v4960
      %v5003 = vmul.f32 1.0, %v5002
      %v5004 = vrcp.pop %v4961
      %v5005 = vmul.f32 1.0, %v5004
      %v5006 = vrcp.pop %v4962
      %v5007 = vmul.f32 1.0, %v5006
      %v5008 = vrcp.pop %v4963
      %v5009 = vmul.f32 1.0, %v5008
      %v5010 = vrcp.pop %v4964
      %v5011 = vmul.f32 1.0, %v5010
      %v5012 = vrcp.pop %v4965
      %v5013 = vmul.f32 1.0, %v5012
      %v5014 = vrcp.pop %v4966
      %v5015 = vmul.f32 1.0, %v5014
      %v5016 = vrcp.pop %v4967
      %v5017 = vmul.f32 1.0, %v5016
      %v5018 = vrcp.pop %v4968
      %v5019 = vmul.f32 1.0, %v5018
      %v5020 = vrcp.pop %v4969
      %v5021 = vmul.f32 1.0, %v5020
      %v5022 = vrcp.pop %v4970
      %v5023 = vmul.f32 1.0, %v5022
      %v5024 = vrcp.pop %v4971
      %v5025 = vmul.f32 1.0, %v5024
      %v5026 = vrcp.pop %v4972
      %v5027 = vmul.f32 1.0, %v5026
      %v5028 = vrcp.pop %v4973
      %v5029 = vmul.f32 1.0, %v5028
      %v5030 = vrcp.pop %v4974
      %v5031 = vmul.f32 1.0, %v5030
      %v5032 = vrcp.pop %v4975
      %v5033 = vmul.f32 1.0, %v5032
      %v5034 = vrcp.pop %v4976
      %v5035 = vmul.f32 1.0, %v5034
      %v5036 = vrcp.pop %v4977
      %v5037 = vmul.f32 1.0, %v5036
      %v5038 = vrcp.pop %v4978
      %v5039 = vmul.f32 1.0, %v5038
      %v5040 = vrcp.pop %v4979
      %v5041 = vmul.f32 1.0, %v5040
      %v5042 = vrcp.pop %v4980
      %v5043 = vmul.f32 1.0, %v5042
      %v5044 = vrcp.pop %v4981
      %v5045 = vmul.f32 1.0, %v5044
      %v5046 = vmul.f32 %v4822, %v4983
      %v5047 = vmul.f32 %v4823, %v4985
      %v5048 = vmul.f32 %v4824, %v4987
      %v5049 = vmul.f32 %v4825, %v4989
      %v5050 = vmul.f32 %v4826, %v4991
      %v5051 = vmul.f32 %v4827, %v4993
      %v5052 = vmul.f32 %v4828, %v4995
      %v5053 = vmul.f32 %v4829, %v4997
      %v5054 = vmul.f32 %v4830, %v4999
      %v5055 = vmul.f32 %v4831, %v5001
      %v5056 = vmul.f32 %v4832, %v5003
      %v5057 = vmul.f32 %v4833, %v5005
      %v5058 = vmul.f32 %v4834, %v5007
      %v5059 = vmul.f32 %v4835, %v5009
      %v5060 = vmul.f32 %v4836, %v5011
      %v5061 = vmul.f32 %v4837, %v5013
      %v5062 = vmul.f32 %v4838, %v5015
      %v5063 = vmul.f32 %v4839, %v5017
      %v5064 = vmul.f32 %v4840, %v5019
      %v5065 = vmul.f32 %v4841, %v5021
      %v5066 = vmul.f32 %v4842, %v5023
      %v5067 = vmul.f32 %v4843, %v5025
      %v5068 = vmul.f32 %v4844, %v5027
      %v5069 = vmul.f32 %v4845, %v5029
      %v5070 = vmul.f32 %v4846, %v5031
      %v5071 = vmul.f32 %v4847, %v5033
      %v5072 = vmul.f32 %v4848, %v5035
      %v5073 = vmul.f32 %v4849, %v5037
      %v5074 = vmul.f32 %v4850, %v5039
      %v5075 = vmul.f32 %v4851, %v5041
      %v5076 = vmul.f32 %v4852, %v5043
      %v5077 = vmul.f32 %v4853, %v5045
      %v5078 = vsel %vm400, %v5046, 0.0
      %v5079 = vsel %vm400, %v5047, 0.0
      %v5080 = vadd.f32 %v5078, %v5079
      %v5081 = vsel %vm400, %v5048, 0.0
      %v5082 = vadd.f32 %v5080, %v5081
      %v5083 = vsel %vm400, %v5049, 0.0
      %v5084 = vadd.f32 %v5082, %v5083
      %v5085 = vsel %vm400, %v5050, 0.0
      %v5086 = vadd.f32 %v5084, %v5085
      %v5087 = vsel %vm400, %v5051, 0.0
      %v5088 = vadd.f32 %v5086, %v5087
      %v5089 = vsel %vm400, %v5052, 0.0
      %v5090 = vadd.f32 %v5088, %v5089
      %v5091 = vsel %vm400, %v5053, 0.0
      %v5092 = vadd.f32 %v5090, %v5091
      %v5093 = vsel %vm400, %v5054, 0.0
      %v5094 = vadd.f32 %v5092, %v5093
      %v5095 = vsel %vm400, %v5055, 0.0
      %v5096 = vadd.f32 %v5094, %v5095
      %v5097 = vsel %vm400, %v5056, 0.0
      %v5098 = vadd.f32 %v5096, %v5097
      %v5099 = vsel %vm400, %v5057, 0.0
      %v5100 = vadd.f32 %v5098, %v5099
      %v5101 = vsel %vm400, %v5058, 0.0
      %v5102 = vadd.f32 %v5100, %v5101
      %v5103 = vsel %vm400, %v5059, 0.0
      %v5104 = vadd.f32 %v5102, %v5103
      %v5105 = vsel %vm400, %v5060, 0.0
      %v5106 = vadd.f32 %v5104, %v5105
      %v5107 = vsel %vm400, %v5061, 0.0
      %v5108 = vadd.f32 %v5106, %v5107
      %v5109 = vsel %vm400, %v5062, 0.0
      %v5110 = vadd.f32 %v5108, %v5109
      %v5111 = vsel %vm400, %v5063, 0.0
      %v5112 = vadd.f32 %v5110, %v5111
      %v5113 = vsel %vm400, %v5064, 0.0
      %v5114 = vadd.f32 %v5112, %v5113
      %v5115 = vsel %vm400, %v5065, 0.0
      %v5116 = vadd.f32 %v5114, %v5115
      %v5117 = vsel %vm400, %v5066, 0.0
      %v5118 = vadd.f32 %v5116, %v5117
      %v5119 = vsel %vm400, %v5067, 0.0
      %v5120 = vadd.f32 %v5118, %v5119
      %v5121 = vsel %vm400, %v5068, 0.0
      %v5122 = vadd.f32 %v5120, %v5121
      %v5123 = vsel %vm400, %v5069, 0.0
      %v5124 = vadd.f32 %v5122, %v5123
      %v5125 = vsel %vm400, %v5070, 0.0
      %v5126 = vadd.f32 %v5124, %v5125
      %v5127 = vsel %vm400, %v5071, 0.0
      %v5128 = vadd.f32 %v5126, %v5127
      %v5129 = vsel %vm400, %v5072, 0.0
      %v5130 = vadd.f32 %v5128, %v5129
      %v5131 = vsel %vm400, %v5073, 0.0
      %v5132 = vadd.f32 %v5130, %v5131
      %v5133 = vsel %vm400, %v5074, 0.0
      %v5134 = vadd.f32 %v5132, %v5133
      %v5135 = vsel %vm400, %v5075, 0.0
      %v5136 = vadd.f32 %v5134, %v5135
      %v5137 = vsel %vm400, %v5076, 0.0
      %v5138 = vadd.f32 %v5136, %v5137
      %v5139 = vsel %vm400, %v5077, 0.0
      %v5140 = vadd.f32 %v5138, %v5139
      %v5141 = vrot.slane %v5140, 4
      %v5142 = vadd.f32 %v5140, %v5141
      %v5143 = vrot.slane %v5142, 2
      %v5144 = vadd.f32 %v5142, %v5143
      %v5145 = vrot.slane %v5144, 1
      %v5146 = vadd.f32 %v5144, %v5145
      %v5147 = vmul.f32 %v5146, 0.00390625
      %v5148 = vsub.f32 %v5046, %v5147
      %v5149 = vsub.f32 %v5047, %v5147
      %v5150 = vsub.f32 %v5048, %v5147
      %v5151 = vsub.f32 %v5049, %v5147
      %v5152 = vsub.f32 %v5050, %v5147
      %v5153 = vsub.f32 %v5051, %v5147
      %v5154 = vsub.f32 %v5052, %v5147
      %v5155 = vsub.f32 %v5053, %v5147
      %v5156 = vsub.f32 %v5054, %v5147
      %v5157 = vsub.f32 %v5055, %v5147
      %v5158 = vsub.f32 %v5056, %v5147
      %v5159 = vsub.f32 %v5057, %v5147
      %v5160 = vsub.f32 %v5058, %v5147
      %v5161 = vsub.f32 %v5059, %v5147
      %v5162 = vsub.f32 %v5060, %v5147
      %v5163 = vsub.f32 %v5061, %v5147
      %v5164 = vsub.f32 %v5062, %v5147
      %v5165 = vsub.f32 %v5063, %v5147
      %v5166 = vsub.f32 %v5064, %v5147
      %v5167 = vsub.f32 %v5065, %v5147
      %v5168 = vsub.f32 %v5066, %v5147
      %v5169 = vsub.f32 %v5067, %v5147
      %v5170 = vsub.f32 %v5068, %v5147
      %v5171 = vsub.f32 %v5069, %v5147
      %v5172 = vsub.f32 %v5070, %v5147
      %v5173 = vsub.f32 %v5071, %v5147
      %v5174 = vsub.f32 %v5072, %v5147
      %v5175 = vsub.f32 %v5073, %v5147
      %v5176 = vsub.f32 %v5074, %v5147
      %v5177 = vsub.f32 %v5075, %v5147
      %v5178 = vsub.f32 %v5076, %v5147
      %v5179 = vsub.f32 %v5077, %v5147
      %v5180 = vmul.f32 %v5148, %v5148
      %v5181 = vmul.f32 %v5149, %v5149
      %v5182 = vmul.f32 %v5150, %v5150
      %v5183 = vmul.f32 %v5151, %v5151
      %v5184 = vmul.f32 %v5152, %v5152
      %v5185 = vmul.f32 %v5153, %v5153
      %v5186 = vmul.f32 %v5154, %v5154
      %v5187 = vmul.f32 %v5155, %v5155
      %v5188 = vmul.f32 %v5156, %v5156
      %v5189 = vmul.f32 %v5157, %v5157
      %v5190 = vmul.f32 %v5158, %v5158
      %v5191 = vmul.f32 %v5159, %v5159
      %v5192 = vmul.f32 %v5160, %v5160
      %v5193 = vmul.f32 %v5161, %v5161
      %v5194 = vmul.f32 %v5162, %v5162
      %v5195 = vmul.f32 %v5163, %v5163
      %v5196 = vmul.f32 %v5164, %v5164
      %v5197 = vmul.f32 %v5165, %v5165
      %v5198 = vmul.f32 %v5166, %v5166
      %v5199 = vmul.f32 %v5167, %v5167
      %v5200 = vmul.f32 %v5168, %v5168
      %v5201 = vmul.f32 %v5169, %v5169
      %v5202 = vmul.f32 %v5170, %v5170
      %v5203 = vmul.f32 %v5171, %v5171
      %v5204 = vmul.f32 %v5172, %v5172
      %v5205 = vmul.f32 %v5173, %v5173
      %v5206 = vmul.f32 %v5174, %v5174
      %v5207 = vmul.f32 %v5175, %v5175
      %v5208 = vmul.f32 %v5176, %v5176
      %v5209 = vmul.f32 %v5177, %v5177
      %v5210 = vmul.f32 %v5178, %v5178
      %v5211 = vmul.f32 %v5179, %v5179
      %v5212 = vsel %vm400, %v5180, 0.0
      %v5213 = vsel %vm400, %v5181, 0.0
      %v5214 = vadd.f32 %v5212, %v5213
      %v5215 = vsel %vm400, %v5182, 0.0
      %v5216 = vadd.f32 %v5214, %v5215
      %v5217 = vsel %vm400, %v5183, 0.0
      %v5218 = vadd.f32 %v5216, %v5217
      %v5219 = vsel %vm400, %v5184, 0.0
      %v5220 = vadd.f32 %v5218, %v5219
      %v5221 = vsel %vm400, %v5185, 0.0
      %v5222 = vadd.f32 %v5220, %v5221
      %v5223 = vsel %vm400, %v5186, 0.0
      %v5224 = vadd.f32 %v5222, %v5223
      %v5225 = vsel %vm400, %v5187, 0.0
      %v5226 = vadd.f32 %v5224, %v5225
      %v5227 = vsel %vm400, %v5188, 0.0
      %v5228 = vadd.f32 %v5226, %v5227
      %v5229 = vsel %vm400, %v5189, 0.0
      %v5230 = vadd.f32 %v5228, %v5229
      %v5231 = vsel %vm400, %v5190, 0.0
      %v5232 = vadd.f32 %v5230, %v5231
      %v5233 = vsel %vm400, %v5191, 0.0
      %v5234 = vadd.f32 %v5232, %v5233
      %v5235 = vsel %vm400, %v5192, 0.0
      %v5236 = vadd.f32 %v5234, %v5235
      %v5237 = vsel %vm400, %v5193, 0.0
      %v5238 = vadd.f32 %v5236, %v5237
      %v5239 = vsel %vm400, %v5194, 0.0
      %v5240 = vadd.f32 %v5238, %v5239
      %v5241 = vsel %vm400, %v5195, 0.0
      %v5242 = vadd.f32 %v5240, %v5241
      %v5243 = vsel %vm400, %v5196, 0.0
      %v5244 = vadd.f32 %v5242, %v5243
      %v5245 = vsel %vm400, %v5197, 0.0
      %v5246 = vadd.f32 %v5244, %v5245
      %v5247 = vsel %vm400, %v5198, 0.0
      %v5248 = vadd.f32 %v5246, %v5247
      %v5249 = vsel %vm400, %v5199, 0.0
      %v5250 = vadd.f32 %v5248, %v5249
      %v5251 = vsel %vm400, %v5200, 0.0
      %v5252 = vadd.f32 %v5250, %v5251
      %v5253 = vsel %vm400, %v5201, 0.0
      %v5254 = vadd.f32 %v5252, %v5253
      %v5255 = vsel %vm400, %v5202, 0.0
      %v5256 = vadd.f32 %v5254, %v5255
      %v5257 = vsel %vm400, %v5203, 0.0
      %v5258 = vadd.f32 %v5256, %v5257
      %v5259 = vsel %vm400, %v5204, 0.0
      %v5260 = vadd.f32 %v5258, %v5259
      %v5261 = vsel %vm400, %v5205, 0.0
      %v5262 = vadd.f32 %v5260, %v5261
      %v5263 = vsel %vm400, %v5206, 0.0
      %v5264 = vadd.f32 %v5262, %v5263
      %v5265 = vsel %vm400, %v5207, 0.0
      %v5266 = vadd.f32 %v5264, %v5265
      %v5267 = vsel %vm400, %v5208, 0.0
      %v5268 = vadd.f32 %v5266, %v5267
      %v5269 = vsel %vm400, %v5209, 0.0
      %v5270 = vadd.f32 %v5268, %v5269
      %v5271 = vsel %vm400, %v5210, 0.0
      %v5272 = vadd.f32 %v5270, %v5271
      %v5273 = vsel %vm400, %v5211, 0.0
      %v5274 = vadd.f32 %v5272, %v5273
      %v5275 = vrot.slane %v5274, 4
      %v5276 = vadd.f32 %v5274, %v5275
      %v5277 = vrot.slane %v5276, 2
      %v5278 = vadd.f32 %v5276, %v5277
      %v5279 = vrot.slane %v5278, 1
      %v5280 = vadd.f32 %v5278, %v5279
      %v5281 = vmul.f32 %v5280, 0.003921569
      %v5282 = vadd.f32 %v5281, 0.0001
      %v5283 = vmul.f32 %v5282, 4.0
      %v5284 = vrcp.pop %v5283
      %v5285 = vmul.f32 %v5180, %v5284
      %v5286 = vmul.f32 %v5181, %v5284
      %v5287 = vmul.f32 %v5182, %v5284
      %v5288 = vmul.f32 %v5183, %v5284
      %v5289 = vmul.f32 %v5184, %v5284
      %v5290 = vmul.f32 %v5185, %v5284
      %v5291 = vmul.f32 %v5186, %v5284
      %v5292 = vmul.f32 %v5187, %v5284
      %v5293 = vmul.f32 %v5188, %v5284
      %v5294 = vmul.f32 %v5189, %v5284
      %v5295 = vmul.f32 %v5190, %v5284
      %v5296 = vmul.f32 %v5191, %v5284
      %v5297 = vmul.f32 %v5192, %v5284
      %v5298 = vmul.f32 %v5193, %v5284
      %v5299 = vmul.f32 %v5194, %v5284
      %v5300 = vmul.f32 %v5195, %v5284
      %v5301 = vmul.f32 %v5196, %v5284
      %v5302 = vmul.f32 %v5197, %v5284
      %v5303 = vmul.f32 %v5198, %v5284
      %v5304 = vmul.f32 %v5199, %v5284
      %v5305 = vmul.f32 %v5200, %v5284
      %v5306 = vmul.f32 %v5201, %v5284
      %v5307 = vmul.f32 %v5202, %v5284
      %v5308 = vmul.f32 %v5203, %v5284
      %v5309 = vmul.f32 %v5204, %v5284
      %v5310 = vmul.f32 %v5205, %v5284
      %v5311 = vmul.f32 %v5206, %v5284
      %v5312 = vmul.f32 %v5207, %v5284
      %v5313 = vmul.f32 %v5208, %v5284
      %v5314 = vmul.f32 %v5209, %v5284
      %v5315 = vmul.f32 %v5210, %v5284
      %v5316 = vmul.f32 %v5211, %v5284
      %v5317 = vadd.f32 %v5285, 0.5
      %v5318 = vadd.f32 %v5286, 0.5
      %v5319 = vadd.f32 %v5287, 0.5
      %v5320 = vadd.f32 %v5288, 0.5
      %v5321 = vadd.f32 %v5289, 0.5
      %v5322 = vadd.f32 %v5290, 0.5
      %v5323 = vadd.f32 %v5291, 0.5
      %v5324 = vadd.f32 %v5292, 0.5
      %v5325 = vadd.f32 %v5293, 0.5
      %v5326 = vadd.f32 %v5294, 0.5
      %v5327 = vadd.f32 %v5295, 0.5
      %v5328 = vadd.f32 %v5296, 0.5
      %v5329 = vadd.f32 %v5297, 0.5
      %v5330 = vadd.f32 %v5298, 0.5
      %v5331 = vadd.f32 %v5299, 0.5
      %v5332 = vadd.f32 %v5300, 0.5
      %v5333 = vadd.f32 %v5301, 0.5
      %v5334 = vadd.f32 %v5302, 0.5
      %v5335 = vadd.f32 %v5303, 0.5
      %v5336 = vadd.f32 %v5304, 0.5
      %v5337 = vadd.f32 %v5305, 0.5
      %v5338 = vadd.f32 %v5306, 0.5
      %v5339 = vadd.f32 %v5307, 0.5
      %v5340 = vadd.f32 %v5308, 0.5
      %v5341 = vadd.f32 %v5309, 0.5
      %v5342 = vadd.f32 %v5310, 0.5
      %v5343 = vadd.f32 %v5311, 0.5
      %v5344 = vadd.f32 %v5312, 0.5
      %v5345 = vadd.f32 %v5313, 0.5
      %v5346 = vadd.f32 %v5314, 0.5
      %v5347 = vadd.f32 %v5315, 0.5
      %v5348 = vadd.f32 %v5316, 0.5
      %v5349 = vxor.u32 %v5317, 2147483648
      %v5350 = vxor.u32 %v5318, 2147483648
      %v5351 = vxor.u32 %v5319, 2147483648
      %v5352 = vxor.u32 %v5320, 2147483648
      %v5353 = vxor.u32 %v5321, 2147483648
      %v5354 = vxor.u32 %v5322, 2147483648
      %v5355 = vxor.u32 %v5323, 2147483648
      %v5356 = vxor.u32 %v5324, 2147483648
      %v5357 = vxor.u32 %v5325, 2147483648
      %v5358 = vxor.u32 %v5326, 2147483648
      %v5359 = vxor.u32 %v5327, 2147483648
      %v5360 = vxor.u32 %v5328, 2147483648
      %v5361 = vxor.u32 %v5329, 2147483648
      %v5362 = vxor.u32 %v5330, 2147483648
      %v5363 = vxor.u32 %v5331, 2147483648
      %v5364 = vxor.u32 %v5332, 2147483648
      %v5365 = vxor.u32 %v5333, 2147483648
      %v5366 = vxor.u32 %v5334, 2147483648
      %v5367 = vxor.u32 %v5335, 2147483648
      %v5368 = vxor.u32 %v5336, 2147483648
      %v5369 = vxor.u32 %v5337, 2147483648
      %v5370 = vxor.u32 %v5338, 2147483648
      %v5371 = vxor.u32 %v5339, 2147483648
      %v5372 = vxor.u32 %v5340, 2147483648
      %v5373 = vxor.u32 %v5341, 2147483648
      %v5374 = vxor.u32 %v5342, 2147483648
      %v5375 = vxor.u32 %v5343, 2147483648
      %v5376 = vxor.u32 %v5344, 2147483648
      %v5377 = vxor.u32 %v5345, 2147483648
      %v5378 = vxor.u32 %v5346, 2147483648
      %v5379 = vxor.u32 %v5347, 2147483648
      %v5380 = vxor.u32 %v5348, 2147483648
      %v5381 = vmul.f32 %v5349, 1.442695
      %v5382 = vpow.pop %v5381
      %v5383 = vmul.f32 %v5350, 1.442695
      %v5384 = vpow.pop %v5383
      %v5385 = vmul.f32 %v5351, 1.442695
      %v5386 = vpow.pop %v5385
      %v5387 = vmul.f32 %v5352, 1.442695
      %v5388 = vpow.pop %v5387
      %v5389 = vmul.f32 %v5353, 1.442695
      %v5390 = vpow.pop %v5389
      %v5391 = vmul.f32 %v5354, 1.442695
      %v5392 = vpow.pop %v5391
      %v5393 = vmul.f32 %v5355, 1.442695
      %v5394 = vpow.pop %v5393
      %v5395 = vmul.f32 %v5356, 1.442695
      %v5396 = vpow.pop %v5395
      %v5397 = vmul.f32 %v5357, 1.442695
      %v5398 = vpow.pop %v5397
      %v5399 = vmul.f32 %v5358, 1.442695
      %v5400 = vpow.pop %v5399
      %v5401 = vmul.f32 %v5359, 1.442695
      %v5402 = vpow.pop %v5401
      %v5403 = vmul.f32 %v5360, 1.442695
      %v5404 = vpow.pop %v5403
      %v5405 = vmul.f32 %v5361, 1.442695
      %v5406 = vpow.pop %v5405
      %v5407 = vmul.f32 %v5362, 1.442695
      %v5408 = vpow.pop %v5407
      %v5409 = vmul.f32 %v5363, 1.442695
      %v5410 = vpow.pop %v5409
      %v5411 = vmul.f32 %v5364, 1.442695
      %v5412 = vpow.pop %v5411
      %v5413 = vmul.f32 %v5365, 1.442695
      %v5414 = vpow.pop %v5413
      %v5415 = vmul.f32 %v5366, 1.442695
      %v5416 = vpow.pop %v5415
      %v5417 = vmul.f32 %v5367, 1.442695
      %v5418 = vpow.pop %v5417
      %v5419 = vmul.f32 %v5368, 1.442695
      %v5420 = vpow.pop %v5419
      %v5421 = vmul.f32 %v5369, 1.442695
      %v5422 = vpow.pop %v5421
      %v5423 = vmul.f32 %v5370, 1.442695
      %v5424 = vpow.pop %v5423
      %v5425 = vmul.f32 %v5371, 1.442695
      %v5426 = vpow.pop %v5425
      %v5427 = vmul.f32 %v5372, 1.442695
      %v5428 = vpow.pop %v5427
      %v5429 = vmul.f32 %v5373, 1.442695
      %v5430 = vpow.pop %v5429
      %v5431 = vmul.f32 %v5374, 1.442695
      %v5432 = vpow.pop %v5431
      %v5433 = vmul.f32 %v5375, 1.442695
      %v5434 = vpow.pop %v5433
      %v5435 = vmul.f32 %v5376, 1.442695
      %v5436 = vpow.pop %v5435
      %v5437 = vmul.f32 %v5377, 1.442695
      %v5438 = vpow.pop %v5437
      %v5439 = vmul.f32 %v5378, 1.442695
      %v5440 = vpow.pop %v5439
      %v5441 = vmul.f32 %v5379, 1.442695
      %v5442 = vpow.pop %v5441
      %v5443 = vmul.f32 %v5380, 1.442695
      %v5444 = vpow.pop %v5443
      %v5445 = vadd.f32 %v5382, 1.0
      %v5446 = vadd.f32 %v5384, 1.0
      %v5447 = vadd.f32 %v5386, 1.0
      %v5448 = vadd.f32 %v5388, 1.0
      %v5449 = vadd.f32 %v5390, 1.0
      %v5450 = vadd.f32 %v5392, 1.0
      %v5451 = vadd.f32 %v5394, 1.0
      %v5452 = vadd.f32 %v5396, 1.0
      %v5453 = vadd.f32 %v5398, 1.0
      %v5454 = vadd.f32 %v5400, 1.0
      %v5455 = vadd.f32 %v5402, 1.0
      %v5456 = vadd.f32 %v5404, 1.0
      %v5457 = vadd.f32 %v5406, 1.0
      %v5458 = vadd.f32 %v5408, 1.0
      %v5459 = vadd.f32 %v5410, 1.0
      %v5460 = vadd.f32 %v5412, 1.0
      %v5461 = vadd.f32 %v5414, 1.0
      %v5462 = vadd.f32 %v5416, 1.0
      %v5463 = vadd.f32 %v5418, 1.0
      %v5464 = vadd.f32 %v5420, 1.0
      %v5465 = vadd.f32 %v5422, 1.0
      %v5466 = vadd.f32 %v5424, 1.0
      %v5467 = vadd.f32 %v5426, 1.0
      %v5468 = vadd.f32 %v5428, 1.0
      %v5469 = vadd.f32 %v5430, 1.0
      %v5470 = vadd.f32 %v5432, 1.0
      %v5471 = vadd.f32 %v5434, 1.0
      %v5472 = vadd.f32 %v5436, 1.0
      %v5473 = vadd.f32 %v5438, 1.0
      %v5474 = vadd.f32 %v5440, 1.0
      %v5475 = vadd.f32 %v5442, 1.0
      %v5476 = vadd.f32 %v5444, 1.0
      %v5477 = vrcp.pop %v5445
      %v5478 = vmul.f32 1.0, %v5477
      %v5479 = vrcp.pop %v5446
      %v5480 = vmul.f32 1.0, %v5479
      %v5481 = vrcp.pop %v5447
      %v5482 = vmul.f32 1.0, %v5481
      %v5483 = vrcp.pop %v5448
      %v5484 = vmul.f32 1.0, %v5483
      %v5485 = vrcp.pop %v5449
      %v5486 = vmul.f32 1.0, %v5485
      %v5487 = vrcp.pop %v5450
      %v5488 = vmul.f32 1.0, %v5487
      %v5489 = vrcp.pop %v5451
      %v5490 = vmul.f32 1.0, %v5489
      %v5491 = vrcp.pop %v5452
      %v5492 = vmul.f32 1.0, %v5491
      %v5493 = vrcp.pop %v5453
      %v5494 = vmul.f32 1.0, %v5493
      %v5495 = vrcp.pop %v5454
      %v5496 = vmul.f32 1.0, %v5495
      %v5497 = vrcp.pop %v5455
      %v5498 = vmul.f32 1.0, %v5497
      %v5499 = vrcp.pop %v5456
      %v5500 = vmul.f32 1.0, %v5499
      %v5501 = vrcp.pop %v5457
      %v5502 = vmul.f32 1.0, %v5501
      %v5503 = vrcp.pop %v5458
      %v5504 = vmul.f32 1.0, %v5503
      %v5505 = vrcp.pop %v5459
      %v5506 = vmul.f32 1.0, %v5505
      %v5507 = vrcp.pop %v5460
      %v5508 = vmul.f32 1.0, %v5507
      %v5509 = vrcp.pop %v5461
      %v5510 = vmul.f32 1.0, %v5509
      %v5511 = vrcp.pop %v5462
      %v5512 = vmul.f32 1.0, %v5511
      %v5513 = vrcp.pop %v5463
      %v5514 = vmul.f32 1.0, %v5513
      %v5515 = vrcp.pop %v5464
      %v5516 = vmul.f32 1.0, %v5515
      %v5517 = vrcp.pop %v5465
      %v5518 = vmul.f32 1.0, %v5517
      %v5519 = vrcp.pop %v5466
      %v5520 = vmul.f32 1.0, %v5519
      %v5521 = vrcp.pop %v5467
      %v5522 = vmul.f32 1.0, %v5521
      %v5523 = vrcp.pop %v5468
      %v5524 = vmul.f32 1.0, %v5523
      %v5525 = vrcp.pop %v5469
      %v5526 = vmul.f32 1.0, %v5525
      %v5527 = vrcp.pop %v5470
      %v5528 = vmul.f32 1.0, %v5527
      %v5529 = vrcp.pop %v5471
      %v5530 = vmul.f32 1.0, %v5529
      %v5531 = vrcp.pop %v5472
      %v5532 = vmul.f32 1.0, %v5531
      %v5533 = vrcp.pop %v5473
      %v5534 = vmul.f32 1.0, %v5533
      %v5535 = vrcp.pop %v5474
      %v5536 = vmul.f32 1.0, %v5535
      %v5537 = vrcp.pop %v5475
      %v5538 = vmul.f32 1.0, %v5537
      %v5539 = vrcp.pop %v5476
      %v5540 = vmul.f32 1.0, %v5539
      %v5541 = vmul.f32 %v5046, %v5478
      %v5542 = vmul.f32 %v5047, %v5480
      %v5543 = vmul.f32 %v5048, %v5482
      %v5544 = vmul.f32 %v5049, %v5484
      %v5545 = vmul.f32 %v5050, %v5486
      %v5546 = vmul.f32 %v5051, %v5488
      %v5547 = vmul.f32 %v5052, %v5490
      %v5548 = vmul.f32 %v5053, %v5492
      %v5549 = vmul.f32 %v5054, %v5494
      %v5550 = vmul.f32 %v5055, %v5496
      %v5551 = vmul.f32 %v5056, %v5498
      %v5552 = vmul.f32 %v5057, %v5500
      %v5553 = vmul.f32 %v5058, %v5502
      %v5554 = vmul.f32 %v5059, %v5504
      %v5555 = vmul.f32 %v5060, %v5506
      %v5556 = vmul.f32 %v5061, %v5508
      %v5557 = vmul.f32 %v5062, %v5510
      %v5558 = vmul.f32 %v5063, %v5512
      %v5559 = vmul.f32 %v5064, %v5514
      %v5560 = vmul.f32 %v5065, %v5516
      %v5561 = vmul.f32 %v5066, %v5518
      %v5562 = vmul.f32 %v5067, %v5520
      %v5563 = vmul.f32 %v5068, %v5522
      %v5564 = vmul.f32 %v5069, %v5524
      %v5565 = vmul.f32 %v5070, %v5526
      %v5566 = vmul.f32 %v5071, %v5528
      %v5567 = vmul.f32 %v5072, %v5530
      %v5568 = vmul.f32 %v5073, %v5532
      %v5569 = vmul.f32 %v5074, %v5534
      %v5570 = vmul.f32 %v5075, %v5536
      %v5571 = vmul.f32 %v5076, %v5538
      %v5572 = vmul.f32 %v5077, %v5540
      %v5573 = vld [vmem:[%s389] sm:$0xff]
      %v5574 = vld [vmem:[%s389 + $0x8] sm:$0xff]
      %v5575 = vld [vmem:[%s389 + $0x10] sm:$0xff]
      %v5576 = vld [vmem:[%s389 + $0x18] sm:$0xff]
      %v5577 = vld [vmem:[%s389 + $0x20] sm:$0xff]
      %v5578 = vld [vmem:[%s389 + $0x28] sm:$0xff]
      %v5579 = vld [vmem:[%s389 + $0x30] sm:$0xff]
      %v5580 = vld [vmem:[%s389 + $0x38] sm:$0xff]
      %v5581 = vld [vmem:[%s389 + $0x40] sm:$0xff]
      %v5582 = vld [vmem:[%s389 + $0x48] sm:$0xff]
      %v5583 = vld [vmem:[%s389 + $0x50] sm:$0xff]
      %v5584 = vld [vmem:[%s389 + $0x58] sm:$0xff]
      %v5585 = vld [vmem:[%s389 + $0x60] sm:$0xff]
      %v5586 = vld [vmem:[%s389 + $0x68] sm:$0xff]
      %v5587 = vld [vmem:[%s389 + $0x70] sm:$0xff]
      %v5588 = vld [vmem:[%s389 + $0x78] sm:$0xff]
      %v5589 = vld [vmem:[%s389 + $0x80] sm:$0xff]
      %v5590 = vld [vmem:[%s389 + $0x88] sm:$0xff]
      %v5591 = vld [vmem:[%s389 + $0x90] sm:$0xff]
      %v5592 = vld [vmem:[%s389 + $0x98] sm:$0xff]
      %v5593 = vld [vmem:[%s389 + $0xa0] sm:$0xff]
      %v5594 = vld [vmem:[%s389 + $0xa8] sm:$0xff]
      %v5595 = vld [vmem:[%s389 + $0xb0] sm:$0xff]
      %v5596 = vld [vmem:[%s389 + $0xb8] sm:$0xff]
      %v5597 = vld [vmem:[%s389 + $0xc0] sm:$0xff]
      %v5598 = vld [vmem:[%s389 + $0xc8] sm:$0xff]
      %v5599 = vld [vmem:[%s389 + $0xd0] sm:$0xff]
      %v5600 = vld [vmem:[%s389 + $0xd8] sm:$0xff]
      %v5601 = vld [vmem:[%s389 + $0xe0] sm:$0xff]
      %v5602 = vld [vmem:[%s389 + $0xe8] sm:$0xff]
      %v5603 = vld [vmem:[%s389 + $0xf0] sm:$0xff]
      %v5604 = vld [vmem:[%s389 + $0xf8] sm:$0xff]
      %v5605 = vadd.f32 %v5573, %v5541
      %v5606 = vadd.f32 %v5574, %v5542
      %v5607 = vadd.f32 %v5575, %v5543
      %v5608 = vadd.f32 %v5576, %v5544
      %v5609 = vadd.f32 %v5577, %v5545
      %v5610 = vadd.f32 %v5578, %v5546
      %v5611 = vadd.f32 %v5579, %v5547
      %v5612 = vadd.f32 %v5580, %v5548
      %v5613 = vadd.f32 %v5581, %v5549
      %v5614 = vadd.f32 %v5582, %v5550
      %v5615 = vadd.f32 %v5583, %v5551
      %v5616 = vadd.f32 %v5584, %v5552
      %v5617 = vadd.f32 %v5585, %v5553
      %v5618 = vadd.f32 %v5586, %v5554
      %v5619 = vadd.f32 %v5587, %v5555
      %v5620 = vadd.f32 %v5588, %v5556
      %v5621 = vadd.f32 %v5589, %v5557
      %v5622 = vadd.f32 %v5590, %v5558
      %v5623 = vadd.f32 %v5591, %v5559
      %v5624 = vadd.f32 %v5592, %v5560
      %v5625 = vadd.f32 %v5593, %v5561
      %v5626 = vadd.f32 %v5594, %v5562
      %v5627 = vadd.f32 %v5595, %v5563
      %v5628 = vadd.f32 %v5596, %v5564
      %v5629 = vadd.f32 %v5597, %v5565
      %v5630 = vadd.f32 %v5598, %v5566
      %v5631 = vadd.f32 %v5599, %v5567
      %v5632 = vadd.f32 %v5600, %v5568
      %v5633 = vadd.f32 %v5601, %v5569
      %v5634 = vadd.f32 %v5602, %v5570
      %v5635 = vadd.f32 %v5603, %v5571
      %v5636 = vadd.f32 %v5604, %v5572
      %v5637 = vld [vmem:[%s5] sm:$0xf]
      %v5638 = vld [vmem:[%s6] sm:$0x1]
      %v5640 = vlaneseq
      %v5641 = vshrl.u32 %v5640, 7
      %v5642 = vsub.s32 0, %v5641
      %v5643 = vrot.slane %v5638, %v5642
      %v5646 = vsel %vm400, %v5605, 0
      %v5649 = vsel %vm400, %v5606, 0
      %v5652 = vsel %vm400, %v5607, 0
      %v5655 = vsel %vm400, %v5608, 0
      %v5658 = vsel %vm400, %v5609, 0
      %v5661 = vsel %vm400, %v5610, 0
      %v5664 = vsel %vm400, %v5611, 0
      %v5667 = vsel %vm400, %v5612, 0
      %v5670 = vsel %vm400, %v5613, 0
      %v5673 = vsel %vm400, %v5614, 0
      %v5676 = vsel %vm400, %v5615, 0
      %v5679 = vsel %vm400, %v5616, 0
      %v5682 = vsel %vm400, %v5617, 0
      %v5685 = vsel %vm400, %v5618, 0
      %v5688 = vsel %vm400, %v5619, 0
      %v5691 = vsel %vm400, %v5620, 0
      %v5694 = vsel %vm400, %v5621, 0
      %v5697 = vsel %vm400, %v5622, 0
      %v5700 = vsel %vm400, %v5623, 0
      %v5703 = vsel %vm400, %v5624, 0
      %v5706 = vsel %vm400, %v5625, 0
      %v5709 = vsel %vm400, %v5626, 0
      %v5712 = vsel %vm400, %v5627, 0
      %v5715 = vsel %vm400, %v5628, 0
      %v5718 = vsel %vm400, %v5629, 0
      %v5721 = vsel %vm400, %v5630, 0
      %v5724 = vsel %vm400, %v5631, 0
      %v5727 = vsel %vm400, %v5632, 0
      %v5730 = vsel %vm400, %v5633, 0
      %v5733 = vsel %vm400, %v5634, 0
      %v5736 = vsel %vm400, %v5635, 0
      %v5739 = vsel %vm400, %v5636, 0
      %v5742 = vsel %vm1114, %v5637, 0
      %5744 = vmatprep.subr.mxu0 0.0
      %5745 = vmatpush1.msra.mxu0 0.0
      %5746 = vmatprep.subr.mxu0 0.0
      %5747 = vmatpush1.msra.mxu0 0.0
      %5748 = vmatprep.subr.mxu0 0.0
      %5749 = vmatpush1.msra.mxu0 0.0
      %5750 = vmatprep.subr.mxu0 0.0
      %5751 = vmatpush1.msra.mxu0 0.0
      %5752 = vmatprep.subr.mxu0 0.0
      %5753 = vmatpush1.msra.mxu0 0.0
      %5754 = vmatprep.subr.mxu0 0.0
      %5755 = vmatpush1.msra.mxu0 0.0
      %5756 = vmatprep.subr.mxu0 0.0
      %5757 = vmatpush1.msra.mxu0 0.0
      %5758 = vmatprep.subr.mxu0 0.0
      %5759 = vmatpush1.msra.mxu0 0.0
      %5760 = vmatprep.subr.mxu0 0.0
      %5761 = vmatpush1.msra.mxu0 0.0
      %5762 = vmatprep.subr.mxu0 0.0
      %5763 = vmatpush1.msra.mxu0 0.0
      %5764 = vmatprep.subr.mxu0 0.0
      %5765 = vmatpush1.msra.mxu0 0.0
      %5766 = vmatprep.subr.mxu0 0.0
      %5767 = vmatpush1.msra.mxu0 0.0
      %5768 = vmatprep.subr.mxu0 0.0
      %5769 = vmatpush1.msra.mxu0 0.0
      %5770 = vmatprep.subr.mxu0 0.0
      %5771 = vmatpush1.msra.mxu0 0.0
      %5772 = vmatprep.subr.mxu0 0.0
      %5773 = vmatpush1.msra.mxu0 0.0
      %5774 = vmatprep.subr.mxu0 0.0
      %5775 = vmatpush1.msra.mxu0 %v5742
      %5776 = vmatprep.subr.mxu0 0.0
      %5777 = vmatpush2.msra.mxu0 0.0
      %5778 = vmatprep.subr.mxu0 0.0
      %5779 = vmatpush2.msra.mxu0 0.0
      %5780 = vmatprep.subr.mxu0 0.0
      %5781 = vmatpush2.msra.mxu0 0.0
      %5782 = vmatprep.subr.mxu0 0.0
      %5783 = vmatpush2.msra.mxu0 0.0
      %5784 = vmatprep.subr.mxu0 0.0
      %5785 = vmatpush2.msra.mxu0 0.0
      %5786 = vmatprep.subr.mxu0 0.0
      %5787 = vmatpush2.msra.mxu0 0.0
      %5788 = vmatprep.subr.mxu0 0.0
      %5789 = vmatpush2.msra.mxu0 0.0
      %5790 = vmatprep.subr.mxu0 0.0
      %5791 = vmatpush2.msra.mxu0 0.0
      %5792 = vmatprep.subr.mxu0 0.0
      %5793 = vmatpush2.msra.mxu0 0.0
      %5794 = vmatprep.subr.mxu0 0.0
      %5795 = vmatpush2.msra.mxu0 0.0
      %5796 = vmatprep.subr.mxu0 0.0
      %5797 = vmatpush2.msra.mxu0 0.0
      %5798 = vmatprep.subr.mxu0 0.0
      %5799 = vmatpush2.msra.mxu0 0.0
      %5800 = vmatprep.subr.mxu0 0.0
      %5801 = vmatpush2.msra.mxu0 0.0
      %5802 = vmatprep.subr.mxu0 0.0
      %5803 = vmatpush2.msra.mxu0 0.0
      %5804 = vmatprep.subr.mxu0 0.0
      %5805 = vmatpush2.msra.mxu0 0.0
      %5806 = vmatprep.subr.mxu0 0.0
      %5807 = vmatpush2.msra.mxu0 0.0
      %5808 = vmatprep.mubr.f32.mxu0 0.0
      %5809 = vmatmul.mubr.f32.gmra.mxu0 %v5646
      %v5810 = vpop.f32.mrf.mxu0
      %v5811 = vadd.f32 %v5643, %v5810
      %v5812 = vpop.f32.mrf.mxu0
      %5813 = vmatprep.mubr.f32.mxu0 0.0
      %5814 = vmatmul.mubr.f32.gmra.mxu0 %v5649
      %v5815 = vpop.f32.mrf.mxu0
      %v5816 = vadd.f32 %v5643, %v5815
      %v5817 = vpop.f32.mrf.mxu0
      %5818 = vmatprep.mubr.f32.mxu0 0.0
      %5819 = vmatmul.mubr.f32.gmra.mxu0 %v5652
      %v5820 = vpop.f32.mrf.mxu0
      %v5821 = vadd.f32 %v5643, %v5820
      %v5822 = vpop.f32.mrf.mxu0
      %5823 = vmatprep.mubr.f32.mxu0 0.0
      %5824 = vmatmul.mubr.f32.gmra.mxu0 %v5655
      %v5825 = vpop.f32.mrf.mxu0
      %v5826 = vadd.f32 %v5643, %v5825
      %v5827 = vpop.f32.mrf.mxu0
      %5828 = vmatprep.mubr.f32.mxu0 0.0
      %5829 = vmatmul.mubr.f32.gmra.mxu0 %v5658
      %v5830 = vpop.f32.mrf.mxu0
      %v5831 = vadd.f32 %v5643, %v5830
      %v5832 = vpop.f32.mrf.mxu0
      %5833 = vmatprep.mubr.f32.mxu0 0.0
      %5834 = vmatmul.mubr.f32.gmra.mxu0 %v5661
      %v5835 = vpop.f32.mrf.mxu0
      %v5836 = vadd.f32 %v5643, %v5835
      %v5837 = vpop.f32.mrf.mxu0
      %5838 = vmatprep.mubr.f32.mxu0 0.0
      %5839 = vmatmul.mubr.f32.gmra.mxu0 %v5664
      %v5840 = vpop.f32.mrf.mxu0
      %v5841 = vadd.f32 %v5643, %v5840
      %v5842 = vpop.f32.mrf.mxu0
      %5843 = vmatprep.mubr.f32.mxu0 0.0
      %5844 = vmatmul.mubr.f32.gmra.mxu0 %v5667
      %v5845 = vpop.f32.mrf.mxu0
      %v5846 = vadd.f32 %v5643, %v5845
      %v5847 = vpop.f32.mrf.mxu0
      %5848 = vmatprep.mubr.f32.mxu0 0.0
      %5849 = vmatmul.mubr.f32.gmra.mxu0 %v5670
      %v5850 = vpop.f32.mrf.mxu0
      %v5851 = vadd.f32 %v5643, %v5850
      %v5852 = vpop.f32.mrf.mxu0
      %5853 = vmatprep.mubr.f32.mxu0 0.0
      %5854 = vmatmul.mubr.f32.gmra.mxu0 %v5673
      %v5855 = vpop.f32.mrf.mxu0
      %v5856 = vadd.f32 %v5643, %v5855
      %v5857 = vpop.f32.mrf.mxu0
      %5858 = vmatprep.mubr.f32.mxu0 0.0
      %5859 = vmatmul.mubr.f32.gmra.mxu0 %v5676
      %v5860 = vpop.f32.mrf.mxu0
      %v5861 = vadd.f32 %v5643, %v5860
      %v5862 = vpop.f32.mrf.mxu0
      %5863 = vmatprep.mubr.f32.mxu0 0.0
      %5864 = vmatmul.mubr.f32.gmra.mxu0 %v5679
      %v5865 = vpop.f32.mrf.mxu0
      %v5866 = vadd.f32 %v5643, %v5865
      %v5867 = vpop.f32.mrf.mxu0
      %5868 = vmatprep.mubr.f32.mxu0 0.0
      %5869 = vmatmul.mubr.f32.gmra.mxu0 %v5682
      %v5870 = vpop.f32.mrf.mxu0
      %v5871 = vadd.f32 %v5643, %v5870
      %v5872 = vpop.f32.mrf.mxu0
      %5873 = vmatprep.mubr.f32.mxu0 0.0
      %5874 = vmatmul.mubr.f32.gmra.mxu0 %v5685
      %v5875 = vpop.f32.mrf.mxu0
      %v5876 = vadd.f32 %v5643, %v5875
      %v5877 = vpop.f32.mrf.mxu0
      %5878 = vmatprep.mubr.f32.mxu0 0.0
      %5879 = vmatmul.mubr.f32.gmra.mxu0 %v5688
      %v5880 = vpop.f32.mrf.mxu0
      %v5881 = vadd.f32 %v5643, %v5880
      %v5882 = vpop.f32.mrf.mxu0
      %5883 = vmatprep.mubr.f32.mxu0 0.0
      %5884 = vmatmul.mubr.f32.gmra.mxu0 %v5691
      %v5885 = vpop.f32.mrf.mxu0
      %v5886 = vadd.f32 %v5643, %v5885
      %v5887 = vpop.f32.mrf.mxu0
      %5888 = vmatprep.mubr.f32.mxu0 0.0
      %5889 = vmatmul.mubr.f32.gmra.mxu0 %v5694
      %v5890 = vpop.f32.mrf.mxu0
      %v5891 = vadd.f32 %v5643, %v5890
      %v5892 = vpop.f32.mrf.mxu0
      %5893 = vmatprep.mubr.f32.mxu0 0.0
      %5894 = vmatmul.mubr.f32.gmra.mxu0 %v5697
      %v5895 = vpop.f32.mrf.mxu0
      %v5896 = vadd.f32 %v5643, %v5895
      %v5897 = vpop.f32.mrf.mxu0
      %5898 = vmatprep.mubr.f32.mxu0 0.0
      %5899 = vmatmul.mubr.f32.gmra.mxu0 %v5700
      %v5900 = vpop.f32.mrf.mxu0
      %v5901 = vadd.f32 %v5643, %v5900
      %v5902 = vpop.f32.mrf.mxu0
      %5903 = vmatprep.mubr.f32.mxu0 0.0
      %5904 = vmatmul.mubr.f32.gmra.mxu0 %v5703
      %v5905 = vpop.f32.mrf.mxu0
      %v5906 = vadd.f32 %v5643, %v5905
      %v5907 = vpop.f32.mrf.mxu0
      %5908 = vmatprep.mubr.f32.mxu0 0.0
      %5909 = vmatmul.mubr.f32.gmra.mxu0 %v5706
      %v5910 = vpop.f32.mrf.mxu0
      %v5911 = vadd.f32 %v5643, %v5910
      %v5912 = vpop.f32.mrf.mxu0
      %5913 = vmatprep.mubr.f32.mxu0 0.0
      %5914 = vmatmul.mubr.f32.gmra.mxu0 %v5709
      %v5915 = vpop.f32.mrf.mxu0
      %v5916 = vadd.f32 %v5643, %v5915
      %v5917 = vpop.f32.mrf.mxu0
      %5918 = vmatprep.mubr.f32.mxu0 0.0
      %5919 = vmatmul.mubr.f32.gmra.mxu0 %v5712
      %v5920 = vpop.f32.mrf.mxu0
      %v5921 = vadd.f32 %v5643, %v5920
      %v5922 = vpop.f32.mrf.mxu0
      %5923 = vmatprep.mubr.f32.mxu0 0.0
      %5924 = vmatmul.mubr.f32.gmra.mxu0 %v5715
      %v5925 = vpop.f32.mrf.mxu0
      %v5926 = vadd.f32 %v5643, %v5925
      %v5927 = vpop.f32.mrf.mxu0
      %5928 = vmatprep.mubr.f32.mxu0 0.0
      %5929 = vmatmul.mubr.f32.gmra.mxu0 %v5718
      %v5930 = vpop.f32.mrf.mxu0
      %v5931 = vadd.f32 %v5643, %v5930
      %v5932 = vpop.f32.mrf.mxu0
      %5933 = vmatprep.mubr.f32.mxu0 0.0
      %5934 = vmatmul.mubr.f32.gmra.mxu0 %v5721
      %v5935 = vpop.f32.mrf.mxu0
      %v5936 = vadd.f32 %v5643, %v5935
      %v5937 = vpop.f32.mrf.mxu0
      %5938 = vmatprep.mubr.f32.mxu0 0.0
      %5939 = vmatmul.mubr.f32.gmra.mxu0 %v5724
      %v5940 = vpop.f32.mrf.mxu0
      %v5941 = vadd.f32 %v5643, %v5940
      %v5942 = vpop.f32.mrf.mxu0
      %5943 = vmatprep.mubr.f32.mxu0 0.0
      %5944 = vmatmul.mubr.f32.gmra.mxu0 %v5727
      %v5945 = vpop.f32.mrf.mxu0
      %v5946 = vadd.f32 %v5643, %v5945
      %v5947 = vpop.f32.mrf.mxu0
      %5948 = vmatprep.mubr.f32.mxu0 0.0
      %5949 = vmatmul.mubr.f32.gmra.mxu0 %v5730
      %v5950 = vpop.f32.mrf.mxu0
      %v5951 = vadd.f32 %v5643, %v5950
      %v5952 = vpop.f32.mrf.mxu0
      %5953 = vmatprep.mubr.f32.mxu0 0.0
      %5954 = vmatmul.mubr.f32.gmra.mxu0 %v5733
      %v5955 = vpop.f32.mrf.mxu0
      %v5956 = vadd.f32 %v5643, %v5955
      %v5957 = vpop.f32.mrf.mxu0
      %5958 = vmatprep.mubr.f32.mxu0 0.0
      %5959 = vmatmul.mubr.f32.gmra.mxu0 %v5736
      %v5960 = vpop.f32.mrf.mxu0
      %v5961 = vadd.f32 %v5643, %v5960
      %v5962 = vpop.f32.mrf.mxu0
      %5963 = vmatprep.mubr.f32.mxu0 0.0
      %5964 = vmatmul.mubr.f32.gmra.mxu0 %v5739
      %v5965 = vpop.f32.mrf.mxu0
      %v5966 = vadd.f32 %v5643, %v5965
      %v5967 = vpop.f32.mrf.mxu0
      %5968 = vdwg.mxu0
      %v5969 = vmul.f32 %v5811, 0.1
      %v5970 = vmul.f32 %v5816, 0.1
      %v5971 = vmul.f32 %v5821, 0.1
      %v5972 = vmul.f32 %v5826, 0.1
      %v5973 = vmul.f32 %v5831, 0.1
      %v5974 = vmul.f32 %v5836, 0.1
      %v5975 = vmul.f32 %v5841, 0.1
      %v5976 = vmul.f32 %v5846, 0.1
      %v5977 = vmul.f32 %v5851, 0.1
      %v5978 = vmul.f32 %v5856, 0.1
      %v5979 = vmul.f32 %v5861, 0.1
      %v5980 = vmul.f32 %v5866, 0.1
      %v5981 = vmul.f32 %v5871, 0.1
      %v5982 = vmul.f32 %v5876, 0.1
      %v5983 = vmul.f32 %v5881, 0.1
      %v5984 = vmul.f32 %v5886, 0.1
      %v5985 = vmul.f32 %v5891, 0.1
      %v5986 = vmul.f32 %v5896, 0.1
      %v5987 = vmul.f32 %v5901, 0.1
      %v5988 = vmul.f32 %v5906, 0.1
      %v5989 = vmul.f32 %v5911, 0.1
      %v5990 = vmul.f32 %v5916, 0.1
      %v5991 = vmul.f32 %v5921, 0.1
      %v5992 = vmul.f32 %v5926, 0.1
      %v5993 = vmul.f32 %v5931, 0.1
      %v5994 = vmul.f32 %v5936, 0.1
      %v5995 = vmul.f32 %v5941, 0.1
      %v5996 = vmul.f32 %v5946, 0.1
      %v5997 = vmul.f32 %v5951, 0.1
      %v5998 = vmul.f32 %v5956, 0.1
      %v5999 = vmul.f32 %v5961, 0.1
      %v6000 = vmul.f32 %v5966, 0.1
      %v6001 = vmax.f32 %v5811, %v5969
      %v6002 = vmax.f32 %v5816, %v5970
      %v6003 = vmax.f32 %v5821, %v5971
      %v6004 = vmax.f32 %v5826, %v5972
      %v6005 = vmax.f32 %v5831, %v5973
      %v6006 = vmax.f32 %v5836, %v5974
      %v6007 = vmax.f32 %v5841, %v5975
      %v6008 = vmax.f32 %v5846, %v5976
      %v6009 = vmax.f32 %v5851, %v5977
      %v6010 = vmax.f32 %v5856, %v5978
      %v6011 = vmax.f32 %v5861, %v5979
      %v6012 = vmax.f32 %v5866, %v5980
      %v6013 = vmax.f32 %v5871, %v5981
      %v6014 = vmax.f32 %v5876, %v5982
      %v6015 = vmax.f32 %v5881, %v5983
      %v6016 = vmax.f32 %v5886, %v5984
      %v6017 = vmax.f32 %v5891, %v5985
      %v6018 = vmax.f32 %v5896, %v5986
      %v6019 = vmax.f32 %v5901, %v5987
      %v6020 = vmax.f32 %v5906, %v5988
      %v6021 = vmax.f32 %v5911, %v5989
      %v6022 = vmax.f32 %v5916, %v5990
      %v6023 = vmax.f32 %v5921, %v5991
      %v6024 = vmax.f32 %v5926, %v5992
      %v6025 = vmax.f32 %v5931, %v5993
      %v6026 = vmax.f32 %v5936, %v5994
      %v6027 = vmax.f32 %v5941, %v5995
      %v6028 = vmax.f32 %v5946, %v5996
      %v6029 = vmax.f32 %v5951, %v5997
      %v6030 = vmax.f32 %v5956, %v5998
      %v6031 = vmax.f32 %v5961, %v5999
      %v6032 = vmax.f32 %v5966, %v6000
      %v6033 = vld [vmem:[%s394] sm:$0xff]
      %v6034 = vld [vmem:[%s394 + $0x8] sm:$0xff]
      %v6035 = vld [vmem:[%s394 + $0x10] sm:$0xff]
      %v6036 = vld [vmem:[%s394 + $0x18] sm:$0xff]
      %v6037 = vld [vmem:[%s394 + $0x20] sm:$0xff]
      %v6038 = vld [vmem:[%s394 + $0x28] sm:$0xff]
      %v6039 = vld [vmem:[%s394 + $0x30] sm:$0xff]
      %v6040 = vld [vmem:[%s394 + $0x38] sm:$0xff]
      %v6041 = vld [vmem:[%s394 + $0x40] sm:$0xff]
      %v6042 = vld [vmem:[%s394 + $0x48] sm:$0xff]
      %v6043 = vld [vmem:[%s394 + $0x50] sm:$0xff]
      %v6044 = vld [vmem:[%s394 + $0x58] sm:$0xff]
      %v6045 = vld [vmem:[%s394 + $0x60] sm:$0xff]
      %v6046 = vld [vmem:[%s394 + $0x68] sm:$0xff]
      %v6047 = vld [vmem:[%s394 + $0x70] sm:$0xff]
      %v6048 = vld [vmem:[%s394 + $0x78] sm:$0xff]
      %v6049 = vld [vmem:[%s394 + $0x80] sm:$0xff]
      %v6050 = vld [vmem:[%s394 + $0x88] sm:$0xff]
      %v6051 = vld [vmem:[%s394 + $0x90] sm:$0xff]
      %v6052 = vld [vmem:[%s394 + $0x98] sm:$0xff]
      %v6053 = vld [vmem:[%s394 + $0xa0] sm:$0xff]
      %v6054 = vld [vmem:[%s394 + $0xa8] sm:$0xff]
      %v6055 = vld [vmem:[%s394 + $0xb0] sm:$0xff]
      %v6056 = vld [vmem:[%s394 + $0xb8] sm:$0xff]
      %v6057 = vld [vmem:[%s394 + $0xc0] sm:$0xff]
      %v6058 = vld [vmem:[%s394 + $0xc8] sm:$0xff]
      %v6059 = vld [vmem:[%s394 + $0xd0] sm:$0xff]
      %v6060 = vld [vmem:[%s394 + $0xd8] sm:$0xff]
      %v6061 = vld [vmem:[%s394 + $0xe0] sm:$0xff]
      %v6062 = vld [vmem:[%s394 + $0xe8] sm:$0xff]
      %v6063 = vld [vmem:[%s394 + $0xf0] sm:$0xff]
      %v6064 = vld [vmem:[%s394 + $0xf8] sm:$0xff]
      %v6065 = vmul.f32 %v6033, 0.1
      %v6066 = vmul.f32 %v6034, 0.1
      %v6067 = vmul.f32 %v6035, 0.1
      %v6068 = vmul.f32 %v6036, 0.1
      %v6069 = vmul.f32 %v6037, 0.1
      %v6070 = vmul.f32 %v6038, 0.1
      %v6071 = vmul.f32 %v6039, 0.1
      %v6072 = vmul.f32 %v6040, 0.1
      %v6073 = vmul.f32 %v6041, 0.1
      %v6074 = vmul.f32 %v6042, 0.1
      %v6075 = vmul.f32 %v6043, 0.1
      %v6076 = vmul.f32 %v6044, 0.1
      %v6077 = vmul.f32 %v6045, 0.1
      %v6078 = vmul.f32 %v6046, 0.1
      %v6079 = vmul.f32 %v6047, 0.1
      %v6080 = vmul.f32 %v6048, 0.1
      %v6081 = vmul.f32 %v6049, 0.1
      %v6082 = vmul.f32 %v6050, 0.1
      %v6083 = vmul.f32 %v6051, 0.1
      %v6084 = vmul.f32 %v6052, 0.1
      %v6085 = vmul.f32 %v6053, 0.1
      %v6086 = vmul.f32 %v6054, 0.1
      %v6087 = vmul.f32 %v6055, 0.1
      %v6088 = vmul.f32 %v6056, 0.1
      %v6089 = vmul.f32 %v6057, 0.1
      %v6090 = vmul.f32 %v6058, 0.1
      %v6091 = vmul.f32 %v6059, 0.1
      %v6092 = vmul.f32 %v6060, 0.1
      %v6093 = vmul.f32 %v6061, 0.1
      %v6094 = vmul.f32 %v6062, 0.1
      %v6095 = vmul.f32 %v6063, 0.1
      %v6096 = vmul.f32 %v6064, 0.1
      %v6097 = vmax.f32 %v6033, %v6065
      %v6098 = vmax.f32 %v6034, %v6066
      %v6099 = vmax.f32 %v6035, %v6067
      %v6100 = vmax.f32 %v6036, %v6068
      %v6101 = vmax.f32 %v6037, %v6069
      %v6102 = vmax.f32 %v6038, %v6070
      %v6103 = vmax.f32 %v6039, %v6071
      %v6104 = vmax.f32 %v6040, %v6072
      %v6105 = vmax.f32 %v6041, %v6073
      %v6106 = vmax.f32 %v6042, %v6074
      %v6107 = vmax.f32 %v6043, %v6075
      %v6108 = vmax.f32 %v6044, %v6076
      %v6109 = vmax.f32 %v6045, %v6077
      %v6110 = vmax.f32 %v6046, %v6078
      %v6111 = vmax.f32 %v6047, %v6079
      %v6112 = vmax.f32 %v6048, %v6080
      %v6113 = vmax.f32 %v6049, %v6081
      %v6114 = vmax.f32 %v6050, %v6082
      %v6115 = vmax.f32 %v6051, %v6083
      %v6116 = vmax.f32 %v6052, %v6084
      %v6117 = vmax.f32 %v6053, %v6085
      %v6118 = vmax.f32 %v6054, %v6086
      %v6119 = vmax.f32 %v6055, %v6087
      %v6120 = vmax.f32 %v6056, %v6088
      %v6121 = vmax.f32 %v6057, %v6089
      %v6122 = vmax.f32 %v6058, %v6090
      %v6123 = vmax.f32 %v6059, %v6091
      %v6124 = vmax.f32 %v6060, %v6092
      %v6125 = vmax.f32 %v6061, %v6093
      %v6126 = vmax.f32 %v6062, %v6094
      %v6127 = vmax.f32 %v6063, %v6095
      %v6128 = vmax.f32 %v6064, %v6096
      %v6129 = vld [vmem:[%s7] sm:$0xf]
      %v6130 = vld [vmem:[%s8] sm:$0xf]
      %v6132 = vsel %vm400, %v6097, 0
      %v6135 = vsel %vm400, %v6098, 0
      %v6138 = vsel %vm400, %v6099, 0
      %v6141 = vsel %vm400, %v6100, 0
      %v6144 = vsel %vm400, %v6101, 0
      %v6147 = vsel %vm400, %v6102, 0
      %v6150 = vsel %vm400, %v6103, 0
      %v6153 = vsel %vm400, %v6104, 0
      %v6156 = vsel %vm400, %v6105, 0
      %v6159 = vsel %vm400, %v6106, 0
      %v6162 = vsel %vm400, %v6107, 0
      %v6165 = vsel %vm400, %v6108, 0
      %v6168 = vsel %vm400, %v6109, 0
      %v6171 = vsel %vm400, %v6110, 0
      %v6174 = vsel %vm400, %v6111, 0
      %v6177 = vsel %vm400, %v6112, 0
      %v6180 = vsel %vm400, %v6113, 0
      %v6183 = vsel %vm400, %v6114, 0
      %v6186 = vsel %vm400, %v6115, 0
      %v6189 = vsel %vm400, %v6116, 0
      %v6192 = vsel %vm400, %v6117, 0
      %v6195 = vsel %vm400, %v6118, 0
      %v6198 = vsel %vm400, %v6119, 0
      %v6201 = vsel %vm400, %v6120, 0
      %v6204 = vsel %vm400, %v6121, 0
      %v6207 = vsel %vm400, %v6122, 0
      %v6210 = vsel %vm400, %v6123, 0
      %v6213 = vsel %vm400, %v6124, 0
      %v6216 = vsel %vm400, %v6125, 0
      %v6219 = vsel %vm400, %v6126, 0
      %v6222 = vsel %vm400, %v6127, 0
      %v6225 = vsel %vm400, %v6128, 0
      %v6228 = vsel %vm1114, %v6130, 0
      %6230 = vmatprep.subr.mxu0 0.0
      %6231 = vmatpush1.msra.mxu0 0.0
      %6232 = vmatprep.subr.mxu0 0.0
      %6233 = vmatpush1.msra.mxu0 0.0
      %6234 = vmatprep.subr.mxu0 0.0
      %6235 = vmatpush1.msra.mxu0 0.0
      %6236 = vmatprep.subr.mxu0 0.0
      %6237 = vmatpush1.msra.mxu0 0.0
      %6238 = vmatprep.subr.mxu0 0.0
      %6239 = vmatpush1.msra.mxu0 0.0
      %6240 = vmatprep.subr.mxu0 0.0
      %6241 = vmatpush1.msra.mxu0 0.0
      %6242 = vmatprep.subr.mxu0 0.0
      %6243 = vmatpush1.msra.mxu0 0.0
      %6244 = vmatprep.subr.mxu0 0.0
      %6245 = vmatpush1.msra.mxu0 0.0
      %6246 = vmatprep.subr.mxu0 0.0
      %6247 = vmatpush1.msra.mxu0 0.0
      %6248 = vmatprep.subr.mxu0 0.0
      %6249 = vmatpush1.msra.mxu0 0.0
      %6250 = vmatprep.subr.mxu0 0.0
      %6251 = vmatpush1.msra.mxu0 0.0
      %6252 = vmatprep.subr.mxu0 0.0
      %6253 = vmatpush1.msra.mxu0 0.0
      %6254 = vmatprep.subr.mxu0 0.0
      %6255 = vmatpush1.msra.mxu0 0.0
      %6256 = vmatprep.subr.mxu0 0.0
      %6257 = vmatpush1.msra.mxu0 0.0
      %6258 = vmatprep.subr.mxu0 0.0
      %6259 = vmatpush1.msra.mxu0 0.0
      %6260 = vmatprep.subr.mxu0 0.0
      %6261 = vmatpush1.msra.mxu0 %v6228
      %6262 = vmatprep.subr.mxu0 0.0
      %6263 = vmatpush2.msra.mxu0 0.0
      %6264 = vmatprep.subr.mxu0 0.0
      %6265 = vmatpush2.msra.mxu0 0.0
      %6266 = vmatprep.subr.mxu0 0.0
      %6267 = vmatpush2.msra.mxu0 0.0
      %6268 = vmatprep.subr.mxu0 0.0
      %6269 = vmatpush2.msra.mxu0 0.0
      %6270 = vmatprep.subr.mxu0 0.0
      %6271 = vmatpush2.msra.mxu0 0.0
      %6272 = vmatprep.subr.mxu0 0.0
      %6273 = vmatpush2.msra.mxu0 0.0
      %6274 = vmatprep.subr.mxu0 0.0
      %6275 = vmatpush2.msra.mxu0 0.0
      %6276 = vmatprep.subr.mxu0 0.0
      %6277 = vmatpush2.msra.mxu0 0.0
      %6278 = vmatprep.subr.mxu0 0.0
      %6279 = vmatpush2.msra.mxu0 0.0
      %6280 = vmatprep.subr.mxu0 0.0
      %6281 = vmatpush2.msra.mxu0 0.0
      %6282 = vmatprep.subr.mxu0 0.0
      %6283 = vmatpush2.msra.mxu0 0.0
      %6284 = vmatprep.subr.mxu0 0.0
      %6285 = vmatpush2.msra.mxu0 0.0
      %6286 = vmatprep.subr.mxu0 0.0
      %6287 = vmatpush2.msra.mxu0 0.0
      %6288 = vmatprep.subr.mxu0 0.0
      %6289 = vmatpush2.msra.mxu0 0.0
      %6290 = vmatprep.subr.mxu0 0.0
      %6291 = vmatpush2.msra.mxu0 0.0
      %6292 = vmatprep.subr.mxu0 0.0
      %6293 = vmatpush2.msra.mxu0 0.0
      %6294 = vmatprep.mubr.f32.mxu0 0.0
      %6295 = vmatmul.mubr.f32.gmra.mxu0 %v6132
      %v6296 = vpop.f32.mrf.mxu0
      %v6297 = vadd.f32 0.0, %v6296
      %v6298 = vpop.f32.mrf.mxu0
      %6299 = vmatprep.mubr.f32.mxu0 0.0
      %6300 = vmatmul.mubr.f32.gmra.mxu0 %v6135
      %v6301 = vpop.f32.mrf.mxu0
      %v6302 = vadd.f32 0.0, %v6301
      %v6303 = vpop.f32.mrf.mxu0
      %6304 = vmatprep.mubr.f32.mxu0 0.0
      %6305 = vmatmul.mubr.f32.gmra.mxu0 %v6138
      %v6306 = vpop.f32.mrf.mxu0
      %v6307 = vadd.f32 0.0, %v6306
      %v6308 = vpop.f32.mrf.mxu0
      %6309 = vmatprep.mubr.f32.mxu0 0.0
      %6310 = vmatmul.mubr.f32.gmra.mxu0 %v6141
      %v6311 = vpop.f32.mrf.mxu0
      %v6312 = vadd.f32 0.0, %v6311
      %v6313 = vpop.f32.mrf.mxu0
      %6314 = vmatprep.mubr.f32.mxu0 0.0
      %6315 = vmatmul.mubr.f32.gmra.mxu0 %v6144
      %v6316 = vpop.f32.mrf.mxu0
      %v6317 = vadd.f32 0.0, %v6316
      %v6318 = vpop.f32.mrf.mxu0
      %6319 = vmatprep.mubr.f32.mxu0 0.0
      %6320 = vmatmul.mubr.f32.gmra.mxu0 %v6147
      %v6321 = vpop.f32.mrf.mxu0
      %v6322 = vadd.f32 0.0, %v6321
      %v6323 = vpop.f32.mrf.mxu0
      %6324 = vmatprep.mubr.f32.mxu0 0.0
      %6325 = vmatmul.mubr.f32.gmra.mxu0 %v6150
      %v6326 = vpop.f32.mrf.mxu0
      %v6327 = vadd.f32 0.0, %v6326
      %v6328 = vpop.f32.mrf.mxu0
      %6329 = vmatprep.mubr.f32.mxu0 0.0
      %6330 = vmatmul.mubr.f32.gmra.mxu0 %v6153
      %v6331 = vpop.f32.mrf.mxu0
      %v6332 = vadd.f32 0.0, %v6331
      %v6333 = vpop.f32.mrf.mxu0
      %6334 = vmatprep.mubr.f32.mxu0 0.0
      %6335 = vmatmul.mubr.f32.gmra.mxu0 %v6156
      %v6336 = vpop.f32.mrf.mxu0
      %v6337 = vadd.f32 0.0, %v6336
      %v6338 = vpop.f32.mrf.mxu0
      %6339 = vmatprep.mubr.f32.mxu0 0.0
      %6340 = vmatmul.mubr.f32.gmra.mxu0 %v6159
      %v6341 = vpop.f32.mrf.mxu0
      %v6342 = vadd.f32 0.0, %v6341
      %v6343 = vpop.f32.mrf.mxu0
      %6344 = vmatprep.mubr.f32.mxu0 0.0
      %6345 = vmatmul.mubr.f32.gmra.mxu0 %v6162
      %v6346 = vpop.f32.mrf.mxu0
      %v6347 = vadd.f32 0.0, %v6346
      %v6348 = vpop.f32.mrf.mxu0
      %6349 = vmatprep.mubr.f32.mxu0 0.0
      %6350 = vmatmul.mubr.f32.gmra.mxu0 %v6165
      %v6351 = vpop.f32.mrf.mxu0
      %v6352 = vadd.f32 0.0, %v6351
      %v6353 = vpop.f32.mrf.mxu0
      %6354 = vmatprep.mubr.f32.mxu0 0.0
      %6355 = vmatmul.mubr.f32.gmra.mxu0 %v6168
      %v6356 = vpop.f32.mrf.mxu0
      %v6357 = vadd.f32 0.0, %v6356
      %v6358 = vpop.f32.mrf.mxu0
      %6359 = vmatprep.mubr.f32.mxu0 0.0
      %6360 = vmatmul.mubr.f32.gmra.mxu0 %v6171
      %v6361 = vpop.f32.mrf.mxu0
      %v6362 = vadd.f32 0.0, %v6361
      %v6363 = vpop.f32.mrf.mxu0
      %6364 = vmatprep.mubr.f32.mxu0 0.0
      %6365 = vmatmul.mubr.f32.gmra.mxu0 %v6174
      %v6366 = vpop.f32.mrf.mxu0
      %v6367 = vadd.f32 0.0, %v6366
      %v6368 = vpop.f32.mrf.mxu0
      %6369 = vmatprep.mubr.f32.mxu0 0.0
      %6370 = vmatmul.mubr.f32.gmra.mxu0 %v6177
      %v6371 = vpop.f32.mrf.mxu0
      %v6372 = vadd.f32 0.0, %v6371
      %v6373 = vpop.f32.mrf.mxu0
      %6374 = vmatprep.mubr.f32.mxu0 0.0
      %6375 = vmatmul.mubr.f32.gmra.mxu0 %v6180
      %v6376 = vpop.f32.mrf.mxu0
      %v6377 = vadd.f32 0.0, %v6376
      %v6378 = vpop.f32.mrf.mxu0
      %6379 = vmatprep.mubr.f32.mxu0 0.0
      %6380 = vmatmul.mubr.f32.gmra.mxu0 %v6183
      %v6381 = vpop.f32.mrf.mxu0
      %v6382 = vadd.f32 0.0, %v6381
      %v6383 = vpop.f32.mrf.mxu0
      %6384 = vmatprep.mubr.f32.mxu0 0.0
      %6385 = vmatmul.mubr.f32.gmra.mxu0 %v6186
      %v6386 = vpop.f32.mrf.mxu0
      %v6387 = vadd.f32 0.0, %v6386
      %v6388 = vpop.f32.mrf.mxu0
      %6389 = vmatprep.mubr.f32.mxu0 0.0
      %6390 = vmatmul.mubr.f32.gmra.mxu0 %v6189
      %v6391 = vpop.f32.mrf.mxu0
      %v6392 = vadd.f32 0.0, %v6391
      %v6393 = vpop.f32.mrf.mxu0
      %6394 = vmatprep.mubr.f32.mxu0 0.0
      %6395 = vmatmul.mubr.f32.gmra.mxu0 %v6192
      %v6396 = vpop.f32.mrf.mxu0
      %v6397 = vadd.f32 0.0, %v6396
      %v6398 = vpop.f32.mrf.mxu0
      %6399 = vmatprep.mubr.f32.mxu0 0.0
      %6400 = vmatmul.mubr.f32.gmra.mxu0 %v6195
      %v6401 = vpop.f32.mrf.mxu0
      %v6402 = vadd.f32 0.0, %v6401
      %v6403 = vpop.f32.mrf.mxu0
      %6404 = vmatprep.mubr.f32.mxu0 0.0
      %6405 = vmatmul.mubr.f32.gmra.mxu0 %v6198
      %v6406 = vpop.f32.mrf.mxu0
      %v6407 = vadd.f32 0.0, %v6406
      %v6408 = vpop.f32.mrf.mxu0
      %6409 = vmatprep.mubr.f32.mxu0 0.0
      %6410 = vmatmul.mubr.f32.gmra.mxu0 %v6201
      %v6411 = vpop.f32.mrf.mxu0
      %v6412 = vadd.f32 0.0, %v6411
      %v6413 = vpop.f32.mrf.mxu0
      %6414 = vmatprep.mubr.f32.mxu0 0.0
      %6415 = vmatmul.mubr.f32.gmra.mxu0 %v6204
      %v6416 = vpop.f32.mrf.mxu0
      %v6417 = vadd.f32 0.0, %v6416
      %v6418 = vpop.f32.mrf.mxu0
      %6419 = vmatprep.mubr.f32.mxu0 0.0
      %6420 = vmatmul.mubr.f32.gmra.mxu0 %v6207
      %v6421 = vpop.f32.mrf.mxu0
      %v6422 = vadd.f32 0.0, %v6421
      %v6423 = vpop.f32.mrf.mxu0
      %6424 = vmatprep.mubr.f32.mxu0 0.0
      %6425 = vmatmul.mubr.f32.gmra.mxu0 %v6210
      %v6426 = vpop.f32.mrf.mxu0
      %v6427 = vadd.f32 0.0, %v6426
      %v6428 = vpop.f32.mrf.mxu0
      %6429 = vmatprep.mubr.f32.mxu0 0.0
      %6430 = vmatmul.mubr.f32.gmra.mxu0 %v6213
      %v6431 = vpop.f32.mrf.mxu0
      %v6432 = vadd.f32 0.0, %v6431
      %v6433 = vpop.f32.mrf.mxu0
      %6434 = vmatprep.mubr.f32.mxu0 0.0
      %6435 = vmatmul.mubr.f32.gmra.mxu0 %v6216
      %v6436 = vpop.f32.mrf.mxu0
      %v6437 = vadd.f32 0.0, %v6436
      %v6438 = vpop.f32.mrf.mxu0
      %6439 = vmatprep.mubr.f32.mxu0 0.0
      %6440 = vmatmul.mubr.f32.gmra.mxu0 %v6219
      %v6441 = vpop.f32.mrf.mxu0
      %v6442 = vadd.f32 0.0, %v6441
      %v6443 = vpop.f32.mrf.mxu0
      %6444 = vmatprep.mubr.f32.mxu0 0.0
      %6445 = vmatmul.mubr.f32.gmra.mxu0 %v6222
      %v6446 = vpop.f32.mrf.mxu0
      %v6447 = vadd.f32 0.0, %v6446
      %v6448 = vpop.f32.mrf.mxu0
      %6449 = vmatprep.mubr.f32.mxu0 0.0
      %6450 = vmatmul.mubr.f32.gmra.mxu0 %v6225
      %v6451 = vpop.f32.mrf.mxu0
      %v6452 = vadd.f32 0.0, %v6451
      %v6453 = vpop.f32.mrf.mxu0
      %6454 = vdwg.mxu0
      %v6456 = vsel %vm400, %v6001, 0
      %v6459 = vsel %vm400, %v6002, 0
      %v6462 = vsel %vm400, %v6003, 0
      %v6465 = vsel %vm400, %v6004, 0
      %v6468 = vsel %vm400, %v6005, 0
      %v6471 = vsel %vm400, %v6006, 0
      %v6474 = vsel %vm400, %v6007, 0
      %v6477 = vsel %vm400, %v6008, 0
      %v6480 = vsel %vm400, %v6009, 0
      %v6483 = vsel %vm400, %v6010, 0
      %v6486 = vsel %vm400, %v6011, 0
      %v6489 = vsel %vm400, %v6012, 0
      %v6492 = vsel %vm400, %v6013, 0
      %v6495 = vsel %vm400, %v6014, 0
      %v6498 = vsel %vm400, %v6015, 0
      %v6501 = vsel %vm400, %v6016, 0
      %v6504 = vsel %vm400, %v6017, 0
      %v6507 = vsel %vm400, %v6018, 0
      %v6510 = vsel %vm400, %v6019, 0
      %v6513 = vsel %vm400, %v6020, 0
      %v6516 = vsel %vm400, %v6021, 0
      %v6519 = vsel %vm400, %v6022, 0
      %v6522 = vsel %vm400, %v6023, 0
      %v6525 = vsel %vm400, %v6024, 0
      %v6528 = vsel %vm400, %v6025, 0
      %v6531 = vsel %vm400, %v6026, 0
      %v6534 = vsel %vm400, %v6027, 0
      %v6537 = vsel %vm400, %v6028, 0
      %v6540 = vsel %vm400, %v6029, 0
      %v6543 = vsel %vm400, %v6030, 0
      %v6546 = vsel %vm400, %v6031, 0
      %v6549 = vsel %vm400, %v6032, 0
      %v6552 = vsel %vm1114, %v6129, 0
      %6554 = vmatprep.subr.mxu0 0.0
      %6555 = vmatpush1.msra.mxu0 0.0
      %6556 = vmatprep.subr.mxu0 0.0
      %6557 = vmatpush1.msra.mxu0 0.0
      %6558 = vmatprep.subr.mxu0 0.0
      %6559 = vmatpush1.msra.mxu0 0.0
      %6560 = vmatprep.subr.mxu0 0.0
      %6561 = vmatpush1.msra.mxu0 0.0
      %6562 = vmatprep.subr.mxu0 0.0
      %6563 = vmatpush1.msra.mxu0 0.0
      %6564 = vmatprep.subr.mxu0 0.0
      %6565 = vmatpush1.msra.mxu0 0.0
      %6566 = vmatprep.subr.mxu0 0.0
      %6567 = vmatpush1.msra.mxu0 0.0
      %6568 = vmatprep.subr.mxu0 0.0
      %6569 = vmatpush1.msra.mxu0 0.0
      %6570 = vmatprep.subr.mxu0 0.0
      %6571 = vmatpush1.msra.mxu0 0.0
      %6572 = vmatprep.subr.mxu0 0.0
      %6573 = vmatpush1.msra.mxu0 0.0
      %6574 = vmatprep.subr.mxu0 0.0
      %6575 = vmatpush1.msra.mxu0 0.0
      %6576 = vmatprep.subr.mxu0 0.0
      %6577 = vmatpush1.msra.mxu0 0.0
      %6578 = vmatprep.subr.mxu0 0.0
      %6579 = vmatpush1.msra.mxu0 0.0
      %6580 = vmatprep.subr.mxu0 0.0
      %6581 = vmatpush1.msra.mxu0 0.0
      %6582 = vmatprep.subr.mxu0 0.0
      %6583 = vmatpush1.msra.mxu0 0.0
      %6584 = vmatprep.subr.mxu0 0.0
      %6585 = vmatpush1.msra.mxu0 %v6552
      %6586 = vmatprep.subr.mxu0 0.0
      %6587 = vmatpush2.msra.mxu0 0.0
      %6588 = vmatprep.subr.mxu0 0.0
      %6589 = vmatpush2.msra.mxu0 0.0
      %6590 = vmatprep.subr.mxu0 0.0
      %6591 = vmatpush2.msra.mxu0 0.0
      %6592 = vmatprep.subr.mxu0 0.0
      %6593 = vmatpush2.msra.mxu0 0.0
      %6594 = vmatprep.subr.mxu0 0.0
      %6595 = vmatpush2.msra.mxu0 0.0
      %6596 = vmatprep.subr.mxu0 0.0
      %6597 = vmatpush2.msra.mxu0 0.0
      %6598 = vmatprep.subr.mxu0 0.0
      %6599 = vmatpush2.msra.mxu0 0.0
      %6600 = vmatprep.subr.mxu0 0.0
      %6601 = vmatpush2.msra.mxu0 0.0
      %6602 = vmatprep.subr.mxu0 0.0
      %6603 = vmatpush2.msra.mxu0 0.0
      %6604 = vmatprep.subr.mxu0 0.0
      %6605 = vmatpush2.msra.mxu0 0.0
      %6606 = vmatprep.subr.mxu0 0.0
      %6607 = vmatpush2.msra.mxu0 0.0
      %6608 = vmatprep.subr.mxu0 0.0
      %6609 = vmatpush2.msra.mxu0 0.0
      %6610 = vmatprep.subr.mxu0 0.0
      %6611 = vmatpush2.msra.mxu0 0.0
      %6612 = vmatprep.subr.mxu0 0.0
      %6613 = vmatpush2.msra.mxu0 0.0
      %6614 = vmatprep.subr.mxu0 0.0
      %6615 = vmatpush2.msra.mxu0 0.0
      %6616 = vmatprep.subr.mxu0 0.0
      %6617 = vmatpush2.msra.mxu0 0.0
      %6618 = vmatprep.mubr.f32.mxu0 0.0
      %6619 = vmatmul.mubr.f32.gmra.mxu0 %v6456
      %v6620 = vpop.f32.mrf.mxu0
      %v6621 = vadd.f32 %v6297, %v6620
      %v6622 = vpop.f32.mrf.mxu0
      %6623 = vmatprep.mubr.f32.mxu0 0.0
      %6624 = vmatmul.mubr.f32.gmra.mxu0 %v6459
      %v6625 = vpop.f32.mrf.mxu0
      %v6626 = vadd.f32 %v6302, %v6625
      %v6627 = vpop.f32.mrf.mxu0
      %6628 = vmatprep.mubr.f32.mxu0 0.0
      %6629 = vmatmul.mubr.f32.gmra.mxu0 %v6462
      %v6630 = vpop.f32.mrf.mxu0
      %v6631 = vadd.f32 %v6307, %v6630
      %v6632 = vpop.f32.mrf.mxu0
      %6633 = vmatprep.mubr.f32.mxu0 0.0
      %6634 = vmatmul.mubr.f32.gmra.mxu0 %v6465
      %v6635 = vpop.f32.mrf.mxu0
      %v6636 = vadd.f32 %v6312, %v6635
      %v6637 = vpop.f32.mrf.mxu0
      %6638 = vmatprep.mubr.f32.mxu0 0.0
      %6639 = vmatmul.mubr.f32.gmra.mxu0 %v6468
      %v6640 = vpop.f32.mrf.mxu0
      %v6641 = vadd.f32 %v6317, %v6640
      %v6642 = vpop.f32.mrf.mxu0
      %6643 = vmatprep.mubr.f32.mxu0 0.0
      %6644 = vmatmul.mubr.f32.gmra.mxu0 %v6471
      %v6645 = vpop.f32.mrf.mxu0
      %v6646 = vadd.f32 %v6322, %v6645
      %v6647 = vpop.f32.mrf.mxu0
      %6648 = vmatprep.mubr.f32.mxu0 0.0
      %6649 = vmatmul.mubr.f32.gmra.mxu0 %v6474
      %v6650 = vpop.f32.mrf.mxu0
      %v6651 = vadd.f32 %v6327, %v6650
      %v6652 = vpop.f32.mrf.mxu0
      %6653 = vmatprep.mubr.f32.mxu0 0.0
      %6654 = vmatmul.mubr.f32.gmra.mxu0 %v6477
      %v6655 = vpop.f32.mrf.mxu0
      %v6656 = vadd.f32 %v6332, %v6655
      %v6657 = vpop.f32.mrf.mxu0
      %6658 = vmatprep.mubr.f32.mxu0 0.0
      %6659 = vmatmul.mubr.f32.gmra.mxu0 %v6480
      %v6660 = vpop.f32.mrf.mxu0
      %v6661 = vadd.f32 %v6337, %v6660
      %v6662 = vpop.f32.mrf.mxu0
      %6663 = vmatprep.mubr.f32.mxu0 0.0
      %6664 = vmatmul.mubr.f32.gmra.mxu0 %v6483
      %v6665 = vpop.f32.mrf.mxu0
      %v6666 = vadd.f32 %v6342, %v6665
      %v6667 = vpop.f32.mrf.mxu0
      %6668 = vmatprep.mubr.f32.mxu0 0.0
      %6669 = vmatmul.mubr.f32.gmra.mxu0 %v6486
      %v6670 = vpop.f32.mrf.mxu0
      %v6671 = vadd.f32 %v6347, %v6670
      %v6672 = vpop.f32.mrf.mxu0
      %6673 = vmatprep.mubr.f32.mxu0 0.0
      %6674 = vmatmul.mubr.f32.gmra.mxu0 %v6489
      %v6675 = vpop.f32.mrf.mxu0
      %v6676 = vadd.f32 %v6352, %v6675
      %v6677 = vpop.f32.mrf.mxu0
      %6678 = vmatprep.mubr.f32.mxu0 0.0
      %6679 = vmatmul.mubr.f32.gmra.mxu0 %v6492
      %v6680 = vpop.f32.mrf.mxu0
      %v6681 = vadd.f32 %v6357, %v6680
      %v6682 = vpop.f32.mrf.mxu0
      %6683 = vmatprep.mubr.f32.mxu0 0.0
      %6684 = vmatmul.mubr.f32.gmra.mxu0 %v6495
      %v6685 = vpop.f32.mrf.mxu0
      %v6686 = vadd.f32 %v6362, %v6685
      %v6687 = vpop.f32.mrf.mxu0
      %6688 = vmatprep.mubr.f32.mxu0 0.0
      %6689 = vmatmul.mubr.f32.gmra.mxu0 %v6498
      %v6690 = vpop.f32.mrf.mxu0
      %v6691 = vadd.f32 %v6367, %v6690
      %v6692 = vpop.f32.mrf.mxu0
      %6693 = vmatprep.mubr.f32.mxu0 0.0
      %6694 = vmatmul.mubr.f32.gmra.mxu0 %v6501
      %v6695 = vpop.f32.mrf.mxu0
      %v6696 = vadd.f32 %v6372, %v6695
      %v6697 = vpop.f32.mrf.mxu0
      %6698 = vmatprep.mubr.f32.mxu0 0.0
      %6699 = vmatmul.mubr.f32.gmra.mxu0 %v6504
      %v6700 = vpop.f32.mrf.mxu0
      %v6701 = vadd.f32 %v6377, %v6700
      %v6702 = vpop.f32.mrf.mxu0
      %6703 = vmatprep.mubr.f32.mxu0 0.0
      %6704 = vmatmul.mubr.f32.gmra.mxu0 %v6507
      %v6705 = vpop.f32.mrf.mxu0
      %v6706 = vadd.f32 %v6382, %v6705
      %v6707 = vpop.f32.mrf.mxu0
      %6708 = vmatprep.mubr.f32.mxu0 0.0
      %6709 = vmatmul.mubr.f32.gmra.mxu0 %v6510
      %v6710 = vpop.f32.mrf.mxu0
      %v6711 = vadd.f32 %v6387, %v6710
      %v6712 = vpop.f32.mrf.mxu0
      %6713 = vmatprep.mubr.f32.mxu0 0.0
      %6714 = vmatmul.mubr.f32.gmra.mxu0 %v6513
      %v6715 = vpop.f32.mrf.mxu0
      %v6716 = vadd.f32 %v6392, %v6715
      %v6717 = vpop.f32.mrf.mxu0
      %6718 = vmatprep.mubr.f32.mxu0 0.0
      %6719 = vmatmul.mubr.f32.gmra.mxu0 %v6516
      %v6720 = vpop.f32.mrf.mxu0
      %v6721 = vadd.f32 %v6397, %v6720
      %v6722 = vpop.f32.mrf.mxu0
      %6723 = vmatprep.mubr.f32.mxu0 0.0
      %6724 = vmatmul.mubr.f32.gmra.mxu0 %v6519
      %v6725 = vpop.f32.mrf.mxu0
      %v6726 = vadd.f32 %v6402, %v6725
      %v6727 = vpop.f32.mrf.mxu0
      %6728 = vmatprep.mubr.f32.mxu0 0.0
      %6729 = vmatmul.mubr.f32.gmra.mxu0 %v6522
      %v6730 = vpop.f32.mrf.mxu0
      %v6731 = vadd.f32 %v6407, %v6730
      %v6732 = vpop.f32.mrf.mxu0
      %6733 = vmatprep.mubr.f32.mxu0 0.0
      %6734 = vmatmul.mubr.f32.gmra.mxu0 %v6525
      %v6735 = vpop.f32.mrf.mxu0
      %v6736 = vadd.f32 %v6412, %v6735
      %v6737 = vpop.f32.mrf.mxu0
      %6738 = vmatprep.mubr.f32.mxu0 0.0
      %6739 = vmatmul.mubr.f32.gmra.mxu0 %v6528
      %v6740 = vpop.f32.mrf.mxu0
      %v6741 = vadd.f32 %v6417, %v6740
      %v6742 = vpop.f32.mrf.mxu0
      %6743 = vmatprep.mubr.f32.mxu0 0.0
      %6744 = vmatmul.mubr.f32.gmra.mxu0 %v6531
      %v6745 = vpop.f32.mrf.mxu0
      %v6746 = vadd.f32 %v6422, %v6745
      %v6747 = vpop.f32.mrf.mxu0
      %6748 = vmatprep.mubr.f32.mxu0 0.0
      %6749 = vmatmul.mubr.f32.gmra.mxu0 %v6534
      %v6750 = vpop.f32.mrf.mxu0
      %v6751 = vadd.f32 %v6427, %v6750
      %v6752 = vpop.f32.mrf.mxu0
      %6753 = vmatprep.mubr.f32.mxu0 0.0
      %6754 = vmatmul.mubr.f32.gmra.mxu0 %v6537
      %v6755 = vpop.f32.mrf.mxu0
      %v6756 = vadd.f32 %v6432, %v6755
      %v6757 = vpop.f32.mrf.mxu0
      %6758 = vmatprep.mubr.f32.mxu0 0.0
      %6759 = vmatmul.mubr.f32.gmra.mxu0 %v6540
      %v6760 = vpop.f32.mrf.mxu0
      %v6761 = vadd.f32 %v6437, %v6760
      %v6762 = vpop.f32.mrf.mxu0
      %6763 = vmatprep.mubr.f32.mxu0 0.0
      %6764 = vmatmul.mubr.f32.gmra.mxu0 %v6543
      %v6765 = vpop.f32.mrf.mxu0
      %v6766 = vadd.f32 %v6442, %v6765
      %v6767 = vpop.f32.mrf.mxu0
      %6768 = vmatprep.mubr.f32.mxu0 0.0
      %6769 = vmatmul.mubr.f32.gmra.mxu0 %v6546
      %v6770 = vpop.f32.mrf.mxu0
      %v6771 = vadd.f32 %v6447, %v6770
      %v6772 = vpop.f32.mrf.mxu0
      %6773 = vmatprep.mubr.f32.mxu0 0.0
      %6774 = vmatmul.mubr.f32.gmra.mxu0 %v6549
      %v6775 = vpop.f32.mrf.mxu0
      %v6776 = vadd.f32 %v6452, %v6775
      %v6777 = vpop.f32.mrf.mxu0
      %6778 = vdwg.mxu0
      %v6779 = vld [vmem:[%s9] sm:$0x1]
      %v6781 = vlaneseq
      %v6782 = vshrl.u32 %v6781, 7
      %v6783 = vsub.s32 0, %v6782
      %v6784 = vrot.slane %v6779, %v6783
      %v6786 = vadd.f32 %v6621, %v6784
      %v6787 = vadd.f32 %v6626, %v6784
      %v6788 = vadd.f32 %v6631, %v6784
      %v6789 = vadd.f32 %v6636, %v6784
      %v6790 = vadd.f32 %v6641, %v6784
      %v6791 = vadd.f32 %v6646, %v6784
      %v6792 = vadd.f32 %v6651, %v6784
      %v6793 = vadd.f32 %v6656, %v6784
      %v6794 = vadd.f32 %v6661, %v6784
      %v6795 = vadd.f32 %v6666, %v6784
      %v6796 = vadd.f32 %v6671, %v6784
      %v6797 = vadd.f32 %v6676, %v6784
      %v6798 = vadd.f32 %v6681, %v6784
      %v6799 = vadd.f32 %v6686, %v6784
      %v6800 = vadd.f32 %v6691, %v6784
      %v6801 = vadd.f32 %v6696, %v6784
      %v6802 = vadd.f32 %v6701, %v6784
      %v6803 = vadd.f32 %v6706, %v6784
      %v6804 = vadd.f32 %v6711, %v6784
      %v6805 = vadd.f32 %v6716, %v6784
      %v6806 = vadd.f32 %v6721, %v6784
      %v6807 = vadd.f32 %v6726, %v6784
      %v6808 = vadd.f32 %v6731, %v6784
      %v6809 = vadd.f32 %v6736, %v6784
      %v6810 = vadd.f32 %v6741, %v6784
      %v6811 = vadd.f32 %v6746, %v6784
      %v6812 = vadd.f32 %v6751, %v6784
      %v6813 = vadd.f32 %v6756, %v6784
      %v6814 = vadd.f32 %v6761, %v6784
      %v6815 = vadd.f32 %v6766, %v6784
      %v6816 = vadd.f32 %v6771, %v6784
      %v6817 = vadd.f32 %v6776, %v6784
      %v6818 = vxor.u32 %v6786, 2147483648
      %v6819 = vxor.u32 %v6787, 2147483648
      %v6820 = vxor.u32 %v6788, 2147483648
      %v6821 = vxor.u32 %v6789, 2147483648
      %v6822 = vxor.u32 %v6790, 2147483648
      %v6823 = vxor.u32 %v6791, 2147483648
      %v6824 = vxor.u32 %v6792, 2147483648
      %v6825 = vxor.u32 %v6793, 2147483648
      %v6826 = vxor.u32 %v6794, 2147483648
      %v6827 = vxor.u32 %v6795, 2147483648
      %v6828 = vxor.u32 %v6796, 2147483648
      %v6829 = vxor.u32 %v6797, 2147483648
      %v6830 = vxor.u32 %v6798, 2147483648
      %v6831 = vxor.u32 %v6799, 2147483648
      %v6832 = vxor.u32 %v6800, 2147483648
      %v6833 = vxor.u32 %v6801, 2147483648
      %v6834 = vxor.u32 %v6802, 2147483648
      %v6835 = vxor.u32 %v6803, 2147483648
      %v6836 = vxor.u32 %v6804, 2147483648
      %v6837 = vxor.u32 %v6805, 2147483648
      %v6838 = vxor.u32 %v6806, 2147483648
      %v6839 = vxor.u32 %v6807, 2147483648
      %v6840 = vxor.u32 %v6808, 2147483648
      %v6841 = vxor.u32 %v6809, 2147483648
      %v6842 = vxor.u32 %v6810, 2147483648
      %v6843 = vxor.u32 %v6811, 2147483648
      %v6844 = vxor.u32 %v6812, 2147483648
      %v6845 = vxor.u32 %v6813, 2147483648
      %v6846 = vxor.u32 %v6814, 2147483648
      %v6847 = vxor.u32 %v6815, 2147483648
      %v6848 = vxor.u32 %v6816, 2147483648
      %v6849 = vxor.u32 %v6817, 2147483648
      %v6850 = vmul.f32 %v6818, 1.442695
      %v6851 = vpow.pop %v6850
      %v6852 = vmul.f32 %v6819, 1.442695
      %v6853 = vpow.pop %v6852
      %v6854 = vmul.f32 %v6820, 1.442695
      %v6855 = vpow.pop %v6854
      %v6856 = vmul.f32 %v6821, 1.442695
      %v6857 = vpow.pop %v6856
      %v6858 = vmul.f32 %v6822, 1.442695
      %v6859 = vpow.pop %v6858
      %v6860 = vmul.f32 %v6823, 1.442695
      %v6861 = vpow.pop %v6860
      %v6862 = vmul.f32 %v6824, 1.442695
      %v6863 = vpow.pop %v6862
      %v6864 = vmul.f32 %v6825, 1.442695
      %v6865 = vpow.pop %v6864
      %v6866 = vmul.f32 %v6826, 1.442695
      %v6867 = vpow.pop %v6866
      %v6868 = vmul.f32 %v6827, 1.442695
      %v6869 = vpow.pop %v6868
      %v6870 = vmul.f32 %v6828, 1.442695
      %v6871 = vpow.pop %v6870
      %v6872 = vmul.f32 %v6829, 1.442695
      %v6873 = vpow.pop %v6872
      %v6874 = vmul.f32 %v6830, 1.442695
      %v6875 = vpow.pop %v6874
      %v6876 = vmul.f32 %v6831, 1.442695
      %v6877 = vpow.pop %v6876
      %v6878 = vmul.f32 %v6832, 1.442695
      %v6879 = vpow.pop %v6878
      %v6880 = vmul.f32 %v6833, 1.442695
      %v6881 = vpow.pop %v6880
      %v6882 = vmul.f32 %v6834, 1.442695
      %v6883 = vpow.pop %v6882
      %v6884 = vmul.f32 %v6835, 1.442695
      %v6885 = vpow.pop %v6884
      %v6886 = vmul.f32 %v6836, 1.442695
      %v6887 = vpow.pop %v6886
      %v6888 = vmul.f32 %v6837, 1.442695
      %v6889 = vpow.pop %v6888
      %v6890 = vmul.f32 %v6838, 1.442695
      %v6891 = vpow.pop %v6890
      %v6892 = vmul.f32 %v6839, 1.442695
      %v6893 = vpow.pop %v6892
      %v6894 = vmul.f32 %v6840, 1.442695
      %v6895 = vpow.pop %v6894
      %v6896 = vmul.f32 %v6841, 1.442695
      %v6897 = vpow.pop %v6896
      %v6898 = vmul.f32 %v6842, 1.442695
      %v6899 = vpow.pop %v6898
      %v6900 = vmul.f32 %v6843, 1.442695
      %v6901 = vpow.pop %v6900
      %v6902 = vmul.f32 %v6844, 1.442695
      %v6903 = vpow.pop %v6902
      %v6904 = vmul.f32 %v6845, 1.442695
      %v6905 = vpow.pop %v6904
      %v6906 = vmul.f32 %v6846, 1.442695
      %v6907 = vpow.pop %v6906
      %v6908 = vmul.f32 %v6847, 1.442695
      %v6909 = vpow.pop %v6908
      %v6910 = vmul.f32 %v6848, 1.442695
      %v6911 = vpow.pop %v6910
      %v6912 = vmul.f32 %v6849, 1.442695
      %v6913 = vpow.pop %v6912
      %v6914 = vadd.f32 %v6851, 1.0
      %v6915 = vadd.f32 %v6853, 1.0
      %v6916 = vadd.f32 %v6855, 1.0
      %v6917 = vadd.f32 %v6857, 1.0
      %v6918 = vadd.f32 %v6859, 1.0
      %v6919 = vadd.f32 %v6861, 1.0
      %v6920 = vadd.f32 %v6863, 1.0
      %v6921 = vadd.f32 %v6865, 1.0
      %v6922 = vadd.f32 %v6867, 1.0
      %v6923 = vadd.f32 %v6869, 1.0
      %v6924 = vadd.f32 %v6871, 1.0
      %v6925 = vadd.f32 %v6873, 1.0
      %v6926 = vadd.f32 %v6875, 1.0
      %v6927 = vadd.f32 %v6877, 1.0
      %v6928 = vadd.f32 %v6879, 1.0
      %v6929 = vadd.f32 %v6881, 1.0
      %v6930 = vadd.f32 %v6883, 1.0
      %v6931 = vadd.f32 %v6885, 1.0
      %v6932 = vadd.f32 %v6887, 1.0
      %v6933 = vadd.f32 %v6889, 1.0
      %v6934 = vadd.f32 %v6891, 1.0
      %v6935 = vadd.f32 %v6893, 1.0
      %v6936 = vadd.f32 %v6895, 1.0
      %v6937 = vadd.f32 %v6897, 1.0
      %v6938 = vadd.f32 %v6899, 1.0
      %v6939 = vadd.f32 %v6901, 1.0
      %v6940 = vadd.f32 %v6903, 1.0
      %v6941 = vadd.f32 %v6905, 1.0
      %v6942 = vadd.f32 %v6907, 1.0
      %v6943 = vadd.f32 %v6909, 1.0
      %v6944 = vadd.f32 %v6911, 1.0
      %v6945 = vadd.f32 %v6913, 1.0
      %v6946 = vrcp.pop %v6914
      %v6947 = vmul.f32 1.0, %v6946
      %v6948 = vrcp.pop %v6915
      %v6949 = vmul.f32 1.0, %v6948
      %v6950 = vrcp.pop %v6916
      %v6951 = vmul.f32 1.0, %v6950
      %v6952 = vrcp.pop %v6917
      %v6953 = vmul.f32 1.0, %v6952
      %v6954 = vrcp.pop %v6918
      %v6955 = vmul.f32 1.0, %v6954
      %v6956 = vrcp.pop %v6919
      %v6957 = vmul.f32 1.0, %v6956
      %v6958 = vrcp.pop %v6920
      %v6959 = vmul.f32 1.0, %v6958
      %v6960 = vrcp.pop %v6921
      %v6961 = vmul.f32 1.0, %v6960
      %v6962 = vrcp.pop %v6922
      %v6963 = vmul.f32 1.0, %v6962
      %v6964 = vrcp.pop %v6923
      %v6965 = vmul.f32 1.0, %v6964
      %v6966 = vrcp.pop %v6924
      %v6967 = vmul.f32 1.0, %v6966
      %v6968 = vrcp.pop %v6925
      %v6969 = vmul.f32 1.0, %v6968
      %v6970 = vrcp.pop %v6926
      %v6971 = vmul.f32 1.0, %v6970
      %v6972 = vrcp.pop %v6927
      %v6973 = vmul.f32 1.0, %v6972
      %v6974 = vrcp.pop %v6928
      %v6975 = vmul.f32 1.0, %v6974
      %v6976 = vrcp.pop %v6929
      %v6977 = vmul.f32 1.0, %v6976
      %v6978 = vrcp.pop %v6930
      %v6979 = vmul.f32 1.0, %v6978
      %v6980 = vrcp.pop %v6931
      %v6981 = vmul.f32 1.0, %v6980
      %v6982 = vrcp.pop %v6932
      %v6983 = vmul.f32 1.0, %v6982
      %v6984 = vrcp.pop %v6933
      %v6985 = vmul.f32 1.0, %v6984
      %v6986 = vrcp.pop %v6934
      %v6987 = vmul.f32 1.0, %v6986
      %v6988 = vrcp.pop %v6935
      %v6989 = vmul.f32 1.0, %v6988
      %v6990 = vrcp.pop %v6936
      %v6991 = vmul.f32 1.0, %v6990
      %v6992 = vrcp.pop %v6937
      %v6993 = vmul.f32 1.0, %v6992
      %v6994 = vrcp.pop %v6938
      %v6995 = vmul.f32 1.0, %v6994
      %v6996 = vrcp.pop %v6939
      %v6997 = vmul.f32 1.0, %v6996
      %v6998 = vrcp.pop %v6940
      %v6999 = vmul.f32 1.0, %v6998
      %v7000 = vrcp.pop %v6941
      %v7001 = vmul.f32 1.0, %v7000
      %v7002 = vrcp.pop %v6942
      %v7003 = vmul.f32 1.0, %v7002
      %v7004 = vrcp.pop %v6943
      %v7005 = vmul.f32 1.0, %v7004
      %v7006 = vrcp.pop %v6944
      %v7007 = vmul.f32 1.0, %v7006
      %v7008 = vrcp.pop %v6945
      %v7009 = vmul.f32 1.0, %v7008
      %v7010 = vmul.f32 %v6786, %v6947
      %v7011 = vmul.f32 %v6787, %v6949
      %v7012 = vmul.f32 %v6788, %v6951
      %v7013 = vmul.f32 %v6789, %v6953
      %v7014 = vmul.f32 %v6790, %v6955
      %v7015 = vmul.f32 %v6791, %v6957
      %v7016 = vmul.f32 %v6792, %v6959
      %v7017 = vmul.f32 %v6793, %v6961
      %v7018 = vmul.f32 %v6794, %v6963
      %v7019 = vmul.f32 %v6795, %v6965
      %v7020 = vmul.f32 %v6796, %v6967
      %v7021 = vmul.f32 %v6797, %v6969
      %v7022 = vmul.f32 %v6798, %v6971
      %v7023 = vmul.f32 %v6799, %v6973
      %v7024 = vmul.f32 %v6800, %v6975
      %v7025 = vmul.f32 %v6801, %v6977
      %v7026 = vmul.f32 %v6802, %v6979
      %v7027 = vmul.f32 %v6803, %v6981
      %v7028 = vmul.f32 %v6804, %v6983
      %v7029 = vmul.f32 %v6805, %v6985
      %v7030 = vmul.f32 %v6806, %v6987
      %v7031 = vmul.f32 %v6807, %v6989
      %v7032 = vmul.f32 %v6808, %v6991
      %v7033 = vmul.f32 %v6809, %v6993
      %v7034 = vmul.f32 %v6810, %v6995
      %v7035 = vmul.f32 %v6811, %v6997
      %v7036 = vmul.f32 %v6812, %v6999
      %v7037 = vmul.f32 %v6813, %v7001
      %v7038 = vmul.f32 %v6814, %v7003
      %v7039 = vmul.f32 %v6815, %v7005
      %v7040 = vmul.f32 %v6816, %v7007
      %v7041 = vmul.f32 %v6817, %v7009
      %vm7042 = vcmask 64512
      %7043 = vst.msk [vmem:[%s399] sm:$0xff] %vm7042, %v7010
      %7044 = vst.msk [vmem:[%s399 + $0x8] sm:$0xff] %vm7042, %v7011
      %7045 = vst.msk [vmem:[%s399 + $0x10] sm:$0xff] %vm7042, %v7012
      %7046 = vst.msk [vmem:[%s399 + $0x18] sm:$0xff] %vm7042, %v7013
      %7047 = vst.msk [vmem:[%s399 + $0x20] sm:$0xff] %vm7042, %v7014
      %7048 = vst.msk [vmem:[%s399 + $0x28] sm:$0xff] %vm7042, %v7015
      %7049 = vst.msk [vmem:[%s399 + $0x30] sm:$0xff] %vm7042, %v7016
      %7050 = vst.msk [vmem:[%s399 + $0x38] sm:$0xff] %vm7042, %v7017
      %7051 = vst.msk [vmem:[%s399 + $0x40] sm:$0xff] %vm7042, %v7018
      %7052 = vst.msk [vmem:[%s399 + $0x48] sm:$0xff] %vm7042, %v7019
      %7053 = vst.msk [vmem:[%s399 + $0x50] sm:$0xff] %vm7042, %v7020
      %7054 = vst.msk [vmem:[%s399 + $0x58] sm:$0xff] %vm7042, %v7021
      %7055 = vst.msk [vmem:[%s399 + $0x60] sm:$0xff] %vm7042, %v7022
      %7056 = vst.msk [vmem:[%s399 + $0x68] sm:$0xff] %vm7042, %v7023
      %7057 = vst.msk [vmem:[%s399 + $0x70] sm:$0xff] %vm7042, %v7024
      %7058 = vst.msk [vmem:[%s399 + $0x78] sm:$0xff] %vm7042, %v7025
      %7059 = vst.msk [vmem:[%s399 + $0x80] sm:$0xff] %vm7042, %v7026
      %7060 = vst.msk [vmem:[%s399 + $0x88] sm:$0xff] %vm7042, %v7027
      %7061 = vst.msk [vmem:[%s399 + $0x90] sm:$0xff] %vm7042, %v7028
      %7062 = vst.msk [vmem:[%s399 + $0x98] sm:$0xff] %vm7042, %v7029
      %7063 = vst.msk [vmem:[%s399 + $0xa0] sm:$0xff] %vm7042, %v7030
      %7064 = vst.msk [vmem:[%s399 + $0xa8] sm:$0xff] %vm7042, %v7031
      %7065 = vst.msk [vmem:[%s399 + $0xb0] sm:$0xff] %vm7042, %v7032
      %7066 = vst.msk [vmem:[%s399 + $0xb8] sm:$0xff] %vm7042, %v7033
      %7067 = vst.msk [vmem:[%s399 + $0xc0] sm:$0xff] %vm7042, %v7034
      %7068 = vst.msk [vmem:[%s399 + $0xc8] sm:$0xff] %vm7042, %v7035
      %7069 = vst.msk [vmem:[%s399 + $0xd0] sm:$0xff] %vm7042, %v7036
      %7070 = vst.msk [vmem:[%s399 + $0xd8] sm:$0xff] %vm7042, %v7037
      %7071 = vst.msk [vmem:[%s399 + $0xe0] sm:$0xff] %vm7042, %v7038
      %7072 = vst.msk [vmem:[%s399 + $0xe8] sm:$0xff] %vm7042, %v7039
      %7073 = vst.msk [vmem:[%s399 + $0xf0] sm:$0xff] %vm7042, %v7040
      %7074 = vst.msk [vmem:[%s399 + $0xf8] sm:$0xff] %vm7042, %v7041
      %p7075 = scmp.lt.s32.totalorder %s21, 1
      %s7076 = scalar_select %p7075, %s21, 1
      %s7077 = smul.addr %s7076, 32
      %s7078 = smul.addr %s7077, 8
      %s7079 = scalar_lea.vmem %s10, %s7078
      // Predicated region
      $region61: #{bottleneck_csp_forward.3} parent=59 // pred_check
        %p7080 = pneg %p264
      $region62: #{bottleneck_csp_forward.3} parent=59 // pred_check_branch
        %7082 = sbr.rel (%p7080) target = $region64
      $region63: #{bottleneck_csp_forward.3} parent=59 // pred_region
        _
      $region64: #{bottleneck_csp_forward.3} parent=59 // pred_fallthru
        _
    $region60: #{bottleneck_csp_forward.3} parent=5 // pred_fallthru
      _
    %p7083 = scmp.le.s32.totalorder 2, %s16
    // Predicated region
    $region65: #{bottleneck_csp_forward.3} parent=5 // pred_check
      %p7084 = pneg %p7083
    $region66: #{bottleneck_csp_forward.3} parent=5 // pred_check_branch
      %7086 = sbr.rel (%p7084) target = $region68
    $region67: #{bottleneck_csp_forward.3} parent=5 // pred_region
      %s7087 = ssub.s32 %s16, 2
      // Predicated region
      $region69: #{bottleneck_csp_forward.3} parent=67 // pred_check
        %p7088 = pneg %p270
      $region70: #{bottleneck_csp_forward.3} parent=67 // pred_check_branch
        %7090 = sbr.rel (%p7088) target = $region72
      $region71: #{bottleneck_csp_forward.3} parent=67 // pred_region
        %p7091 = scmp.lt.s32.totalorder %s22, 1
        %s7092 = scalar_select %p7091, %s22, 1
        %s7093 = smul.addr %s7092, 32
        %s7094 = smul.addr %s7093, 8
        %s7095 = scalar_lea.vmem %s10, %s7094
      $region72: #{bottleneck_csp_forward.3} parent=67 // pred_fallthru
        _
    $region68: #{bottleneck_csp_forward.3} parent=5 // pred_fallthru
      _
  $region6: #{bottleneck_csp_forward.3} parent=0 // loop_footer
    %s20 = sadd.s32 1, %s16
  $region7: #{bottleneck_csp_forward.3} parent=0 // loop_footer_branch
    %15 = sbr.rel target = $region3
  $region8: #{bottleneck_csp_forward.3} parent=0 // loop_exit
    _

</llo_original>
